<compile_context>
chip_gen: v7x
topology: tpu7x:2x2x1
jax: 0.10.0
libtpu: 0.0.40
codegen_flags: <defaults>
</compile_context>

<pallas_src>
import functools

import jax
import jax.numpy as jnp
from jax import lax
from jax.experimental import pallas as pl
from jax.experimental.pallas import tpu as pltpu

_PROJ_CFG = {2: (6, 2, 2), 4: (8, 4, 2), 8: (12, 8, 2), 16: (20, 16, 2)}  # k, s, p

_MAX_TILE_ROWS = 1024              # rows per grid step for large problems
# Per-step VMEM at TR=1024 is only a few MiB double-buffered; 32 MiB is safe
# headroom on every generation (v7x physical VMEM is 64 MiB per TensorCore).
_VMEM_LIMIT = 32 * 1024 * 1024


def _round_up(x, m):
    return (x + m - 1) // m * m


def _pick_tile_rows(rows):
    """Largest row tile <= 1024 that keeps the grid exact and rows%8==0."""
    if rows <= _MAX_TILE_ROWS:
        return _round_up(max(rows, 8), 8)
    return _MAX_TILE_ROWS


def _make_gemm_epilogue_kernel(res_sign):
    """(TR, D) x (D, C) MXU dot + bias + PReLU (+/- fused residual)."""
    if res_sign == 0:
        def kernel(lhs_ref, w_ref, b_ref, a_ref, o_ref):
            acc = jnp.dot(lhs_ref[...], w_ref[...],
                          preferred_element_type=jnp.float32)
            y = acc + b_ref[...]
            y = jnp.where(y >= 0.0, y, a_ref[...] * y)
            o_ref[...] = y.astype(o_ref.dtype)
    else:
        def kernel(lhs_ref, w_ref, b_ref, a_ref, res_ref, o_ref):
            acc = jnp.dot(lhs_ref[...], w_ref[...],
                          preferred_element_type=jnp.float32)
            y = acc + b_ref[...]
            y = jnp.where(y >= 0.0, y, a_ref[...] * y)
            r = res_ref[...].astype(jnp.float32)
            y = y + r if res_sign == 1 else y - r
            o_ref[...] = y.astype(o_ref.dtype)
    return kernel


def _fused_gemm_bias_prelu(lhs, w, b, alpha, res=None, res_sign=0):
    """Batched row-tiled GEMM: prelu(lhs @ w + b) (+/- res), in one pallas_call.

    lhs: (P, R, D) bf16    w: (P, D, C) bf16    b, alpha: (C,)
    res: (P, R, C) bf16 or None.  Returns (P, R, C) bf16.
    No lane/depth padding: block last dims equal the full array dims.
    """
    P, R, D = lhs.shape
    C = w.shape[-1]
    TR = _pick_tile_rows(R)
    Rp = _round_up(R, TR)
    if Rp != R:
        lhs = jnp.pad(lhs, ((0, 0), (0, Rp - R), (0, 0)))
        if res is not None:
            res = jnp.pad(res, ((0, 0), (0, Rp - R), (0, 0)))

    b2 = b.reshape(1, C).astype(jnp.float32)
    a2 = alpha.reshape(1, C).astype(jnp.float32)

    inputs = [lhs, w, b2, a2]
    in_specs = [
        pl.BlockSpec((None, TR, D), lambda p, i: (p, i, 0)),
        pl.BlockSpec((None, D, C), lambda p, i: (p, 0, 0)),
        pl.BlockSpec((1, C), lambda p, i: (0, 0)),
        pl.BlockSpec((1, C), lambda p, i: (0, 0)),
    ]
    if res_sign != 0:
        inputs.append(res)
        in_specs.append(pl.BlockSpec((None, TR, C), lambda p, i: (p, i, 0)))

    out = pl.pallas_call(
        _make_gemm_epilogue_kernel(res_sign),
        out_shape=jax.ShapeDtypeStruct((P, Rp, C), jnp.bfloat16),
        grid=(P, Rp // TR),
        in_specs=in_specs,
        out_specs=pl.BlockSpec((None, TR, C), lambda p, i: (p, i, 0)),
        compiler_params=pltpu.CompilerParams(
            dimension_semantics=("parallel", "parallel"),
            vmem_limit_bytes=_VMEM_LIMIT,
            allow_input_fusion=[True] * len(inputs)),
    )(*inputs)
    if Rp != R:
        out = out[:, :R, :]
    return out


def _conv2d_prelu(x, w, b, alpha, K, S, P, res=None, res_sign=0):
    """NHWC Conv2d(stride=S, padding=P) + bias + PReLU (+/- residual)."""
    N, H, W, Cin = x.shape
    Cout = w.shape[-1]
    xb = x.astype(jnp.bfloat16)
    xp = jnp.pad(xb, ((0, 0), (P, P), (P, P), (0, 0)))
    Hp, Wp = H + 2 * P, W + 2 * P
    Ho = (Hp - K) // S + 1
    Wo = (Wp - K) // S + 1
    cols = []
    for kh in range(K):
        for kw in range(K):
            cols.append(xp[:, kh:kh + (Ho - 1) * S + 1:S,
                           kw:kw + (Wo - 1) * S + 1:S, :])
    lhs = jnp.concatenate(cols, axis=-1).reshape(1, N * Ho * Wo, K * K * Cin)
    wmat = w.reshape(1, K * K * Cin, Cout).astype(jnp.bfloat16)
    r = None
    if res_sign != 0:
        r = res.astype(jnp.bfloat16).reshape(1, N * Ho * Wo, Cout)
    y = _fused_gemm_bias_prelu(lhs, wmat, b, alpha, res=r, res_sign=res_sign)
    return y.reshape(N, Ho, Wo, Cout)


def _conv_transpose2d_prelu(x, w_eq, b, alpha, K, S, P, res=None, res_sign=0):
    """ConvTranspose2d(stride=S, padding=P) + bias + PReLU (+/- residual).

    Sub-pixel decomposition: for each output parity (rh, rw) only the kernel
    taps that hit a real (non-inserted-zero) input contribute, giving S*S
    small dense GEMMs.  All S*S parity GEMMs are stacked (tap depth padded to
    a common max when parities differ) and run in ONE batched pallas_call;
    results are interleaved into the full output in the wrapper.
    `w_eq` is the transpose-conv weight in equivalent-conv (K,K,Cin,Cout)
    layout (spatially flipped vs. torch's tensor).
    """
    N, H, W, Cin = x.shape
    Cout = w_eq.shape[-1]
    Ppad = K - 1 - P
    Ho = (H - 1) * S + K - 2 * P
    Wo = (W - 1) * S + K - 2 * P
    assert Ho == S * H and Wo == S * W  # holds for every _PROJ_CFG entry

    xb = x.astype(jnp.bfloat16)
    w_bf = w_eq.astype(jnp.bfloat16)

    lhs_list, w_list, res_list = [], [], []
    for rh in range(S):
        taps_h = [(kh, (rh + kh - Ppad) // S)
                  for kh in range(K) if (rh + kh - Ppad) % S == 0]
        for rw in range(S):
            taps_w = [(kw, (rw + kw - Ppad) // S)
                      for kw in range(K) if (rw + kw - Ppad) % S == 0]
            th = [t for _, t in taps_h]
            tw = [t for _, t in taps_w]
            ph_lo, ph_hi = max(0, -min(th)), max(0, max(th))
            pw_lo, pw_hi = max(0, -min(tw)), max(0, max(tw))
            xpad = jnp.pad(xb, ((0, 0), (ph_lo, ph_hi), (pw_lo, pw_hi), (0, 0)))
            cols, wrows = [], []
            for kh, t_h in taps_h:
                for kw, t_w in taps_w:
                    cols.append(xpad[:, t_h + ph_lo:t_h + ph_lo + H,
                                     t_w + pw_lo:t_w + pw_lo + W, :])
                    wrows.append(w_bf[kh, kw])  # (Cin, Cout)
            lhs_list.append(jnp.concatenate(cols, axis=-1).reshape(
                N * H * W, len(cols) * Cin))
            w_list.append(jnp.concatenate(wrows, axis=0))
            if res_sign != 0:
                res_list.append(res[:, rh::S, rw::S, :].astype(
                    jnp.bfloat16).reshape(N * H * W, Cout))

    # Uniform tap depth across parities so one batched pallas_call covers all.
    dmax = max(a.shape[-1] for a in lhs_list)
    lhs_list = [a if a.shape[-1] == dmax
                else jnp.pad(a, ((0, 0), (0, dmax - a.shape[-1])))
                for a in lhs_list]
    w_list = [m if m.shape[0] == dmax
              else jnp.pad(m, ((0, dmax - m.shape[0]), (0, 0)))
              for m in w_list]

    lhs = jnp.stack(lhs_list, axis=0)           # (S*S, N*H*W, dmax)
    wstack = jnp.stack(w_list, axis=0)          # (S*S, dmax, Cout)
    r = jnp.stack(res_list, axis=0) if res_sign != 0 else None

    y = _fused_gemm_bias_prelu(lhs, wstack, b, alpha, res=r, res_sign=res_sign)
    y = y.reshape(S, S, N, H, W, Cout)
    out = jnp.transpose(y, (2, 3, 0, 4, 1, 5))  # (N, H, S, W, S, Cout)
    return out.reshape(N, Ho, Wo, Cout)


def _projection(x, w, b, alpha, scale, up, res=None, res_sign=0):
    K, S, P = _PROJ_CFG[scale]
    if up:
        return _conv_transpose2d_prelu(x, w, b, alpha, K, S, P, res, res_sign)
    return _conv2d_prelu(x, w, b, alpha, K, S, P, res, res_sign)


def init_dense_projection_params(key, in_channels, nr, scale):
    """Deterministic synthetic parameters (shapes follow the torch __init__).

    NOTE: w1/w3 are transpose-conv weights stored directly in equivalent-conv
    (K,K,Cin,Cout) layout; real torch ConvTranspose2d weights would need a
    spatial flip + Cin/Cout transpose before use.
    """
    K = _PROJ_CFG[scale][0]
    ks = jax.random.split(key, 8)
    w = lambda k, s: 0.05 * jax.random.normal(k, s, jnp.float32)
    prelu_a = jnp.full((nr,), 0.25, jnp.float32)  # torch PReLU default init
    return {
        # bottleneck: Conv2d(in_channels, nr, 1) + PReLU(nr)
        "w0": w(ks[0], (1, 1, in_channels, nr)), "b0": w(ks[1], (nr,)), "a0": prelu_a,
        # conv_1: projection_conv(nr, nr, scale, up=True) + PReLU(nr)
        "w1": w(ks[2], (K, K, nr, nr)), "b1": w(ks[3], (nr,)), "a1": prelu_a,
        # conv_2: projection_conv(nr, nr, scale, up=False) + PReLU(nr)
        "w2": w(ks[4], (K, K, nr, nr)), "b2": w(ks[5], (nr,)), "a2": prelu_a,
        # conv_3: projection_conv(nr, nr, scale, up=True) + PReLU(nr)
        "w3": w(ks[6], (K, K, nr, nr)), "b3": w(ks[7], (nr,)), "a3": prelu_a,
    }


@functools.partial(jax.jit, static_argnames=("scale", "up"))
def dense_projection_forward(x_nchw, params, scale=2, up=True):
    x = jnp.transpose(x_nchw, (0, 2, 3, 1)).astype(jnp.float32)  # NCHW -> NHWC
    N, H, W, Cin = x.shape
    nr = params["b0"].shape[0]

    # bottleneck: 1x1 conv + PReLU  (plain fused GEMM, P=1 batch)
    xb = _fused_gemm_bias_prelu(
        x.astype(jnp.bfloat16).reshape(1, N * H * W, Cin),
        params["w0"].reshape(1, Cin, nr).astype(jnp.bfloat16),
        params["b0"], params["a0"]).reshape(N, H, W, nr)
    # a_0 = conv_1(xb)
    a0 = _projection(xb, params["w1"], params["b1"], params["a1"], scale, up)
    # e = conv_2(a_0) - xb   (subtract fused into the GEMM epilogue)
    e = _projection(a0, params["w2"], params["b2"], params["a2"], scale,
                    not up, res=xb, res_sign=-1)
    # out = conv_3(e) + a_0  (add fused into the GEMM epilogue)
    out = _projection(e, params["w3"], params["b3"], params["a3"], scale, up,
                      res=a0, res_sign=1)
    return jnp.transpose(out.astype(jnp.float32), (0, 3, 1, 2))  # NHWC -> NCHW


def _ref_forward_nchw(x_nchw, params, scale, up):
    """Pure-JAX (lax.conv) reference with identical weight conventions."""
    K, S, P = _PROJ_CFG[scale]
    dn = ("NHWC", "HWIO", "NHWC")
    x = jnp.transpose(x_nchw, (0, 2, 3, 1)).astype(jnp.float32)

    def prelu(y, a):
        return jnp.where(y >= 0, y, a.reshape(1, 1, 1, -1) * y)

    def conv(v, w, b, stride, pad):
        y = lax.conv_general_dilated(v, w, (stride, stride),
                                     [(pad, pad)] * 2, dimension_numbers=dn)
        return y + b.reshape(1, 1, 1, -1)

    def convT(v, w, b):
        y = lax.conv_general_dilated(v, w, (1, 1),
                                     [(K - 1 - P, K - 1 - P)] * 2,
                                     lhs_dilation=(S, S), dimension_numbers=dn)
        return y + b.reshape(1, 1, 1, -1)

    def proj(v, w, b, a, up_flag):
        y = convT(v, w, b) if up_flag else conv(v, w, b, S, P)
        return prelu(y, a)

    xb = prelu(conv(x, params["w0"], params["b0"], 1, 0), params["a0"])
    a0 = proj(xb, params["w1"], params["b1"], params["a1"], up)
    e = proj(a0, params["w2"], params["b2"], params["a2"], not up) - xb
    out = proj(e, params["w3"], params["b3"], params["a3"], up) + a0
    return jnp.transpose(out, (0, 3, 1, 2))


if __name__ == "__main__":
    key = jax.random.PRNGKey(0)
    kx, kp = jax.random.split(key)
    N, C, H, W = 2, 4, 16, 16
    nr, scale = 8, 2

    x = jax.random.normal(kx, (N, C, H, W), jnp.float32)
    params = init_dense_projection_params(kp, C, nr, scale)

    out = dense_projection_forward(x, params, scale=scale, up=True)
    out = jax.block_until_ready(out)

    assert out.shape == (N, nr, H * scale, W * scale), out.shape
    assert bool(jnp.all(jnp.isfinite(out)))

    # numerical check vs. a pure-JAX reference (bf16 activations/MXU tolerance)
    ref = _ref_forward_nchw(x, params, scale, True)
    err = float(jnp.max(jnp.abs(out - ref)))
    tol = 7e-2 * (1.0 + float(jnp.max(jnp.abs(ref))))
    assert err < tol, (err, tol)
    print("KERNEL_OK")
</pallas_src>

<mosaic_0001>
module attributes {stable_mosaic.version = 11 : i64} {
  func.func @kernel(%arg0: i32, %arg1: i32, %arg2: memref<1x512x4xbf16, #tpu.memory_space<vmem>>, %arg3: memref<1x4x8xbf16, #tpu.memory_space<vmem>>, %arg4: memref<1x8xf32, #tpu.memory_space<vmem>>, %arg5: memref<1x8xf32, #tpu.memory_space<vmem>>, %arg6: memref<1x512x8xbf16, #tpu.memory_space<vmem>>) attributes {dimension_semantics = [#tpu.dimension_semantics<parallel>, #tpu.dimension_semantics<parallel>], iteration_bounds = array<i64: 1, 1>, scalar_prefetch = 0 : i64, scratch_operands = 0 : i64, tpu.core_type = #tpu.core_type<tc>, window_params = [{transform_indices = @transform_0, window_bounds = array<i64: 1, 512, 4>}, {transform_indices = @transform_1, window_bounds = array<i64: 1, 4, 8>}, {pipeline_mode = #tpu.pipeline_mode<synchronous>, transform_indices = @transform_2, window_bounds = array<i64: 1, 8>}, {pipeline_mode = #tpu.pipeline_mode<synchronous>, transform_indices = @transform_3, window_bounds = array<i64: 1, 8>}, {transform_indices = @transform_4, window_bounds = array<i64: 1, 512, 8>}]} {
    %c0 = arith.constant 0 : index
    %c0_0 = arith.constant 0 : index
    %c0_1 = arith.constant 0 : index
    %0 = vector.load %arg2[%c0, %c0_0, %c0_1] : memref<1x512x4xbf16, #tpu.memory_space<vmem>>, vector<1x512x4xbf16>
    %1 = vector.shape_cast %0 : vector<1x512x4xbf16> to vector<512x4xbf16>
    %c0_2 = arith.constant 0 : index
    %c0_3 = arith.constant 0 : index
    %c0_4 = arith.constant 0 : index
    %2 = vector.load %arg3[%c0_2, %c0_3, %c0_4] : memref<1x4x8xbf16, #tpu.memory_space<vmem>>, vector<1x4x8xbf16>
    %3 = vector.shape_cast %2 : vector<1x4x8xbf16> to vector<4x8xbf16>
    %cst = arith.constant dense<0.000000e+00> : vector<512x8xf32>
    %4 = tpu.matmul %1, %3, %cst {dimension_numbers = #tpu.dot_dimension_numbers<[1], [0], [0], [1], [0, 0, 1, 1], [], []>} : vector<512x4xbf16>, vector<4x8xbf16>, vector<512x8xf32> -> vector<512x8xf32>
    %c0_5 = arith.constant 0 : index
    %c0_6 = arith.constant 0 : index
    %5 = vector.load %arg4[%c0_5, %c0_6] : memref<1x8xf32, #tpu.memory_space<vmem>>, vector<1x8xf32>
    %6 = vector.broadcast %5 : vector<1x8xf32> to vector<512x8xf32>
    %7 = arith.addf %4, %6 : vector<512x8xf32>
    %cst_7 = arith.constant 0.000000e+00 : f32
    %8 = vector.broadcast %cst_7 : f32 to vector<512x8xf32>
    %9 = arith.cmpf oge, %7, %8 : vector<512x8xf32>
    %c0_8 = arith.constant 0 : index
    %c0_9 = arith.constant 0 : index
    %10 = vector.load %arg5[%c0_8, %c0_9] : memref<1x8xf32, #tpu.memory_space<vmem>>, vector<1x8xf32>
    %11 = vector.broadcast %10 : vector<1x8xf32> to vector<512x8xf32>
    %12 = arith.mulf %11, %7 : vector<512x8xf32>
    %13 = arith.select %9, %7, %12 : vector<512x8xi1>, vector<512x8xf32>
    %14 = arith.truncf %13 : vector<512x8xf32> to vector<512x8xbf16>
    %c0_10 = arith.constant 0 : index
    %c0_11 = arith.constant 0 : index
    %c0_12 = arith.constant 0 : index
    %15 = vector.load %arg6[%c0_10, %c0_11, %c0_12] : memref<1x512x8xbf16, #tpu.memory_space<vmem>>, vector<1x512x8xbf16>
    %16 = vector.shape_cast %15 : vector<1x512x8xbf16> to vector<512x8xbf16>
    %17 = vector.shape_cast %14 : vector<512x8xbf16> to vector<1x512x8xbf16>
    tpu.vector_store %arg6[%c0_10, %c0_11, %c0_12], %17 {strides = array<i32>} : memref<1x512x8xbf16, #tpu.memory_space<vmem>>, vector<1x512x8xbf16>,
    return
  }
  func.func @transform_0(%arg0: i32, %arg1: i32) -> (i32, i32, i32) {
    %c0_i32 = arith.constant 0 : i32
    %c0_i32_0 = arith.constant 0 : i32
    return %arg0, %arg1, %c0_i32 : i32, i32, i32
  }
  func.func @transform_1(%arg0: i32, %arg1: i32) -> (i32, i32, i32) {
    %c0_i32 = arith.constant 0 : i32
    %c0_i32_0 = arith.constant 0 : i32
    %c0_i32_1 = arith.constant 0 : i32
    return %arg0, %c0_i32, %c0_i32_0 : i32, i32, i32
  }
  func.func @transform_2(%arg0: i32, %arg1: i32) -> (i32, i32) {
    %c0_i32 = arith.constant 0 : i32
    %c0_i32_0 = arith.constant 0 : i32
    %c0_i32_1 = arith.constant 0 : i32
    return %c0_i32, %c0_i32_0 : i32, i32
  }
  func.func @transform_3(%arg0: i32, %arg1: i32) -> (i32, i32) {
    %c0_i32 = arith.constant 0 : i32
    %c0_i32_0 = arith.constant 0 : i32
    %c0_i32_1 = arith.constant 0 : i32
    return %c0_i32, %c0_i32_0 : i32, i32
  }
  func.func @transform_4(%arg0: i32, %arg1: i32) -> (i32, i32, i32) {
    %c0_i32 = arith.constant 0 : i32
    %c0_i32_0 = arith.constant 0 : i32
    return %arg0, %arg1, %c0_i32 : i32, i32, i32
  }
}

module attributes {stable_mosaic.version = 11 : i64} {
  func.func @kernel(%arg0: i32, %arg1: i32, %arg2: memref<1x512x72xbf16, #tpu.memory_space<vmem>>, %arg3: memref<1x72x8xbf16, #tpu.memory_space<vmem>>, %arg4: memref<1x8xf32, #tpu.memory_space<vmem>>, %arg5: memref<1x8xf32, #tpu.memory_space<vmem>>, %arg6: memref<1x512x8xbf16, #tpu.memory_space<vmem>>) attributes {dimension_semantics = [#tpu.dimension_semantics<parallel>, #tpu.dimension_semantics<parallel>], iteration_bounds = array<i64: 4, 1>, scalar_prefetch = 0 : i64, scratch_operands = 0 : i64, tpu.core_type = #tpu.core_type<tc>, window_params = [{transform_indices = @transform_0, window_bounds = array<i64: 1, 512, 72>}, {transform_indices = @transform_1, window_bounds = array<i64: 1, 72, 8>}, {pipeline_mode = #tpu.pipeline_mode<synchronous>, transform_indices = @transform_2, window_bounds = array<i64: 1, 8>}, {pipeline_mode = #tpu.pipeline_mode<synchronous>, transform_indices = @transform_3, window_bounds = array<i64: 1, 8>}, {transform_indices = @transform_4, window_bounds = array<i64: 1, 512, 8>}]} {
    %c0 = arith.constant 0 : index
    %c0_0 = arith.constant 0 : index
    %c0_1 = arith.constant 0 : index
    %0 = vector.load %arg2[%c0, %c0_0, %c0_1] : memref<1x512x72xbf16, #tpu.memory_space<vmem>>, vector<1x512x72xbf16>
    %1 = vector.shape_cast %0 : vector<1x512x72xbf16> to vector<512x72xbf16>
    %c0_2 = arith.constant 0 : index
    %c0_3 = arith.constant 0 : index
    %c0_4 = arith.constant 0 : index
    %2 = vector.load %arg3[%c0_2, %c0_3, %c0_4] : memref<1x72x8xbf16, #tpu.memory_space<vmem>>, vector<1x72x8xbf16>
    %3 = vector.shape_cast %2 : vector<1x72x8xbf16> to vector<72x8xbf16>
    %cst = arith.constant dense<0.000000e+00> : vector<512x8xf32>
    %4 = tpu.matmul %1, %3, %cst {dimension_numbers = #tpu.dot_dimension_numbers<[1], [0], [0], [1], [0, 0, 1, 1], [], []>} : vector<512x72xbf16>, vector<72x8xbf16>, vector<512x8xf32> -> vector<512x8xf32>
    %c0_5 = arith.constant 0 : index
    %c0_6 = arith.constant 0 : index
    %5 = vector.load %arg4[%c0_5, %c0_6] : memref<1x8xf32, #tpu.memory_space<vmem>>, vector<1x8xf32>
    %6 = vector.broadcast %5 : vector<1x8xf32> to vector<512x8xf32>
    %7 = arith.addf %4, %6 : vector<512x8xf32>
    %cst_7 = arith.constant 0.000000e+00 : f32
    %8 = vector.broadcast %cst_7 : f32 to vector<512x8xf32>
    %9 = arith.cmpf oge, %7, %8 : vector<512x8xf32>
    %c0_8 = arith.constant 0 : index
    %c0_9 = arith.constant 0 : index
    %10 = vector.load %arg5[%c0_8, %c0_9] : memref<1x8xf32, #tpu.memory_space<vmem>>, vector<1x8xf32>
    %11 = vector.broadcast %10 : vector<1x8xf32> to vector<512x8xf32>
    %12 = arith.mulf %11, %7 : vector<512x8xf32>
    %13 = arith.select %9, %7, %12 : vector<512x8xi1>, vector<512x8xf32>
    %14 = arith.truncf %13 : vector<512x8xf32> to vector<512x8xbf16>
    %c0_10 = arith.constant 0 : index
    %c0_11 = arith.constant 0 : index
    %c0_12 = arith.constant 0 : index
    %15 = vector.load %arg6[%c0_10, %c0_11, %c0_12] : memref<1x512x8xbf16, #tpu.memory_space<vmem>>, vector<1x512x8xbf16>
    %16 = vector.shape_cast %15 : vector<1x512x8xbf16> to vector<512x8xbf16>
    %17 = vector.shape_cast %14 : vector<512x8xbf16> to vector<1x512x8xbf16>
    tpu.vector_store %arg6[%c0_10, %c0_11, %c0_12], %17 {strides = array<i32>} : memref<1x512x8xbf16, #tpu.memory_space<vmem>>, vector<1x512x8xbf16>,
    return
  }
  func.func @transform_0(%arg0: i32, %arg1: i32) -> (i32, i32, i32) {
    %c0_i32 = arith.constant 0 : i32
    %c0_i32_0 = arith.constant 0 : i32
    return %arg0, %arg1, %c0_i32 : i32, i32, i32
  }
  func.func @transform_1(%arg0: i32, %arg1: i32) -> (i32, i32, i32) {
    %c0_i32 = arith.constant 0 : i32
    %c0_i32_0 = arith.constant 0 : i32
    %c0_i32_1 = arith.constant 0 : i32
    return %arg0, %c0_i32, %c0_i32_0 : i32, i32, i32
  }
  func.func @transform_2(%arg0: i32, %arg1: i32) -> (i32, i32) {
    %c0_i32 = arith.constant 0 : i32
    %c0_i32_0 = arith.constant 0 : i32
    %c0_i32_1 = arith.constant 0 : i32
    return %c0_i32, %c0_i32_0 : i32, i32
  }
  func.func @transform_3(%arg0: i32, %arg1: i32) -> (i32, i32) {
    %c0_i32 = arith.constant 0 : i32
    %c0_i32_0 = arith.constant 0 : i32
    %c0_i32_1 = arith.constant 0 : i32
    return %c0_i32, %c0_i32_0 : i32, i32
  }
  func.func @transform_4(%arg0: i32, %arg1: i32) -> (i32, i32, i32) {
    %c0_i32 = arith.constant 0 : i32
    %c0_i32_0 = arith.constant 0 : i32
    return %arg0, %arg1, %c0_i32 : i32, i32, i32
  }
}

module attributes {stable_mosaic.version = 11 : i64} {
  func.func @kernel(%arg0: i32, %arg1: i32, %arg2: memref<1x512x288xbf16, #tpu.memory_space<vmem>>, %arg3: memref<1x288x8xbf16, #tpu.memory_space<vmem>>, %arg4: memref<1x8xf32, #tpu.memory_space<vmem>>, %arg5: memref<1x8xf32, #tpu.memory_space<vmem>>, %arg6: memref<1x512x8xbf16, #tpu.memory_space<vmem>>, %arg7: memref<1x512x8xbf16, #tpu.memory_space<vmem>>) attributes {dimension_semantics = [#tpu.dimension_semantics<parallel>, #tpu.dimension_semantics<parallel>], iteration_bounds = array<i64: 1, 1>, scalar_prefetch = 0 : i64, scratch_operands = 0 : i64, tpu.core_type = #tpu.core_type<tc>, window_params = [{transform_indices = @transform_0, window_bounds = array<i64: 1, 512, 288>}, {transform_indices = @transform_1, window_bounds = array<i64: 1, 288, 8>}, {pipeline_mode = #tpu.pipeline_mode<synchronous>, transform_indices = @transform_2, window_bounds = array<i64: 1, 8>}, {pipeline_mode = #tpu.pipeline_mode<synchronous>, transform_indices = @transform_3, window_bounds = array<i64: 1, 8>}, {transform_indices = @transform_4, window_bounds = array<i64: 1, 512, 8>}, {transform_indices = @transform_5, window_bounds = array<i64: 1, 512, 8>}]} {
    %c0 = arith.constant 0 : index
    %c0_0 = arith.constant 0 : index
    %c0_1 = arith.constant 0 : index
    %0 = vector.load %arg2[%c0, %c0_0, %c0_1] : memref<1x512x288xbf16, #tpu.memory_space<vmem>>, vector<1x512x288xbf16>
    %1 = vector.shape_cast %0 : vector<1x512x288xbf16> to vector<512x288xbf16>
    %c0_2 = arith.constant 0 : index
    %c0_3 = arith.constant 0 : index
    %c0_4 = arith.constant 0 : index
    %2 = vector.load %arg3[%c0_2, %c0_3, %c0_4] : memref<1x288x8xbf16, #tpu.memory_space<vmem>>, vector<1x288x8xbf16>
    %3 = vector.shape_cast %2 : vector<1x288x8xbf16> to vector<288x8xbf16>
    %cst = arith.constant dense<0.000000e+00> : vector<512x8xf32>
    %4 = tpu.matmul %1, %3, %cst {dimension_numbers = #tpu.dot_dimension_numbers<[1], [0], [0], [1], [0, 0, 1, 1], [], []>} : vector<512x288xbf16>, vector<288x8xbf16>, vector<512x8xf32> -> vector<512x8xf32>
    %c0_5 = arith.constant 0 : index
    %c0_6 = arith.constant 0 : index
    %5 = vector.load %arg4[%c0_5, %c0_6] : memref<1x8xf32, #tpu.memory_space<vmem>>, vector<1x8xf32>
    %6 = vector.broadcast %5 : vector<1x8xf32> to vector<512x8xf32>
    %7 = arith.addf %4, %6 : vector<512x8xf32>
    %cst_7 = arith.constant 0.000000e+00 : f32
    %8 = vector.broadcast %cst_7 : f32 to vector<512x8xf32>
    %9 = arith.cmpf oge, %7, %8 : vector<512x8xf32>
    %c0_8 = arith.constant 0 : index
    %c0_9 = arith.constant 0 : index
    %10 = vector.load %arg5[%c0_8, %c0_9] : memref<1x8xf32, #tpu.memory_space<vmem>>, vector<1x8xf32>
    %11 = vector.broadcast %10 : vector<1x8xf32> to vector<512x8xf32>
    %12 = arith.mulf %11, %7 : vector<512x8xf32>
    %13 = arith.select %9, %7, %12 : vector<512x8xi1>, vector<512x8xf32>
    %c0_10 = arith.constant 0 : index
    %c0_11 = arith.constant 0 : index
    %c0_12 = arith.constant 0 : index
    %14 = vector.load %arg6[%c0_10, %c0_11, %c0_12] : memref<1x512x8xbf16, #tpu.memory_space<vmem>>, vector<1x512x8xbf16>
    %15 = vector.shape_cast %14 : vector<1x512x8xbf16> to vector<512x8xbf16>
    %16 = arith.extf %15 : vector<512x8xbf16> to vector<512x8xf32>
    %17 = arith.subf %13, %16 : vector<512x8xf32>
    %18 = arith.truncf %17 : vector<512x8xf32> to vector<512x8xbf16>
    %c0_13 = arith.constant 0 : index
    %c0_14 = arith.constant 0 : index
    %c0_15 = arith.constant 0 : index
    %19 = vector.load %arg7[%c0_13, %c0_14, %c0_15] : memref<1x512x8xbf16, #tpu.memory_space<vmem>>, vector<1x512x8xbf16>
    %20 = vector.shape_cast %19 : vector<1x512x8xbf16> to vector<512x8xbf16>
    %21 = vector.shape_cast %18 : vector<512x8xbf16> to vector<1x512x8xbf16>
    tpu.vector_store %arg7[%c0_13, %c0_14, %c0_15], %21 {strides = array<i32>} : memref<1x512x8xbf16, #tpu.memory_space<vmem>>, vector<1x512x8xbf16>,
    return
  }
  func.func @transform_0(%arg0: i32, %arg1: i32) -> (i32, i32, i32) {
    %c0_i32 = arith.constant 0 : i32
    %c0_i32_0 = arith.constant 0 : i32
    return %arg0, %arg1, %c0_i32 : i32, i32, i32
  }
  func.func @transform_1(%arg0: i32, %arg1: i32) -> (i32, i32, i32) {
    %c0_i32 = arith.constant 0 : i32
    %c0_i32_0 = arith.constant 0 : i32
    %c0_i32_1 = arith.constant 0 : i32
    return %arg0, %c0_i32, %c0_i32_0 : i32, i32, i32
  }
  func.func @transform_2(%arg0: i32, %arg1: i32) -> (i32, i32) {
    %c0_i32 = arith.constant 0 : i32
    %c0_i32_0 = arith.constant 0 : i32
    %c0_i32_1 = arith.constant 0 : i32
    return %c0_i32, %c0_i32_0 : i32, i32
  }
  func.func @transform_3(%arg0: i32, %arg1: i32) -> (i32, i32) {
    %c0_i32 = arith.constant 0 : i32
    %c0_i32_0 = arith.constant 0 : i32
    %c0_i32_1 = arith.constant 0 : i32
    return %c0_i32, %c0_i32_0 : i32, i32
  }
  func.func @transform_4(%arg0: i32, %arg1: i32) -> (i32, i32, i32) {
    %c0_i32 = arith.constant 0 : i32
    %c0_i32_0 = arith.constant 0 : i32
    return %arg0, %arg1, %c0_i32 : i32, i32, i32
  }
  func.func @transform_5(%arg0: i32, %arg1: i32) -> (i32, i32, i32) {
    %c0_i32 = arith.constant 0 : i32
    %c0_i32_0 = arith.constant 0 : i32
    return %arg0, %arg1, %c0_i32 : i32, i32, i32
  }
}

module attributes {stable_mosaic.version = 11 : i64} {
  func.func @kernel(%arg0: i32, %arg1: i32, %arg2: memref<1x512x72xbf16, #tpu.memory_space<vmem>>, %arg3: memref<1x72x8xbf16, #tpu.memory_space<vmem>>, %arg4: memref<1x8xf32, #tpu.memory_space<vmem>>, %arg5: memref<1x8xf32, #tpu.memory_space<vmem>>, %arg6: memref<1x512x8xbf16, #tpu.memory_space<vmem>>, %arg7: memref<1x512x8xbf16, #tpu.memory_space<vmem>>) attributes {dimension_semantics = [#tpu.dimension_semantics<parallel>, #tpu.dimension_semantics<parallel>], iteration_bounds = array<i64: 4, 1>, scalar_prefetch = 0 : i64, scratch_operands = 0 : i64, tpu.core_type = #tpu.core_type<tc>, window_params = [{transform_indices = @transform_0, window_bounds = array<i64: 1, 512, 72>}, {transform_indices = @transform_1, window_bounds = array<i64: 1, 72, 8>}, {pipeline_mode = #tpu.pipeline_mode<synchronous>, transform_indices = @transform_2, window_bounds = array<i64: 1, 8>}, {pipeline_mode = #tpu.pipeline_mode<synchronous>, transform_indices = @transform_3, window_bounds = array<i64: 1, 8>}, {transform_indices = @transform_4, window_bounds = array<i64: 1, 512, 8>}, {transform_indices = @transform_5, window_bounds = array<i64: 1, 512, 8>}]} {
    %c0 = arith.constant 0 : index
    %c0_0 = arith.constant 0 : index
    %c0_1 = arith.constant 0 : index
    %0 = vector.load %arg2[%c0, %c0_0, %c0_1] : memref<1x512x72xbf16, #tpu.memory_space<vmem>>, vector<1x512x72xbf16>
    %1 = vector.shape_cast %0 : vector<1x512x72xbf16> to vector<512x72xbf16>
    %c0_2 = arith.constant 0 : index
    %c0_3 = arith.constant 0 : index
    %c0_4 = arith.constant 0 : index
    %2 = vector.load %arg3[%c0_2, %c0_3, %c0_4] : memref<1x72x8xbf16, #tpu.memory_space<vmem>>, vector<1x72x8xbf16>
    %3 = vector.shape_cast %2 : vector<1x72x8xbf16> to vector<72x8xbf16>
    %cst = arith.constant dense<0.000000e+00> : vector<512x8xf32>
    %4 = tpu.matmul %1, %3, %cst {dimension_numbers = #tpu.dot_dimension_numbers<[1], [0], [0], [1], [0, 0, 1, 1], [], []>} : vector<512x72xbf16>, vector<72x8xbf16>, vector<512x8xf32> -> vector<512x8xf32>
    %c0_5 = arith.constant 0 : index
    %c0_6 = arith.constant 0 : index
    %5 = vector.load %arg4[%c0_5, %c0_6] : memref<1x8xf32, #tpu.memory_space<vmem>>, vector<1x8xf32>
    %6 = vector.broadcast %5 : vector<1x8xf32> to vector<512x8xf32>
    %7 = arith.addf %4, %6 : vector<512x8xf32>
    %cst_7 = arith.constant 0.000000e+00 : f32
    %8 = vector.broadcast %cst_7 : f32 to vector<512x8xf32>
    %9 = arith.cmpf oge, %7, %8 : vector<512x8xf32>
    %c0_8 = arith.constant 0 : index
    %c0_9 = arith.constant 0 : index
    %10 = vector.load %arg5[%c0_8, %c0_9] : memref<1x8xf32, #tpu.memory_space<vmem>>, vector<1x8xf32>
    %11 = vector.broadcast %10 : vector<1x8xf32> to vector<512x8xf32>
    %12 = arith.mulf %11, %7 : vector<512x8xf32>
    %13 = arith.select %9, %7, %12 : vector<512x8xi1>, vector<512x8xf32>
    %c0_10 = arith.constant 0 : index
    %c0_11 = arith.constant 0 : index
    %c0_12 = arith.constant 0 : index
    %14 = vector.load %arg6[%c0_10, %c0_11, %c0_12] : memref<1x512x8xbf16, #tpu.memory_space<vmem>>, vector<1x512x8xbf16>
    %15 = vector.shape_cast %14 : vector<1x512x8xbf16> to vector<512x8xbf16>
    %16 = arith.extf %15 : vector<512x8xbf16> to vector<512x8xf32>
    %17 = arith.addf %13, %16 : vector<512x8xf32>
    %18 = arith.truncf %17 : vector<512x8xf32> to vector<512x8xbf16>
    %c0_13 = arith.constant 0 : index
    %c0_14 = arith.constant 0 : index
    %c0_15 = arith.constant 0 : index
    %19 = vector.load %arg7[%c0_13, %c0_14, %c0_15] : memref<1x512x8xbf16, #tpu.memory_space<vmem>>, vector<1x512x8xbf16>
    %20 = vector.shape_cast %19 : vector<1x512x8xbf16> to vector<512x8xbf16>
    %21 = vector.shape_cast %18 : vector<512x8xbf16> to vector<1x512x8xbf16>
    tpu.vector_store %arg7[%c0_13, %c0_14, %c0_15], %21 {strides = array<i32>} : memref<1x512x8xbf16, #tpu.memory_space<vmem>>, vector<1x512x8xbf16>,
    return
  }
  func.func @transform_0(%arg0: i32, %arg1: i32) -> (i32, i32, i32) {
    %c0_i32 = arith.constant 0 : i32
    %c0_i32_0 = arith.constant 0 : i32
    return %arg0, %arg1, %c0_i32 : i32, i32, i32
  }
  func.func @transform_1(%arg0: i32, %arg1: i32) -> (i32, i32, i32) {
    %c0_i32 = arith.constant 0 : i32
    %c0_i32_0 = arith.constant 0 : i32
    %c0_i32_1 = arith.constant 0 : i32
    return %arg0, %c0_i32, %c0_i32_0 : i32, i32, i32
  }
  func.func @transform_2(%arg0: i32, %arg1: i32) -> (i32, i32) {
    %c0_i32 = arith.constant 0 : i32
    %c0_i32_0 = arith.constant 0 : i32
    %c0_i32_1 = arith.constant 0 : i32
    return %c0_i32, %c0_i32_0 : i32, i32
  }
  func.func @transform_3(%arg0: i32, %arg1: i32) -> (i32, i32) {
    %c0_i32 = arith.constant 0 : i32
    %c0_i32_0 = arith.constant 0 : i32
    %c0_i32_1 = arith.constant 0 : i32
    return %c0_i32, %c0_i32_0 : i32, i32
  }
  func.func @transform_4(%arg0: i32, %arg1: i32) -> (i32, i32, i32) {
    %c0_i32 = arith.constant 0 : i32
    %c0_i32_0 = arith.constant 0 : i32
    return %arg0, %arg1, %c0_i32 : i32, i32, i32
  }
  func.func @transform_5(%arg0: i32, %arg1: i32) -> (i32, i32, i32) {
    %c0_i32 = arith.constant 0 : i32
    %c0_i32_0 = arith.constant 0 : i32
    return %arg0, %arg1, %c0_i32 : i32, i32, i32
  }
}

</mosaic_0001>

<llo_original>
// kernel: dense_projection_forward.10
$region0: #{dense_projection_forward.10}
  #allocation0 [shape = 'u32[]', space=smem, size = 0x4, offset = 0x4, fixed_abs, tag = 'smem constant byte address 0x4 - core index']
  #allocation1 [shape = 'u32[144,128]{1,0:T(1,128)}', space=vmem, size = 0x12000, scoped, tag = 'internal scratch']
  %s0 = inlined_call_operand.vmem [shape: bf16[1,512,4], index: 0, kind: input, shape index: {}]
  %s1 = inlined_call_operand.vmem [shape: f32[1,1,4,8], index: 1, kind: input, shape index: {}]
  %s2 = inlined_call_operand.vmem [shape: f32[8], index: 2, kind: input, shape index: {}]
  %s3 = inlined_call_operand.vmem [shape: f32[8], index: 3, kind: input, shape index: {}]
  %s4 = inlined_call_operand.vmem [shape: bf16[1,512,8], index: 4, kind: output, shape index: {}]
  %s5 = sld [smem:[#allocation0]]
  $region26: #{dense_projection_forward.10} parent=0
    _
  %s7 = ssub.s32 1, %s5
  %s8 = scalar_select 0, %s7, %s5
  $region1: #{dense_projection_forward.10} parent=0
    #allocation2 [shape = 'u8[1024]{0}', space=vmem, size = 0x400, dematerialized = true, scoped, tag = 'FusionAdapter Buffer %fusion.5 = bf16[1,4,8]{2,1,0:T(4,128)(2,1)} fusion(%param_1.34), kind=kLoop, calls=%fused_computation.97.clone, metadata={op_name="jit(dense_projection_forward)/convert_element_type" stack_frame_id=9}']
    #allocation3 [shape = 'u8[512]{0}', space=vmem, size = 0x400, dematerialized = true, scoped, tag = 'FusionAdapter Buffer %fusion.15 = f32[1,8]{1,0:T(1,128)} fusion(%param_3.27), kind=kLoop, calls=%fused_computation.107.clone, metadata={op_name="jit(dense_projection_forward)/reshape" stack_frame_id=11}']
    #allocation4 [shape = 'u8[512]{0}', space=vmem, size = 0x400, dematerialized = true, scoped, tag = 'FusionAdapter Buffer %fusion.14 = f32[1,8]{1,0:T(1,128)} fusion(%param_2.22), kind=kLoop, calls=%fused_computation.106.clone, metadata={op_name="jit(dense_projection_forward)/reshape" stack_frame_id=12}']
    // Predicated region
    $region2: #{dense_projection_forward.10} parent=1 // pred_check
      _
    $region3: #{dense_projection_forward.10} parent=1 // pred_check_branch
      %10 = sbr.rel (0) target = $region5
    $region4: #{dense_projection_forward.10} parent=1 // pred_region
      _
    $region5: #{dense_projection_forward.10} parent=1 // pred_fallthru
      _
    // Predicated region
    $region6: #{dense_projection_forward.10} parent=1 // pred_check
      _
    $region7: #{dense_projection_forward.10} parent=1 // pred_check_branch
      %12 = sbr.rel (0) target = $region9
    $region8: #{dense_projection_forward.10} parent=1 // pred_region
      _
    $region9: #{dense_projection_forward.10} parent=1 // pred_fallthru
      _
    // Predicated region
    $region10: #{dense_projection_forward.10} parent=1 // pred_check
      _
    $region11: #{dense_projection_forward.10} parent=1 // pred_check_branch
      %14 = sbr.rel (0) target = $region13
    $region12: #{dense_projection_forward.10} parent=1 // pred_region
      _
    $region13: #{dense_projection_forward.10} parent=1 // pred_fallthru
      _
    // Predicated region
    $region14: #{dense_projection_forward.10} parent=1 // pred_check
      _
    $region15: #{dense_projection_forward.10} parent=1 // pred_check_branch
      %16 = sbr.rel (0) target = $region17
    $region16: #{dense_projection_forward.10} parent=1 // pred_region
      _
    $region17: #{dense_projection_forward.10} parent=1 // pred_fallthru
      _
    %v17 = vld [vmem:[%s1] sm:$0xf]
    %18 = xla_tuple %v17
    %19 = xla_tuple %18
    %20 = xla_tuple %v17
    %v21 = vpack.c.bf16 0.0, %v17
    %23 = vst [vmem:[#allocation2] sm:$0x3] %v21
    %v24 = vld [vmem:[%s3] sm:$0x1]
    %26 = vst [vmem:[#allocation3] sm:$0x1] %v24
    %v27 = vld [vmem:[%s2] sm:$0x1]
    %29 = vst [vmem:[#allocation4] sm:$0x1] %v27
    %v31 = vld [vmem:[%s0] sm:$0xf]
    %v32 = vld [vmem:[%s0 + $0x4] sm:$0xf]
    %v33 = vld [vmem:[%s0 + $0x8] sm:$0xf]
    %v34 = vld [vmem:[%s0 + $0xc] sm:$0xf]
    %v35 = vld [vmem:[%s0 + $0x10] sm:$0xf]
    %v36 = vld [vmem:[%s0 + $0x14] sm:$0xf]
    %v37 = vld [vmem:[%s0 + $0x18] sm:$0xf]
    %v38 = vld [vmem:[%s0 + $0x1c] sm:$0xf]
    %v39 = vld [vmem:[%s0 + $0x20] sm:$0xf]
    %v40 = vld [vmem:[%s0 + $0x24] sm:$0xf]
    %v41 = vld [vmem:[%s0 + $0x28] sm:$0xf]
    %v42 = vld [vmem:[%s0 + $0x2c] sm:$0xf]
    %v43 = vld [vmem:[%s0 + $0x30] sm:$0xf]
    %v44 = vld [vmem:[%s0 + $0x34] sm:$0xf]
    %v45 = vld [vmem:[%s0 + $0x38] sm:$0xf]
    %v46 = vld [vmem:[%s0 + $0x3c] sm:$0xf]
    %v47 = vld [vmem:[%s0 + $0x40] sm:$0xf]
    %v48 = vld [vmem:[%s0 + $0x44] sm:$0xf]
    %v49 = vld [vmem:[%s0 + $0x48] sm:$0xf]
    %v50 = vld [vmem:[%s0 + $0x4c] sm:$0xf]
    %v51 = vld [vmem:[%s0 + $0x50] sm:$0xf]
    %v52 = vld [vmem:[%s0 + $0x54] sm:$0xf]
    %v53 = vld [vmem:[%s0 + $0x58] sm:$0xf]
    %v54 = vld [vmem:[%s0 + $0x5c] sm:$0xf]
    %v55 = vld [vmem:[%s0 + $0x60] sm:$0xf]
    %v56 = vld [vmem:[%s0 + $0x64] sm:$0xf]
    %v57 = vld [vmem:[%s0 + $0x68] sm:$0xf]
    %v58 = vld [vmem:[%s0 + $0x6c] sm:$0xf]
    %v59 = vld [vmem:[%s0 + $0x70] sm:$0xf]
    %v60 = vld [vmem:[%s0 + $0x74] sm:$0xf]
    %v61 = vld [vmem:[%s0 + $0x78] sm:$0xf]
    %v62 = vld [vmem:[%s0 + $0x7c] sm:$0xf]
    %v63 = vld [vmem:[%s0 + $0x80] sm:$0xf]
    %v64 = vld [vmem:[%s0 + $0x84] sm:$0xf]
    %v65 = vld [vmem:[%s0 + $0x88] sm:$0xf]
    %v66 = vld [vmem:[%s0 + $0x8c] sm:$0xf]
    %v67 = vld [vmem:[%s0 + $0x90] sm:$0xf]
    %v68 = vld [vmem:[%s0 + $0x94] sm:$0xf]
    %v69 = vld [vmem:[%s0 + $0x98] sm:$0xf]
    %v70 = vld [vmem:[%s0 + $0x9c] sm:$0xf]
    %v71 = vld [vmem:[%s0 + $0xa0] sm:$0xf]
    %v72 = vld [vmem:[%s0 + $0xa4] sm:$0xf]
    %v73 = vld [vmem:[%s0 + $0xa8] sm:$0xf]
    %v74 = vld [vmem:[%s0 + $0xac] sm:$0xf]
    %v75 = vld [vmem:[%s0 + $0xb0] sm:$0xf]
    %v76 = vld [vmem:[%s0 + $0xb4] sm:$0xf]
    %v77 = vld [vmem:[%s0 + $0xb8] sm:$0xf]
    %v78 = vld [vmem:[%s0 + $0xbc] sm:$0xf]
    %v79 = vld [vmem:[%s0 + $0xc0] sm:$0xf]
    %v80 = vld [vmem:[%s0 + $0xc4] sm:$0xf]
    %v81 = vld [vmem:[%s0 + $0xc8] sm:$0xf]
    %v82 = vld [vmem:[%s0 + $0xcc] sm:$0xf]
    %v83 = vld [vmem:[%s0 + $0xd0] sm:$0xf]
    %v84 = vld [vmem:[%s0 + $0xd4] sm:$0xf]
    %v85 = vld [vmem:[%s0 + $0xd8] sm:$0xf]
    %v86 = vld [vmem:[%s0 + $0xdc] sm:$0xf]
    %v87 = vld [vmem:[%s0 + $0xe0] sm:$0xf]
    %v88 = vld [vmem:[%s0 + $0xe4] sm:$0xf]
    %v89 = vld [vmem:[%s0 + $0xe8] sm:$0xf]
    %v90 = vld [vmem:[%s0 + $0xec] sm:$0xf]
    %v91 = vld [vmem:[%s0 + $0xf0] sm:$0xf]
    %v92 = vld [vmem:[%s0 + $0xf4] sm:$0xf]
    %v93 = vld [vmem:[%s0 + $0xf8] sm:$0xf]
    %v94 = vld [vmem:[%s0 + $0xfc] sm:$0xf]
    %v95 = vld [vmem:[#allocation2] sm:$0x3]
    %v96 = vld [vmem:[#allocation3] sm:$0x1]
    %v98 = vlaneseq
    %v99 = vshrl.u32 %v98, 7
    %v100 = vsub.s32 0, %v99
    %v101 = vrot.slane %v96, %v100
    %v167 = vunpack.c.l.b16 %v31
    %v168 = vunpack.c.l.b16 %v32
    %v169 = vunpack.c.l.b16 %v33
    %v170 = vunpack.c.l.b16 %v34
    %v171 = vunpack.c.l.b16 %v35
    %v172 = vunpack.c.l.b16 %v36
    %v173 = vunpack.c.l.b16 %v37
    %v174 = vunpack.c.l.b16 %v38
    %v175 = vunpack.c.l.b16 %v39
    %v176 = vunpack.c.l.b16 %v40
    %v177 = vunpack.c.l.b16 %v41
    %v178 = vunpack.c.l.b16 %v42
    %v179 = vunpack.c.l.b16 %v43
    %v180 = vunpack.c.l.b16 %v44
    %v181 = vunpack.c.l.b16 %v45
    %v182 = vunpack.c.l.b16 %v46
    %v183 = vunpack.c.l.b16 %v47
    %v184 = vunpack.c.l.b16 %v48
    %v185 = vunpack.c.l.b16 %v49
    %v186 = vunpack.c.l.b16 %v50
    %v187 = vunpack.c.l.b16 %v51
    %v188 = vunpack.c.l.b16 %v52
    %v189 = vunpack.c.l.b16 %v53
    %v190 = vunpack.c.l.b16 %v54
    %v191 = vunpack.c.l.b16 %v55
    %v192 = vunpack.c.l.b16 %v56
    %v193 = vunpack.c.l.b16 %v57
    %v194 = vunpack.c.l.b16 %v58
    %v195 = vunpack.c.l.b16 %v59
    %v196 = vunpack.c.l.b16 %v60
    %v197 = vunpack.c.l.b16 %v61
    %v198 = vunpack.c.l.b16 %v62
    %v199 = vunpack.c.l.b16 %v63
    %v200 = vunpack.c.l.b16 %v64
    %v201 = vunpack.c.l.b16 %v65
    %v202 = vunpack.c.l.b16 %v66
    %v203 = vunpack.c.l.b16 %v67
    %v204 = vunpack.c.l.b16 %v68
    %v205 = vunpack.c.l.b16 %v69
    %v206 = vunpack.c.l.b16 %v70
    %v207 = vunpack.c.l.b16 %v71
    %v208 = vunpack.c.l.b16 %v72
    %v209 = vunpack.c.l.b16 %v73
    %v210 = vunpack.c.l.b16 %v74
    %v211 = vunpack.c.l.b16 %v75
    %v212 = vunpack.c.l.b16 %v76
    %v213 = vunpack.c.l.b16 %v77
    %v214 = vunpack.c.l.b16 %v78
    %v215 = vunpack.c.l.b16 %v79
    %v216 = vunpack.c.l.b16 %v80
    %v217 = vunpack.c.l.b16 %v81
    %v218 = vunpack.c.l.b16 %v82
    %v219 = vunpack.c.l.b16 %v83
    %v220 = vunpack.c.l.b16 %v84
    %v221 = vunpack.c.l.b16 %v85
    %v222 = vunpack.c.l.b16 %v86
    %v223 = vunpack.c.l.b16 %v87
    %v224 = vunpack.c.l.b16 %v88
    %v225 = vunpack.c.l.b16 %v89
    %v226 = vunpack.c.l.b16 %v90
    %v227 = vunpack.c.l.b16 %v91
    %v228 = vunpack.c.l.b16 %v92
    %v229 = vunpack.c.l.b16 %v93
    %v230 = vunpack.c.l.b16 %v94
    %v231 = vpack.c.b16 %v168, %v167
    %v232 = vpack.c.b16 %v170, %v169
    %v233 = vpack.c.b16 %v172, %v171
    %v234 = vpack.c.b16 %v174, %v173
    %v235 = vpack.c.b16 %v176, %v175
    %v236 = vpack.c.b16 %v178, %v177
    %v237 = vpack.c.b16 %v180, %v179
    %v238 = vpack.c.b16 %v182, %v181
    %v239 = vpack.c.b16 %v184, %v183
    %v240 = vpack.c.b16 %v186, %v185
    %v241 = vpack.c.b16 %v188, %v187
    %v242 = vpack.c.b16 %v190, %v189
    %v243 = vpack.c.b16 %v192, %v191
    %v244 = vpack.c.b16 %v194, %v193
    %v245 = vpack.c.b16 %v196, %v195
    %v246 = vpack.c.b16 %v198, %v197
    %v247 = vpack.c.b16 %v200, %v199
    %v248 = vpack.c.b16 %v202, %v201
    %v249 = vpack.c.b16 %v204, %v203
    %v250 = vpack.c.b16 %v206, %v205
    %v251 = vpack.c.b16 %v208, %v207
    %v252 = vpack.c.b16 %v210, %v209
    %v253 = vpack.c.b16 %v212, %v211
    %v254 = vpack.c.b16 %v214, %v213
    %v255 = vpack.c.b16 %v216, %v215
    %v256 = vpack.c.b16 %v218, %v217
    %v257 = vpack.c.b16 %v220, %v219
    %v258 = vpack.c.b16 %v222, %v221
    %v259 = vpack.c.b16 %v224, %v223
    %v260 = vpack.c.b16 %v226, %v225
    %v261 = vpack.c.b16 %v228, %v227
    %v262 = vpack.c.b16 %v230, %v229
    %vm263 = vcmask 31744
    %v265 = vsel %vm263, %v231, 0
    %v268 = vsel %vm263, %v232, 0
    %v271 = vsel %vm263, %v233, 0
    %v274 = vsel %vm263, %v234, 0
    %v277 = vsel %vm263, %v235, 0
    %v280 = vsel %vm263, %v236, 0
    %v283 = vsel %vm263, %v237, 0
    %v286 = vsel %vm263, %v238, 0
    %v289 = vsel %vm263, %v239, 0
    %v292 = vsel %vm263, %v240, 0
    %v295 = vsel %vm263, %v241, 0
    %v298 = vsel %vm263, %v242, 0
    %v301 = vsel %vm263, %v243, 0
    %v304 = vsel %vm263, %v244, 0
    %v307 = vsel %vm263, %v245, 0
    %v310 = vsel %vm263, %v246, 0
    %v313 = vsel %vm263, %v247, 0
    %v316 = vsel %vm263, %v248, 0
    %v319 = vsel %vm263, %v249, 0
    %v322 = vsel %vm263, %v250, 0
    %v325 = vsel %vm263, %v251, 0
    %v328 = vsel %vm263, %v252, 0
    %v331 = vsel %vm263, %v253, 0
    %v334 = vsel %vm263, %v254, 0
    %v337 = vsel %vm263, %v255, 0
    %v340 = vsel %vm263, %v256, 0
    %v343 = vsel %vm263, %v257, 0
    %v346 = vsel %vm263, %v258, 0
    %v349 = vsel %vm263, %v259, 0
    %v352 = vsel %vm263, %v260, 0
    %v355 = vsel %vm263, %v261, 0
    %v358 = vsel %vm263, %v262, 0
    %vm360 = vcmask 1041408
    %v362 = vsel %vm360, %v95, 0
    %364 = vmatprep.subr.bf16.mxu0 0
    %365 = vmatpush1.bf16.msra.mxu0 %v362
    %366 = vmatprep.subr.bf16.mxu0 0
    %367 = vmatpush1.bf16.msra.mxu0 0
    %368 = vmatprep.subr.bf16.mxu0 0
    %369 = vmatpush1.bf16.msra.mxu0 0
    %370 = vmatprep.subr.bf16.mxu0 0
    %371 = vmatpush1.bf16.msra.mxu0 0
    %372 = vmatprep.subr.bf16.mxu0 0
    %373 = vmatpush1.bf16.msra.mxu0 0
    %374 = vmatprep.subr.bf16.mxu0 0
    %375 = vmatpush1.bf16.msra.mxu0 0
    %376 = vmatprep.subr.bf16.mxu0 0
    %377 = vmatpush1.bf16.msra.mxu0 0
    %378 = vmatprep.subr.bf16.mxu0 0
    %379 = vmatpush1.bf16.msra.mxu0 0
    %380 = vmatprep.subr.bf16.mxu0 0
    %381 = vmatpush1.bf16.msra.mxu0 0
    %382 = vmatprep.subr.bf16.mxu0 0
    %383 = vmatpush1.bf16.msra.mxu0 0
    %384 = vmatprep.subr.bf16.mxu0 0
    %385 = vmatpush1.bf16.msra.mxu0 0
    %386 = vmatprep.subr.bf16.mxu0 0
    %387 = vmatpush1.bf16.msra.mxu0 0
    %388 = vmatprep.subr.bf16.mxu0 0
    %389 = vmatpush1.bf16.msra.mxu0 0
    %390 = vmatprep.subr.bf16.mxu0 0
    %391 = vmatpush1.bf16.msra.mxu0 0
    %392 = vmatprep.subr.bf16.mxu0 0
    %393 = vmatpush1.bf16.msra.mxu0 0
    %394 = vmatprep.subr.bf16.mxu0 0
    %395 = vmatpush1.bf16.msra.mxu0 0
    %396 = vmatprep.mubr.bf16.mxu0 0
    %397 = vmatmul.mubr.bf16.gmra.mrb[0].mxu0 %v265
    %v398 = vpop.f32.mrb[0].mxu0
    %v399 = vadd.f32 %v101, %v398
    %v400 = vpop.f32.mrb[0].mxu0
    %v401 = vpop.f32.mrb[0].mxu0
    %v402 = vadd.f32 %v101, %v401
    %v403 = vpop.f32.mrb[0].mxu0
    %404 = vmatprep.mubr.bf16.mxu0 0
    %405 = vmatmul.mubr.bf16.gmra.mrb[0].mxu0 %v268
    %v406 = vpop.f32.mrb[0].mxu0
    %v407 = vadd.f32 %v101, %v406
    %v408 = vpop.f32.mrb[0].mxu0
    %v409 = vpop.f32.mrb[0].mxu0
    %v410 = vadd.f32 %v101, %v409
    %v411 = vpop.f32.mrb[0].mxu0
    %412 = vmatprep.mubr.bf16.mxu0 0
    %413 = vmatmul.mubr.bf16.gmra.mrb[0].mxu0 %v271
    %v414 = vpop.f32.mrb[0].mxu0
    %v415 = vadd.f32 %v101, %v414
    %v416 = vpop.f32.mrb[0].mxu0
    %v417 = vpop.f32.mrb[0].mxu0
    %v418 = vadd.f32 %v101, %v417
    %v419 = vpop.f32.mrb[0].mxu0
    %420 = vmatprep.mubr.bf16.mxu0 0
    %421 = vmatmul.mubr.bf16.gmra.mrb[0].mxu0 %v274
    %v422 = vpop.f32.mrb[0].mxu0
    %v423 = vadd.f32 %v101, %v422
    %v424 = vpop.f32.mrb[0].mxu0
    %v425 = vpop.f32.mrb[0].mxu0
    %v426 = vadd.f32 %v101, %v425
    %v427 = vpop.f32.mrb[0].mxu0
    %428 = vmatprep.mubr.bf16.mxu0 0
    %429 = vmatmul.mubr.bf16.gmra.mrb[0].mxu0 %v277
    %v430 = vpop.f32.mrb[0].mxu0
    %v431 = vadd.f32 %v101, %v430
    %v432 = vpop.f32.mrb[0].mxu0
    %v433 = vpop.f32.mrb[0].mxu0
    %v434 = vadd.f32 %v101, %v433
    %v435 = vpop.f32.mrb[0].mxu0
    %436 = vmatprep.mubr.bf16.mxu0 0
    %437 = vmatmul.mubr.bf16.gmra.mrb[0].mxu0 %v280
    %v438 = vpop.f32.mrb[0].mxu0
    %v439 = vadd.f32 %v101, %v438
    %v440 = vpop.f32.mrb[0].mxu0
    %v441 = vpop.f32.mrb[0].mxu0
    %v442 = vadd.f32 %v101, %v441
    %v443 = vpop.f32.mrb[0].mxu0
    %444 = vmatprep.mubr.bf16.mxu0 0
    %445 = vmatmul.mubr.bf16.gmra.mrb[0].mxu0 %v283
    %v446 = vpop.f32.mrb[0].mxu0
    %v447 = vadd.f32 %v101, %v446
    %v448 = vpop.f32.mrb[0].mxu0
    %v449 = vpop.f32.mrb[0].mxu0
    %v450 = vadd.f32 %v101, %v449
    %v451 = vpop.f32.mrb[0].mxu0
    %452 = vmatprep.mubr.bf16.mxu0 0
    %453 = vmatmul.mubr.bf16.gmra.mrb[0].mxu0 %v286
    %v454 = vpop.f32.mrb[0].mxu0
    %v455 = vadd.f32 %v101, %v454
    %v456 = vpop.f32.mrb[0].mxu0
    %v457 = vpop.f32.mrb[0].mxu0
    %v458 = vadd.f32 %v101, %v457
    %v459 = vpop.f32.mrb[0].mxu0
    %460 = vmatprep.mubr.bf16.mxu0 0
    %461 = vmatmul.mubr.bf16.gmra.mrb[0].mxu0 %v289
    %v462 = vpop.f32.mrb[0].mxu0
    %v463 = vadd.f32 %v101, %v462
    %v464 = vpop.f32.mrb[0].mxu0
    %v465 = vpop.f32.mrb[0].mxu0
    %v466 = vadd.f32 %v101, %v465
    %v467 = vpop.f32.mrb[0].mxu0
    %468 = vmatprep.mubr.bf16.mxu0 0
    %469 = vmatmul.mubr.bf16.gmra.mrb[0].mxu0 %v292
    %v470 = vpop.f32.mrb[0].mxu0
    %v471 = vadd.f32 %v101, %v470
    %v472 = vpop.f32.mrb[0].mxu0
    %v473 = vpop.f32.mrb[0].mxu0
    %v474 = vadd.f32 %v101, %v473
    %v475 = vpop.f32.mrb[0].mxu0
    %476 = vmatprep.mubr.bf16.mxu0 0
    %477 = vmatmul.mubr.bf16.gmra.mrb[0].mxu0 %v295
    %v478 = vpop.f32.mrb[0].mxu0
    %v479 = vadd.f32 %v101, %v478
    %v480 = vpop.f32.mrb[0].mxu0
    %v481 = vpop.f32.mrb[0].mxu0
    %v482 = vadd.f32 %v101, %v481
    %v483 = vpop.f32.mrb[0].mxu0
    %484 = vmatprep.mubr.bf16.mxu0 0
    %485 = vmatmul.mubr.bf16.gmra.mrb[0].mxu0 %v298
    %v486 = vpop.f32.mrb[0].mxu0
    %v487 = vadd.f32 %v101, %v486
    %v488 = vpop.f32.mrb[0].mxu0
    %v489 = vpop.f32.mrb[0].mxu0
    %v490 = vadd.f32 %v101, %v489
    %v491 = vpop.f32.mrb[0].mxu0
    %492 = vmatprep.mubr.bf16.mxu0 0
    %493 = vmatmul.mubr.bf16.gmra.mrb[0].mxu0 %v301
    %v494 = vpop.f32.mrb[0].mxu0
    %v495 = vadd.f32 %v101, %v494
    %v496 = vpop.f32.mrb[0].mxu0
    %v497 = vpop.f32.mrb[0].mxu0
    %v498 = vadd.f32 %v101, %v497
    %v499 = vpop.f32.mrb[0].mxu0
    %500 = vmatprep.mubr.bf16.mxu0 0
    %501 = vmatmul.mubr.bf16.gmra.mrb[0].mxu0 %v304
    %v502 = vpop.f32.mrb[0].mxu0
    %v503 = vadd.f32 %v101, %v502
    %v504 = vpop.f32.mrb[0].mxu0
    %v505 = vpop.f32.mrb[0].mxu0
    %v506 = vadd.f32 %v101, %v505
    %v507 = vpop.f32.mrb[0].mxu0
    %508 = vmatprep.mubr.bf16.mxu0 0
    %509 = vmatmul.mubr.bf16.gmra.mrb[0].mxu0 %v307
    %v510 = vpop.f32.mrb[0].mxu0
    %v511 = vadd.f32 %v101, %v510
    %v512 = vpop.f32.mrb[0].mxu0
    %v513 = vpop.f32.mrb[0].mxu0
    %v514 = vadd.f32 %v101, %v513
    %v515 = vpop.f32.mrb[0].mxu0
    %516 = vmatprep.mubr.bf16.mxu0 0
    %517 = vmatmul.mubr.bf16.gmra.mrb[0].mxu0 %v310
    %v518 = vpop.f32.mrb[0].mxu0
    %v519 = vadd.f32 %v101, %v518
    %v520 = vpop.f32.mrb[0].mxu0
    %v521 = vpop.f32.mrb[0].mxu0
    %v522 = vadd.f32 %v101, %v521
    %v523 = vpop.f32.mrb[0].mxu0
    %524 = vmatprep.mubr.bf16.mxu0 0
    %525 = vmatmul.mubr.bf16.gmra.mrb[0].mxu0 %v313
    %v526 = vpop.f32.mrb[0].mxu0
    %v527 = vadd.f32 %v101, %v526
    %v528 = vpop.f32.mrb[0].mxu0
    %v529 = vpop.f32.mrb[0].mxu0
    %v530 = vadd.f32 %v101, %v529
    %v531 = vpop.f32.mrb[0].mxu0
    %532 = vmatprep.mubr.bf16.mxu0 0
    %533 = vmatmul.mubr.bf16.gmra.mrb[0].mxu0 %v316
    %v534 = vpop.f32.mrb[0].mxu0
    %v535 = vadd.f32 %v101, %v534
    %v536 = vpop.f32.mrb[0].mxu0
    %v537 = vpop.f32.mrb[0].mxu0
    %v538 = vadd.f32 %v101, %v537
    %v539 = vpop.f32.mrb[0].mxu0
    %540 = vmatprep.mubr.bf16.mxu0 0
    %541 = vmatmul.mubr.bf16.gmra.mrb[0].mxu0 %v319
    %v542 = vpop.f32.mrb[0].mxu0
    %v543 = vadd.f32 %v101, %v542
    %v544 = vpop.f32.mrb[0].mxu0
    %v545 = vpop.f32.mrb[0].mxu0
    %v546 = vadd.f32 %v101, %v545
    %v547 = vpop.f32.mrb[0].mxu0
    %548 = vmatprep.mubr.bf16.mxu0 0
    %549 = vmatmul.mubr.bf16.gmra.mrb[0].mxu0 %v322
    %v550 = vpop.f32.mrb[0].mxu0
    %v551 = vadd.f32 %v101, %v550
    %v552 = vpop.f32.mrb[0].mxu0
    %v553 = vpop.f32.mrb[0].mxu0
    %v554 = vadd.f32 %v101, %v553
    %v555 = vpop.f32.mrb[0].mxu0
    %556 = vmatprep.mubr.bf16.mxu0 0
    %557 = vmatmul.mubr.bf16.gmra.mrb[0].mxu0 %v325
    %v558 = vpop.f32.mrb[0].mxu0
    %v559 = vadd.f32 %v101, %v558
    %v560 = vpop.f32.mrb[0].mxu0
    %v561 = vpop.f32.mrb[0].mxu0
    %v562 = vadd.f32 %v101, %v561
    %v563 = vpop.f32.mrb[0].mxu0
    %564 = vmatprep.mubr.bf16.mxu0 0
    %565 = vmatmul.mubr.bf16.gmra.mrb[0].mxu0 %v328
    %v566 = vpop.f32.mrb[0].mxu0
    %v567 = vadd.f32 %v101, %v566
    %v568 = vpop.f32.mrb[0].mxu0
    %v569 = vpop.f32.mrb[0].mxu0
    %v570 = vadd.f32 %v101, %v569
    %v571 = vpop.f32.mrb[0].mxu0
    %572 = vmatprep.mubr.bf16.mxu0 0
    %573 = vmatmul.mubr.bf16.gmra.mrb[0].mxu0 %v331
    %v574 = vpop.f32.mrb[0].mxu0
    %v575 = vadd.f32 %v101, %v574
    %v576 = vpop.f32.mrb[0].mxu0
    %v577 = vpop.f32.mrb[0].mxu0
    %v578 = vadd.f32 %v101, %v577
    %v579 = vpop.f32.mrb[0].mxu0
    %580 = vmatprep.mubr.bf16.mxu0 0
    %581 = vmatmul.mubr.bf16.gmra.mrb[0].mxu0 %v334
    %v582 = vpop.f32.mrb[0].mxu0
    %v583 = vadd.f32 %v101, %v582
    %v584 = vpop.f32.mrb[0].mxu0
    %v585 = vpop.f32.mrb[0].mxu0
    %v586 = vadd.f32 %v101, %v585
    %v587 = vpop.f32.mrb[0].mxu0
    %588 = vmatprep.mubr.bf16.mxu0 0
    %589 = vmatmul.mubr.bf16.gmra.mrb[0].mxu0 %v337
    %v590 = vpop.f32.mrb[0].mxu0
    %v591 = vadd.f32 %v101, %v590
    %v592 = vpop.f32.mrb[0].mxu0
    %v593 = vpop.f32.mrb[0].mxu0
    %v594 = vadd.f32 %v101, %v593
    %v595 = vpop.f32.mrb[0].mxu0
    %596 = vmatprep.mubr.bf16.mxu0 0
    %597 = vmatmul.mubr.bf16.gmra.mrb[0].mxu0 %v340
    %v598 = vpop.f32.mrb[0].mxu0
    %v599 = vadd.f32 %v101, %v598
    %v600 = vpop.f32.mrb[0].mxu0
    %v601 = vpop.f32.mrb[0].mxu0
    %v602 = vadd.f32 %v101, %v601
    %v603 = vpop.f32.mrb[0].mxu0
    %604 = vmatprep.mubr.bf16.mxu0 0
    %605 = vmatmul.mubr.bf16.gmra.mrb[0].mxu0 %v343
    %v606 = vpop.f32.mrb[0].mxu0
    %v607 = vadd.f32 %v101, %v606
    %v608 = vpop.f32.mrb[0].mxu0
    %v609 = vpop.f32.mrb[0].mxu0
    %v610 = vadd.f32 %v101, %v609
    %v611 = vpop.f32.mrb[0].mxu0
    %612 = vmatprep.mubr.bf16.mxu0 0
    %613 = vmatmul.mubr.bf16.gmra.mrb[0].mxu0 %v346
    %v614 = vpop.f32.mrb[0].mxu0
    %v615 = vadd.f32 %v101, %v614
    %v616 = vpop.f32.mrb[0].mxu0
    %v617 = vpop.f32.mrb[0].mxu0
    %v618 = vadd.f32 %v101, %v617
    %v619 = vpop.f32.mrb[0].mxu0
    %620 = vmatprep.mubr.bf16.mxu0 0
    %621 = vmatmul.mubr.bf16.gmra.mrb[0].mxu0 %v349
    %v622 = vpop.f32.mrb[0].mxu0
    %v623 = vadd.f32 %v101, %v622
    %v624 = vpop.f32.mrb[0].mxu0
    %v625 = vpop.f32.mrb[0].mxu0
    %v626 = vadd.f32 %v101, %v625
    %v627 = vpop.f32.mrb[0].mxu0
    %628 = vmatprep.mubr.bf16.mxu0 0
    %629 = vmatmul.mubr.bf16.gmra.mrb[0].mxu0 %v352
    %v630 = vpop.f32.mrb[0].mxu0
    %v631 = vadd.f32 %v101, %v630
    %v632 = vpop.f32.mrb[0].mxu0
    %v633 = vpop.f32.mrb[0].mxu0
    %v634 = vadd.f32 %v101, %v633
    %v635 = vpop.f32.mrb[0].mxu0
    %636 = vmatprep.mubr.bf16.mxu0 0
    %637 = vmatmul.mubr.bf16.gmra.mrb[0].mxu0 %v355
    %v638 = vpop.f32.mrb[0].mxu0
    %v639 = vadd.f32 %v101, %v638
    %v640 = vpop.f32.mrb[0].mxu0
    %v641 = vpop.f32.mrb[0].mxu0
    %v642 = vadd.f32 %v101, %v641
    %v643 = vpop.f32.mrb[0].mxu0
    %644 = vmatprep.mubr.bf16.mxu0 0
    %645 = vmatmul.mubr.bf16.gmra.mrb[0].mxu0 %v358
    %v646 = vpop.f32.mrb[0].mxu0
    %v647 = vadd.f32 %v101, %v646
    %v648 = vpop.f32.mrb[0].mxu0
    %v649 = vpop.f32.mrb[0].mxu0
    %v650 = vadd.f32 %v101, %v649
    %v651 = vpop.f32.mrb[0].mxu0
    %652 = vdwg.mxu0
    %vm653 = vcmp.ge.f32.partialorder %v399, 0.0
    %vm654 = vcmp.ge.f32.partialorder %v402, 0.0
    %vm655 = vcmp.ge.f32.partialorder %v407, 0.0
    %vm656 = vcmp.ge.f32.partialorder %v410, 0.0
    %vm657 = vcmp.ge.f32.partialorder %v415, 0.0
    %vm658 = vcmp.ge.f32.partialorder %v418, 0.0
    %vm659 = vcmp.ge.f32.partialorder %v423, 0.0
    %vm660 = vcmp.ge.f32.partialorder %v426, 0.0
    %vm661 = vcmp.ge.f32.partialorder %v431, 0.0
    %vm662 = vcmp.ge.f32.partialorder %v434, 0.0
    %vm663 = vcmp.ge.f32.partialorder %v439, 0.0
    %vm664 = vcmp.ge.f32.partialorder %v442, 0.0
    %vm665 = vcmp.ge.f32.partialorder %v447, 0.0
    %vm666 = vcmp.ge.f32.partialorder %v450, 0.0
    %vm667 = vcmp.ge.f32.partialorder %v455, 0.0
    %vm668 = vcmp.ge.f32.partialorder %v458, 0.0
    %vm669 = vcmp.ge.f32.partialorder %v463, 0.0
    %vm670 = vcmp.ge.f32.partialorder %v466, 0.0
    %vm671 = vcmp.ge.f32.partialorder %v471, 0.0
    %vm672 = vcmp.ge.f32.partialorder %v474, 0.0
    %vm673 = vcmp.ge.f32.partialorder %v479, 0.0
    %vm674 = vcmp.ge.f32.partialorder %v482, 0.0
    %vm675 = vcmp.ge.f32.partialorder %v487, 0.0
    %vm676 = vcmp.ge.f32.partialorder %v490, 0.0
    %vm677 = vcmp.ge.f32.partialorder %v495, 0.0
    %vm678 = vcmp.ge.f32.partialorder %v498, 0.0
    %vm679 = vcmp.ge.f32.partialorder %v503, 0.0
    %vm680 = vcmp.ge.f32.partialorder %v506, 0.0
    %vm681 = vcmp.ge.f32.partialorder %v511, 0.0
    %vm682 = vcmp.ge.f32.partialorder %v514, 0.0
    %vm683 = vcmp.ge.f32.partialorder %v519, 0.0
    %vm684 = vcmp.ge.f32.partialorder %v522, 0.0
    %vm685 = vcmp.ge.f32.partialorder %v527, 0.0
    %vm686 = vcmp.ge.f32.partialorder %v530, 0.0
    %vm687 = vcmp.ge.f32.partialorder %v535, 0.0
    %vm688 = vcmp.ge.f32.partialorder %v538, 0.0
    %vm689 = vcmp.ge.f32.partialorder %v543, 0.0
    %vm690 = vcmp.ge.f32.partialorder %v546, 0.0
    %vm691 = vcmp.ge.f32.partialorder %v551, 0.0
    %vm692 = vcmp.ge.f32.partialorder %v554, 0.0
    %vm693 = vcmp.ge.f32.partialorder %v559, 0.0
    %vm694 = vcmp.ge.f32.partialorder %v562, 0.0
    %vm695 = vcmp.ge.f32.partialorder %v567, 0.0
    %vm696 = vcmp.ge.f32.partialorder %v570, 0.0
    %vm697 = vcmp.ge.f32.partialorder %v575, 0.0
    %vm698 = vcmp.ge.f32.partialorder %v578, 0.0
    %vm699 = vcmp.ge.f32.partialorder %v583, 0.0
    %vm700 = vcmp.ge.f32.partialorder %v586, 0.0
    %vm701 = vcmp.ge.f32.partialorder %v591, 0.0
    %vm702 = vcmp.ge.f32.partialorder %v594, 0.0
    %vm703 = vcmp.ge.f32.partialorder %v599, 0.0
    %vm704 = vcmp.ge.f32.partialorder %v602, 0.0
    %vm705 = vcmp.ge.f32.partialorder %v607, 0.0
    %vm706 = vcmp.ge.f32.partialorder %v610, 0.0
    %vm707 = vcmp.ge.f32.partialorder %v615, 0.0
    %vm708 = vcmp.ge.f32.partialorder %v618, 0.0
    %vm709 = vcmp.ge.f32.partialorder %v623, 0.0
    %vm710 = vcmp.ge.f32.partialorder %v626, 0.0
    %vm711 = vcmp.ge.f32.partialorder %v631, 0.0
    %vm712 = vcmp.ge.f32.partialorder %v634, 0.0
    %vm713 = vcmp.ge.f32.partialorder %v639, 0.0
    %vm714 = vcmp.ge.f32.partialorder %v642, 0.0
    %vm715 = vcmp.ge.f32.partialorder %v647, 0.0
    %vm716 = vcmp.ge.f32.partialorder %v650, 0.0
    %v717 = vld [vmem:[#allocation4] sm:$0x1]
    %v719 = vlaneseq
    %v720 = vshrl.u32 %v719, 7
    %v721 = vsub.s32 0, %v720
    %v722 = vrot.slane %v717, %v721
    %v724 = vmul.f32 %v722, %v399
    %v725 = vmul.f32 %v722, %v402
    %v726 = vmul.f32 %v722, %v407
    %v727 = vmul.f32 %v722, %v410
    %v728 = vmul.f32 %v722, %v415
    %v729 = vmul.f32 %v722, %v418
    %v730 = vmul.f32 %v722, %v423
    %v731 = vmul.f32 %v722, %v426
    %v732 = vmul.f32 %v722, %v431
    %v733 = vmul.f32 %v722, %v434
    %v734 = vmul.f32 %v722, %v439
    %v735 = vmul.f32 %v722, %v442
    %v736 = vmul.f32 %v722, %v447
    %v737 = vmul.f32 %v722, %v450
    %v738 = vmul.f32 %v722, %v455
    %v739 = vmul.f32 %v722, %v458
    %v740 = vmul.f32 %v722, %v463
    %v741 = vmul.f32 %v722, %v466
    %v742 = vmul.f32 %v722, %v471
    %v743 = vmul.f32 %v722, %v474
    %v744 = vmul.f32 %v722, %v479
    %v745 = vmul.f32 %v722, %v482
    %v746 = vmul.f32 %v722, %v487
    %v747 = vmul.f32 %v722, %v490
    %v748 = vmul.f32 %v722, %v495
    %v749 = vmul.f32 %v722, %v498
    %v750 = vmul.f32 %v722, %v503
    %v751 = vmul.f32 %v722, %v506
    %v752 = vmul.f32 %v722, %v511
    %v753 = vmul.f32 %v722, %v514
    %v754 = vmul.f32 %v722, %v519
    %v755 = vmul.f32 %v722, %v522
    %v756 = vmul.f32 %v722, %v527
    %v757 = vmul.f32 %v722, %v530
    %v758 = vmul.f32 %v722, %v535
    %v759 = vmul.f32 %v722, %v538
    %v760 = vmul.f32 %v722, %v543
    %v761 = vmul.f32 %v722, %v546
    %v762 = vmul.f32 %v722, %v551
    %v763 = vmul.f32 %v722, %v554
    %v764 = vmul.f32 %v722, %v559
    %v765 = vmul.f32 %v722, %v562
    %v766 = vmul.f32 %v722, %v567
    %v767 = vmul.f32 %v722, %v570
    %v768 = vmul.f32 %v722, %v575
    %v769 = vmul.f32 %v722, %v578
    %v770 = vmul.f32 %v722, %v583
    %v771 = vmul.f32 %v722, %v586
    %v772 = vmul.f32 %v722, %v591
    %v773 = vmul.f32 %v722, %v594
    %v774 = vmul.f32 %v722, %v599
    %v775 = vmul.f32 %v722, %v602
    %v776 = vmul.f32 %v722, %v607
    %v777 = vmul.f32 %v722, %v610
    %v778 = vmul.f32 %v722, %v615
    %v779 = vmul.f32 %v722, %v618
    %v780 = vmul.f32 %v722, %v623
    %v781 = vmul.f32 %v722, %v626
    %v782 = vmul.f32 %v722, %v631
    %v783 = vmul.f32 %v722, %v634
    %v784 = vmul.f32 %v722, %v639
    %v785 = vmul.f32 %v722, %v642
    %v786 = vmul.f32 %v722, %v647
    %v787 = vmul.f32 %v722, %v650
    %v788 = vsel %vm653, %v399, %v724
    %v789 = vsel %vm654, %v402, %v725
    %v790 = vsel %vm655, %v407, %v726
    %v791 = vsel %vm656, %v410, %v727
    %v792 = vsel %vm657, %v415, %v728
    %v793 = vsel %vm658, %v418, %v729
    %v794 = vsel %vm659, %v423, %v730
    %v795 = vsel %vm660, %v426, %v731
    %v796 = vsel %vm661, %v431, %v732
    %v797 = vsel %vm662, %v434, %v733
    %v798 = vsel %vm663, %v439, %v734
    %v799 = vsel %vm664, %v442, %v735
    %v800 = vsel %vm665, %v447, %v736
    %v801 = vsel %vm666, %v450, %v737
    %v802 = vsel %vm667, %v455, %v738
    %v803 = vsel %vm668, %v458, %v739
    %v804 = vsel %vm669, %v463, %v740
    %v805 = vsel %vm670, %v466, %v741
    %v806 = vsel %vm671, %v471, %v742
    %v807 = vsel %vm672, %v474, %v743
    %v808 = vsel %vm673, %v479, %v744
    %v809 = vsel %vm674, %v482, %v745
    %v810 = vsel %vm675, %v487, %v746
    %v811 = vsel %vm676, %v490, %v747
    %v812 = vsel %vm677, %v495, %v748
    %v813 = vsel %vm678, %v498, %v749
    %v814 = vsel %vm679, %v503, %v750
    %v815 = vsel %vm680, %v506, %v751
    %v816 = vsel %vm681, %v511, %v752
    %v817 = vsel %vm682, %v514, %v753
    %v818 = vsel %vm683, %v519, %v754
    %v819 = vsel %vm684, %v522, %v755
    %v820 = vsel %vm685, %v527, %v756
    %v821 = vsel %vm686, %v530, %v757
    %v822 = vsel %vm687, %v535, %v758
    %v823 = vsel %vm688, %v538, %v759
    %v824 = vsel %vm689, %v543, %v760
    %v825 = vsel %vm690, %v546, %v761
    %v826 = vsel %vm691, %v551, %v762
    %v827 = vsel %vm692, %v554, %v763
    %v828 = vsel %vm693, %v559, %v764
    %v829 = vsel %vm694, %v562, %v765
    %v830 = vsel %vm695, %v567, %v766
    %v831 = vsel %vm696, %v570, %v767
    %v832 = vsel %vm697, %v575, %v768
    %v833 = vsel %vm698, %v578, %v769
    %v834 = vsel %vm699, %v583, %v770
    %v835 = vsel %vm700, %v586, %v771
    %v836 = vsel %vm701, %v591, %v772
    %v837 = vsel %vm702, %v594, %v773
    %v838 = vsel %vm703, %v599, %v774
    %v839 = vsel %vm704, %v602, %v775
    %v840 = vsel %vm705, %v607, %v776
    %v841 = vsel %vm706, %v610, %v777
    %v842 = vsel %vm707, %v615, %v778
    %v843 = vsel %vm708, %v618, %v779
    %v844 = vsel %vm709, %v623, %v780
    %v845 = vsel %vm710, %v626, %v781
    %v846 = vsel %vm711, %v631, %v782
    %v847 = vsel %vm712, %v634, %v783
    %v848 = vsel %vm713, %v639, %v784
    %v849 = vsel %vm714, %v642, %v785
    %v850 = vsel %vm715, %v647, %v786
    %v851 = vsel %vm716, %v650, %v787
    %v852 = vpack.c.bf16 %v789, %v788
    %v853 = vpack.c.bf16 %v791, %v790
    %v854 = vpack.c.bf16 %v793, %v792
    %v855 = vpack.c.bf16 %v795, %v794
    %v856 = vpack.c.bf16 %v797, %v796
    %v857 = vpack.c.bf16 %v799, %v798
    %v858 = vpack.c.bf16 %v801, %v800
    %v859 = vpack.c.bf16 %v803, %v802
    %v860 = vpack.c.bf16 %v805, %v804
    %v861 = vpack.c.bf16 %v807, %v806
    %v862 = vpack.c.bf16 %v809, %v808
    %v863 = vpack.c.bf16 %v811, %v810
    %v864 = vpack.c.bf16 %v813, %v812
    %v865 = vpack.c.bf16 %v815, %v814
    %v866 = vpack.c.bf16 %v817, %v816
    %v867 = vpack.c.bf16 %v819, %v818
    %v868 = vpack.c.bf16 %v821, %v820
    %v869 = vpack.c.bf16 %v823, %v822
    %v870 = vpack.c.bf16 %v825, %v824
    %v871 = vpack.c.bf16 %v827, %v826
    %v872 = vpack.c.bf16 %v829, %v828
    %v873 = vpack.c.bf16 %v831, %v830
    %v874 = vpack.c.bf16 %v833, %v832
    %v875 = vpack.c.bf16 %v835, %v834
    %v876 = vpack.c.bf16 %v837, %v836
    %v877 = vpack.c.bf16 %v839, %v838
    %v878 = vpack.c.bf16 %v841, %v840
    %v879 = vpack.c.bf16 %v843, %v842
    %v880 = vpack.c.bf16 %v845, %v844
    %v881 = vpack.c.bf16 %v847, %v846
    %v882 = vpack.c.bf16 %v849, %v848
    %v883 = vpack.c.bf16 %v851, %v850
    %v916 = vunpack.c.l.b16 %v852
    %v917 = vunpack.c.h.b16 %v852
    %v918 = vunpack.c.l.b16 %v853
    %v919 = vunpack.c.h.b16 %v853
    %v920 = vunpack.c.l.b16 %v854
    %v921 = vunpack.c.h.b16 %v854
    %v922 = vunpack.c.l.b16 %v855
    %v923 = vunpack.c.h.b16 %v855
    %v924 = vunpack.c.l.b16 %v856
    %v925 = vunpack.c.h.b16 %v856
    %v926 = vunpack.c.l.b16 %v857
    %v927 = vunpack.c.h.b16 %v857
    %v928 = vunpack.c.l.b16 %v858
    %v929 = vunpack.c.h.b16 %v858
    %v930 = vunpack.c.l.b16 %v859
    %v931 = vunpack.c.h.b16 %v859
    %v932 = vunpack.c.l.b16 %v860
    %v933 = vunpack.c.h.b16 %v860
    %v934 = vunpack.c.l.b16 %v861
    %v935 = vunpack.c.h.b16 %v861
    %v936 = vunpack.c.l.b16 %v862
    %v937 = vunpack.c.h.b16 %v862
    %v938 = vunpack.c.l.b16 %v863
    %v939 = vunpack.c.h.b16 %v863
    %v940 = vunpack.c.l.b16 %v864
    %v941 = vunpack.c.h.b16 %v864
    %v942 = vunpack.c.l.b16 %v865
    %v943 = vunpack.c.h.b16 %v865
    %v944 = vunpack.c.l.b16 %v866
    %v945 = vunpack.c.h.b16 %v866
    %v946 = vunpack.c.l.b16 %v867
    %v947 = vunpack.c.h.b16 %v867
    %v948 = vunpack.c.l.b16 %v868
    %v949 = vunpack.c.h.b16 %v868
    %v950 = vunpack.c.l.b16 %v869
    %v951 = vunpack.c.h.b16 %v869
    %v952 = vunpack.c.l.b16 %v870
    %v953 = vunpack.c.h.b16 %v870
    %v954 = vunpack.c.l.b16 %v871
    %v955 = vunpack.c.h.b16 %v871
    %v956 = vunpack.c.l.b16 %v872
    %v957 = vunpack.c.h.b16 %v872
    %v958 = vunpack.c.l.b16 %v873
    %v959 = vunpack.c.h.b16 %v873
    %v960 = vunpack.c.l.b16 %v874
    %v961 = vunpack.c.h.b16 %v874
    %v962 = vunpack.c.l.b16 %v875
    %v963 = vunpack.c.h.b16 %v875
    %v964 = vunpack.c.l.b16 %v876
    %v965 = vunpack.c.h.b16 %v876
    %v966 = vunpack.c.l.b16 %v877
    %v967 = vunpack.c.h.b16 %v877
    %v968 = vunpack.c.l.b16 %v878
    %v969 = vunpack.c.h.b16 %v878
    %v970 = vunpack.c.l.b16 %v879
    %v971 = vunpack.c.h.b16 %v879
    %v972 = vunpack.c.l.b16 %v880
    %v973 = vunpack.c.h.b16 %v880
    %v974 = vunpack.c.l.b16 %v881
    %v975 = vunpack.c.h.b16 %v881
    %v976 = vunpack.c.l.b16 %v882
    %v977 = vunpack.c.h.b16 %v882
    %v978 = vunpack.c.l.b16 %v883
    %v979 = vunpack.c.h.b16 %v883
    %v980 = vpack.c.b16 %v916, %v916
    %v981 = vpack.c.b16 %v917, %v917
    %v982 = vpack.c.b16 %v918, %v918
    %v983 = vpack.c.b16 %v919, %v919
    %v984 = vpack.c.b16 %v920, %v920
    %v985 = vpack.c.b16 %v921, %v921
    %v986 = vpack.c.b16 %v922, %v922
    %v987 = vpack.c.b16 %v923, %v923
    %v988 = vpack.c.b16 %v924, %v924
    %v989 = vpack.c.b16 %v925, %v925
    %v990 = vpack.c.b16 %v926, %v926
    %v991 = vpack.c.b16 %v927, %v927
    %v992 = vpack.c.b16 %v928, %v928
    %v993 = vpack.c.b16 %v929, %v929
    %v994 = vpack.c.b16 %v930, %v930
    %v995 = vpack.c.b16 %v931, %v931
    %v996 = vpack.c.b16 %v932, %v932
    %v997 = vpack.c.b16 %v933, %v933
    %v998 = vpack.c.b16 %v934, %v934
    %v999 = vpack.c.b16 %v935, %v935
    %v1000 = vpack.c.b16 %v936, %v936
    %v1001 = vpack.c.b16 %v937, %v937
    %v1002 = vpack.c.b16 %v938, %v938
    %v1003 = vpack.c.b16 %v939, %v939
    %v1004 = vpack.c.b16 %v940, %v940
    %v1005 = vpack.c.b16 %v941, %v941
    %v1006 = vpack.c.b16 %v942, %v942
    %v1007 = vpack.c.b16 %v943, %v943
    %v1008 = vpack.c.b16 %v944, %v944
    %v1009 = vpack.c.b16 %v945, %v945
    %v1010 = vpack.c.b16 %v946, %v946
    %v1011 = vpack.c.b16 %v947, %v947
    %v1012 = vpack.c.b16 %v948, %v948
    %v1013 = vpack.c.b16 %v949, %v949
    %v1014 = vpack.c.b16 %v950, %v950
    %v1015 = vpack.c.b16 %v951, %v951
    %v1016 = vpack.c.b16 %v952, %v952
    %v1017 = vpack.c.b16 %v953, %v953
    %v1018 = vpack.c.b16 %v954, %v954
    %v1019 = vpack.c.b16 %v955, %v955
    %v1020 = vpack.c.b16 %v956, %v956
    %v1021 = vpack.c.b16 %v957, %v957
    %v1022 = vpack.c.b16 %v958, %v958
    %v1023 = vpack.c.b16 %v959, %v959
    %v1024 = vpack.c.b16 %v960, %v960
    %v1025 = vpack.c.b16 %v961, %v961
    %v1026 = vpack.c.b16 %v962, %v962
    %v1027 = vpack.c.b16 %v963, %v963
    %v1028 = vpack.c.b16 %v964, %v964
    %v1029 = vpack.c.b16 %v965, %v965
    %v1030 = vpack.c.b16 %v966, %v966
    %v1031 = vpack.c.b16 %v967, %v967
    %v1032 = vpack.c.b16 %v968, %v968
    %v1033 = vpack.c.b16 %v969, %v969
    %v1034 = vpack.c.b16 %v970, %v970
    %v1035 = vpack.c.b16 %v971, %v971
    %v1036 = vpack.c.b16 %v972, %v972
    %v1037 = vpack.c.b16 %v973, %v973
    %v1038 = vpack.c.b16 %v974, %v974
    %v1039 = vpack.c.b16 %v975, %v975
    %v1040 = vpack.c.b16 %v976, %v976
    %v1041 = vpack.c.b16 %v977, %v977
    %v1042 = vpack.c.b16 %v978, %v978
    %v1043 = vpack.c.b16 %v979, %v979
    %vm1108 = vcmask 60416
    %1109 = vst.msk [vmem:[%s4] sm:$0xf] %vm1108, %v980
    %1110 = vst.msk [vmem:[%s4 + $0x4] sm:$0xf] %vm1108, %v981
    %1111 = vst.msk [vmem:[%s4 + $0x8] sm:$0xf] %vm1108, %v982
    %1112 = vst.msk [vmem:[%s4 + $0xc] sm:$0xf] %vm1108, %v983
    %1113 = vst.msk [vmem:[%s4 + $0x10] sm:$0xf] %vm1108, %v984
    %1114 = vst.msk [vmem:[%s4 + $0x14] sm:$0xf] %vm1108, %v985
    %1115 = vst.msk [vmem:[%s4 + $0x18] sm:$0xf] %vm1108, %v986
    %1116 = vst.msk [vmem:[%s4 + $0x1c] sm:$0xf] %vm1108, %v987
    %1117 = vst.msk [vmem:[%s4 + $0x20] sm:$0xf] %vm1108, %v988
    %1118 = vst.msk [vmem:[%s4 + $0x24] sm:$0xf] %vm1108, %v989
    %1119 = vst.msk [vmem:[%s4 + $0x28] sm:$0xf] %vm1108, %v990
    %1120 = vst.msk [vmem:[%s4 + $0x2c] sm:$0xf] %vm1108, %v991
    %1121 = vst.msk [vmem:[%s4 + $0x30] sm:$0xf] %vm1108, %v992
    %1122 = vst.msk [vmem:[%s4 + $0x34] sm:$0xf] %vm1108, %v993
    %1123 = vst.msk [vmem:[%s4 + $0x38] sm:$0xf] %vm1108, %v994
    %1124 = vst.msk [vmem:[%s4 + $0x3c] sm:$0xf] %vm1108, %v995
    %1125 = vst.msk [vmem:[%s4 + $0x40] sm:$0xf] %vm1108, %v996
    %1126 = vst.msk [vmem:[%s4 + $0x44] sm:$0xf] %vm1108, %v997
    %1127 = vst.msk [vmem:[%s4 + $0x48] sm:$0xf] %vm1108, %v998
    %1128 = vst.msk [vmem:[%s4 + $0x4c] sm:$0xf] %vm1108, %v999
    %1129 = vst.msk [vmem:[%s4 + $0x50] sm:$0xf] %vm1108, %v1000
    %1130 = vst.msk [vmem:[%s4 + $0x54] sm:$0xf] %vm1108, %v1001
    %1131 = vst.msk [vmem:[%s4 + $0x58] sm:$0xf] %vm1108, %v1002
    %1132 = vst.msk [vmem:[%s4 + $0x5c] sm:$0xf] %vm1108, %v1003
    %1133 = vst.msk [vmem:[%s4 + $0x60] sm:$0xf] %vm1108, %v1004
    %1134 = vst.msk [vmem:[%s4 + $0x64] sm:$0xf] %vm1108, %v1005
    %1135 = vst.msk [vmem:[%s4 + $0x68] sm:$0xf] %vm1108, %v1006
    %1136 = vst.msk [vmem:[%s4 + $0x6c] sm:$0xf] %vm1108, %v1007
    %1137 = vst.msk [vmem:[%s4 + $0x70] sm:$0xf] %vm1108, %v1008
    %1138 = vst.msk [vmem:[%s4 + $0x74] sm:$0xf] %vm1108, %v1009
    %1139 = vst.msk [vmem:[%s4 + $0x78] sm:$0xf] %vm1108, %v1010
    %1140 = vst.msk [vmem:[%s4 + $0x7c] sm:$0xf] %vm1108, %v1011
    %1141 = vst.msk [vmem:[%s4 + $0x80] sm:$0xf] %vm1108, %v1012
    %1142 = vst.msk [vmem:[%s4 + $0x84] sm:$0xf] %vm1108, %v1013
    %1143 = vst.msk [vmem:[%s4 + $0x88] sm:$0xf] %vm1108, %v1014
    %1144 = vst.msk [vmem:[%s4 + $0x8c] sm:$0xf] %vm1108, %v1015
    %1145 = vst.msk [vmem:[%s4 + $0x90] sm:$0xf] %vm1108, %v1016
    %1146 = vst.msk [vmem:[%s4 + $0x94] sm:$0xf] %vm1108, %v1017
    %1147 = vst.msk [vmem:[%s4 + $0x98] sm:$0xf] %vm1108, %v1018
    %1148 = vst.msk [vmem:[%s4 + $0x9c] sm:$0xf] %vm1108, %v1019
    %1149 = vst.msk [vmem:[%s4 + $0xa0] sm:$0xf] %vm1108, %v1020
    %1150 = vst.msk [vmem:[%s4 + $0xa4] sm:$0xf] %vm1108, %v1021
    %1151 = vst.msk [vmem:[%s4 + $0xa8] sm:$0xf] %vm1108, %v1022
    %1152 = vst.msk [vmem:[%s4 + $0xac] sm:$0xf] %vm1108, %v1023
    %1153 = vst.msk [vmem:[%s4 + $0xb0] sm:$0xf] %vm1108, %v1024
    %1154 = vst.msk [vmem:[%s4 + $0xb4] sm:$0xf] %vm1108, %v1025
    %1155 = vst.msk [vmem:[%s4 + $0xb8] sm:$0xf] %vm1108, %v1026
    %1156 = vst.msk [vmem:[%s4 + $0xbc] sm:$0xf] %vm1108, %v1027
    %1157 = vst.msk [vmem:[%s4 + $0xc0] sm:$0xf] %vm1108, %v1028
    %1158 = vst.msk [vmem:[%s4 + $0xc4] sm:$0xf] %vm1108, %v1029
    %1159 = vst.msk [vmem:[%s4 + $0xc8] sm:$0xf] %vm1108, %v1030
    %1160 = vst.msk [vmem:[%s4 + $0xcc] sm:$0xf] %vm1108, %v1031
    %1161 = vst.msk [vmem:[%s4 + $0xd0] sm:$0xf] %vm1108, %v1032
    %1162 = vst.msk [vmem:[%s4 + $0xd4] sm:$0xf] %vm1108, %v1033
    %1163 = vst.msk [vmem:[%s4 + $0xd8] sm:$0xf] %vm1108, %v1034
    %1164 = vst.msk [vmem:[%s4 + $0xdc] sm:$0xf] %vm1108, %v1035
    %1165 = vst.msk [vmem:[%s4 + $0xe0] sm:$0xf] %vm1108, %v1036
    %1166 = vst.msk [vmem:[%s4 + $0xe4] sm:$0xf] %vm1108, %v1037
    %1167 = vst.msk [vmem:[%s4 + $0xe8] sm:$0xf] %vm1108, %v1038
    %1168 = vst.msk [vmem:[%s4 + $0xec] sm:$0xf] %vm1108, %v1039
    %1169 = vst.msk [vmem:[%s4 + $0xf0] sm:$0xf] %vm1108, %v1040
    %1170 = vst.msk [vmem:[%s4 + $0xf4] sm:$0xf] %vm1108, %v1041
    %1171 = vst.msk [vmem:[%s4 + $0xf8] sm:$0xf] %vm1108, %v1042
    %1172 = vst.msk [vmem:[%s4 + $0xfc] sm:$0xf] %vm1108, %v1043
    // Predicated region
    $region18: #{dense_projection_forward.10} parent=1 // pred_check
      _
    $region19: #{dense_projection_forward.10} parent=1 // pred_check_branch
      %1174 = sbr.rel (0) target = $region21
    $region20: #{dense_projection_forward.10} parent=1 // pred_region
      _
    $region21: #{dense_projection_forward.10} parent=1 // pred_fallthru
      _
    // Predicated region
    $region22: #{dense_projection_forward.10} parent=1 // pred_check
      _
    $region23: #{dense_projection_forward.10} parent=1 // pred_check_branch
      %1176 = sbr.rel (0) target = $region25
    $region24: #{dense_projection_forward.10} parent=1 // pred_region
      _
    $region25: #{dense_projection_forward.10} parent=1 // pred_fallthru
      _

// kernel: dense_projection_forward.9
$region0: #{dense_projection_forward.9}
  #allocation0 [shape = 'u32[]', space=smem, size = 0x4, offset = 0x4, fixed_abs, tag = 'smem constant byte address 0x4 - core index']
  #allocation1 [shape = 'u32[144,128]{1,0:T(1,128)}', space=vmem, size = 0x12000, scoped, tag = 'internal scratch']
  %s0 = inlined_call_operand.vmem [shape: bf16[4,72,8], index: 0, kind: input, shape index: {}]
  %s1 = inlined_call_operand.vmem [shape: bf16[512,72], index: 1, kind: input, shape index: {}]
  %s2 = inlined_call_operand.vmem [shape: f32[8], index: 2, kind: input, shape index: {}]
  %s3 = inlined_call_operand.vmem [shape: f32[8], index: 3, kind: input, shape index: {}]
  %s4 = inlined_call_operand.vmem [shape: bf16[4,512,8], index: 4, kind: output, shape index: {}]
  %s5 = sld [smem:[#allocation0]]
  $region49: #{dense_projection_forward.9} parent=0
    _
  %s7 = ssub.s32 1, %s5
  %s8 = scalar_select 0, %s7, %s5
  loop: start=0, step=1, limit=6
  $region2: #{dense_projection_forward.9} parent=0 // loop_pre_header
    _
  $region3: #{dense_projection_forward.9} parent=0 // loop_header
    %s10 = sphi 0, %s14
    %p11 = scmp.ge.s32.totalorder %s10, 6
    %s17 = sphi 0, %s29
    %s18 = sphi 0, %s25
    %s19 = sphi 0, %s17
    %s20 = sphi 0, %s18
    %s21 = sphi 0, %s19
    %s22 = sphi 0, %s20
    %s36 = sphi 0, %s38
    %s39 = sphi 0, %s36
    %s40 = sphi 0, %s39
    %s56 = sphi 0, %s40
    %s62 = sphi 0, %s64
    %s65 = sphi 0, %s62
    %s66 = sphi 0, %s65
    %s82 = sphi 0, %s66
    %s86 = sphi 0, %s86
    %s88 = sphi 0, %s86
    %s89 = sphi 0, %s88
    %s103 = sphi 0, %s89
    %s107 = sphi 0, %s107
    %s109 = sphi 0, %s107
    %s110 = sphi 0, %s109
    %s124 = sphi 0, %s110
    %s132 = sphi 0, %s134
    %s135 = sphi 0, %s132
    %s136 = sphi 0, %s135
    %s152 = sphi 0, %s136
  $region4: #{dense_projection_forward.9} parent=0 // loop_header_branch
    %13 = sbr.rel (%p11) target = $region8
  $region5: #{dense_projection_forward.9} parent=0 // loop_body
    %s15 = ssub.s32 %s10, 1
    %s16 = ssub.s32 %s10, 2
    %s23 = sadd.s32 1, %s18
    %p24 = scmp.ge.s32.totalorder %s23, 1
    %s25 = scalar_select %p24, 0, %s23
    %s26 = sadd.s32 1, %s17
    %s27 = scalar_select %p24, %s26, %s17
    %p28 = scmp.ge.s32.totalorder %s27, 4
    %s29 = scalar_select %p28, 0, %s27
    %s30 = smul.addr %s18, 512
    %s31 = sshrl.u32 %s30, 3
    %s32 = smul.addr %s25, 512
    %s33 = sshrl.u32 %s32, 3
    %s34 = ssub.s32 %s31, %s33
    %p35 = scmp.eq.s32.totalorder %s34, 0
    %s37 = sadd.s32 %s36, 1
    %s38 = scalar_select %p35, %s36, %s37
    %p41 = pneg %p35
    %p42 = scmp.eq.s32.totalorder %s10, 3
    %p43 = por %p41, %p42
    %p44 = scmp.ne.s32.totalorder %s36, %s39
    %p45 = scmp.eq.s32.totalorder %s10, 0
    %p46 = por %p44, %p45
    %p47 = scmp.ne.s32.totalorder %s36, %s39
    %p48 = scmp.eq.s32.totalorder %s15, 3
    %p49 = por %p47, %p48
    %p50 = scmp.ne.s32.totalorder %s39, %s40
    %p51 = scmp.eq.s32.totalorder %s15, 0
    %p52 = por %p50, %p51
    %p53 = scmp.ne.s32.totalorder %s39, %s40
    %p54 = scmp.eq.s32.totalorder %s16, 3
    %p55 = por %p53, %p54
    %p57 = scmp.ne.s32.totalorder %s40, %s56
    %p58 = scmp.eq.s32.totalorder %s16, 0
    %p59 = por %p57, %p58
    %s60 = ssub.s32 %s17, %s29
    %p61 = scmp.eq.s32.totalorder %s60, 0
    %s63 = sadd.s32 %s62, 1
    %s64 = scalar_select %p61, %s62, %s63
    %p67 = pneg %p61
    %p68 = scmp.eq.s32.totalorder %s10, 3
    %p69 = por %p67, %p68
    %p70 = scmp.ne.s32.totalorder %s62, %s65
    %p71 = scmp.eq.s32.totalorder %s10, 0
    %p72 = por %p70, %p71
    %p73 = scmp.ne.s32.totalorder %s62, %s65
    %p74 = scmp.eq.s32.totalorder %s15, 3
    %p75 = por %p73, %p74
    %p76 = scmp.ne.s32.totalorder %s65, %s66
    %p77 = scmp.eq.s32.totalorder %s15, 0
    %p78 = por %p76, %p77
    %p79 = scmp.ne.s32.totalorder %s65, %s66
    %p80 = scmp.eq.s32.totalorder %s16, 3
    %p81 = por %p79, %p80
    %p83 = scmp.ne.s32.totalorder %s66, %s82
    %p84 = scmp.eq.s32.totalorder %s16, 0
    %p85 = por %p83, %p84
    %s87 = sadd.s32 %s86, 1
    %p90 = scmp.eq.s32.totalorder %s10, 3
    %p91 = scmp.ne.s32.totalorder %s86, %s88
    %p92 = scmp.eq.s32.totalorder %s10, 0
    %p93 = por %p91, %p92
    %p94 = scmp.ne.s32.totalorder %s86, %s88
    %p95 = scmp.eq.s32.totalorder %s15, 3
    %p96 = por %p94, %p95
    %p97 = scmp.ne.s32.totalorder %s88, %s89
    %p98 = scmp.eq.s32.totalorder %s15, 0
    %p99 = por %p97, %p98
    %p100 = scmp.ne.s32.totalorder %s88, %s89
    %p101 = scmp.eq.s32.totalorder %s16, 3
    %p102 = por %p100, %p101
    %p104 = scmp.ne.s32.totalorder %s89, %s103
    %p105 = scmp.eq.s32.totalorder %s16, 0
    %p106 = por %p104, %p105
    %s108 = sadd.s32 %s107, 1
    %p111 = scmp.eq.s32.totalorder %s10, 3
    %p112 = scmp.ne.s32.totalorder %s107, %s109
    %p113 = scmp.eq.s32.totalorder %s10, 0
    %p114 = por %p112, %p113
    %p115 = scmp.ne.s32.totalorder %s107, %s109
    %p116 = scmp.eq.s32.totalorder %s15, 3
    %p117 = por %p115, %p116
    %p118 = scmp.ne.s32.totalorder %s109, %s110
    %p119 = scmp.eq.s32.totalorder %s15, 0
    %p120 = por %p118, %p119
    %p121 = scmp.ne.s32.totalorder %s109, %s110
    %p122 = scmp.eq.s32.totalorder %s16, 3
    %p123 = por %p121, %p122
    %p125 = scmp.ne.s32.totalorder %s110, %s124
    %p126 = scmp.eq.s32.totalorder %s16, 0
    %p127 = por %p125, %p126
    %s128 = ssub.s32 %s17, %s29
    %s129 = ssub.s32 %s18, %s25
    %s130 = sor.u32 %s128, %s129
    %p131 = scmp.eq.s32.totalorder %s130, 0
    %s133 = sadd.s32 %s132, 1
    %s134 = scalar_select %p131, %s132, %s133
    %p137 = pneg %p131
    %p138 = scmp.eq.s32.totalorder %s10, 3
    %p139 = por %p137, %p138
    %p140 = scmp.ne.s32.totalorder %s132, %s135
    %p141 = scmp.eq.s32.totalorder %s10, 0
    %p142 = por %p140, %p141
    %p143 = scmp.ne.s32.totalorder %s132, %s135
    %p144 = scmp.eq.s32.totalorder %s15, 3
    %p145 = por %p143, %p144
    %p146 = scmp.ne.s32.totalorder %s135, %s136
    %p147 = scmp.eq.s32.totalorder %s15, 0
    %p148 = por %p146, %p147
    %p149 = scmp.ne.s32.totalorder %s135, %s136
    %p150 = scmp.eq.s32.totalorder %s16, 3
    %p151 = por %p149, %p150
    %p153 = scmp.ne.s32.totalorder %s136, %s152
    %p154 = scmp.eq.s32.totalorder %s16, 0
    %p155 = por %p153, %p154
    %p156 = scmp.le.s32.totalorder 1, %s10
    %p157 = scmp.lt.s32.totalorder %s10, 5
    %p158 = pnand %p156, %p157
    %p159 = pneg %p158
    // Predicated region
    $region9: #{dense_projection_forward.9} parent=5 // pred_check
      _
    $region10: #{dense_projection_forward.9} parent=5 // pred_check_branch
      %161 = sbr.rel (%p158) target = $region12
    $region11: #{dense_projection_forward.9} parent=5 // pred_region
      %s162 = ssub.s32 %s10, 1
      // Predicated region
      $region13: #{dense_projection_forward.9} parent=11 // pred_check
        %p163 = pneg %p99
      $region14: #{dense_projection_forward.9} parent=11 // pred_check_branch
        %165 = sbr.rel (%p163) target = $region16
      $region15: #{dense_projection_forward.9} parent=11 // pred_region
        _
      $region16: #{dense_projection_forward.9} parent=11 // pred_fallthru
        _
      // Predicated region
      $region17: #{dense_projection_forward.9} parent=11 // pred_check
        %p166 = pneg %p120
      $region18: #{dense_projection_forward.9} parent=11 // pred_check_branch
        %168 = sbr.rel (%p166) target = $region20
      $region19: #{dense_projection_forward.9} parent=11 // pred_region
        _
      $region20: #{dense_projection_forward.9} parent=11 // pred_fallthru
        _
    $region12: #{dense_projection_forward.9} parent=5 // pred_fallthru
      _
    %p169 = scmp.lt.s32.totalorder %s10, 4
    // Predicated region
    $region21: #{dense_projection_forward.9} parent=5 // pred_check
      %p170 = pneg %p169
    $region22: #{dense_projection_forward.9} parent=5 // pred_check_branch
      %172 = sbr.rel (%p170) target = $region24
    $region23: #{dense_projection_forward.9} parent=5 // pred_region
      // Predicated region
      $region25: #{dense_projection_forward.9} parent=23 // pred_check
        %p173 = pneg %p46
      $region26: #{dense_projection_forward.9} parent=23 // pred_check_branch
        %175 = sbr.rel (%p173) target = $region28
      $region27: #{dense_projection_forward.9} parent=23 // pred_region
        %s176 = smul.addr %s18, 512
        %s177 = sshrl.u32 %s176, 3
        %p178 = scmp.lt.s32.totalorder %s177, 63
        %s179 = scalar_select %p178, %s177, 63
        %s180 = smul.addr %s179, 4
        %s181 = scalar_lea.vmem %s1, %s180
        %s182 = smul.addr %s18, 512
        %s183 = sshrl.u32 %s182, 3
      $region28: #{dense_projection_forward.9} parent=23 // pred_fallthru
        _
      // Predicated region
      $region29: #{dense_projection_forward.9} parent=23 // pred_check
        %p184 = pneg %p72
      $region30: #{dense_projection_forward.9} parent=23 // pred_check_branch
        %186 = sbr.rel (%p184) target = $region32
      $region31: #{dense_projection_forward.9} parent=23 // pred_region
        %p187 = scmp.lt.s32.totalorder %s17, 3
        %s188 = scalar_select %p187, %s17, 3
        %s189 = smul.addr %s188, 9
        %s190 = smul.addr %s189, 4
        %s191 = scalar_lea.vmem %s0, %s190
      $region32: #{dense_projection_forward.9} parent=23 // pred_fallthru
        _
    $region24: #{dense_projection_forward.9} parent=5 // pred_fallthru
      _
    %p192 = scmp.le.s32.totalorder 1, %s10
    %p193 = scmp.lt.s32.totalorder %s10, 5
    %p194 = pnand %p192, %p193
    %p195 = pneg %p194
    // Predicated region
    $region33: #{dense_projection_forward.9} parent=5 // pred_check
      _
    $region34: #{dense_projection_forward.9} parent=5 // pred_check_branch
      %197 = sbr.rel (%p194) target = $region36
    $region35: #{dense_projection_forward.9} parent=5 // pred_region
      #allocation2 [shape = 'u8[131072]{0}', space=vmem, size = 0x20000, dematerialized = true, scoped, tag = 'FusionAdapter Buffer %fusion.3 = bf16[4,512,72]{2,1,0:T(8,128)(2,1)} fusion(%param_1.33), kind=kLoop, calls=%fused_computation.19.clone, metadata={op_name="jit(dense_projection_forward)/concatenate" stack_frame_id=26}']
      #allocation3 [shape = 'u8[512]{0}', space=vmem, size = 0x400, dematerialized = true, scoped, tag = 'FusionAdapter Buffer %fusion.13 = f32[1,8]{1,0:T(1,128)} fusion(%param_3.25), kind=kLoop, calls=%fused_computation.105.clone, metadata={op_name="jit(dense_projection_forward)/reshape" stack_frame_id=29}']
      #allocation4 [shape = 'u8[512]{0}', space=vmem, size = 0x400, dematerialized = true, scoped, tag = 'FusionAdapter Buffer %fusion.12 = f32[1,8]{1,0:T(1,128)} fusion(%param_2.20), kind=kLoop, calls=%fused_computation.104.clone, metadata={op_name="jit(dense_projection_forward)/reshape" stack_frame_id=30}']
      %s198 = ssub.s32 %s10, 1
      %s199 = smul.addr %s20, 512
      %s200 = sshrl.u32 %s199, 3
      %p201 = scmp.lt.s32.totalorder %s200, 63
      %s202 = scalar_select %p201, %s200, 63
      %s203 = smul.addr %s202, 4
      %s204 = scalar_lea.vmem %s1, %s203
      %p205 = pneg %p52
      %p206 = pneg %p49
      %p207 = scmp.lt.s32.totalorder %s19, 3
      %s208 = scalar_select %p207, %s19, 3
      %s209 = smul.addr %s208, 9
      %s210 = smul.addr %s209, 4
      %s211 = scalar_lea.vmem %s0, %s210
      %p212 = pneg %p78
      %p213 = pneg %p75
      %p214 = pneg %p99
      %p215 = pneg %p96
      %p216 = pneg %p120
      %p217 = pneg %p117
      %p218 = pneg %p148
      %p219 = pneg %p145
      %s220 = smul.u32 64, %s20
      %p221 = scmp.lt.s32.totalorder %s19, 3
      %s222 = scalar_select %p221, %s19, 3
      %p223 = scmp.lt.s32.totalorder %s220, 63
      %s224 = scalar_select %p223, %s220, 63
      %s225 = smul.addr %s222, 64
      %s226 = sadd.s32 %s224, %s225
      %s227 = smul.addr %s226, 4
      %s228 = scalar_lea.vmem %s4, %s227
      %s229 = smul.addr %s20, 512
      %s230 = sshrl.u32 %s229, 3
      %p231 = scmp.lt.s32.totalorder %s230, 63
      %s232 = scalar_select %p231, %s230, 63
      %s233 = smul.addr %s232, 4
      %s234 = scalar_lea.vmem %s1, %s233
      %s235 = smul.addr %s20, 512
      %s236 = sshrl.u32 %s235, 3
      %p237 = scmp.lt.s32.totalorder %s19, 3
      %s238 = scalar_select %p237, %s19, 3
      %s239 = smul.addr %s238, 9
      %s240 = smul.addr %s239, 4
      %s241 = scalar_lea.vmem %s0, %s240
      %s242 = smul.u32 64, %s20
      %p243 = scmp.lt.s32.totalorder %s19, 3
      %s244 = scalar_select %p243, %s19, 3
      %p245 = scmp.lt.s32.totalorder %s242, 63
      %s246 = scalar_select %p245, %s242, 63
      %s247 = smul.addr %s244, 64
      %s248 = sadd.s32 %s246, %s247
      %s249 = smul.addr %s248, 4
      %s250 = scalar_lea.vmem %s4, %s249
      %s251 = smul.u32 64, %s20
      %s252 = smul.addr %s20, 64
      %s253 = smul.addr %s252, 8
      %s254 = smul.addr %s236, 4
      %s255 = scalar_lea.vmem %s1, %s254
      %v256 = vld [vmem:[%s255] sm:$0xf]
      %v257 = vunpack.c.l.bf16 %v256
      %v258 = vunpack.c.h.bf16 %v256
      %v259 = vpack.c.bf16 0.0, %v257
      %261 = vst [vmem:[#allocation2] sm:$0xf] %v259
      %s262 = sadd.s32 1, %s236
      %s263 = smul.addr %s262, 4
      %s264 = scalar_lea.vmem %s1, %s263
      %v265 = vld [vmem:[%s264] sm:$0xf]
      %v266 = vunpack.c.l.bf16 %v265
      %v267 = vunpack.c.h.bf16 %v265
      %s268 = scalar_lea.vmem [#allocation2], 4
      %v269 = vpack.c.bf16 0.0, %v266
      %271 = vst [vmem:[%s268] sm:$0xf] %v269
      %s272 = sadd.s32 2, %s236
      %s273 = smul.addr %s272, 4
      %s274 = scalar_lea.vmem %s1, %s273
      %v275 = vld [vmem:[%s274] sm:$0xf]
      %v276 = vunpack.c.l.bf16 %v275
      %v277 = vunpack.c.h.bf16 %v275
      %s278 = scalar_lea.vmem [#allocation2], 8
      %v279 = vpack.c.bf16 0.0, %v276
      %281 = vst [vmem:[%s278] sm:$0xf] %v279
      %s282 = sadd.s32 3, %s236
      %s283 = smul.addr %s282, 4
      %s284 = scalar_lea.vmem %s1, %s283
      %v285 = vld [vmem:[%s284] sm:$0xf]
      %v286 = vunpack.c.l.bf16 %v285
      %v287 = vunpack.c.h.bf16 %v285
      %s288 = scalar_lea.vmem [#allocation2], 12
      %v289 = vpack.c.bf16 0.0, %v286
      %291 = vst [vmem:[%s288] sm:$0xf] %v289
      %s292 = sadd.s32 4, %s236
      %s293 = smul.addr %s292, 4
      %s294 = scalar_lea.vmem %s1, %s293
      %v295 = vld [vmem:[%s294] sm:$0xf]
      %v296 = vunpack.c.l.bf16 %v295
      %v297 = vunpack.c.h.bf16 %v295
      %s298 = scalar_lea.vmem [#allocation2], 16
      %v299 = vpack.c.bf16 0.0, %v296
      %301 = vst [vmem:[%s298] sm:$0xf] %v299
      %s302 = sadd.s32 5, %s236
      %s303 = smul.addr %s302, 4
      %s304 = scalar_lea.vmem %s1, %s303
      %v305 = vld [vmem:[%s304] sm:$0xf]
      %v306 = vunpack.c.l.bf16 %v305
      %v307 = vunpack.c.h.bf16 %v305
      %s308 = scalar_lea.vmem [#allocation2], 20
      %v309 = vpack.c.bf16 0.0, %v306
      %311 = vst [vmem:[%s308] sm:$0xf] %v309
      %s312 = sadd.s32 6, %s236
      %s313 = smul.addr %s312, 4
      %s314 = scalar_lea.vmem %s1, %s313
      %v315 = vld [vmem:[%s314] sm:$0xf]
      %v316 = vunpack.c.l.bf16 %v315
      %v317 = vunpack.c.h.bf16 %v315
      %s318 = scalar_lea.vmem [#allocation2], 24
      %v319 = vpack.c.bf16 0.0, %v316
      %321 = vst [vmem:[%s318] sm:$0xf] %v319
      %s322 = sadd.s32 7, %s236
      %s323 = smul.addr %s322, 4
      %s324 = scalar_lea.vmem %s1, %s323
      %v325 = vld [vmem:[%s324] sm:$0xf]
      %v326 = vunpack.c.l.bf16 %v325
      %v327 = vunpack.c.h.bf16 %v325
      %s328 = scalar_lea.vmem [#allocation2], 28
      %v329 = vpack.c.bf16 0.0, %v326
      %331 = vst [vmem:[%s328] sm:$0xf] %v329
      %s332 = sadd.s32 8, %s236
      %s333 = smul.addr %s332, 4
      %s334 = scalar_lea.vmem %s1, %s333
      %v335 = vld [vmem:[%s334] sm:$0xf]
      %v336 = vunpack.c.l.bf16 %v335
      %v337 = vunpack.c.h.bf16 %v335
      %s338 = scalar_lea.vmem [#allocation2], 32
      %v339 = vpack.c.bf16 0.0, %v336
      %341 = vst [vmem:[%s338] sm:$0xf] %v339
      %s342 = sadd.s32 9, %s236
      %s343 = smul.addr %s342, 4
      %s344 = scalar_lea.vmem %s1, %s343
      %v345 = vld [vmem:[%s344] sm:$0xf]
      %v346 = vunpack.c.l.bf16 %v345
      %v347 = vunpack.c.h.bf16 %v345
      %s348 = scalar_lea.vmem [#allocation2], 36
      %v349 = vpack.c.bf16 0.0, %v346
      %351 = vst [vmem:[%s348] sm:$0xf] %v349
      %s352 = sadd.s32 10, %s236
      %s353 = smul.addr %s352, 4
      %s354 = scalar_lea.vmem %s1, %s353
      %v355 = vld [vmem:[%s354] sm:$0xf]
      %v356 = vunpack.c.l.bf16 %v355
      %v357 = vunpack.c.h.bf16 %v355
      %s358 = scalar_lea.vmem [#allocation2], 40
      %v359 = vpack.c.bf16 0.0, %v356
      %361 = vst [vmem:[%s358] sm:$0xf] %v359
      %s362 = sadd.s32 11, %s236
      %s363 = smul.addr %s362, 4
      %s364 = scalar_lea.vmem %s1, %s363
      %v365 = vld [vmem:[%s364] sm:$0xf]
      %v366 = vunpack.c.l.bf16 %v365
      %v367 = vunpack.c.h.bf16 %v365
      %s368 = scalar_lea.vmem [#allocation2], 44
      %v369 = vpack.c.bf16 0.0, %v366
      %371 = vst [vmem:[%s368] sm:$0xf] %v369
      %s372 = sadd.s32 12, %s236
      %s373 = smul.addr %s372, 4
      %s374 = scalar_lea.vmem %s1, %s373
      %v375 = vld [vmem:[%s374] sm:$0xf]
      %v376 = vunpack.c.l.bf16 %v375
      %v377 = vunpack.c.h.bf16 %v375
      %s378 = scalar_lea.vmem [#allocation2], 48
      %v379 = vpack.c.bf16 0.0, %v376
      %381 = vst [vmem:[%s378] sm:$0xf] %v379
      %s382 = sadd.s32 13, %s236
      %s383 = smul.addr %s382, 4
      %s384 = scalar_lea.vmem %s1, %s383
      %v385 = vld [vmem:[%s384] sm:$0xf]
      %v386 = vunpack.c.l.bf16 %v385
      %v387 = vunpack.c.h.bf16 %v385
      %s388 = scalar_lea.vmem [#allocation2], 52
      %v389 = vpack.c.bf16 0.0, %v386
      %391 = vst [vmem:[%s388] sm:$0xf] %v389
      %s392 = sadd.s32 14, %s236
      %s393 = smul.addr %s392, 4
      %s394 = scalar_lea.vmem %s1, %s393
      %v395 = vld [vmem:[%s394] sm:$0xf]
      %v396 = vunpack.c.l.bf16 %v395
      %v397 = vunpack.c.h.bf16 %v395
      %s398 = scalar_lea.vmem [#allocation2], 56
      %v399 = vpack.c.bf16 0.0, %v396
      %401 = vst [vmem:[%s398] sm:$0xf] %v399
      %s402 = sadd.s32 15, %s236
      %s403 = smul.addr %s402, 4
      %s404 = scalar_lea.vmem %s1, %s403
      %v405 = vld [vmem:[%s404] sm:$0xf]
      %v406 = vunpack.c.l.bf16 %v405
      %v407 = vunpack.c.h.bf16 %v405
      %s408 = scalar_lea.vmem [#allocation2], 60
      %v409 = vpack.c.bf16 0.0, %v406
      %411 = vst [vmem:[%s408] sm:$0xf] %v409
      %s412 = sadd.s32 16, %s236
      %s413 = smul.addr %s412, 4
      %s414 = scalar_lea.vmem %s1, %s413
      %v415 = vld [vmem:[%s414] sm:$0xf]
      %v416 = vunpack.c.l.bf16 %v415
      %v417 = vunpack.c.h.bf16 %v415
      %s418 = scalar_lea.vmem [#allocation2], 64
      %v419 = vpack.c.bf16 0.0, %v416
      %421 = vst [vmem:[%s418] sm:$0xf] %v419
      %s422 = sadd.s32 17, %s236
      %s423 = smul.addr %s422, 4
      %s424 = scalar_lea.vmem %s1, %s423
      %v425 = vld [vmem:[%s424] sm:$0xf]
      %v426 = vunpack.c.l.bf16 %v425
      %v427 = vunpack.c.h.bf16 %v425
      %s428 = scalar_lea.vmem [#allocation2], 68
      %v429 = vpack.c.bf16 0.0, %v426
      %431 = vst [vmem:[%s428] sm:$0xf] %v429
      %s432 = sadd.s32 18, %s236
      %s433 = smul.addr %s432, 4
      %s434 = scalar_lea.vmem %s1, %s433
      %v435 = vld [vmem:[%s434] sm:$0xf]
      %v436 = vunpack.c.l.bf16 %v435
      %v437 = vunpack.c.h.bf16 %v435
      %s438 = scalar_lea.vmem [#allocation2], 72
      %v439 = vpack.c.bf16 0.0, %v436
      %441 = vst [vmem:[%s438] sm:$0xf] %v439
      %s442 = sadd.s32 19, %s236
      %s443 = smul.addr %s442, 4
      %s444 = scalar_lea.vmem %s1, %s443
      %v445 = vld [vmem:[%s444] sm:$0xf]
      %v446 = vunpack.c.l.bf16 %v445
      %v447 = vunpack.c.h.bf16 %v445
      %s448 = scalar_lea.vmem [#allocation2], 76
      %v449 = vpack.c.bf16 0.0, %v446
      %451 = vst [vmem:[%s448] sm:$0xf] %v449
      %s452 = sadd.s32 20, %s236
      %s453 = smul.addr %s452, 4
      %s454 = scalar_lea.vmem %s1, %s453
      %v455 = vld [vmem:[%s454] sm:$0xf]
      %v456 = vunpack.c.l.bf16 %v455
      %v457 = vunpack.c.h.bf16 %v455
      %s458 = scalar_lea.vmem [#allocation2], 80
      %v459 = vpack.c.bf16 0.0, %v456
      %461 = vst [vmem:[%s458] sm:$0xf] %v459
      %s462 = sadd.s32 21, %s236
      %s463 = smul.addr %s462, 4
      %s464 = scalar_lea.vmem %s1, %s463
      %v465 = vld [vmem:[%s464] sm:$0xf]
      %v466 = vunpack.c.l.bf16 %v465
      %v467 = vunpack.c.h.bf16 %v465
      %s468 = scalar_lea.vmem [#allocation2], 84
      %v469 = vpack.c.bf16 0.0, %v466
      %471 = vst [vmem:[%s468] sm:$0xf] %v469
      %s472 = sadd.s32 22, %s236
      %s473 = smul.addr %s472, 4
      %s474 = scalar_lea.vmem %s1, %s473
      %v475 = vld [vmem:[%s474] sm:$0xf]
      %v476 = vunpack.c.l.bf16 %v475
      %v477 = vunpack.c.h.bf16 %v475
      %s478 = scalar_lea.vmem [#allocation2], 88
      %v479 = vpack.c.bf16 0.0, %v476
      %481 = vst [vmem:[%s478] sm:$0xf] %v479
      %s482 = sadd.s32 23, %s236
      %s483 = smul.addr %s482, 4
      %s484 = scalar_lea.vmem %s1, %s483
      %v485 = vld [vmem:[%s484] sm:$0xf]
      %v486 = vunpack.c.l.bf16 %v485
      %v487 = vunpack.c.h.bf16 %v485
      %s488 = scalar_lea.vmem [#allocation2], 92
      %v489 = vpack.c.bf16 0.0, %v486
      %491 = vst [vmem:[%s488] sm:$0xf] %v489
      %s492 = sadd.s32 24, %s236
      %s493 = smul.addr %s492, 4
      %s494 = scalar_lea.vmem %s1, %s493
      %v495 = vld [vmem:[%s494] sm:$0xf]
      %v496 = vunpack.c.l.bf16 %v495
      %v497 = vunpack.c.h.bf16 %v495
      %s498 = scalar_lea.vmem [#allocation2], 96
      %v499 = vpack.c.bf16 0.0, %v496
      %501 = vst [vmem:[%s498] sm:$0xf] %v499
      %s502 = sadd.s32 25, %s236
      %s503 = smul.addr %s502, 4
      %s504 = scalar_lea.vmem %s1, %s503
      %v505 = vld [vmem:[%s504] sm:$0xf]
      %v506 = vunpack.c.l.bf16 %v505
      %v507 = vunpack.c.h.bf16 %v505
      %s508 = scalar_lea.vmem [#allocation2], 100
      %v509 = vpack.c.bf16 0.0, %v506
      %511 = vst [vmem:[%s508] sm:$0xf] %v509
      %s512 = sadd.s32 26, %s236
      %s513 = smul.addr %s512, 4
      %s514 = scalar_lea.vmem %s1, %s513
      %v515 = vld [vmem:[%s514] sm:$0xf]
      %v516 = vunpack.c.l.bf16 %v515
      %v517 = vunpack.c.h.bf16 %v515
      %s518 = scalar_lea.vmem [#allocation2], 104
      %v519 = vpack.c.bf16 0.0, %v516
      %521 = vst [vmem:[%s518] sm:$0xf] %v519
      %s522 = sadd.s32 27, %s236
      %s523 = smul.addr %s522, 4
      %s524 = scalar_lea.vmem %s1, %s523
      %v525 = vld [vmem:[%s524] sm:$0xf]
      %v526 = vunpack.c.l.bf16 %v525
      %v527 = vunpack.c.h.bf16 %v525
      %s528 = scalar_lea.vmem [#allocation2], 108
      %v529 = vpack.c.bf16 0.0, %v526
      %531 = vst [vmem:[%s528] sm:$0xf] %v529
      %s532 = sadd.s32 28, %s236
      %s533 = smul.addr %s532, 4
      %s534 = scalar_lea.vmem %s1, %s533
      %v535 = vld [vmem:[%s534] sm:$0xf]
      %v536 = vunpack.c.l.bf16 %v535
      %v537 = vunpack.c.h.bf16 %v535
      %s538 = scalar_lea.vmem [#allocation2], 112
      %v539 = vpack.c.bf16 0.0, %v536
      %541 = vst [vmem:[%s538] sm:$0xf] %v539
      %s542 = sadd.s32 29, %s236
      %s543 = smul.addr %s542, 4
      %s544 = scalar_lea.vmem %s1, %s543
      %v545 = vld [vmem:[%s544] sm:$0xf]
      %v546 = vunpack.c.l.bf16 %v545
      %v547 = vunpack.c.h.bf16 %v545
      %s548 = scalar_lea.vmem [#allocation2], 116
      %v549 = vpack.c.bf16 0.0, %v546
      %551 = vst [vmem:[%s548] sm:$0xf] %v549
      %s552 = sadd.s32 30, %s236
      %s553 = smul.addr %s552, 4
      %s554 = scalar_lea.vmem %s1, %s553
      %v555 = vld [vmem:[%s554] sm:$0xf]
      %v556 = vunpack.c.l.bf16 %v555
      %v557 = vunpack.c.h.bf16 %v555
      %s558 = scalar_lea.vmem [#allocation2], 120
      %v559 = vpack.c.bf16 0.0, %v556
      %561 = vst [vmem:[%s558] sm:$0xf] %v559
      %s562 = sadd.s32 31, %s236
      %s563 = smul.addr %s562, 4
      %s564 = scalar_lea.vmem %s1, %s563
      %v565 = vld [vmem:[%s564] sm:$0xf]
      %v566 = vunpack.c.l.bf16 %v565
      %v567 = vunpack.c.h.bf16 %v565
      %s568 = scalar_lea.vmem [#allocation2], 124
      %v569 = vpack.c.bf16 0.0, %v566
      %571 = vst [vmem:[%s568] sm:$0xf] %v569
      %s572 = sadd.s32 32, %s236
      %s573 = smul.addr %s572, 4
      %s574 = scalar_lea.vmem %s1, %s573
      %v575 = vld [vmem:[%s574] sm:$0xf]
      %v576 = vunpack.c.l.bf16 %v575
      %v577 = vunpack.c.h.bf16 %v575
      %s578 = scalar_lea.vmem [#allocation2], 128
      %v579 = vpack.c.bf16 0.0, %v576
      %581 = vst [vmem:[%s578] sm:$0xf] %v579
      %s582 = sadd.s32 33, %s236
      %s583 = smul.addr %s582, 4
      %s584 = scalar_lea.vmem %s1, %s583
      %v585 = vld [vmem:[%s584] sm:$0xf]
      %v586 = vunpack.c.l.bf16 %v585
      %v587 = vunpack.c.h.bf16 %v585
      %s588 = scalar_lea.vmem [#allocation2], 132
      %v589 = vpack.c.bf16 0.0, %v586
      %591 = vst [vmem:[%s588] sm:$0xf] %v589
      %s592 = sadd.s32 34, %s236
      %s593 = smul.addr %s592, 4
      %s594 = scalar_lea.vmem %s1, %s593
      %v595 = vld [vmem:[%s594] sm:$0xf]
      %v596 = vunpack.c.l.bf16 %v595
      %v597 = vunpack.c.h.bf16 %v595
      %s598 = scalar_lea.vmem [#allocation2], 136
      %v599 = vpack.c.bf16 0.0, %v596
      %601 = vst [vmem:[%s598] sm:$0xf] %v599
      %s602 = sadd.s32 35, %s236
      %s603 = smul.addr %s602, 4
      %s604 = scalar_lea.vmem %s1, %s603
      %v605 = vld [vmem:[%s604] sm:$0xf]
      %v606 = vunpack.c.l.bf16 %v605
      %v607 = vunpack.c.h.bf16 %v605
      %s608 = scalar_lea.vmem [#allocation2], 140
      %v609 = vpack.c.bf16 0.0, %v606
      %611 = vst [vmem:[%s608] sm:$0xf] %v609
      %s612 = sadd.s32 36, %s236
      %s613 = smul.addr %s612, 4
      %s614 = scalar_lea.vmem %s1, %s613
      %v615 = vld [vmem:[%s614] sm:$0xf]
      %v616 = vunpack.c.l.bf16 %v615
      %v617 = vunpack.c.h.bf16 %v615
      %s618 = scalar_lea.vmem [#allocation2], 144
      %v619 = vpack.c.bf16 0.0, %v616
      %621 = vst [vmem:[%s618] sm:$0xf] %v619
      %s622 = sadd.s32 37, %s236
      %s623 = smul.addr %s622, 4
      %s624 = scalar_lea.vmem %s1, %s623
      %v625 = vld [vmem:[%s624] sm:$0xf]
      %v626 = vunpack.c.l.bf16 %v625
      %v627 = vunpack.c.h.bf16 %v625
      %s628 = scalar_lea.vmem [#allocation2], 148
      %v629 = vpack.c.bf16 0.0, %v626
      %631 = vst [vmem:[%s628] sm:$0xf] %v629
      %s632 = sadd.s32 38, %s236
      %s633 = smul.addr %s632, 4
      %s634 = scalar_lea.vmem %s1, %s633
      %v635 = vld [vmem:[%s634] sm:$0xf]
      %v636 = vunpack.c.l.bf16 %v635
      %v637 = vunpack.c.h.bf16 %v635
      %s638 = scalar_lea.vmem [#allocation2], 152
      %v639 = vpack.c.bf16 0.0, %v636
      %641 = vst [vmem:[%s638] sm:$0xf] %v639
      %s642 = sadd.s32 39, %s236
      %s643 = smul.addr %s642, 4
      %s644 = scalar_lea.vmem %s1, %s643
      %v645 = vld [vmem:[%s644] sm:$0xf]
      %v646 = vunpack.c.l.bf16 %v645
      %v647 = vunpack.c.h.bf16 %v645
      %s648 = scalar_lea.vmem [#allocation2], 156
      %v649 = vpack.c.bf16 0.0, %v646
      %651 = vst [vmem:[%s648] sm:$0xf] %v649
      %s652 = sadd.s32 40, %s236
      %s653 = smul.addr %s652, 4
      %s654 = scalar_lea.vmem %s1, %s653
      %v655 = vld [vmem:[%s654] sm:$0xf]
      %v656 = vunpack.c.l.bf16 %v655
      %v657 = vunpack.c.h.bf16 %v655
      %s658 = scalar_lea.vmem [#allocation2], 160
      %v659 = vpack.c.bf16 0.0, %v656
      %661 = vst [vmem:[%s658] sm:$0xf] %v659
      %s662 = sadd.s32 41, %s236
      %s663 = smul.addr %s662, 4
      %s664 = scalar_lea.vmem %s1, %s663
      %v665 = vld [vmem:[%s664] sm:$0xf]
      %v666 = vunpack.c.l.bf16 %v665
      %v667 = vunpack.c.h.bf16 %v665
      %s668 = scalar_lea.vmem [#allocation2], 164
      %v669 = vpack.c.bf16 0.0, %v666
      %671 = vst [vmem:[%s668] sm:$0xf] %v669
      %s672 = sadd.s32 42, %s236
      %s673 = smul.addr %s672, 4
      %s674 = scalar_lea.vmem %s1, %s673
      %v675 = vld [vmem:[%s674] sm:$0xf]
      %v676 = vunpack.c.l.bf16 %v675
      %v677 = vunpack.c.h.bf16 %v675
      %s678 = scalar_lea.vmem [#allocation2], 168
      %v679 = vpack.c.bf16 0.0, %v676
      %681 = vst [vmem:[%s678] sm:$0xf] %v679
      %s682 = sadd.s32 43, %s236
      %s683 = smul.addr %s682, 4
      %s684 = scalar_lea.vmem %s1, %s683
      %v685 = vld [vmem:[%s684] sm:$0xf]
      %v686 = vunpack.c.l.bf16 %v685
      %v687 = vunpack.c.h.bf16 %v685
      %s688 = scalar_lea.vmem [#allocation2], 172
      %v689 = vpack.c.bf16 0.0, %v686
      %691 = vst [vmem:[%s688] sm:$0xf] %v689
      %s692 = sadd.s32 44, %s236
      %s693 = smul.addr %s692, 4
      %s694 = scalar_lea.vmem %s1, %s693
      %v695 = vld [vmem:[%s694] sm:$0xf]
      %v696 = vunpack.c.l.bf16 %v695
      %v697 = vunpack.c.h.bf16 %v695
      %s698 = scalar_lea.vmem [#allocation2], 176
      %v699 = vpack.c.bf16 0.0, %v696
      %701 = vst [vmem:[%s698] sm:$0xf] %v699
      %s702 = sadd.s32 45, %s236
      %s703 = smul.addr %s702, 4
      %s704 = scalar_lea.vmem %s1, %s703
      %v705 = vld [vmem:[%s704] sm:$0xf]
      %v706 = vunpack.c.l.bf16 %v705
      %v707 = vunpack.c.h.bf16 %v705
      %s708 = scalar_lea.vmem [#allocation2], 180
      %v709 = vpack.c.bf16 0.0, %v706
      %711 = vst [vmem:[%s708] sm:$0xf] %v709
      %s712 = sadd.s32 46, %s236
      %s713 = smul.addr %s712, 4
      %s714 = scalar_lea.vmem %s1, %s713
      %v715 = vld [vmem:[%s714] sm:$0xf]
      %v716 = vunpack.c.l.bf16 %v715
      %v717 = vunpack.c.h.bf16 %v715
      %s718 = scalar_lea.vmem [#allocation2], 184
      %v719 = vpack.c.bf16 0.0, %v716
      %721 = vst [vmem:[%s718] sm:$0xf] %v719
      %s722 = sadd.s32 47, %s236
      %s723 = smul.addr %s722, 4
      %s724 = scalar_lea.vmem %s1, %s723
      %v725 = vld [vmem:[%s724] sm:$0xf]
      %v726 = vunpack.c.l.bf16 %v725
      %v727 = vunpack.c.h.bf16 %v725
      %s728 = scalar_lea.vmem [#allocation2], 188
      %v729 = vpack.c.bf16 0.0, %v726
      %731 = vst [vmem:[%s728] sm:$0xf] %v729
      %s732 = sadd.s32 48, %s236
      %s733 = smul.addr %s732, 4
      %s734 = scalar_lea.vmem %s1, %s733
      %v735 = vld [vmem:[%s734] sm:$0xf]
      %v736 = vunpack.c.l.bf16 %v735
      %v737 = vunpack.c.h.bf16 %v735
      %s738 = scalar_lea.vmem [#allocation2], 192
      %v739 = vpack.c.bf16 0.0, %v736
      %741 = vst [vmem:[%s738] sm:$0xf] %v739
      %s742 = sadd.s32 49, %s236
      %s743 = smul.addr %s742, 4
      %s744 = scalar_lea.vmem %s1, %s743
      %v745 = vld [vmem:[%s744] sm:$0xf]
      %v746 = vunpack.c.l.bf16 %v745
      %v747 = vunpack.c.h.bf16 %v745
      %s748 = scalar_lea.vmem [#allocation2], 196
      %v749 = vpack.c.bf16 0.0, %v746
      %751 = vst [vmem:[%s748] sm:$0xf] %v749
      %s752 = sadd.s32 50, %s236
      %s753 = smul.addr %s752, 4
      %s754 = scalar_lea.vmem %s1, %s753
      %v755 = vld [vmem:[%s754] sm:$0xf]
      %v756 = vunpack.c.l.bf16 %v755
      %v757 = vunpack.c.h.bf16 %v755
      %s758 = scalar_lea.vmem [#allocation2], 200
      %v759 = vpack.c.bf16 0.0, %v756
      %761 = vst [vmem:[%s758] sm:$0xf] %v759
      %s762 = sadd.s32 51, %s236
      %s763 = smul.addr %s762, 4
      %s764 = scalar_lea.vmem %s1, %s763
      %v765 = vld [vmem:[%s764] sm:$0xf]
      %v766 = vunpack.c.l.bf16 %v765
      %v767 = vunpack.c.h.bf16 %v765
      %s768 = scalar_lea.vmem [#allocation2], 204
      %v769 = vpack.c.bf16 0.0, %v766
      %771 = vst [vmem:[%s768] sm:$0xf] %v769
      %s772 = sadd.s32 52, %s236
      %s773 = smul.addr %s772, 4
      %s774 = scalar_lea.vmem %s1, %s773
      %v775 = vld [vmem:[%s774] sm:$0xf]
      %v776 = vunpack.c.l.bf16 %v775
      %v777 = vunpack.c.h.bf16 %v775
      %s778 = scalar_lea.vmem [#allocation2], 208
      %v779 = vpack.c.bf16 0.0, %v776
      %781 = vst [vmem:[%s778] sm:$0xf] %v779
      %s782 = sadd.s32 53, %s236
      %s783 = smul.addr %s782, 4
      %s784 = scalar_lea.vmem %s1, %s783
      %v785 = vld [vmem:[%s784] sm:$0xf]
      %v786 = vunpack.c.l.bf16 %v785
      %v787 = vunpack.c.h.bf16 %v785
      %s788 = scalar_lea.vmem [#allocation2], 212
      %v789 = vpack.c.bf16 0.0, %v786
      %791 = vst [vmem:[%s788] sm:$0xf] %v789
      %s792 = sadd.s32 54, %s236
      %s793 = smul.addr %s792, 4
      %s794 = scalar_lea.vmem %s1, %s793
      %v795 = vld [vmem:[%s794] sm:$0xf]
      %v796 = vunpack.c.l.bf16 %v795
      %v797 = vunpack.c.h.bf16 %v795
      %s798 = scalar_lea.vmem [#allocation2], 216
      %v799 = vpack.c.bf16 0.0, %v796
      %801 = vst [vmem:[%s798] sm:$0xf] %v799
      %s802 = sadd.s32 55, %s236
      %s803 = smul.addr %s802, 4
      %s804 = scalar_lea.vmem %s1, %s803
      %v805 = vld [vmem:[%s804] sm:$0xf]
      %v806 = vunpack.c.l.bf16 %v805
      %v807 = vunpack.c.h.bf16 %v805
      %s808 = scalar_lea.vmem [#allocation2], 220
      %v809 = vpack.c.bf16 0.0, %v806
      %811 = vst [vmem:[%s808] sm:$0xf] %v809
      %s812 = sadd.s32 56, %s236
      %s813 = smul.addr %s812, 4
      %s814 = scalar_lea.vmem %s1, %s813
      %v815 = vld [vmem:[%s814] sm:$0xf]
      %v816 = vunpack.c.l.bf16 %v815
      %v817 = vunpack.c.h.bf16 %v815
      %s818 = scalar_lea.vmem [#allocation2], 224
      %v819 = vpack.c.bf16 0.0, %v816
      %821 = vst [vmem:[%s818] sm:$0xf] %v819
      %s822 = sadd.s32 57, %s236
      %s823 = smul.addr %s822, 4
      %s824 = scalar_lea.vmem %s1, %s823
      %v825 = vld [vmem:[%s824] sm:$0xf]
      %v826 = vunpack.c.l.bf16 %v825
      %v827 = vunpack.c.h.bf16 %v825
      %s828 = scalar_lea.vmem [#allocation2], 228
      %v829 = vpack.c.bf16 0.0, %v826
      %831 = vst [vmem:[%s828] sm:$0xf] %v829
      %s832 = sadd.s32 58, %s236
      %s833 = smul.addr %s832, 4
      %s834 = scalar_lea.vmem %s1, %s833
      %v835 = vld [vmem:[%s834] sm:$0xf]
      %v836 = vunpack.c.l.bf16 %v835
      %v837 = vunpack.c.h.bf16 %v835
      %s838 = scalar_lea.vmem [#allocation2], 232
      %v839 = vpack.c.bf16 0.0, %v836
      %841 = vst [vmem:[%s838] sm:$0xf] %v839
      %s842 = sadd.s32 59, %s236
      %s843 = smul.addr %s842, 4
      %s844 = scalar_lea.vmem %s1, %s843
      %v845 = vld [vmem:[%s844] sm:$0xf]
      %v846 = vunpack.c.l.bf16 %v845
      %v847 = vunpack.c.h.bf16 %v845
      %s848 = scalar_lea.vmem [#allocation2], 236
      %v849 = vpack.c.bf16 0.0, %v846
      %851 = vst [vmem:[%s848] sm:$0xf] %v849
      %s852 = sadd.s32 60, %s236
      %s853 = smul.addr %s852, 4
      %s854 = scalar_lea.vmem %s1, %s853
      %v855 = vld [vmem:[%s854] sm:$0xf]
      %v856 = vunpack.c.l.bf16 %v855
      %v857 = vunpack.c.h.bf16 %v855
      %s858 = scalar_lea.vmem [#allocation2], 240
      %v859 = vpack.c.bf16 0.0, %v856
      %861 = vst [vmem:[%s858] sm:$0xf] %v859
      %s862 = sadd.s32 61, %s236
      %s863 = smul.addr %s862, 4
      %s864 = scalar_lea.vmem %s1, %s863
      %v865 = vld [vmem:[%s864] sm:$0xf]
      %v866 = vunpack.c.l.bf16 %v865
      %v867 = vunpack.c.h.bf16 %v865
      %s868 = scalar_lea.vmem [#allocation2], 244
      %v869 = vpack.c.bf16 0.0, %v866
      %871 = vst [vmem:[%s868] sm:$0xf] %v869
      %s872 = sadd.s32 62, %s236
      %s873 = smul.addr %s872, 4
      %s874 = scalar_lea.vmem %s1, %s873
      %v875 = vld [vmem:[%s874] sm:$0xf]
      %v876 = vunpack.c.l.bf16 %v875
      %v877 = vunpack.c.h.bf16 %v875
      %s878 = scalar_lea.vmem [#allocation2], 248
      %v879 = vpack.c.bf16 0.0, %v876
      %881 = vst [vmem:[%s878] sm:$0xf] %v879
      %s882 = sadd.s32 63, %s236
      %s883 = smul.addr %s882, 4
      %s884 = scalar_lea.vmem %s1, %s883
      %v885 = vld [vmem:[%s884] sm:$0xf]
      %v886 = vunpack.c.l.bf16 %v885
      %v887 = vunpack.c.h.bf16 %v885
      %s888 = scalar_lea.vmem [#allocation2], 252
      %v889 = vpack.c.bf16 0.0, %v886
      %891 = vst [vmem:[%s888] sm:$0xf] %v889
      %v892 = vld [vmem:[%s3] sm:$0x1]
      %894 = vst [vmem:[#allocation3] sm:$0x1] %v892
      %v895 = vld [vmem:[%s2] sm:$0x1]
      %897 = vst [vmem:[#allocation4] sm:$0x1] %v895
      %v899 = vld [vmem:[#allocation2] sm:$0xf]
      %v900 = vld [vmem:[#allocation2 + $0x4] sm:$0xf]
      %v901 = vld [vmem:[#allocation2 + $0x8] sm:$0xf]
      %v902 = vld [vmem:[#allocation2 + $0xc] sm:$0xf]
      %v903 = vld [vmem:[#allocation2 + $0x10] sm:$0xf]
      %v904 = vld [vmem:[#allocation2 + $0x14] sm:$0xf]
      %v905 = vld [vmem:[#allocation2 + $0x18] sm:$0xf]
      %v906 = vld [vmem:[#allocation2 + $0x1c] sm:$0xf]
      %v907 = vld [vmem:[#allocation2 + $0x20] sm:$0xf]
      %v908 = vld [vmem:[#allocation2 + $0x24] sm:$0xf]
      %v909 = vld [vmem:[#allocation2 + $0x28] sm:$0xf]
      %v910 = vld [vmem:[#allocation2 + $0x2c] sm:$0xf]
      %v911 = vld [vmem:[#allocation2 + $0x30] sm:$0xf]
      %v912 = vld [vmem:[#allocation2 + $0x34] sm:$0xf]
      %v913 = vld [vmem:[#allocation2 + $0x38] sm:$0xf]
      %v914 = vld [vmem:[#allocation2 + $0x3c] sm:$0xf]
      %v915 = vld [vmem:[#allocation2 + $0x40] sm:$0xf]
      %v916 = vld [vmem:[#allocation2 + $0x44] sm:$0xf]
      %v917 = vld [vmem:[#allocation2 + $0x48] sm:$0xf]
      %v918 = vld [vmem:[#allocation2 + $0x4c] sm:$0xf]
      %v919 = vld [vmem:[#allocation2 + $0x50] sm:$0xf]
      %v920 = vld [vmem:[#allocation2 + $0x54] sm:$0xf]
      %v921 = vld [vmem:[#allocation2 + $0x58] sm:$0xf]
      %v922 = vld [vmem:[#allocation2 + $0x5c] sm:$0xf]
      %v923 = vld [vmem:[#allocation2 + $0x60] sm:$0xf]
      %v924 = vld [vmem:[#allocation2 + $0x64] sm:$0xf]
      %v925 = vld [vmem:[#allocation2 + $0x68] sm:$0xf]
      %v926 = vld [vmem:[#allocation2 + $0x6c] sm:$0xf]
      %v927 = vld [vmem:[#allocation2 + $0x70] sm:$0xf]
      %v928 = vld [vmem:[#allocation2 + $0x74] sm:$0xf]
      %v929 = vld [vmem:[#allocation2 + $0x78] sm:$0xf]
      %v930 = vld [vmem:[#allocation2 + $0x7c] sm:$0xf]
      %v931 = vld [vmem:[#allocation2 + $0x80] sm:$0xf]
      %v932 = vld [vmem:[#allocation2 + $0x84] sm:$0xf]
      %v933 = vld [vmem:[#allocation2 + $0x88] sm:$0xf]
      %v934 = vld [vmem:[#allocation2 + $0x8c] sm:$0xf]
      %v935 = vld [vmem:[#allocation2 + $0x90] sm:$0xf]
      %v936 = vld [vmem:[#allocation2 + $0x94] sm:$0xf]
      %v937 = vld [vmem:[#allocation2 + $0x98] sm:$0xf]
      %v938 = vld [vmem:[#allocation2 + $0x9c] sm:$0xf]
      %v939 = vld [vmem:[#allocation2 + $0xa0] sm:$0xf]
      %v940 = vld [vmem:[#allocation2 + $0xa4] sm:$0xf]
      %v941 = vld [vmem:[#allocation2 + $0xa8] sm:$0xf]
      %v942 = vld [vmem:[#allocation2 + $0xac] sm:$0xf]
      %v943 = vld [vmem:[#allocation2 + $0xb0] sm:$0xf]
      %v944 = vld [vmem:[#allocation2 + $0xb4] sm:$0xf]
      %v945 = vld [vmem:[#allocation2 + $0xb8] sm:$0xf]
      %v946 = vld [vmem:[#allocation2 + $0xbc] sm:$0xf]
      %v947 = vld [vmem:[#allocation2 + $0xc0] sm:$0xf]
      %v948 = vld [vmem:[#allocation2 + $0xc4] sm:$0xf]
      %v949 = vld [vmem:[#allocation2 + $0xc8] sm:$0xf]
      %v950 = vld [vmem:[#allocation2 + $0xcc] sm:$0xf]
      %v951 = vld [vmem:[#allocation2 + $0xd0] sm:$0xf]
      %v952 = vld [vmem:[#allocation2 + $0xd4] sm:$0xf]
      %v953 = vld [vmem:[#allocation2 + $0xd8] sm:$0xf]
      %v954 = vld [vmem:[#allocation2 + $0xdc] sm:$0xf]
      %v955 = vld [vmem:[#allocation2 + $0xe0] sm:$0xf]
      %v956 = vld [vmem:[#allocation2 + $0xe4] sm:$0xf]
      %v957 = vld [vmem:[#allocation2 + $0xe8] sm:$0xf]
      %v958 = vld [vmem:[#allocation2 + $0xec] sm:$0xf]
      %v959 = vld [vmem:[#allocation2 + $0xf0] sm:$0xf]
      %v960 = vld [vmem:[#allocation2 + $0xf4] sm:$0xf]
      %v961 = vld [vmem:[#allocation2 + $0xf8] sm:$0xf]
      %v962 = vld [vmem:[#allocation2 + $0xfc] sm:$0xf]
      %v963 = vld [vmem:[%s241] sm:$0xf]
      %v964 = vld [vmem:[%s241 + $0x4] sm:$0xf]
      %v965 = vld [vmem:[%s241 + $0x8] sm:$0xf]
      %v966 = vld [vmem:[%s241 + $0xc] sm:$0xf]
      %v967 = vld [vmem:[%s241 + $0x10] sm:$0xf]
      %v968 = vld [vmem:[%s241 + $0x14] sm:$0xf]
      %v969 = vld [vmem:[%s241 + $0x18] sm:$0xf]
      %v970 = vld [vmem:[%s241 + $0x1c] sm:$0xf]
      %v971 = vld [vmem:[%s241 + $0x20] sm:$0xf]
      %v972 = vld [vmem:[#allocation3] sm:$0x1]
      %v974 = vlaneseq
      %v975 = vshrl.u32 %v974, 7
      %v976 = vsub.s32 0, %v975
      %v977 = vrot.slane %v972, %v976
      %v1043 = vunpack.c.l.b16 %v899
      %v1044 = vunpack.c.l.b16 %v900
      %v1045 = vunpack.c.l.b16 %v901
      %v1046 = vunpack.c.l.b16 %v902
      %v1047 = vunpack.c.l.b16 %v903
      %v1048 = vunpack.c.l.b16 %v904
      %v1049 = vunpack.c.l.b16 %v905
      %v1050 = vunpack.c.l.b16 %v906
      %v1051 = vunpack.c.l.b16 %v907
      %v1052 = vunpack.c.l.b16 %v908
      %v1053 = vunpack.c.l.b16 %v909
      %v1054 = vunpack.c.l.b16 %v910
      %v1055 = vunpack.c.l.b16 %v911
      %v1056 = vunpack.c.l.b16 %v912
      %v1057 = vunpack.c.l.b16 %v913
      %v1058 = vunpack.c.l.b16 %v914
      %v1059 = vunpack.c.l.b16 %v915
      %v1060 = vunpack.c.l.b16 %v916
      %v1061 = vunpack.c.l.b16 %v917
      %v1062 = vunpack.c.l.b16 %v918
      %v1063 = vunpack.c.l.b16 %v919
      %v1064 = vunpack.c.l.b16 %v920
      %v1065 = vunpack.c.l.b16 %v921
      %v1066 = vunpack.c.l.b16 %v922
      %v1067 = vunpack.c.l.b16 %v923
      %v1068 = vunpack.c.l.b16 %v924
      %v1069 = vunpack.c.l.b16 %v925
      %v1070 = vunpack.c.l.b16 %v926
      %v1071 = vunpack.c.l.b16 %v927
      %v1072 = vunpack.c.l.b16 %v928
      %v1073 = vunpack.c.l.b16 %v929
      %v1074 = vunpack.c.l.b16 %v930
      %v1075 = vunpack.c.l.b16 %v931
      %v1076 = vunpack.c.l.b16 %v932
      %v1077 = vunpack.c.l.b16 %v933
      %v1078 = vunpack.c.l.b16 %v934
      %v1079 = vunpack.c.l.b16 %v935
      %v1080 = vunpack.c.l.b16 %v936
      %v1081 = vunpack.c.l.b16 %v937
      %v1082 = vunpack.c.l.b16 %v938
      %v1083 = vunpack.c.l.b16 %v939
      %v1084 = vunpack.c.l.b16 %v940
      %v1085 = vunpack.c.l.b16 %v941
      %v1086 = vunpack.c.l.b16 %v942
      %v1087 = vunpack.c.l.b16 %v943
      %v1088 = vunpack.c.l.b16 %v944
      %v1089 = vunpack.c.l.b16 %v945
      %v1090 = vunpack.c.l.b16 %v946
      %v1091 = vunpack.c.l.b16 %v947
      %v1092 = vunpack.c.l.b16 %v948
      %v1093 = vunpack.c.l.b16 %v949
      %v1094 = vunpack.c.l.b16 %v950
      %v1095 = vunpack.c.l.b16 %v951
      %v1096 = vunpack.c.l.b16 %v952
      %v1097 = vunpack.c.l.b16 %v953
      %v1098 = vunpack.c.l.b16 %v954
      %v1099 = vunpack.c.l.b16 %v955
      %v1100 = vunpack.c.l.b16 %v956
      %v1101 = vunpack.c.l.b16 %v957
      %v1102 = vunpack.c.l.b16 %v958
      %v1103 = vunpack.c.l.b16 %v959
      %v1104 = vunpack.c.l.b16 %v960
      %v1105 = vunpack.c.l.b16 %v961
      %v1106 = vunpack.c.l.b16 %v962
      %v1107 = vpack.c.b16 %v1044, %v1043
      %v1108 = vpack.c.b16 %v1046, %v1045
      %v1109 = vpack.c.b16 %v1048, %v1047
      %v1110 = vpack.c.b16 %v1050, %v1049
      %v1111 = vpack.c.b16 %v1052, %v1051
      %v1112 = vpack.c.b16 %v1054, %v1053
      %v1113 = vpack.c.b16 %v1056, %v1055
      %v1114 = vpack.c.b16 %v1058, %v1057
      %v1115 = vpack.c.b16 %v1060, %v1059
      %v1116 = vpack.c.b16 %v1062, %v1061
      %v1117 = vpack.c.b16 %v1064, %v1063
      %v1118 = vpack.c.b16 %v1066, %v1065
      %v1119 = vpack.c.b16 %v1068, %v1067
      %v1120 = vpack.c.b16 %v1070, %v1069
      %v1121 = vpack.c.b16 %v1072, %v1071
      %v1122 = vpack.c.b16 %v1074, %v1073
      %v1123 = vpack.c.b16 %v1076, %v1075
      %v1124 = vpack.c.b16 %v1078, %v1077
      %v1125 = vpack.c.b16 %v1080, %v1079
      %v1126 = vpack.c.b16 %v1082, %v1081
      %v1127 = vpack.c.b16 %v1084, %v1083
      %v1128 = vpack.c.b16 %v1086, %v1085
      %v1129 = vpack.c.b16 %v1088, %v1087
      %v1130 = vpack.c.b16 %v1090, %v1089
      %v1131 = vpack.c.b16 %v1092, %v1091
      %v1132 = vpack.c.b16 %v1094, %v1093
      %v1133 = vpack.c.b16 %v1096, %v1095
      %v1134 = vpack.c.b16 %v1098, %v1097
      %v1135 = vpack.c.b16 %v1100, %v1099
      %v1136 = vpack.c.b16 %v1102, %v1101
      %v1137 = vpack.c.b16 %v1104, %v1103
      %v1138 = vpack.c.b16 %v1106, %v1105
      %v1148 = vunpack.c.l.b16 %v963
      %v1149 = vunpack.c.l.b16 %v964
      %v1150 = vunpack.c.l.b16 %v965
      %v1151 = vunpack.c.l.b16 %v966
      %v1152 = vunpack.c.l.b16 %v967
      %v1153 = vunpack.c.l.b16 %v968
      %v1154 = vunpack.c.l.b16 %v969
      %v1155 = vunpack.c.l.b16 %v970
      %v1156 = vunpack.c.l.b16 %v971
      %v1157 = vpack.c.b16 %v1149, %v1148
      %v1158 = vpack.c.b16 %v1151, %v1150
      %v1159 = vpack.c.b16 %v1153, %v1152
      %v1160 = vpack.c.b16 %v1155, %v1154
      %v1161 = vpack.c.b16 %v1156, %v1156
      %vm1166 = vcmask 588800
      %v1168 = vsel %vm1166, %v1107, 0
      %v1171 = vsel %vm1166, %v1108, 0
      %v1174 = vsel %vm1166, %v1109, 0
      %v1177 = vsel %vm1166, %v1110, 0
      %v1180 = vsel %vm1166, %v1111, 0
      %v1183 = vsel %vm1166, %v1112, 0
      %v1186 = vsel %vm1166, %v1113, 0
      %v1189 = vsel %vm1166, %v1114, 0
      %v1192 = vsel %vm1166, %v1115, 0
      %v1195 = vsel %vm1166, %v1116, 0
      %v1198 = vsel %vm1166, %v1117, 0
      %v1201 = vsel %vm1166, %v1118, 0
      %v1204 = vsel %vm1166, %v1119, 0
      %v1207 = vsel %vm1166, %v1120, 0
      %v1210 = vsel %vm1166, %v1121, 0
      %v1213 = vsel %vm1166, %v1122, 0
      %v1216 = vsel %vm1166, %v1123, 0
      %v1219 = vsel %vm1166, %v1124, 0
      %v1222 = vsel %vm1166, %v1125, 0
      %v1225 = vsel %vm1166, %v1126, 0
      %v1228 = vsel %vm1166, %v1127, 0
      %v1231 = vsel %vm1166, %v1128, 0
      %v1234 = vsel %vm1166, %v1129, 0
      %v1237 = vsel %vm1166, %v1130, 0
      %v1240 = vsel %vm1166, %v1131, 0
      %v1243 = vsel %vm1166, %v1132, 0
      %v1246 = vsel %vm1166, %v1133, 0
      %v1249 = vsel %vm1166, %v1134, 0
      %v1252 = vsel %vm1166, %v1135, 0
      %v1255 = vsel %vm1166, %v1136, 0
      %v1258 = vsel %vm1166, %v1137, 0
      %v1261 = vsel %vm1166, %v1138, 0
      %vm1263 = vcmask 1043456
      %v1265 = vsel %vm1263, %v1161, 0
      %1267 = vmatprep.subr.bf16.mxu0 0
      %1268 = vmatpush1.bf16.msra.mxu0 %v1157
      %1269 = vmatprep.subr.bf16.mxu0 0
      %1270 = vmatpush1.bf16.msra.mxu0 %v1158
      %1271 = vmatprep.subr.bf16.mxu0 0
      %1272 = vmatpush1.bf16.msra.mxu0 %v1159
      %1273 = vmatprep.subr.bf16.mxu0 0
      %1274 = vmatpush1.bf16.msra.mxu0 %v1160
      %1275 = vmatprep.subr.bf16.mxu0 0
      %1276 = vmatpush1.bf16.msra.mxu0 %v1265
      %1277 = vmatprep.subr.bf16.mxu0 0
      %1278 = vmatpush1.bf16.msra.mxu0 0
      %1279 = vmatprep.subr.bf16.mxu0 0
      %1280 = vmatpush1.bf16.msra.mxu0 0
      %1281 = vmatprep.subr.bf16.mxu0 0
      %1282 = vmatpush1.bf16.msra.mxu0 0
      %1283 = vmatprep.subr.bf16.mxu0 0
      %1284 = vmatpush1.bf16.msra.mxu0 0
      %1285 = vmatprep.subr.bf16.mxu0 0
      %1286 = vmatpush1.bf16.msra.mxu0 0
      %1287 = vmatprep.subr.bf16.mxu0 0
      %1288 = vmatpush1.bf16.msra.mxu0 0
      %1289 = vmatprep.subr.bf16.mxu0 0
      %1290 = vmatpush1.bf16.msra.mxu0 0
      %1291 = vmatprep.subr.bf16.mxu0 0
      %1292 = vmatpush1.bf16.msra.mxu0 0
      %1293 = vmatprep.subr.bf16.mxu0 0
      %1294 = vmatpush1.bf16.msra.mxu0 0
      %1295 = vmatprep.subr.bf16.mxu0 0
      %1296 = vmatpush1.bf16.msra.mxu0 0
      %1297 = vmatprep.subr.bf16.mxu0 0
      %1298 = vmatpush1.bf16.msra.mxu0 0
      %1299 = vmatprep.mubr.bf16.mxu0 0
      %1300 = vmatmul.mubr.bf16.gmra.mrb[0].mxu0 %v1168
      %v1301 = vpop.f32.mrb[0].mxu0
      %v1302 = vadd.f32 %v977, %v1301
      %v1303 = vpop.f32.mrb[0].mxu0
      %v1304 = vpop.f32.mrb[0].mxu0
      %v1305 = vadd.f32 %v977, %v1304
      %v1306 = vpop.f32.mrb[0].mxu0
      %1307 = vmatprep.mubr.bf16.mxu0 0
      %1308 = vmatmul.mubr.bf16.gmra.mrb[0].mxu0 %v1171
      %v1309 = vpop.f32.mrb[0].mxu0
      %v1310 = vadd.f32 %v977, %v1309
      %v1311 = vpop.f32.mrb[0].mxu0
      %v1312 = vpop.f32.mrb[0].mxu0
      %v1313 = vadd.f32 %v977, %v1312
      %v1314 = vpop.f32.mrb[0].mxu0
      %1315 = vmatprep.mubr.bf16.mxu0 0
      %1316 = vmatmul.mubr.bf16.gmra.mrb[0].mxu0 %v1174
      %v1317 = vpop.f32.mrb[0].mxu0
      %v1318 = vadd.f32 %v977, %v1317
      %v1319 = vpop.f32.mrb[0].mxu0
      %v1320 = vpop.f32.mrb[0].mxu0
      %v1321 = vadd.f32 %v977, %v1320
      %v1322 = vpop.f32.mrb[0].mxu0
      %1323 = vmatprep.mubr.bf16.mxu0 0
      %1324 = vmatmul.mubr.bf16.gmra.mrb[0].mxu0 %v1177
      %v1325 = vpop.f32.mrb[0].mxu0
      %v1326 = vadd.f32 %v977, %v1325
      %v1327 = vpop.f32.mrb[0].mxu0
      %v1328 = vpop.f32.mrb[0].mxu0
      %v1329 = vadd.f32 %v977, %v1328
      %v1330 = vpop.f32.mrb[0].mxu0
      %1331 = vmatprep.mubr.bf16.mxu0 0
      %1332 = vmatmul.mubr.bf16.gmra.mrb[0].mxu0 %v1180
      %v1333 = vpop.f32.mrb[0].mxu0
      %v1334 = vadd.f32 %v977, %v1333
      %v1335 = vpop.f32.mrb[0].mxu0
      %v1336 = vpop.f32.mrb[0].mxu0
      %v1337 = vadd.f32 %v977, %v1336
      %v1338 = vpop.f32.mrb[0].mxu0
      %1339 = vmatprep.mubr.bf16.mxu0 0
      %1340 = vmatmul.mubr.bf16.gmra.mrb[0].mxu0 %v1183
      %v1341 = vpop.f32.mrb[0].mxu0
      %v1342 = vadd.f32 %v977, %v1341
      %v1343 = vpop.f32.mrb[0].mxu0
      %v1344 = vpop.f32.mrb[0].mxu0
      %v1345 = vadd.f32 %v977, %v1344
      %v1346 = vpop.f32.mrb[0].mxu0
      %1347 = vmatprep.mubr.bf16.mxu0 0
      %1348 = vmatmul.mubr.bf16.gmra.mrb[0].mxu0 %v1186
      %v1349 = vpop.f32.mrb[0].mxu0
      %v1350 = vadd.f32 %v977, %v1349
      %v1351 = vpop.f32.mrb[0].mxu0
      %v1352 = vpop.f32.mrb[0].mxu0
      %v1353 = vadd.f32 %v977, %v1352
      %v1354 = vpop.f32.mrb[0].mxu0
      %1355 = vmatprep.mubr.bf16.mxu0 0
      %1356 = vmatmul.mubr.bf16.gmra.mrb[0].mxu0 %v1189
      %v1357 = vpop.f32.mrb[0].mxu0
      %v1358 = vadd.f32 %v977, %v1357
      %v1359 = vpop.f32.mrb[0].mxu0
      %v1360 = vpop.f32.mrb[0].mxu0
      %v1361 = vadd.f32 %v977, %v1360
      %v1362 = vpop.f32.mrb[0].mxu0
      %1363 = vmatprep.mubr.bf16.mxu0 0
      %1364 = vmatmul.mubr.bf16.gmra.mrb[0].mxu0 %v1192
      %v1365 = vpop.f32.mrb[0].mxu0
      %v1366 = vadd.f32 %v977, %v1365
      %v1367 = vpop.f32.mrb[0].mxu0
      %v1368 = vpop.f32.mrb[0].mxu0
      %v1369 = vadd.f32 %v977, %v1368
      %v1370 = vpop.f32.mrb[0].mxu0
      %1371 = vmatprep.mubr.bf16.mxu0 0
      %1372 = vmatmul.mubr.bf16.gmra.mrb[0].mxu0 %v1195
      %v1373 = vpop.f32.mrb[0].mxu0
      %v1374 = vadd.f32 %v977, %v1373
      %v1375 = vpop.f32.mrb[0].mxu0
      %v1376 = vpop.f32.mrb[0].mxu0
      %v1377 = vadd.f32 %v977, %v1376
      %v1378 = vpop.f32.mrb[0].mxu0
      %1379 = vmatprep.mubr.bf16.mxu0 0
      %1380 = vmatmul.mubr.bf16.gmra.mrb[0].mxu0 %v1198
      %v1381 = vpop.f32.mrb[0].mxu0
      %v1382 = vadd.f32 %v977, %v1381
      %v1383 = vpop.f32.mrb[0].mxu0
      %v1384 = vpop.f32.mrb[0].mxu0
      %v1385 = vadd.f32 %v977, %v1384
      %v1386 = vpop.f32.mrb[0].mxu0
      %1387 = vmatprep.mubr.bf16.mxu0 0
      %1388 = vmatmul.mubr.bf16.gmra.mrb[0].mxu0 %v1201
      %v1389 = vpop.f32.mrb[0].mxu0
      %v1390 = vadd.f32 %v977, %v1389
      %v1391 = vpop.f32.mrb[0].mxu0
      %v1392 = vpop.f32.mrb[0].mxu0
      %v1393 = vadd.f32 %v977, %v1392
      %v1394 = vpop.f32.mrb[0].mxu0
      %1395 = vmatprep.mubr.bf16.mxu0 0
      %1396 = vmatmul.mubr.bf16.gmra.mrb[0].mxu0 %v1204
      %v1397 = vpop.f32.mrb[0].mxu0
      %v1398 = vadd.f32 %v977, %v1397
      %v1399 = vpop.f32.mrb[0].mxu0
      %v1400 = vpop.f32.mrb[0].mxu0
      %v1401 = vadd.f32 %v977, %v1400
      %v1402 = vpop.f32.mrb[0].mxu0
      %1403 = vmatprep.mubr.bf16.mxu0 0
      %1404 = vmatmul.mubr.bf16.gmra.mrb[0].mxu0 %v1207
      %v1405 = vpop.f32.mrb[0].mxu0
      %v1406 = vadd.f32 %v977, %v1405
      %v1407 = vpop.f32.mrb[0].mxu0
      %v1408 = vpop.f32.mrb[0].mxu0
      %v1409 = vadd.f32 %v977, %v1408
      %v1410 = vpop.f32.mrb[0].mxu0
      %1411 = vmatprep.mubr.bf16.mxu0 0
      %1412 = vmatmul.mubr.bf16.gmra.mrb[0].mxu0 %v1210
      %v1413 = vpop.f32.mrb[0].mxu0
      %v1414 = vadd.f32 %v977, %v1413
      %v1415 = vpop.f32.mrb[0].mxu0
      %v1416 = vpop.f32.mrb[0].mxu0
      %v1417 = vadd.f32 %v977, %v1416
      %v1418 = vpop.f32.mrb[0].mxu0
      %1419 = vmatprep.mubr.bf16.mxu0 0
      %1420 = vmatmul.mubr.bf16.gmra.mrb[0].mxu0 %v1213
      %v1421 = vpop.f32.mrb[0].mxu0
      %v1422 = vadd.f32 %v977, %v1421
      %v1423 = vpop.f32.mrb[0].mxu0
      %v1424 = vpop.f32.mrb[0].mxu0
      %v1425 = vadd.f32 %v977, %v1424
      %v1426 = vpop.f32.mrb[0].mxu0
      %1427 = vmatprep.mubr.bf16.mxu0 0
      %1428 = vmatmul.mubr.bf16.gmra.mrb[0].mxu0 %v1216
      %v1429 = vpop.f32.mrb[0].mxu0
      %v1430 = vadd.f32 %v977, %v1429
      %v1431 = vpop.f32.mrb[0].mxu0
      %v1432 = vpop.f32.mrb[0].mxu0
      %v1433 = vadd.f32 %v977, %v1432
      %v1434 = vpop.f32.mrb[0].mxu0
      %1435 = vmatprep.mubr.bf16.mxu0 0
      %1436 = vmatmul.mubr.bf16.gmra.mrb[0].mxu0 %v1219
      %v1437 = vpop.f32.mrb[0].mxu0
      %v1438 = vadd.f32 %v977, %v1437
      %v1439 = vpop.f32.mrb[0].mxu0
      %v1440 = vpop.f32.mrb[0].mxu0
      %v1441 = vadd.f32 %v977, %v1440
      %v1442 = vpop.f32.mrb[0].mxu0
      %1443 = vmatprep.mubr.bf16.mxu0 0
      %1444 = vmatmul.mubr.bf16.gmra.mrb[0].mxu0 %v1222
      %v1445 = vpop.f32.mrb[0].mxu0
      %v1446 = vadd.f32 %v977, %v1445
      %v1447 = vpop.f32.mrb[0].mxu0
      %v1448 = vpop.f32.mrb[0].mxu0
      %v1449 = vadd.f32 %v977, %v1448
      %v1450 = vpop.f32.mrb[0].mxu0
      %1451 = vmatprep.mubr.bf16.mxu0 0
      %1452 = vmatmul.mubr.bf16.gmra.mrb[0].mxu0 %v1225
      %v1453 = vpop.f32.mrb[0].mxu0
      %v1454 = vadd.f32 %v977, %v1453
      %v1455 = vpop.f32.mrb[0].mxu0
      %v1456 = vpop.f32.mrb[0].mxu0
      %v1457 = vadd.f32 %v977, %v1456
      %v1458 = vpop.f32.mrb[0].mxu0
      %1459 = vmatprep.mubr.bf16.mxu0 0
      %1460 = vmatmul.mubr.bf16.gmra.mrb[0].mxu0 %v1228
      %v1461 = vpop.f32.mrb[0].mxu0
      %v1462 = vadd.f32 %v977, %v1461
      %v1463 = vpop.f32.mrb[0].mxu0
      %v1464 = vpop.f32.mrb[0].mxu0
      %v1465 = vadd.f32 %v977, %v1464
      %v1466 = vpop.f32.mrb[0].mxu0
      %1467 = vmatprep.mubr.bf16.mxu0 0
      %1468 = vmatmul.mubr.bf16.gmra.mrb[0].mxu0 %v1231
      %v1469 = vpop.f32.mrb[0].mxu0
      %v1470 = vadd.f32 %v977, %v1469
      %v1471 = vpop.f32.mrb[0].mxu0
      %v1472 = vpop.f32.mrb[0].mxu0
      %v1473 = vadd.f32 %v977, %v1472
      %v1474 = vpop.f32.mrb[0].mxu0
      %1475 = vmatprep.mubr.bf16.mxu0 0
      %1476 = vmatmul.mubr.bf16.gmra.mrb[0].mxu0 %v1234
      %v1477 = vpop.f32.mrb[0].mxu0
      %v1478 = vadd.f32 %v977, %v1477
      %v1479 = vpop.f32.mrb[0].mxu0
      %v1480 = vpop.f32.mrb[0].mxu0
      %v1481 = vadd.f32 %v977, %v1480
      %v1482 = vpop.f32.mrb[0].mxu0
      %1483 = vmatprep.mubr.bf16.mxu0 0
      %1484 = vmatmul.mubr.bf16.gmra.mrb[0].mxu0 %v1237
      %v1485 = vpop.f32.mrb[0].mxu0
      %v1486 = vadd.f32 %v977, %v1485
      %v1487 = vpop.f32.mrb[0].mxu0
      %v1488 = vpop.f32.mrb[0].mxu0
      %v1489 = vadd.f32 %v977, %v1488
      %v1490 = vpop.f32.mrb[0].mxu0
      %1491 = vmatprep.mubr.bf16.mxu0 0
      %1492 = vmatmul.mubr.bf16.gmra.mrb[0].mxu0 %v1240
      %v1493 = vpop.f32.mrb[0].mxu0
      %v1494 = vadd.f32 %v977, %v1493
      %v1495 = vpop.f32.mrb[0].mxu0
      %v1496 = vpop.f32.mrb[0].mxu0
      %v1497 = vadd.f32 %v977, %v1496
      %v1498 = vpop.f32.mrb[0].mxu0
      %1499 = vmatprep.mubr.bf16.mxu0 0
      %1500 = vmatmul.mubr.bf16.gmra.mrb[0].mxu0 %v1243
      %v1501 = vpop.f32.mrb[0].mxu0
      %v1502 = vadd.f32 %v977, %v1501
      %v1503 = vpop.f32.mrb[0].mxu0
      %v1504 = vpop.f32.mrb[0].mxu0
      %v1505 = vadd.f32 %v977, %v1504
      %v1506 = vpop.f32.mrb[0].mxu0
      %1507 = vmatprep.mubr.bf16.mxu0 0
      %1508 = vmatmul.mubr.bf16.gmra.mrb[0].mxu0 %v1246
      %v1509 = vpop.f32.mrb[0].mxu0
      %v1510 = vadd.f32 %v977, %v1509
      %v1511 = vpop.f32.mrb[0].mxu0
      %v1512 = vpop.f32.mrb[0].mxu0
      %v1513 = vadd.f32 %v977, %v1512
      %v1514 = vpop.f32.mrb[0].mxu0
      %1515 = vmatprep.mubr.bf16.mxu0 0
      %1516 = vmatmul.mubr.bf16.gmra.mrb[0].mxu0 %v1249
      %v1517 = vpop.f32.mrb[0].mxu0
      %v1518 = vadd.f32 %v977, %v1517
      %v1519 = vpop.f32.mrb[0].mxu0
      %v1520 = vpop.f32.mrb[0].mxu0
      %v1521 = vadd.f32 %v977, %v1520
      %v1522 = vpop.f32.mrb[0].mxu0
      %1523 = vmatprep.mubr.bf16.mxu0 0
      %1524 = vmatmul.mubr.bf16.gmra.mrb[0].mxu0 %v1252
      %v1525 = vpop.f32.mrb[0].mxu0
      %v1526 = vadd.f32 %v977, %v1525
      %v1527 = vpop.f32.mrb[0].mxu0
      %v1528 = vpop.f32.mrb[0].mxu0
      %v1529 = vadd.f32 %v977, %v1528
      %v1530 = vpop.f32.mrb[0].mxu0
      %1531 = vmatprep.mubr.bf16.mxu0 0
      %1532 = vmatmul.mubr.bf16.gmra.mrb[0].mxu0 %v1255
      %v1533 = vpop.f32.mrb[0].mxu0
      %v1534 = vadd.f32 %v977, %v1533
      %v1535 = vpop.f32.mrb[0].mxu0
      %v1536 = vpop.f32.mrb[0].mxu0
      %v1537 = vadd.f32 %v977, %v1536
      %v1538 = vpop.f32.mrb[0].mxu0
      %1539 = vmatprep.mubr.bf16.mxu0 0
      %1540 = vmatmul.mubr.bf16.gmra.mrb[0].mxu0 %v1258
      %v1541 = vpop.f32.mrb[0].mxu0
      %v1542 = vadd.f32 %v977, %v1541
      %v1543 = vpop.f32.mrb[0].mxu0
      %v1544 = vpop.f32.mrb[0].mxu0
      %v1545 = vadd.f32 %v977, %v1544
      %v1546 = vpop.f32.mrb[0].mxu0
      %1547 = vmatprep.mubr.bf16.mxu0 0
      %1548 = vmatmul.mubr.bf16.gmra.mrb[0].mxu0 %v1261
      %v1549 = vpop.f32.mrb[0].mxu0
      %v1550 = vadd.f32 %v977, %v1549
      %v1551 = vpop.f32.mrb[0].mxu0
      %v1552 = vpop.f32.mrb[0].mxu0
      %v1553 = vadd.f32 %v977, %v1552
      %v1554 = vpop.f32.mrb[0].mxu0
      %1555 = vdwg.mxu0
      %vm1556 = vcmp.ge.f32.partialorder %v1302, 0.0
      %vm1557 = vcmp.ge.f32.partialorder %v1305, 0.0
      %vm1558 = vcmp.ge.f32.partialorder %v1310, 0.0
      %vm1559 = vcmp.ge.f32.partialorder %v1313, 0.0
      %vm1560 = vcmp.ge.f32.partialorder %v1318, 0.0
      %vm1561 = vcmp.ge.f32.partialorder %v1321, 0.0
      %vm1562 = vcmp.ge.f32.partialorder %v1326, 0.0
      %vm1563 = vcmp.ge.f32.partialorder %v1329, 0.0
      %vm1564 = vcmp.ge.f32.partialorder %v1334, 0.0
      %vm1565 = vcmp.ge.f32.partialorder %v1337, 0.0
      %vm1566 = vcmp.ge.f32.partialorder %v1342, 0.0
      %vm1567 = vcmp.ge.f32.partialorder %v1345, 0.0
      %vm1568 = vcmp.ge.f32.partialorder %v1350, 0.0
      %vm1569 = vcmp.ge.f32.partialorder %v1353, 0.0
      %vm1570 = vcmp.ge.f32.partialorder %v1358, 0.0
      %vm1571 = vcmp.ge.f32.partialorder %v1361, 0.0
      %vm1572 = vcmp.ge.f32.partialorder %v1366, 0.0
      %vm1573 = vcmp.ge.f32.partialorder %v1369, 0.0
      %vm1574 = vcmp.ge.f32.partialorder %v1374, 0.0
      %vm1575 = vcmp.ge.f32.partialorder %v1377, 0.0
      %vm1576 = vcmp.ge.f32.partialorder %v1382, 0.0
      %vm1577 = vcmp.ge.f32.partialorder %v1385, 0.0
      %vm1578 = vcmp.ge.f32.partialorder %v1390, 0.0
      %vm1579 = vcmp.ge.f32.partialorder %v1393, 0.0
      %vm1580 = vcmp.ge.f32.partialorder %v1398, 0.0
      %vm1581 = vcmp.ge.f32.partialorder %v1401, 0.0
      %vm1582 = vcmp.ge.f32.partialorder %v1406, 0.0
      %vm1583 = vcmp.ge.f32.partialorder %v1409, 0.0
      %vm1584 = vcmp.ge.f32.partialorder %v1414, 0.0
      %vm1585 = vcmp.ge.f32.partialorder %v1417, 0.0
      %vm1586 = vcmp.ge.f32.partialorder %v1422, 0.0
      %vm1587 = vcmp.ge.f32.partialorder %v1425, 0.0
      %vm1588 = vcmp.ge.f32.partialorder %v1430, 0.0
      %vm1589 = vcmp.ge.f32.partialorder %v1433, 0.0
      %vm1590 = vcmp.ge.f32.partialorder %v1438, 0.0
      %vm1591 = vcmp.ge.f32.partialorder %v1441, 0.0
      %vm1592 = vcmp.ge.f32.partialorder %v1446, 0.0
      %vm1593 = vcmp.ge.f32.partialorder %v1449, 0.0
      %vm1594 = vcmp.ge.f32.partialorder %v1454, 0.0
      %vm1595 = vcmp.ge.f32.partialorder %v1457, 0.0
      %vm1596 = vcmp.ge.f32.partialorder %v1462, 0.0
      %vm1597 = vcmp.ge.f32.partialorder %v1465, 0.0
      %vm1598 = vcmp.ge.f32.partialorder %v1470, 0.0
      %vm1599 = vcmp.ge.f32.partialorder %v1473, 0.0
      %vm1600 = vcmp.ge.f32.partialorder %v1478, 0.0
      %vm1601 = vcmp.ge.f32.partialorder %v1481, 0.0
      %vm1602 = vcmp.ge.f32.partialorder %v1486, 0.0
      %vm1603 = vcmp.ge.f32.partialorder %v1489, 0.0
      %vm1604 = vcmp.ge.f32.partialorder %v1494, 0.0
      %vm1605 = vcmp.ge.f32.partialorder %v1497, 0.0
      %vm1606 = vcmp.ge.f32.partialorder %v1502, 0.0
      %vm1607 = vcmp.ge.f32.partialorder %v1505, 0.0
      %vm1608 = vcmp.ge.f32.partialorder %v1510, 0.0
      %vm1609 = vcmp.ge.f32.partialorder %v1513, 0.0
      %vm1610 = vcmp.ge.f32.partialorder %v1518, 0.0
      %vm1611 = vcmp.ge.f32.partialorder %v1521, 0.0
      %vm1612 = vcmp.ge.f32.partialorder %v1526, 0.0
      %vm1613 = vcmp.ge.f32.partialorder %v1529, 0.0
      %vm1614 = vcmp.ge.f32.partialorder %v1534, 0.0
      %vm1615 = vcmp.ge.f32.partialorder %v1537, 0.0
      %vm1616 = vcmp.ge.f32.partialorder %v1542, 0.0
      %vm1617 = vcmp.ge.f32.partialorder %v1545, 0.0
      %vm1618 = vcmp.ge.f32.partialorder %v1550, 0.0
      %vm1619 = vcmp.ge.f32.partialorder %v1553, 0.0
      %v1620 = vld [vmem:[#allocation4] sm:$0x1]
      %v1622 = vlaneseq
      %v1623 = vshrl.u32 %v1622, 7
      %v1624 = vsub.s32 0, %v1623
      %v1625 = vrot.slane %v1620, %v1624
      %v1627 = vmul.f32 %v1625, %v1302
      %v1628 = vmul.f32 %v1625, %v1305
      %v1629 = vmul.f32 %v1625, %v1310
      %v1630 = vmul.f32 %v1625, %v1313
      %v1631 = vmul.f32 %v1625, %v1318
      %v1632 = vmul.f32 %v1625, %v1321
      %v1633 = vmul.f32 %v1625, %v1326
      %v1634 = vmul.f32 %v1625, %v1329
      %v1635 = vmul.f32 %v1625, %v1334
      %v1636 = vmul.f32 %v1625, %v1337
      %v1637 = vmul.f32 %v1625, %v1342
      %v1638 = vmul.f32 %v1625, %v1345
      %v1639 = vmul.f32 %v1625, %v1350
      %v1640 = vmul.f32 %v1625, %v1353
      %v1641 = vmul.f32 %v1625, %v1358
      %v1642 = vmul.f32 %v1625, %v1361
      %v1643 = vmul.f32 %v1625, %v1366
      %v1644 = vmul.f32 %v1625, %v1369
      %v1645 = vmul.f32 %v1625, %v1374
      %v1646 = vmul.f32 %v1625, %v1377
      %v1647 = vmul.f32 %v1625, %v1382
      %v1648 = vmul.f32 %v1625, %v1385
      %v1649 = vmul.f32 %v1625, %v1390
      %v1650 = vmul.f32 %v1625, %v1393
      %v1651 = vmul.f32 %v1625, %v1398
      %v1652 = vmul.f32 %v1625, %v1401
      %v1653 = vmul.f32 %v1625, %v1406
      %v1654 = vmul.f32 %v1625, %v1409
      %v1655 = vmul.f32 %v1625, %v1414
      %v1656 = vmul.f32 %v1625, %v1417
      %v1657 = vmul.f32 %v1625, %v1422
      %v1658 = vmul.f32 %v1625, %v1425
      %v1659 = vmul.f32 %v1625, %v1430
      %v1660 = vmul.f32 %v1625, %v1433
      %v1661 = vmul.f32 %v1625, %v1438
      %v1662 = vmul.f32 %v1625, %v1441
      %v1663 = vmul.f32 %v1625, %v1446
      %v1664 = vmul.f32 %v1625, %v1449
      %v1665 = vmul.f32 %v1625, %v1454
      %v1666 = vmul.f32 %v1625, %v1457
      %v1667 = vmul.f32 %v1625, %v1462
      %v1668 = vmul.f32 %v1625, %v1465
      %v1669 = vmul.f32 %v1625, %v1470
      %v1670 = vmul.f32 %v1625, %v1473
      %v1671 = vmul.f32 %v1625, %v1478
      %v1672 = vmul.f32 %v1625, %v1481
      %v1673 = vmul.f32 %v1625, %v1486
      %v1674 = vmul.f32 %v1625, %v1489
      %v1675 = vmul.f32 %v1625, %v1494
      %v1676 = vmul.f32 %v1625, %v1497
      %v1677 = vmul.f32 %v1625, %v1502
      %v1678 = vmul.f32 %v1625, %v1505
      %v1679 = vmul.f32 %v1625, %v1510
      %v1680 = vmul.f32 %v1625, %v1513
      %v1681 = vmul.f32 %v1625, %v1518
      %v1682 = vmul.f32 %v1625, %v1521
      %v1683 = vmul.f32 %v1625, %v1526
      %v1684 = vmul.f32 %v1625, %v1529
      %v1685 = vmul.f32 %v1625, %v1534
      %v1686 = vmul.f32 %v1625, %v1537
      %v1687 = vmul.f32 %v1625, %v1542
      %v1688 = vmul.f32 %v1625, %v1545
      %v1689 = vmul.f32 %v1625, %v1550
      %v1690 = vmul.f32 %v1625, %v1553
      %v1691 = vsel %vm1556, %v1302, %v1627
      %v1692 = vsel %vm1557, %v1305, %v1628
      %v1693 = vsel %vm1558, %v1310, %v1629
      %v1694 = vsel %vm1559, %v1313, %v1630
      %v1695 = vsel %vm1560, %v1318, %v1631
      %v1696 = vsel %vm1561, %v1321, %v1632
      %v1697 = vsel %vm1562, %v1326, %v1633
      %v1698 = vsel %vm1563, %v1329, %v1634
      %v1699 = vsel %vm1564, %v1334, %v1635
      %v1700 = vsel %vm1565, %v1337, %v1636
      %v1701 = vsel %vm1566, %v1342, %v1637
      %v1702 = vsel %vm1567, %v1345, %v1638
      %v1703 = vsel %vm1568, %v1350, %v1639
      %v1704 = vsel %vm1569, %v1353, %v1640
      %v1705 = vsel %vm1570, %v1358, %v1641
      %v1706 = vsel %vm1571, %v1361, %v1642
      %v1707 = vsel %vm1572, %v1366, %v1643
      %v1708 = vsel %vm1573, %v1369, %v1644
      %v1709 = vsel %vm1574, %v1374, %v1645
      %v1710 = vsel %vm1575, %v1377, %v1646
      %v1711 = vsel %vm1576, %v1382, %v1647
      %v1712 = vsel %vm1577, %v1385, %v1648
      %v1713 = vsel %vm1578, %v1390, %v1649
      %v1714 = vsel %vm1579, %v1393, %v1650
      %v1715 = vsel %vm1580, %v1398, %v1651
      %v1716 = vsel %vm1581, %v1401, %v1652
      %v1717 = vsel %vm1582, %v1406, %v1653
      %v1718 = vsel %vm1583, %v1409, %v1654
      %v1719 = vsel %vm1584, %v1414, %v1655
      %v1720 = vsel %vm1585, %v1417, %v1656
      %v1721 = vsel %vm1586, %v1422, %v1657
      %v1722 = vsel %vm1587, %v1425, %v1658
      %v1723 = vsel %vm1588, %v1430, %v1659
      %v1724 = vsel %vm1589, %v1433, %v1660
      %v1725 = vsel %vm1590, %v1438, %v1661
      %v1726 = vsel %vm1591, %v1441, %v1662
      %v1727 = vsel %vm1592, %v1446, %v1663
      %v1728 = vsel %vm1593, %v1449, %v1664
      %v1729 = vsel %vm1594, %v1454, %v1665
      %v1730 = vsel %vm1595, %v1457, %v1666
      %v1731 = vsel %vm1596, %v1462, %v1667
      %v1732 = vsel %vm1597, %v1465, %v1668
      %v1733 = vsel %vm1598, %v1470, %v1669
      %v1734 = vsel %vm1599, %v1473, %v1670
      %v1735 = vsel %vm1600, %v1478, %v1671
      %v1736 = vsel %vm1601, %v1481, %v1672
      %v1737 = vsel %vm1602, %v1486, %v1673
      %v1738 = vsel %vm1603, %v1489, %v1674
      %v1739 = vsel %vm1604, %v1494, %v1675
      %v1740 = vsel %vm1605, %v1497, %v1676
      %v1741 = vsel %vm1606, %v1502, %v1677
      %v1742 = vsel %vm1607, %v1505, %v1678
      %v1743 = vsel %vm1608, %v1510, %v1679
      %v1744 = vsel %vm1609, %v1513, %v1680
      %v1745 = vsel %vm1610, %v1518, %v1681
      %v1746 = vsel %vm1611, %v1521, %v1682
      %v1747 = vsel %vm1612, %v1526, %v1683
      %v1748 = vsel %vm1613, %v1529, %v1684
      %v1749 = vsel %vm1614, %v1534, %v1685
      %v1750 = vsel %vm1615, %v1537, %v1686
      %v1751 = vsel %vm1616, %v1542, %v1687
      %v1752 = vsel %vm1617, %v1545, %v1688
      %v1753 = vsel %vm1618, %v1550, %v1689
      %v1754 = vsel %vm1619, %v1553, %v1690
      %v1755 = vpack.c.bf16 %v1692, %v1691
      %v1756 = vpack.c.bf16 %v1694, %v1693
      %v1757 = vpack.c.bf16 %v1696, %v1695
      %v1758 = vpack.c.bf16 %v1698, %v1697
      %v1759 = vpack.c.bf16 %v1700, %v1699
      %v1760 = vpack.c.bf16 %v1702, %v1701
      %v1761 = vpack.c.bf16 %v1704, %v1703
      %v1762 = vpack.c.bf16 %v1706, %v1705
      %v1763 = vpack.c.bf16 %v1708, %v1707
      %v1764 = vpack.c.bf16 %v1710, %v1709
      %v1765 = vpack.c.bf16 %v1712, %v1711
      %v1766 = vpack.c.bf16 %v1714, %v1713
      %v1767 = vpack.c.bf16 %v1716, %v1715
      %v1768 = vpack.c.bf16 %v1718, %v1717
      %v1769 = vpack.c.bf16 %v1720, %v1719
      %v1770 = vpack.c.bf16 %v1722, %v1721
      %v1771 = vpack.c.bf16 %v1724, %v1723
      %v1772 = vpack.c.bf16 %v1726, %v1725
      %v1773 = vpack.c.bf16 %v1728, %v1727
      %v1774 = vpack.c.bf16 %v1730, %v1729
      %v1775 = vpack.c.bf16 %v1732, %v1731
      %v1776 = vpack.c.bf16 %v1734, %v1733
      %v1777 = vpack.c.bf16 %v1736, %v1735
      %v1778 = vpack.c.bf16 %v1738, %v1737
      %v1779 = vpack.c.bf16 %v1740, %v1739
      %v1780 = vpack.c.bf16 %v1742, %v1741
      %v1781 = vpack.c.bf16 %v1744, %v1743
      %v1782 = vpack.c.bf16 %v1746, %v1745
      %v1783 = vpack.c.bf16 %v1748, %v1747
      %v1784 = vpack.c.bf16 %v1750, %v1749
      %v1785 = vpack.c.bf16 %v1752, %v1751
      %v1786 = vpack.c.bf16 %v1754, %v1753
      %v1819 = vunpack.c.l.b16 %v1755
      %v1820 = vunpack.c.h.b16 %v1755
      %v1821 = vunpack.c.l.b16 %v1756
      %v1822 = vunpack.c.h.b16 %v1756
      %v1823 = vunpack.c.l.b16 %v1757
      %v1824 = vunpack.c.h.b16 %v1757
      %v1825 = vunpack.c.l.b16 %v1758
      %v1826 = vunpack.c.h.b16 %v1758
      %v1827 = vunpack.c.l.b16 %v1759
      %v1828 = vunpack.c.h.b16 %v1759
      %v1829 = vunpack.c.l.b16 %v1760
      %v1830 = vunpack.c.h.b16 %v1760
      %v1831 = vunpack.c.l.b16 %v1761
      %v1832 = vunpack.c.h.b16 %v1761
      %v1833 = vunpack.c.l.b16 %v1762
      %v1834 = vunpack.c.h.b16 %v1762
      %v1835 = vunpack.c.l.b16 %v1763
      %v1836 = vunpack.c.h.b16 %v1763
      %v1837 = vunpack.c.l.b16 %v1764
      %v1838 = vunpack.c.h.b16 %v1764
      %v1839 = vunpack.c.l.b16 %v1765
      %v1840 = vunpack.c.h.b16 %v1765
      %v1841 = vunpack.c.l.b16 %v1766
      %v1842 = vunpack.c.h.b16 %v1766
      %v1843 = vunpack.c.l.b16 %v1767
      %v1844 = vunpack.c.h.b16 %v1767
      %v1845 = vunpack.c.l.b16 %v1768
      %v1846 = vunpack.c.h.b16 %v1768
      %v1847 = vunpack.c.l.b16 %v1769
      %v1848 = vunpack.c.h.b16 %v1769
      %v1849 = vunpack.c.l.b16 %v1770
      %v1850 = vunpack.c.h.b16 %v1770
      %v1851 = vunpack.c.l.b16 %v1771
      %v1852 = vunpack.c.h.b16 %v1771
      %v1853 = vunpack.c.l.b16 %v1772
      %v1854 = vunpack.c.h.b16 %v1772
      %v1855 = vunpack.c.l.b16 %v1773
      %v1856 = vunpack.c.h.b16 %v1773
      %v1857 = vunpack.c.l.b16 %v1774
      %v1858 = vunpack.c.h.b16 %v1774
      %v1859 = vunpack.c.l.b16 %v1775
      %v1860 = vunpack.c.h.b16 %v1775
      %v1861 = vunpack.c.l.b16 %v1776
      %v1862 = vunpack.c.h.b16 %v1776
      %v1863 = vunpack.c.l.b16 %v1777
      %v1864 = vunpack.c.h.b16 %v1777
      %v1865 = vunpack.c.l.b16 %v1778
      %v1866 = vunpack.c.h.b16 %v1778
      %v1867 = vunpack.c.l.b16 %v1779
      %v1868 = vunpack.c.h.b16 %v1779
      %v1869 = vunpack.c.l.b16 %v1780
      %v1870 = vunpack.c.h.b16 %v1780
      %v1871 = vunpack.c.l.b16 %v1781
      %v1872 = vunpack.c.h.b16 %v1781
      %v1873 = vunpack.c.l.b16 %v1782
      %v1874 = vunpack.c.h.b16 %v1782
      %v1875 = vunpack.c.l.b16 %v1783
      %v1876 = vunpack.c.h.b16 %v1783
      %v1877 = vunpack.c.l.b16 %v1784
      %v1878 = vunpack.c.h.b16 %v1784
      %v1879 = vunpack.c.l.b16 %v1785
      %v1880 = vunpack.c.h.b16 %v1785
      %v1881 = vunpack.c.l.b16 %v1786
      %v1882 = vunpack.c.h.b16 %v1786
      %v1883 = vpack.c.b16 %v1819, %v1819
      %v1884 = vpack.c.b16 %v1820, %v1820
      %v1885 = vpack.c.b16 %v1821, %v1821
      %v1886 = vpack.c.b16 %v1822, %v1822
      %v1887 = vpack.c.b16 %v1823, %v1823
      %v1888 = vpack.c.b16 %v1824, %v1824
      %v1889 = vpack.c.b16 %v1825, %v1825
      %v1890 = vpack.c.b16 %v1826, %v1826
      %v1891 = vpack.c.b16 %v1827, %v1827
      %v1892 = vpack.c.b16 %v1828, %v1828
      %v1893 = vpack.c.b16 %v1829, %v1829
      %v1894 = vpack.c.b16 %v1830, %v1830
      %v1895 = vpack.c.b16 %v1831, %v1831
      %v1896 = vpack.c.b16 %v1832, %v1832
      %v1897 = vpack.c.b16 %v1833, %v1833
      %v1898 = vpack.c.b16 %v1834, %v1834
      %v1899 = vpack.c.b16 %v1835, %v1835
      %v1900 = vpack.c.b16 %v1836, %v1836
      %v1901 = vpack.c.b16 %v1837, %v1837
      %v1902 = vpack.c.b16 %v1838, %v1838
      %v1903 = vpack.c.b16 %v1839, %v1839
      %v1904 = vpack.c.b16 %v1840, %v1840
      %v1905 = vpack.c.b16 %v1841, %v1841
      %v1906 = vpack.c.b16 %v1842, %v1842
      %v1907 = vpack.c.b16 %v1843, %v1843
      %v1908 = vpack.c.b16 %v1844, %v1844
      %v1909 = vpack.c.b16 %v1845, %v1845
      %v1910 = vpack.c.b16 %v1846, %v1846
      %v1911 = vpack.c.b16 %v1847, %v1847
      %v1912 = vpack.c.b16 %v1848, %v1848
      %v1913 = vpack.c.b16 %v1849, %v1849
      %v1914 = vpack.c.b16 %v1850, %v1850
      %v1915 = vpack.c.b16 %v1851, %v1851
      %v1916 = vpack.c.b16 %v1852, %v1852
      %v1917 = vpack.c.b16 %v1853, %v1853
      %v1918 = vpack.c.b16 %v1854, %v1854
      %v1919 = vpack.c.b16 %v1855, %v1855
      %v1920 = vpack.c.b16 %v1856, %v1856
      %v1921 = vpack.c.b16 %v1857, %v1857
      %v1922 = vpack.c.b16 %v1858, %v1858
      %v1923 = vpack.c.b16 %v1859, %v1859
      %v1924 = vpack.c.b16 %v1860, %v1860
      %v1925 = vpack.c.b16 %v1861, %v1861
      %v1926 = vpack.c.b16 %v1862, %v1862
      %v1927 = vpack.c.b16 %v1863, %v1863
      %v1928 = vpack.c.b16 %v1864, %v1864
      %v1929 = vpack.c.b16 %v1865, %v1865
      %v1930 = vpack.c.b16 %v1866, %v1866
      %v1931 = vpack.c.b16 %v1867, %v1867
      %v1932 = vpack.c.b16 %v1868, %v1868
      %v1933 = vpack.c.b16 %v1869, %v1869
      %v1934 = vpack.c.b16 %v1870, %v1870
      %v1935 = vpack.c.b16 %v1871, %v1871
      %v1936 = vpack.c.b16 %v1872, %v1872
      %v1937 = vpack.c.b16 %v1873, %v1873
      %v1938 = vpack.c.b16 %v1874, %v1874
      %v1939 = vpack.c.b16 %v1875, %v1875
      %v1940 = vpack.c.b16 %v1876, %v1876
      %v1941 = vpack.c.b16 %v1877, %v1877
      %v1942 = vpack.c.b16 %v1878, %v1878
      %v1943 = vpack.c.b16 %v1879, %v1879
      %v1944 = vpack.c.b16 %v1880, %v1880
      %v1945 = vpack.c.b16 %v1881, %v1881
      %v1946 = vpack.c.b16 %v1882, %v1882
      %vm2011 = vcmask 60416
      %2012 = vst.msk [vmem:[%s250] sm:$0xf] %vm2011, %v1883
      %2013 = vst.msk [vmem:[%s250 + $0x4] sm:$0xf] %vm2011, %v1884
      %2014 = vst.msk [vmem:[%s250 + $0x8] sm:$0xf] %vm2011, %v1885
      %2015 = vst.msk [vmem:[%s250 + $0xc] sm:$0xf] %vm2011, %v1886
      %2016 = vst.msk [vmem:[%s250 + $0x10] sm:$0xf] %vm2011, %v1887
      %2017 = vst.msk [vmem:[%s250 + $0x14] sm:$0xf] %vm2011, %v1888
      %2018 = vst.msk [vmem:[%s250 + $0x18] sm:$0xf] %vm2011, %v1889
      %2019 = vst.msk [vmem:[%s250 + $0x1c] sm:$0xf] %vm2011, %v1890
      %2020 = vst.msk [vmem:[%s250 + $0x20] sm:$0xf] %vm2011, %v1891
      %2021 = vst.msk [vmem:[%s250 + $0x24] sm:$0xf] %vm2011, %v1892
      %2022 = vst.msk [vmem:[%s250 + $0x28] sm:$0xf] %vm2011, %v1893
      %2023 = vst.msk [vmem:[%s250 + $0x2c] sm:$0xf] %vm2011, %v1894
      %2024 = vst.msk [vmem:[%s250 + $0x30] sm:$0xf] %vm2011, %v1895
      %2025 = vst.msk [vmem:[%s250 + $0x34] sm:$0xf] %vm2011, %v1896
      %2026 = vst.msk [vmem:[%s250 + $0x38] sm:$0xf] %vm2011, %v1897
      %2027 = vst.msk [vmem:[%s250 + $0x3c] sm:$0xf] %vm2011, %v1898
      %2028 = vst.msk [vmem:[%s250 + $0x40] sm:$0xf] %vm2011, %v1899
      %2029 = vst.msk [vmem:[%s250 + $0x44] sm:$0xf] %vm2011, %v1900
      %2030 = vst.msk [vmem:[%s250 + $0x48] sm:$0xf] %vm2011, %v1901
      %2031 = vst.msk [vmem:[%s250 + $0x4c] sm:$0xf] %vm2011, %v1902
      %2032 = vst.msk [vmem:[%s250 + $0x50] sm:$0xf] %vm2011, %v1903
      %2033 = vst.msk [vmem:[%s250 + $0x54] sm:$0xf] %vm2011, %v1904
      %2034 = vst.msk [vmem:[%s250 + $0x58] sm:$0xf] %vm2011, %v1905
      %2035 = vst.msk [vmem:[%s250 + $0x5c] sm:$0xf] %vm2011, %v1906
      %2036 = vst.msk [vmem:[%s250 + $0x60] sm:$0xf] %vm2011, %v1907
      %2037 = vst.msk [vmem:[%s250 + $0x64] sm:$0xf] %vm2011, %v1908
      %2038 = vst.msk [vmem:[%s250 + $0x68] sm:$0xf] %vm2011, %v1909
      %2039 = vst.msk [vmem:[%s250 + $0x6c] sm:$0xf] %vm2011, %v1910
      %2040 = vst.msk [vmem:[%s250 + $0x70] sm:$0xf] %vm2011, %v1911
      %2041 = vst.msk [vmem:[%s250 + $0x74] sm:$0xf] %vm2011, %v1912
      %2042 = vst.msk [vmem:[%s250 + $0x78] sm:$0xf] %vm2011, %v1913
      %2043 = vst.msk [vmem:[%s250 + $0x7c] sm:$0xf] %vm2011, %v1914
      %2044 = vst.msk [vmem:[%s250 + $0x80] sm:$0xf] %vm2011, %v1915
      %2045 = vst.msk [vmem:[%s250 + $0x84] sm:$0xf] %vm2011, %v1916
      %2046 = vst.msk [vmem:[%s250 + $0x88] sm:$0xf] %vm2011, %v1917
      %2047 = vst.msk [vmem:[%s250 + $0x8c] sm:$0xf] %vm2011, %v1918
      %2048 = vst.msk [vmem:[%s250 + $0x90] sm:$0xf] %vm2011, %v1919
      %2049 = vst.msk [vmem:[%s250 + $0x94] sm:$0xf] %vm2011, %v1920
      %2050 = vst.msk [vmem:[%s250 + $0x98] sm:$0xf] %vm2011, %v1921
      %2051 = vst.msk [vmem:[%s250 + $0x9c] sm:$0xf] %vm2011, %v1922
      %2052 = vst.msk [vmem:[%s250 + $0xa0] sm:$0xf] %vm2011, %v1923
      %2053 = vst.msk [vmem:[%s250 + $0xa4] sm:$0xf] %vm2011, %v1924
      %2054 = vst.msk [vmem:[%s250 + $0xa8] sm:$0xf] %vm2011, %v1925
      %2055 = vst.msk [vmem:[%s250 + $0xac] sm:$0xf] %vm2011, %v1926
      %2056 = vst.msk [vmem:[%s250 + $0xb0] sm:$0xf] %vm2011, %v1927
      %2057 = vst.msk [vmem:[%s250 + $0xb4] sm:$0xf] %vm2011, %v1928
      %2058 = vst.msk [vmem:[%s250 + $0xb8] sm:$0xf] %vm2011, %v1929
      %2059 = vst.msk [vmem:[%s250 + $0xbc] sm:$0xf] %vm2011, %v1930
      %2060 = vst.msk [vmem:[%s250 + $0xc0] sm:$0xf] %vm2011, %v1931
      %2061 = vst.msk [vmem:[%s250 + $0xc4] sm:$0xf] %vm2011, %v1932
      %2062 = vst.msk [vmem:[%s250 + $0xc8] sm:$0xf] %vm2011, %v1933
      %2063 = vst.msk [vmem:[%s250 + $0xcc] sm:$0xf] %vm2011, %v1934
      %2064 = vst.msk [vmem:[%s250 + $0xd0] sm:$0xf] %vm2011, %v1935
      %2065 = vst.msk [vmem:[%s250 + $0xd4] sm:$0xf] %vm2011, %v1936
      %2066 = vst.msk [vmem:[%s250 + $0xd8] sm:$0xf] %vm2011, %v1937
      %2067 = vst.msk [vmem:[%s250 + $0xdc] sm:$0xf] %vm2011, %v1938
      %2068 = vst.msk [vmem:[%s250 + $0xe0] sm:$0xf] %vm2011, %v1939
      %2069 = vst.msk [vmem:[%s250 + $0xe4] sm:$0xf] %vm2011, %v1940
      %2070 = vst.msk [vmem:[%s250 + $0xe8] sm:$0xf] %vm2011, %v1941
      %2071 = vst.msk [vmem:[%s250 + $0xec] sm:$0xf] %vm2011, %v1942
      %2072 = vst.msk [vmem:[%s250 + $0xf0] sm:$0xf] %vm2011, %v1943
      %2073 = vst.msk [vmem:[%s250 + $0xf4] sm:$0xf] %vm2011, %v1944
      %2074 = vst.msk [vmem:[%s250 + $0xf8] sm:$0xf] %vm2011, %v1945
      %2075 = vst.msk [vmem:[%s250 + $0xfc] sm:$0xf] %vm2011, %v1946
      %s2076 = smul.u32 64, %s20
      %p2077 = scmp.lt.s32.totalorder %s19, 3
      %s2078 = scalar_select %p2077, %s19, 3
      %p2079 = scmp.lt.s32.totalorder %s2076, 63
      %s2080 = scalar_select %p2079, %s2076, 63
      %s2081 = smul.addr %s2078, 64
      %s2082 = sadd.s32 %s2080, %s2081
      %s2083 = smul.addr %s2082, 4
      %s2084 = scalar_lea.vmem %s4, %s2083
      // Predicated region
      $region37: #{dense_projection_forward.9} parent=35 // pred_check
        %p2085 = pneg %p145
      $region38: #{dense_projection_forward.9} parent=35 // pred_check_branch
        %2087 = sbr.rel (%p2085) target = $region40
      $region39: #{dense_projection_forward.9} parent=35 // pred_region
        %s2088 = smul.u32 64, %s20
      $region40: #{dense_projection_forward.9} parent=35 // pred_fallthru
        _
    $region36: #{dense_projection_forward.9} parent=5 // pred_fallthru
      _
    %p2089 = scmp.le.s32.totalorder 2, %s10
    // Predicated region
    $region41: #{dense_projection_forward.9} parent=5 // pred_check
      %p2090 = pneg %p2089
    $region42: #{dense_projection_forward.9} parent=5 // pred_check_branch
      %2092 = sbr.rel (%p2090) target = $region44
    $region43: #{dense_projection_forward.9} parent=5 // pred_region
      %s2093 = ssub.s32 %s10, 2
      // Predicated region
      $region45: #{dense_projection_forward.9} parent=43 // pred_check
        %p2094 = pneg %p151
      $region46: #{dense_projection_forward.9} parent=43 // pred_check_branch
        %2096 = sbr.rel (%p2094) target = $region48
      $region47: #{dense_projection_forward.9} parent=43 // pred_region
        %s2097 = smul.u32 64, %s22
        %p2098 = scmp.lt.s32.totalorder %s21, 3
        %s2099 = scalar_select %p2098, %s21, 3
        %p2100 = scmp.lt.s32.totalorder %s2097, 63
        %s2101 = scalar_select %p2100, %s2097, 63
        %s2102 = smul.addr %s2099, 64
        %s2103 = sadd.s32 %s2101, %s2102
        %s2104 = smul.addr %s2103, 4
        %s2105 = scalar_lea.vmem %s4, %s2104
      $region48: #{dense_projection_forward.9} parent=43 // pred_fallthru
        _
    $region44: #{dense_projection_forward.9} parent=5 // pred_fallthru
      _
  $region6: #{dense_projection_forward.9} parent=0 // loop_footer
    %s14 = sadd.s32 1, %s10
  $region7: #{dense_projection_forward.9} parent=0 // loop_footer_branch
    %9 = sbr.rel target = $region3
  $region8: #{dense_projection_forward.9} parent=0 // loop_exit
    _

// kernel: dense_projection_forward.8
$region0: #{dense_projection_forward.8}
  #allocation0 [shape = 'u32[]', space=smem, size = 0x4, offset = 0x4, fixed_abs, tag = 'smem constant byte address 0x4 - core index']
  #allocation1 [shape = 'u32[144,128]{1,0:T(1,128)}', space=vmem, size = 0x12000, scoped, tag = 'internal scratch']
  %s0 = inlined_call_operand.vmem [shape: bf16[4,72,8], index: 0, kind: input, shape index: {}]
  %s1 = inlined_call_operand.vmem [shape: bf16[4,512,8], index: 1, kind: input, shape index: {}]
  %s2 = inlined_call_operand.vmem [shape: bf16[512,72], index: 2, kind: input, shape index: {}]
  %s3 = inlined_call_operand.vmem [shape: f32[8], index: 3, kind: input, shape index: {}]
  %s4 = inlined_call_operand.vmem [shape: f32[8], index: 4, kind: input, shape index: {}]
  %s5 = inlined_call_operand.vmem [shape: bf16[4,512,8], index: 5, kind: output, shape index: {}]
  %s6 = sld [smem:[#allocation0]]
  $region53: #{dense_projection_forward.8} parent=0
    _
  %s8 = ssub.s32 1, %s6
  %s9 = scalar_select 0, %s8, %s6
  loop: start=0, step=1, limit=6
  $region2: #{dense_projection_forward.8} parent=0 // loop_pre_header
    _
  $region3: #{dense_projection_forward.8} parent=0 // loop_header
    %s11 = sphi 0, %s15
    %p12 = scmp.ge.s32.totalorder %s11, 6
    %s18 = sphi 0, %s30
    %s19 = sphi 0, %s26
    %s20 = sphi 0, %s18
    %s21 = sphi 0, %s19
    %s22 = sphi 0, %s20
    %s23 = sphi 0, %s21
    %s37 = sphi 0, %s39
    %s40 = sphi 0, %s37
    %s41 = sphi 0, %s40
    %s57 = sphi 0, %s41
    %s63 = sphi 0, %s65
    %s66 = sphi 0, %s63
    %s67 = sphi 0, %s66
    %s83 = sphi 0, %s67
    %s87 = sphi 0, %s87
    %s89 = sphi 0, %s87
    %s90 = sphi 0, %s89
    %s104 = sphi 0, %s90
    %s108 = sphi 0, %s108
    %s110 = sphi 0, %s108
    %s111 = sphi 0, %s110
    %s125 = sphi 0, %s111
    %s133 = sphi 0, %s135
    %s136 = sphi 0, %s133
    %s137 = sphi 0, %s136
    %s153 = sphi 0, %s137
    %s161 = sphi 0, %s163
    %s164 = sphi 0, %s161
    %s165 = sphi 0, %s164
    %s181 = sphi 0, %s165
  $region4: #{dense_projection_forward.8} parent=0 // loop_header_branch
    %14 = sbr.rel (%p12) target = $region8
  $region5: #{dense_projection_forward.8} parent=0 // loop_body
    %s16 = ssub.s32 %s11, 1
    %s17 = ssub.s32 %s11, 2
    %s24 = sadd.s32 1, %s19
    %p25 = scmp.ge.s32.totalorder %s24, 1
    %s26 = scalar_select %p25, 0, %s24
    %s27 = sadd.s32 1, %s18
    %s28 = scalar_select %p25, %s27, %s18
    %p29 = scmp.ge.s32.totalorder %s28, 4
    %s30 = scalar_select %p29, 0, %s28
    %s31 = smul.addr %s19, 512
    %s32 = sshrl.u32 %s31, 3
    %s33 = smul.addr %s26, 512
    %s34 = sshrl.u32 %s33, 3
    %s35 = ssub.s32 %s32, %s34
    %p36 = scmp.eq.s32.totalorder %s35, 0
    %s38 = sadd.s32 %s37, 1
    %s39 = scalar_select %p36, %s37, %s38
    %p42 = pneg %p36
    %p43 = scmp.eq.s32.totalorder %s11, 3
    %p44 = por %p42, %p43
    %p45 = scmp.ne.s32.totalorder %s37, %s40
    %p46 = scmp.eq.s32.totalorder %s11, 0
    %p47 = por %p45, %p46
    %p48 = scmp.ne.s32.totalorder %s37, %s40
    %p49 = scmp.eq.s32.totalorder %s16, 3
    %p50 = por %p48, %p49
    %p51 = scmp.ne.s32.totalorder %s40, %s41
    %p52 = scmp.eq.s32.totalorder %s16, 0
    %p53 = por %p51, %p52
    %p54 = scmp.ne.s32.totalorder %s40, %s41
    %p55 = scmp.eq.s32.totalorder %s17, 3
    %p56 = por %p54, %p55
    %p58 = scmp.ne.s32.totalorder %s41, %s57
    %p59 = scmp.eq.s32.totalorder %s17, 0
    %p60 = por %p58, %p59
    %s61 = ssub.s32 %s18, %s30
    %p62 = scmp.eq.s32.totalorder %s61, 0
    %s64 = sadd.s32 %s63, 1
    %s65 = scalar_select %p62, %s63, %s64
    %p68 = pneg %p62
    %p69 = scmp.eq.s32.totalorder %s11, 3
    %p70 = por %p68, %p69
    %p71 = scmp.ne.s32.totalorder %s63, %s66
    %p72 = scmp.eq.s32.totalorder %s11, 0
    %p73 = por %p71, %p72
    %p74 = scmp.ne.s32.totalorder %s63, %s66
    %p75 = scmp.eq.s32.totalorder %s16, 3
    %p76 = por %p74, %p75
    %p77 = scmp.ne.s32.totalorder %s66, %s67
    %p78 = scmp.eq.s32.totalorder %s16, 0
    %p79 = por %p77, %p78
    %p80 = scmp.ne.s32.totalorder %s66, %s67
    %p81 = scmp.eq.s32.totalorder %s17, 3
    %p82 = por %p80, %p81
    %p84 = scmp.ne.s32.totalorder %s67, %s83
    %p85 = scmp.eq.s32.totalorder %s17, 0
    %p86 = por %p84, %p85
    %s88 = sadd.s32 %s87, 1
    %p91 = scmp.eq.s32.totalorder %s11, 3
    %p92 = scmp.ne.s32.totalorder %s87, %s89
    %p93 = scmp.eq.s32.totalorder %s11, 0
    %p94 = por %p92, %p93
    %p95 = scmp.ne.s32.totalorder %s87, %s89
    %p96 = scmp.eq.s32.totalorder %s16, 3
    %p97 = por %p95, %p96
    %p98 = scmp.ne.s32.totalorder %s89, %s90
    %p99 = scmp.eq.s32.totalorder %s16, 0
    %p100 = por %p98, %p99
    %p101 = scmp.ne.s32.totalorder %s89, %s90
    %p102 = scmp.eq.s32.totalorder %s17, 3
    %p103 = por %p101, %p102
    %p105 = scmp.ne.s32.totalorder %s90, %s104
    %p106 = scmp.eq.s32.totalorder %s17, 0
    %p107 = por %p105, %p106
    %s109 = sadd.s32 %s108, 1
    %p112 = scmp.eq.s32.totalorder %s11, 3
    %p113 = scmp.ne.s32.totalorder %s108, %s110
    %p114 = scmp.eq.s32.totalorder %s11, 0
    %p115 = por %p113, %p114
    %p116 = scmp.ne.s32.totalorder %s108, %s110
    %p117 = scmp.eq.s32.totalorder %s16, 3
    %p118 = por %p116, %p117
    %p119 = scmp.ne.s32.totalorder %s110, %s111
    %p120 = scmp.eq.s32.totalorder %s16, 0
    %p121 = por %p119, %p120
    %p122 = scmp.ne.s32.totalorder %s110, %s111
    %p123 = scmp.eq.s32.totalorder %s17, 3
    %p124 = por %p122, %p123
    %p126 = scmp.ne.s32.totalorder %s111, %s125
    %p127 = scmp.eq.s32.totalorder %s17, 0
    %p128 = por %p126, %p127
    %s129 = ssub.s32 %s18, %s30
    %s130 = ssub.s32 %s19, %s26
    %s131 = sor.u32 %s129, %s130
    %p132 = scmp.eq.s32.totalorder %s131, 0
    %s134 = sadd.s32 %s133, 1
    %s135 = scalar_select %p132, %s133, %s134
    %p138 = pneg %p132
    %p139 = scmp.eq.s32.totalorder %s11, 3
    %p140 = por %p138, %p139
    %p141 = scmp.ne.s32.totalorder %s133, %s136
    %p142 = scmp.eq.s32.totalorder %s11, 0
    %p143 = por %p141, %p142
    %p144 = scmp.ne.s32.totalorder %s133, %s136
    %p145 = scmp.eq.s32.totalorder %s16, 3
    %p146 = por %p144, %p145
    %p147 = scmp.ne.s32.totalorder %s136, %s137
    %p148 = scmp.eq.s32.totalorder %s16, 0
    %p149 = por %p147, %p148
    %p150 = scmp.ne.s32.totalorder %s136, %s137
    %p151 = scmp.eq.s32.totalorder %s17, 3
    %p152 = por %p150, %p151
    %p154 = scmp.ne.s32.totalorder %s137, %s153
    %p155 = scmp.eq.s32.totalorder %s17, 0
    %p156 = por %p154, %p155
    %s157 = ssub.s32 %s18, %s30
    %s158 = ssub.s32 %s19, %s26
    %s159 = sor.u32 %s157, %s158
    %p160 = scmp.eq.s32.totalorder %s159, 0
    %s162 = sadd.s32 %s161, 1
    %s163 = scalar_select %p160, %s161, %s162
    %p166 = pneg %p160
    %p167 = scmp.eq.s32.totalorder %s11, 3
    %p168 = por %p166, %p167
    %p169 = scmp.ne.s32.totalorder %s161, %s164
    %p170 = scmp.eq.s32.totalorder %s11, 0
    %p171 = por %p169, %p170
    %p172 = scmp.ne.s32.totalorder %s161, %s164
    %p173 = scmp.eq.s32.totalorder %s16, 3
    %p174 = por %p172, %p173
    %p175 = scmp.ne.s32.totalorder %s164, %s165
    %p176 = scmp.eq.s32.totalorder %s16, 0
    %p177 = por %p175, %p176
    %p178 = scmp.ne.s32.totalorder %s164, %s165
    %p179 = scmp.eq.s32.totalorder %s17, 3
    %p180 = por %p178, %p179
    %p182 = scmp.ne.s32.totalorder %s165, %s181
    %p183 = scmp.eq.s32.totalorder %s17, 0
    %p184 = por %p182, %p183
    %p185 = scmp.le.s32.totalorder 1, %s11
    %p186 = scmp.lt.s32.totalorder %s11, 5
    %p187 = pnand %p185, %p186
    %p188 = pneg %p187
    // Predicated region
    $region9: #{dense_projection_forward.8} parent=5 // pred_check
      _
    $region10: #{dense_projection_forward.8} parent=5 // pred_check_branch
      %190 = sbr.rel (%p187) target = $region12
    $region11: #{dense_projection_forward.8} parent=5 // pred_region
      %s191 = ssub.s32 %s11, 1
      // Predicated region
      $region13: #{dense_projection_forward.8} parent=11 // pred_check
        %p192 = pneg %p100
      $region14: #{dense_projection_forward.8} parent=11 // pred_check_branch
        %194 = sbr.rel (%p192) target = $region16
      $region15: #{dense_projection_forward.8} parent=11 // pred_region
        _
      $region16: #{dense_projection_forward.8} parent=11 // pred_fallthru
        _
      // Predicated region
      $region17: #{dense_projection_forward.8} parent=11 // pred_check
        %p195 = pneg %p121
      $region18: #{dense_projection_forward.8} parent=11 // pred_check_branch
        %197 = sbr.rel (%p195) target = $region20
      $region19: #{dense_projection_forward.8} parent=11 // pred_region
        _
      $region20: #{dense_projection_forward.8} parent=11 // pred_fallthru
        _
    $region12: #{dense_projection_forward.8} parent=5 // pred_fallthru
      _
    %p198 = scmp.lt.s32.totalorder %s11, 4
    // Predicated region
    $region21: #{dense_projection_forward.8} parent=5 // pred_check
      %p199 = pneg %p198
    $region22: #{dense_projection_forward.8} parent=5 // pred_check_branch
      %201 = sbr.rel (%p199) target = $region24
    $region23: #{dense_projection_forward.8} parent=5 // pred_region
      // Predicated region
      $region25: #{dense_projection_forward.8} parent=23 // pred_check
        %p202 = pneg %p47
      $region26: #{dense_projection_forward.8} parent=23 // pred_check_branch
        %204 = sbr.rel (%p202) target = $region28
      $region27: #{dense_projection_forward.8} parent=23 // pred_region
        %s205 = smul.addr %s19, 512
        %s206 = sshrl.u32 %s205, 3
        %p207 = scmp.lt.s32.totalorder %s206, 63
        %s208 = scalar_select %p207, %s206, 63
        %s209 = smul.addr %s208, 4
        %s210 = scalar_lea.vmem %s2, %s209
        %s211 = smul.addr %s19, 512
        %s212 = sshrl.u32 %s211, 3
      $region28: #{dense_projection_forward.8} parent=23 // pred_fallthru
        _
      // Predicated region
      $region29: #{dense_projection_forward.8} parent=23 // pred_check
        %p213 = pneg %p73
      $region30: #{dense_projection_forward.8} parent=23 // pred_check_branch
        %215 = sbr.rel (%p213) target = $region32
      $region31: #{dense_projection_forward.8} parent=23 // pred_region
        %p216 = scmp.lt.s32.totalorder %s18, 3
        %s217 = scalar_select %p216, %s18, 3
        %s218 = smul.addr %s217, 9
        %s219 = smul.addr %s218, 4
        %s220 = scalar_lea.vmem %s0, %s219
      $region32: #{dense_projection_forward.8} parent=23 // pred_fallthru
        _
      // Predicated region
      $region33: #{dense_projection_forward.8} parent=23 // pred_check
        %p221 = pneg %p143
      $region34: #{dense_projection_forward.8} parent=23 // pred_check_branch
        %223 = sbr.rel (%p221) target = $region36
      $region35: #{dense_projection_forward.8} parent=23 // pred_region
        %s224 = smul.u32 64, %s19
        %p225 = scmp.lt.s32.totalorder %s18, 3
        %s226 = scalar_select %p225, %s18, 3
        %p227 = scmp.lt.s32.totalorder %s224, 63
        %s228 = scalar_select %p227, %s224, 63
        %s229 = smul.addr %s226, 64
        %s230 = sadd.s32 %s228, %s229
        %s231 = smul.addr %s230, 4
        %s232 = scalar_lea.vmem %s1, %s231
        %s233 = smul.u32 64, %s19
      $region36: #{dense_projection_forward.8} parent=23 // pred_fallthru
        _
    $region24: #{dense_projection_forward.8} parent=5 // pred_fallthru
      _
    %p234 = scmp.le.s32.totalorder 1, %s11
    %p235 = scmp.lt.s32.totalorder %s11, 5
    %p236 = pnand %p234, %p235
    %p237 = pneg %p236
    // Predicated region
    $region37: #{dense_projection_forward.8} parent=5 // pred_check
      _
    $region38: #{dense_projection_forward.8} parent=5 // pred_check_branch
      %239 = sbr.rel (%p236) target = $region40
    $region39: #{dense_projection_forward.8} parent=5 // pred_region
      #allocation2 [shape = 'u8[131072]{0}', space=vmem, size = 0x20000, dematerialized = true, scoped, tag = 'FusionAdapter Buffer %fusion.1 = bf16[4,512,72]{2,1,0:T(8,128)(2,1)} fusion(%param_2.16), kind=kLoop, calls=%fused_computation.17.clone, metadata={op_name="jit(dense_projection_forward)/concatenate" stack_frame_id=72}']
      #allocation3 [shape = 'u8[512]{0}', space=vmem, size = 0x400, dematerialized = true, scoped, tag = 'FusionAdapter Buffer %fusion.8 = f32[1,8]{1,0:T(1,128)} fusion(%param_4.12), kind=kLoop, calls=%fused_computation.100.clone, metadata={op_name="jit(dense_projection_forward)/reshape" stack_frame_id=76}']
      #allocation4 [shape = 'u8[512]{0}', space=vmem, size = 0x400, dematerialized = true, scoped, tag = 'FusionAdapter Buffer %fusion.7 = f32[1,8]{1,0:T(1,128)} fusion(%param_3.20), kind=kLoop, calls=%fused_computation.99.clone, metadata={op_name="jit(dense_projection_forward)/reshape" stack_frame_id=77}']
      %s240 = ssub.s32 %s11, 1
      %s241 = smul.addr %s21, 512
      %s242 = sshrl.u32 %s241, 3
      %p243 = scmp.lt.s32.totalorder %s242, 63
      %s244 = scalar_select %p243, %s242, 63
      %s245 = smul.addr %s244, 4
      %s246 = scalar_lea.vmem %s2, %s245
      %p247 = pneg %p53
      %p248 = pneg %p50
      %p249 = scmp.lt.s32.totalorder %s20, 3
      %s250 = scalar_select %p249, %s20, 3
      %s251 = smul.addr %s250, 9
      %s252 = smul.addr %s251, 4
      %s253 = scalar_lea.vmem %s0, %s252
      %p254 = pneg %p79
      %p255 = pneg %p76
      %p256 = pneg %p100
      %p257 = pneg %p97
      %p258 = pneg %p121
      %p259 = pneg %p118
      %s260 = smul.u32 64, %s21
      %p261 = scmp.lt.s32.totalorder %s20, 3
      %s262 = scalar_select %p261, %s20, 3
      %p263 = scmp.lt.s32.totalorder %s260, 63
      %s264 = scalar_select %p263, %s260, 63
      %s265 = smul.addr %s262, 64
      %s266 = sadd.s32 %s264, %s265
      %s267 = smul.addr %s266, 4
      %s268 = scalar_lea.vmem %s1, %s267
      %p269 = pneg %p149
      %p270 = pneg %p146
      %p271 = pneg %p177
      %p272 = pneg %p174
      %s273 = smul.u32 64, %s21
      %p274 = scmp.lt.s32.totalorder %s20, 3
      %s275 = scalar_select %p274, %s20, 3
      %p276 = scmp.lt.s32.totalorder %s273, 63
      %s277 = scalar_select %p276, %s273, 63
      %s278 = smul.addr %s275, 64
      %s279 = sadd.s32 %s277, %s278
      %s280 = smul.addr %s279, 4
      %s281 = scalar_lea.vmem %s5, %s280
      %s282 = smul.addr %s21, 512
      %s283 = sshrl.u32 %s282, 3
      %p284 = scmp.lt.s32.totalorder %s283, 63
      %s285 = scalar_select %p284, %s283, 63
      %s286 = smul.addr %s285, 4
      %s287 = scalar_lea.vmem %s2, %s286
      %s288 = smul.addr %s21, 512
      %s289 = sshrl.u32 %s288, 3
      %p290 = scmp.lt.s32.totalorder %s20, 3
      %s291 = scalar_select %p290, %s20, 3
      %s292 = smul.addr %s291, 9
      %s293 = smul.addr %s292, 4
      %s294 = scalar_lea.vmem %s0, %s293
      %s295 = smul.u32 64, %s21
      %p296 = scmp.lt.s32.totalorder %s20, 3
      %s297 = scalar_select %p296, %s20, 3
      %p298 = scmp.lt.s32.totalorder %s295, 63
      %s299 = scalar_select %p298, %s295, 63
      %s300 = smul.addr %s297, 64
      %s301 = sadd.s32 %s299, %s300
      %s302 = smul.addr %s301, 4
      %s303 = scalar_lea.vmem %s1, %s302
      %s304 = smul.u32 64, %s21
      %s305 = smul.u32 64, %s21
      %p306 = scmp.lt.s32.totalorder %s20, 3
      %s307 = scalar_select %p306, %s20, 3
      %p308 = scmp.lt.s32.totalorder %s305, 63
      %s309 = scalar_select %p308, %s305, 63
      %s310 = smul.addr %s307, 64
      %s311 = sadd.s32 %s309, %s310
      %s312 = smul.addr %s311, 4
      %s313 = scalar_lea.vmem %s5, %s312
      %s314 = smul.u32 64, %s21
      %s315 = smul.addr %s21, 64
      %s316 = smul.addr %s315, 8
      %s317 = smul.addr %s289, 4
      %s318 = scalar_lea.vmem %s2, %s317
      %v319 = vld [vmem:[%s318] sm:$0xf]
      %v320 = vunpack.c.l.bf16 %v319
      %v321 = vunpack.c.h.bf16 %v319
      %v322 = vpack.c.bf16 0.0, %v320
      %324 = vst [vmem:[#allocation2] sm:$0xf] %v322
      %s325 = sadd.s32 1, %s289
      %s326 = smul.addr %s325, 4
      %s327 = scalar_lea.vmem %s2, %s326
      %v328 = vld [vmem:[%s327] sm:$0xf]
      %v329 = vunpack.c.l.bf16 %v328
      %v330 = vunpack.c.h.bf16 %v328
      %s331 = scalar_lea.vmem [#allocation2], 4
      %v332 = vpack.c.bf16 0.0, %v329
      %334 = vst [vmem:[%s331] sm:$0xf] %v332
      %s335 = sadd.s32 2, %s289
      %s336 = smul.addr %s335, 4
      %s337 = scalar_lea.vmem %s2, %s336
      %v338 = vld [vmem:[%s337] sm:$0xf]
      %v339 = vunpack.c.l.bf16 %v338
      %v340 = vunpack.c.h.bf16 %v338
      %s341 = scalar_lea.vmem [#allocation2], 8
      %v342 = vpack.c.bf16 0.0, %v339
      %344 = vst [vmem:[%s341] sm:$0xf] %v342
      %s345 = sadd.s32 3, %s289
      %s346 = smul.addr %s345, 4
      %s347 = scalar_lea.vmem %s2, %s346
      %v348 = vld [vmem:[%s347] sm:$0xf]
      %v349 = vunpack.c.l.bf16 %v348
      %v350 = vunpack.c.h.bf16 %v348
      %s351 = scalar_lea.vmem [#allocation2], 12
      %v352 = vpack.c.bf16 0.0, %v349
      %354 = vst [vmem:[%s351] sm:$0xf] %v352
      %s355 = sadd.s32 4, %s289
      %s356 = smul.addr %s355, 4
      %s357 = scalar_lea.vmem %s2, %s356
      %v358 = vld [vmem:[%s357] sm:$0xf]
      %v359 = vunpack.c.l.bf16 %v358
      %v360 = vunpack.c.h.bf16 %v358
      %s361 = scalar_lea.vmem [#allocation2], 16
      %v362 = vpack.c.bf16 0.0, %v359
      %364 = vst [vmem:[%s361] sm:$0xf] %v362
      %s365 = sadd.s32 5, %s289
      %s366 = smul.addr %s365, 4
      %s367 = scalar_lea.vmem %s2, %s366
      %v368 = vld [vmem:[%s367] sm:$0xf]
      %v369 = vunpack.c.l.bf16 %v368
      %v370 = vunpack.c.h.bf16 %v368
      %s371 = scalar_lea.vmem [#allocation2], 20
      %v372 = vpack.c.bf16 0.0, %v369
      %374 = vst [vmem:[%s371] sm:$0xf] %v372
      %s375 = sadd.s32 6, %s289
      %s376 = smul.addr %s375, 4
      %s377 = scalar_lea.vmem %s2, %s376
      %v378 = vld [vmem:[%s377] sm:$0xf]
      %v379 = vunpack.c.l.bf16 %v378
      %v380 = vunpack.c.h.bf16 %v378
      %s381 = scalar_lea.vmem [#allocation2], 24
      %v382 = vpack.c.bf16 0.0, %v379
      %384 = vst [vmem:[%s381] sm:$0xf] %v382
      %s385 = sadd.s32 7, %s289
      %s386 = smul.addr %s385, 4
      %s387 = scalar_lea.vmem %s2, %s386
      %v388 = vld [vmem:[%s387] sm:$0xf]
      %v389 = vunpack.c.l.bf16 %v388
      %v390 = vunpack.c.h.bf16 %v388
      %s391 = scalar_lea.vmem [#allocation2], 28
      %v392 = vpack.c.bf16 0.0, %v389
      %394 = vst [vmem:[%s391] sm:$0xf] %v392
      %s395 = sadd.s32 8, %s289
      %s396 = smul.addr %s395, 4
      %s397 = scalar_lea.vmem %s2, %s396
      %v398 = vld [vmem:[%s397] sm:$0xf]
      %v399 = vunpack.c.l.bf16 %v398
      %v400 = vunpack.c.h.bf16 %v398
      %s401 = scalar_lea.vmem [#allocation2], 32
      %v402 = vpack.c.bf16 0.0, %v399
      %404 = vst [vmem:[%s401] sm:$0xf] %v402
      %s405 = sadd.s32 9, %s289
      %s406 = smul.addr %s405, 4
      %s407 = scalar_lea.vmem %s2, %s406
      %v408 = vld [vmem:[%s407] sm:$0xf]
      %v409 = vunpack.c.l.bf16 %v408
      %v410 = vunpack.c.h.bf16 %v408
      %s411 = scalar_lea.vmem [#allocation2], 36
      %v412 = vpack.c.bf16 0.0, %v409
      %414 = vst [vmem:[%s411] sm:$0xf] %v412
      %s415 = sadd.s32 10, %s289
      %s416 = smul.addr %s415, 4
      %s417 = scalar_lea.vmem %s2, %s416
      %v418 = vld [vmem:[%s417] sm:$0xf]
      %v419 = vunpack.c.l.bf16 %v418
      %v420 = vunpack.c.h.bf16 %v418
      %s421 = scalar_lea.vmem [#allocation2], 40
      %v422 = vpack.c.bf16 0.0, %v419
      %424 = vst [vmem:[%s421] sm:$0xf] %v422
      %s425 = sadd.s32 11, %s289
      %s426 = smul.addr %s425, 4
      %s427 = scalar_lea.vmem %s2, %s426
      %v428 = vld [vmem:[%s427] sm:$0xf]
      %v429 = vunpack.c.l.bf16 %v428
      %v430 = vunpack.c.h.bf16 %v428
      %s431 = scalar_lea.vmem [#allocation2], 44
      %v432 = vpack.c.bf16 0.0, %v429
      %434 = vst [vmem:[%s431] sm:$0xf] %v432
      %s435 = sadd.s32 12, %s289
      %s436 = smul.addr %s435, 4
      %s437 = scalar_lea.vmem %s2, %s436
      %v438 = vld [vmem:[%s437] sm:$0xf]
      %v439 = vunpack.c.l.bf16 %v438
      %v440 = vunpack.c.h.bf16 %v438
      %s441 = scalar_lea.vmem [#allocation2], 48
      %v442 = vpack.c.bf16 0.0, %v439
      %444 = vst [vmem:[%s441] sm:$0xf] %v442
      %s445 = sadd.s32 13, %s289
      %s446 = smul.addr %s445, 4
      %s447 = scalar_lea.vmem %s2, %s446
      %v448 = vld [vmem:[%s447] sm:$0xf]
      %v449 = vunpack.c.l.bf16 %v448
      %v450 = vunpack.c.h.bf16 %v448
      %s451 = scalar_lea.vmem [#allocation2], 52
      %v452 = vpack.c.bf16 0.0, %v449
      %454 = vst [vmem:[%s451] sm:$0xf] %v452
      %s455 = sadd.s32 14, %s289
      %s456 = smul.addr %s455, 4
      %s457 = scalar_lea.vmem %s2, %s456
      %v458 = vld [vmem:[%s457] sm:$0xf]
      %v459 = vunpack.c.l.bf16 %v458
      %v460 = vunpack.c.h.bf16 %v458
      %s461 = scalar_lea.vmem [#allocation2], 56
      %v462 = vpack.c.bf16 0.0, %v459
      %464 = vst [vmem:[%s461] sm:$0xf] %v462
      %s465 = sadd.s32 15, %s289
      %s466 = smul.addr %s465, 4
      %s467 = scalar_lea.vmem %s2, %s466
      %v468 = vld [vmem:[%s467] sm:$0xf]
      %v469 = vunpack.c.l.bf16 %v468
      %v470 = vunpack.c.h.bf16 %v468
      %s471 = scalar_lea.vmem [#allocation2], 60
      %v472 = vpack.c.bf16 0.0, %v469
      %474 = vst [vmem:[%s471] sm:$0xf] %v472
      %s475 = sadd.s32 16, %s289
      %s476 = smul.addr %s475, 4
      %s477 = scalar_lea.vmem %s2, %s476
      %v478 = vld [vmem:[%s477] sm:$0xf]
      %v479 = vunpack.c.l.bf16 %v478
      %v480 = vunpack.c.h.bf16 %v478
      %s481 = scalar_lea.vmem [#allocation2], 64
      %v482 = vpack.c.bf16 0.0, %v479
      %484 = vst [vmem:[%s481] sm:$0xf] %v482
      %s485 = sadd.s32 17, %s289
      %s486 = smul.addr %s485, 4
      %s487 = scalar_lea.vmem %s2, %s486
      %v488 = vld [vmem:[%s487] sm:$0xf]
      %v489 = vunpack.c.l.bf16 %v488
      %v490 = vunpack.c.h.bf16 %v488
      %s491 = scalar_lea.vmem [#allocation2], 68
      %v492 = vpack.c.bf16 0.0, %v489
      %494 = vst [vmem:[%s491] sm:$0xf] %v492
      %s495 = sadd.s32 18, %s289
      %s496 = smul.addr %s495, 4
      %s497 = scalar_lea.vmem %s2, %s496
      %v498 = vld [vmem:[%s497] sm:$0xf]
      %v499 = vunpack.c.l.bf16 %v498
      %v500 = vunpack.c.h.bf16 %v498
      %s501 = scalar_lea.vmem [#allocation2], 72
      %v502 = vpack.c.bf16 0.0, %v499
      %504 = vst [vmem:[%s501] sm:$0xf] %v502
      %s505 = sadd.s32 19, %s289
      %s506 = smul.addr %s505, 4
      %s507 = scalar_lea.vmem %s2, %s506
      %v508 = vld [vmem:[%s507] sm:$0xf]
      %v509 = vunpack.c.l.bf16 %v508
      %v510 = vunpack.c.h.bf16 %v508
      %s511 = scalar_lea.vmem [#allocation2], 76
      %v512 = vpack.c.bf16 0.0, %v509
      %514 = vst [vmem:[%s511] sm:$0xf] %v512
      %s515 = sadd.s32 20, %s289
      %s516 = smul.addr %s515, 4
      %s517 = scalar_lea.vmem %s2, %s516
      %v518 = vld [vmem:[%s517] sm:$0xf]
      %v519 = vunpack.c.l.bf16 %v518
      %v520 = vunpack.c.h.bf16 %v518
      %s521 = scalar_lea.vmem [#allocation2], 80
      %v522 = vpack.c.bf16 0.0, %v519
      %524 = vst [vmem:[%s521] sm:$0xf] %v522
      %s525 = sadd.s32 21, %s289
      %s526 = smul.addr %s525, 4
      %s527 = scalar_lea.vmem %s2, %s526
      %v528 = vld [vmem:[%s527] sm:$0xf]
      %v529 = vunpack.c.l.bf16 %v528
      %v530 = vunpack.c.h.bf16 %v528
      %s531 = scalar_lea.vmem [#allocation2], 84
      %v532 = vpack.c.bf16 0.0, %v529
      %534 = vst [vmem:[%s531] sm:$0xf] %v532
      %s535 = sadd.s32 22, %s289
      %s536 = smul.addr %s535, 4
      %s537 = scalar_lea.vmem %s2, %s536
      %v538 = vld [vmem:[%s537] sm:$0xf]
      %v539 = vunpack.c.l.bf16 %v538
      %v540 = vunpack.c.h.bf16 %v538
      %s541 = scalar_lea.vmem [#allocation2], 88
      %v542 = vpack.c.bf16 0.0, %v539
      %544 = vst [vmem:[%s541] sm:$0xf] %v542
      %s545 = sadd.s32 23, %s289
      %s546 = smul.addr %s545, 4
      %s547 = scalar_lea.vmem %s2, %s546
      %v548 = vld [vmem:[%s547] sm:$0xf]
      %v549 = vunpack.c.l.bf16 %v548
      %v550 = vunpack.c.h.bf16 %v548
      %s551 = scalar_lea.vmem [#allocation2], 92
      %v552 = vpack.c.bf16 0.0, %v549
      %554 = vst [vmem:[%s551] sm:$0xf] %v552
      %s555 = sadd.s32 24, %s289
      %s556 = smul.addr %s555, 4
      %s557 = scalar_lea.vmem %s2, %s556
      %v558 = vld [vmem:[%s557] sm:$0xf]
      %v559 = vunpack.c.l.bf16 %v558
      %v560 = vunpack.c.h.bf16 %v558
      %s561 = scalar_lea.vmem [#allocation2], 96
      %v562 = vpack.c.bf16 0.0, %v559
      %564 = vst [vmem:[%s561] sm:$0xf] %v562
      %s565 = sadd.s32 25, %s289
      %s566 = smul.addr %s565, 4
      %s567 = scalar_lea.vmem %s2, %s566
      %v568 = vld [vmem:[%s567] sm:$0xf]
      %v569 = vunpack.c.l.bf16 %v568
      %v570 = vunpack.c.h.bf16 %v568
      %s571 = scalar_lea.vmem [#allocation2], 100
      %v572 = vpack.c.bf16 0.0, %v569
      %574 = vst [vmem:[%s571] sm:$0xf] %v572
      %s575 = sadd.s32 26, %s289
      %s576 = smul.addr %s575, 4
      %s577 = scalar_lea.vmem %s2, %s576
      %v578 = vld [vmem:[%s577] sm:$0xf]
      %v579 = vunpack.c.l.bf16 %v578
      %v580 = vunpack.c.h.bf16 %v578
      %s581 = scalar_lea.vmem [#allocation2], 104
      %v582 = vpack.c.bf16 0.0, %v579
      %584 = vst [vmem:[%s581] sm:$0xf] %v582
      %s585 = sadd.s32 27, %s289
      %s586 = smul.addr %s585, 4
      %s587 = scalar_lea.vmem %s2, %s586
      %v588 = vld [vmem:[%s587] sm:$0xf]
      %v589 = vunpack.c.l.bf16 %v588
      %v590 = vunpack.c.h.bf16 %v588
      %s591 = scalar_lea.vmem [#allocation2], 108
      %v592 = vpack.c.bf16 0.0, %v589
      %594 = vst [vmem:[%s591] sm:$0xf] %v592
      %s595 = sadd.s32 28, %s289
      %s596 = smul.addr %s595, 4
      %s597 = scalar_lea.vmem %s2, %s596
      %v598 = vld [vmem:[%s597] sm:$0xf]
      %v599 = vunpack.c.l.bf16 %v598
      %v600 = vunpack.c.h.bf16 %v598
      %s601 = scalar_lea.vmem [#allocation2], 112
      %v602 = vpack.c.bf16 0.0, %v599
      %604 = vst [vmem:[%s601] sm:$0xf] %v602
      %s605 = sadd.s32 29, %s289
      %s606 = smul.addr %s605, 4
      %s607 = scalar_lea.vmem %s2, %s606
      %v608 = vld [vmem:[%s607] sm:$0xf]
      %v609 = vunpack.c.l.bf16 %v608
      %v610 = vunpack.c.h.bf16 %v608
      %s611 = scalar_lea.vmem [#allocation2], 116
      %v612 = vpack.c.bf16 0.0, %v609
      %614 = vst [vmem:[%s611] sm:$0xf] %v612
      %s615 = sadd.s32 30, %s289
      %s616 = smul.addr %s615, 4
      %s617 = scalar_lea.vmem %s2, %s616
      %v618 = vld [vmem:[%s617] sm:$0xf]
      %v619 = vunpack.c.l.bf16 %v618
      %v620 = vunpack.c.h.bf16 %v618
      %s621 = scalar_lea.vmem [#allocation2], 120
      %v622 = vpack.c.bf16 0.0, %v619
      %624 = vst [vmem:[%s621] sm:$0xf] %v622
      %s625 = sadd.s32 31, %s289
      %s626 = smul.addr %s625, 4
      %s627 = scalar_lea.vmem %s2, %s626
      %v628 = vld [vmem:[%s627] sm:$0xf]
      %v629 = vunpack.c.l.bf16 %v628
      %v630 = vunpack.c.h.bf16 %v628
      %s631 = scalar_lea.vmem [#allocation2], 124
      %v632 = vpack.c.bf16 0.0, %v629
      %634 = vst [vmem:[%s631] sm:$0xf] %v632
      %s635 = sadd.s32 32, %s289
      %s636 = smul.addr %s635, 4
      %s637 = scalar_lea.vmem %s2, %s636
      %v638 = vld [vmem:[%s637] sm:$0xf]
      %v639 = vunpack.c.l.bf16 %v638
      %v640 = vunpack.c.h.bf16 %v638
      %s641 = scalar_lea.vmem [#allocation2], 128
      %v642 = vpack.c.bf16 0.0, %v639
      %644 = vst [vmem:[%s641] sm:$0xf] %v642
      %s645 = sadd.s32 33, %s289
      %s646 = smul.addr %s645, 4
      %s647 = scalar_lea.vmem %s2, %s646
      %v648 = vld [vmem:[%s647] sm:$0xf]
      %v649 = vunpack.c.l.bf16 %v648
      %v650 = vunpack.c.h.bf16 %v648
      %s651 = scalar_lea.vmem [#allocation2], 132
      %v652 = vpack.c.bf16 0.0, %v649
      %654 = vst [vmem:[%s651] sm:$0xf] %v652
      %s655 = sadd.s32 34, %s289
      %s656 = smul.addr %s655, 4
      %s657 = scalar_lea.vmem %s2, %s656
      %v658 = vld [vmem:[%s657] sm:$0xf]
      %v659 = vunpack.c.l.bf16 %v658
      %v660 = vunpack.c.h.bf16 %v658
      %s661 = scalar_lea.vmem [#allocation2], 136
      %v662 = vpack.c.bf16 0.0, %v659
      %664 = vst [vmem:[%s661] sm:$0xf] %v662
      %s665 = sadd.s32 35, %s289
      %s666 = smul.addr %s665, 4
      %s667 = scalar_lea.vmem %s2, %s666
      %v668 = vld [vmem:[%s667] sm:$0xf]
      %v669 = vunpack.c.l.bf16 %v668
      %v670 = vunpack.c.h.bf16 %v668
      %s671 = scalar_lea.vmem [#allocation2], 140
      %v672 = vpack.c.bf16 0.0, %v669
      %674 = vst [vmem:[%s671] sm:$0xf] %v672
      %s675 = sadd.s32 36, %s289
      %s676 = smul.addr %s675, 4
      %s677 = scalar_lea.vmem %s2, %s676
      %v678 = vld [vmem:[%s677] sm:$0xf]
      %v679 = vunpack.c.l.bf16 %v678
      %v680 = vunpack.c.h.bf16 %v678
      %s681 = scalar_lea.vmem [#allocation2], 144
      %v682 = vpack.c.bf16 0.0, %v679
      %684 = vst [vmem:[%s681] sm:$0xf] %v682
      %s685 = sadd.s32 37, %s289
      %s686 = smul.addr %s685, 4
      %s687 = scalar_lea.vmem %s2, %s686
      %v688 = vld [vmem:[%s687] sm:$0xf]
      %v689 = vunpack.c.l.bf16 %v688
      %v690 = vunpack.c.h.bf16 %v688
      %s691 = scalar_lea.vmem [#allocation2], 148
      %v692 = vpack.c.bf16 0.0, %v689
      %694 = vst [vmem:[%s691] sm:$0xf] %v692
      %s695 = sadd.s32 38, %s289
      %s696 = smul.addr %s695, 4
      %s697 = scalar_lea.vmem %s2, %s696
      %v698 = vld [vmem:[%s697] sm:$0xf]
      %v699 = vunpack.c.l.bf16 %v698
      %v700 = vunpack.c.h.bf16 %v698
      %s701 = scalar_lea.vmem [#allocation2], 152
      %v702 = vpack.c.bf16 0.0, %v699
      %704 = vst [vmem:[%s701] sm:$0xf] %v702
      %s705 = sadd.s32 39, %s289
      %s706 = smul.addr %s705, 4
      %s707 = scalar_lea.vmem %s2, %s706
      %v708 = vld [vmem:[%s707] sm:$0xf]
      %v709 = vunpack.c.l.bf16 %v708
      %v710 = vunpack.c.h.bf16 %v708
      %s711 = scalar_lea.vmem [#allocation2], 156
      %v712 = vpack.c.bf16 0.0, %v709
      %714 = vst [vmem:[%s711] sm:$0xf] %v712
      %s715 = sadd.s32 40, %s289
      %s716 = smul.addr %s715, 4
      %s717 = scalar_lea.vmem %s2, %s716
      %v718 = vld [vmem:[%s717] sm:$0xf]
      %v719 = vunpack.c.l.bf16 %v718
      %v720 = vunpack.c.h.bf16 %v718
      %s721 = scalar_lea.vmem [#allocation2], 160
      %v722 = vpack.c.bf16 0.0, %v719
      %724 = vst [vmem:[%s721] sm:$0xf] %v722
      %s725 = sadd.s32 41, %s289
      %s726 = smul.addr %s725, 4
      %s727 = scalar_lea.vmem %s2, %s726
      %v728 = vld [vmem:[%s727] sm:$0xf]
      %v729 = vunpack.c.l.bf16 %v728
      %v730 = vunpack.c.h.bf16 %v728
      %s731 = scalar_lea.vmem [#allocation2], 164
      %v732 = vpack.c.bf16 0.0, %v729
      %734 = vst [vmem:[%s731] sm:$0xf] %v732
      %s735 = sadd.s32 42, %s289
      %s736 = smul.addr %s735, 4
      %s737 = scalar_lea.vmem %s2, %s736
      %v738 = vld [vmem:[%s737] sm:$0xf]
      %v739 = vunpack.c.l.bf16 %v738
      %v740 = vunpack.c.h.bf16 %v738
      %s741 = scalar_lea.vmem [#allocation2], 168
      %v742 = vpack.c.bf16 0.0, %v739
      %744 = vst [vmem:[%s741] sm:$0xf] %v742
      %s745 = sadd.s32 43, %s289
      %s746 = smul.addr %s745, 4
      %s747 = scalar_lea.vmem %s2, %s746
      %v748 = vld [vmem:[%s747] sm:$0xf]
      %v749 = vunpack.c.l.bf16 %v748
      %v750 = vunpack.c.h.bf16 %v748
      %s751 = scalar_lea.vmem [#allocation2], 172
      %v752 = vpack.c.bf16 0.0, %v749
      %754 = vst [vmem:[%s751] sm:$0xf] %v752
      %s755 = sadd.s32 44, %s289
      %s756 = smul.addr %s755, 4
      %s757 = scalar_lea.vmem %s2, %s756
      %v758 = vld [vmem:[%s757] sm:$0xf]
      %v759 = vunpack.c.l.bf16 %v758
      %v760 = vunpack.c.h.bf16 %v758
      %s761 = scalar_lea.vmem [#allocation2], 176
      %v762 = vpack.c.bf16 0.0, %v759
      %764 = vst [vmem:[%s761] sm:$0xf] %v762
      %s765 = sadd.s32 45, %s289
      %s766 = smul.addr %s765, 4
      %s767 = scalar_lea.vmem %s2, %s766
      %v768 = vld [vmem:[%s767] sm:$0xf]
      %v769 = vunpack.c.l.bf16 %v768
      %v770 = vunpack.c.h.bf16 %v768
      %s771 = scalar_lea.vmem [#allocation2], 180
      %v772 = vpack.c.bf16 0.0, %v769
      %774 = vst [vmem:[%s771] sm:$0xf] %v772
      %s775 = sadd.s32 46, %s289
      %s776 = smul.addr %s775, 4
      %s777 = scalar_lea.vmem %s2, %s776
      %v778 = vld [vmem:[%s777] sm:$0xf]
      %v779 = vunpack.c.l.bf16 %v778
      %v780 = vunpack.c.h.bf16 %v778
      %s781 = scalar_lea.vmem [#allocation2], 184
      %v782 = vpack.c.bf16 0.0, %v779
      %784 = vst [vmem:[%s781] sm:$0xf] %v782
      %s785 = sadd.s32 47, %s289
      %s786 = smul.addr %s785, 4
      %s787 = scalar_lea.vmem %s2, %s786
      %v788 = vld [vmem:[%s787] sm:$0xf]
      %v789 = vunpack.c.l.bf16 %v788
      %v790 = vunpack.c.h.bf16 %v788
      %s791 = scalar_lea.vmem [#allocation2], 188
      %v792 = vpack.c.bf16 0.0, %v789
      %794 = vst [vmem:[%s791] sm:$0xf] %v792
      %s795 = sadd.s32 48, %s289
      %s796 = smul.addr %s795, 4
      %s797 = scalar_lea.vmem %s2, %s796
      %v798 = vld [vmem:[%s797] sm:$0xf]
      %v799 = vunpack.c.l.bf16 %v798
      %v800 = vunpack.c.h.bf16 %v798
      %s801 = scalar_lea.vmem [#allocation2], 192
      %v802 = vpack.c.bf16 0.0, %v799
      %804 = vst [vmem:[%s801] sm:$0xf] %v802
      %s805 = sadd.s32 49, %s289
      %s806 = smul.addr %s805, 4
      %s807 = scalar_lea.vmem %s2, %s806
      %v808 = vld [vmem:[%s807] sm:$0xf]
      %v809 = vunpack.c.l.bf16 %v808
      %v810 = vunpack.c.h.bf16 %v808
      %s811 = scalar_lea.vmem [#allocation2], 196
      %v812 = vpack.c.bf16 0.0, %v809
      %814 = vst [vmem:[%s811] sm:$0xf] %v812
      %s815 = sadd.s32 50, %s289
      %s816 = smul.addr %s815, 4
      %s817 = scalar_lea.vmem %s2, %s816
      %v818 = vld [vmem:[%s817] sm:$0xf]
      %v819 = vunpack.c.l.bf16 %v818
      %v820 = vunpack.c.h.bf16 %v818
      %s821 = scalar_lea.vmem [#allocation2], 200
      %v822 = vpack.c.bf16 0.0, %v819
      %824 = vst [vmem:[%s821] sm:$0xf] %v822
      %s825 = sadd.s32 51, %s289
      %s826 = smul.addr %s825, 4
      %s827 = scalar_lea.vmem %s2, %s826
      %v828 = vld [vmem:[%s827] sm:$0xf]
      %v829 = vunpack.c.l.bf16 %v828
      %v830 = vunpack.c.h.bf16 %v828
      %s831 = scalar_lea.vmem [#allocation2], 204
      %v832 = vpack.c.bf16 0.0, %v829
      %834 = vst [vmem:[%s831] sm:$0xf] %v832
      %s835 = sadd.s32 52, %s289
      %s836 = smul.addr %s835, 4
      %s837 = scalar_lea.vmem %s2, %s836
      %v838 = vld [vmem:[%s837] sm:$0xf]
      %v839 = vunpack.c.l.bf16 %v838
      %v840 = vunpack.c.h.bf16 %v838
      %s841 = scalar_lea.vmem [#allocation2], 208
      %v842 = vpack.c.bf16 0.0, %v839
      %844 = vst [vmem:[%s841] sm:$0xf] %v842
      %s845 = sadd.s32 53, %s289
      %s846 = smul.addr %s845, 4
      %s847 = scalar_lea.vmem %s2, %s846
      %v848 = vld [vmem:[%s847] sm:$0xf]
      %v849 = vunpack.c.l.bf16 %v848
      %v850 = vunpack.c.h.bf16 %v848
      %s851 = scalar_lea.vmem [#allocation2], 212
      %v852 = vpack.c.bf16 0.0, %v849
      %854 = vst [vmem:[%s851] sm:$0xf] %v852
      %s855 = sadd.s32 54, %s289
      %s856 = smul.addr %s855, 4
      %s857 = scalar_lea.vmem %s2, %s856
      %v858 = vld [vmem:[%s857] sm:$0xf]
      %v859 = vunpack.c.l.bf16 %v858
      %v860 = vunpack.c.h.bf16 %v858
      %s861 = scalar_lea.vmem [#allocation2], 216
      %v862 = vpack.c.bf16 0.0, %v859
      %864 = vst [vmem:[%s861] sm:$0xf] %v862
      %s865 = sadd.s32 55, %s289
      %s866 = smul.addr %s865, 4
      %s867 = scalar_lea.vmem %s2, %s866
      %v868 = vld [vmem:[%s867] sm:$0xf]
      %v869 = vunpack.c.l.bf16 %v868
      %v870 = vunpack.c.h.bf16 %v868
      %s871 = scalar_lea.vmem [#allocation2], 220
      %v872 = vpack.c.bf16 0.0, %v869
      %874 = vst [vmem:[%s871] sm:$0xf] %v872
      %s875 = sadd.s32 56, %s289
      %s876 = smul.addr %s875, 4
      %s877 = scalar_lea.vmem %s2, %s876
      %v878 = vld [vmem:[%s877] sm:$0xf]
      %v879 = vunpack.c.l.bf16 %v878
      %v880 = vunpack.c.h.bf16 %v878
      %s881 = scalar_lea.vmem [#allocation2], 224
      %v882 = vpack.c.bf16 0.0, %v879
      %884 = vst [vmem:[%s881] sm:$0xf] %v882
      %s885 = sadd.s32 57, %s289
      %s886 = smul.addr %s885, 4
      %s887 = scalar_lea.vmem %s2, %s886
      %v888 = vld [vmem:[%s887] sm:$0xf]
      %v889 = vunpack.c.l.bf16 %v888
      %v890 = vunpack.c.h.bf16 %v888
      %s891 = scalar_lea.vmem [#allocation2], 228
      %v892 = vpack.c.bf16 0.0, %v889
      %894 = vst [vmem:[%s891] sm:$0xf] %v892
      %s895 = sadd.s32 58, %s289
      %s896 = smul.addr %s895, 4
      %s897 = scalar_lea.vmem %s2, %s896
      %v898 = vld [vmem:[%s897] sm:$0xf]
      %v899 = vunpack.c.l.bf16 %v898
      %v900 = vunpack.c.h.bf16 %v898
      %s901 = scalar_lea.vmem [#allocation2], 232
      %v902 = vpack.c.bf16 0.0, %v899
      %904 = vst [vmem:[%s901] sm:$0xf] %v902
      %s905 = sadd.s32 59, %s289
      %s906 = smul.addr %s905, 4
      %s907 = scalar_lea.vmem %s2, %s906
      %v908 = vld [vmem:[%s907] sm:$0xf]
      %v909 = vunpack.c.l.bf16 %v908
      %v910 = vunpack.c.h.bf16 %v908
      %s911 = scalar_lea.vmem [#allocation2], 236
      %v912 = vpack.c.bf16 0.0, %v909
      %914 = vst [vmem:[%s911] sm:$0xf] %v912
      %s915 = sadd.s32 60, %s289
      %s916 = smul.addr %s915, 4
      %s917 = scalar_lea.vmem %s2, %s916
      %v918 = vld [vmem:[%s917] sm:$0xf]
      %v919 = vunpack.c.l.bf16 %v918
      %v920 = vunpack.c.h.bf16 %v918
      %s921 = scalar_lea.vmem [#allocation2], 240
      %v922 = vpack.c.bf16 0.0, %v919
      %924 = vst [vmem:[%s921] sm:$0xf] %v922
      %s925 = sadd.s32 61, %s289
      %s926 = smul.addr %s925, 4
      %s927 = scalar_lea.vmem %s2, %s926
      %v928 = vld [vmem:[%s927] sm:$0xf]
      %v929 = vunpack.c.l.bf16 %v928
      %v930 = vunpack.c.h.bf16 %v928
      %s931 = scalar_lea.vmem [#allocation2], 244
      %v932 = vpack.c.bf16 0.0, %v929
      %934 = vst [vmem:[%s931] sm:$0xf] %v932
      %s935 = sadd.s32 62, %s289
      %s936 = smul.addr %s935, 4
      %s937 = scalar_lea.vmem %s2, %s936
      %v938 = vld [vmem:[%s937] sm:$0xf]
      %v939 = vunpack.c.l.bf16 %v938
      %v940 = vunpack.c.h.bf16 %v938
      %s941 = scalar_lea.vmem [#allocation2], 248
      %v942 = vpack.c.bf16 0.0, %v939
      %944 = vst [vmem:[%s941] sm:$0xf] %v942
      %s945 = sadd.s32 63, %s289
      %s946 = smul.addr %s945, 4
      %s947 = scalar_lea.vmem %s2, %s946
      %v948 = vld [vmem:[%s947] sm:$0xf]
      %v949 = vunpack.c.l.bf16 %v948
      %v950 = vunpack.c.h.bf16 %v948
      %s951 = scalar_lea.vmem [#allocation2], 252
      %v952 = vpack.c.bf16 0.0, %v949
      %954 = vst [vmem:[%s951] sm:$0xf] %v952
      %v955 = vld [vmem:[%s4] sm:$0x1]
      %957 = vst [vmem:[#allocation3] sm:$0x1] %v955
      %v958 = vld [vmem:[%s3] sm:$0x1]
      %960 = vst [vmem:[#allocation4] sm:$0x1] %v958
      %v962 = vld [vmem:[#allocation2] sm:$0xf]
      %v963 = vld [vmem:[#allocation2 + $0x4] sm:$0xf]
      %v964 = vld [vmem:[#allocation2 + $0x8] sm:$0xf]
      %v965 = vld [vmem:[#allocation2 + $0xc] sm:$0xf]
      %v966 = vld [vmem:[#allocation2 + $0x10] sm:$0xf]
      %v967 = vld [vmem:[#allocation2 + $0x14] sm:$0xf]
      %v968 = vld [vmem:[#allocation2 + $0x18] sm:$0xf]
      %v969 = vld [vmem:[#allocation2 + $0x1c] sm:$0xf]
      %v970 = vld [vmem:[#allocation2 + $0x20] sm:$0xf]
      %v971 = vld [vmem:[#allocation2 + $0x24] sm:$0xf]
      %v972 = vld [vmem:[#allocation2 + $0x28] sm:$0xf]
      %v973 = vld [vmem:[#allocation2 + $0x2c] sm:$0xf]
      %v974 = vld [vmem:[#allocation2 + $0x30] sm:$0xf]
      %v975 = vld [vmem:[#allocation2 + $0x34] sm:$0xf]
      %v976 = vld [vmem:[#allocation2 + $0x38] sm:$0xf]
      %v977 = vld [vmem:[#allocation2 + $0x3c] sm:$0xf]
      %v978 = vld [vmem:[#allocation2 + $0x40] sm:$0xf]
      %v979 = vld [vmem:[#allocation2 + $0x44] sm:$0xf]
      %v980 = vld [vmem:[#allocation2 + $0x48] sm:$0xf]
      %v981 = vld [vmem:[#allocation2 + $0x4c] sm:$0xf]
      %v982 = vld [vmem:[#allocation2 + $0x50] sm:$0xf]
      %v983 = vld [vmem:[#allocation2 + $0x54] sm:$0xf]
      %v984 = vld [vmem:[#allocation2 + $0x58] sm:$0xf]
      %v985 = vld [vmem:[#allocation2 + $0x5c] sm:$0xf]
      %v986 = vld [vmem:[#allocation2 + $0x60] sm:$0xf]
      %v987 = vld [vmem:[#allocation2 + $0x64] sm:$0xf]
      %v988 = vld [vmem:[#allocation2 + $0x68] sm:$0xf]
      %v989 = vld [vmem:[#allocation2 + $0x6c] sm:$0xf]
      %v990 = vld [vmem:[#allocation2 + $0x70] sm:$0xf]
      %v991 = vld [vmem:[#allocation2 + $0x74] sm:$0xf]
      %v992 = vld [vmem:[#allocation2 + $0x78] sm:$0xf]
      %v993 = vld [vmem:[#allocation2 + $0x7c] sm:$0xf]
      %v994 = vld [vmem:[#allocation2 + $0x80] sm:$0xf]
      %v995 = vld [vmem:[#allocation2 + $0x84] sm:$0xf]
      %v996 = vld [vmem:[#allocation2 + $0x88] sm:$0xf]
      %v997 = vld [vmem:[#allocation2 + $0x8c] sm:$0xf]
      %v998 = vld [vmem:[#allocation2 + $0x90] sm:$0xf]
      %v999 = vld [vmem:[#allocation2 + $0x94] sm:$0xf]
      %v1000 = vld [vmem:[#allocation2 + $0x98] sm:$0xf]
      %v1001 = vld [vmem:[#allocation2 + $0x9c] sm:$0xf]
      %v1002 = vld [vmem:[#allocation2 + $0xa0] sm:$0xf]
      %v1003 = vld [vmem:[#allocation2 + $0xa4] sm:$0xf]
      %v1004 = vld [vmem:[#allocation2 + $0xa8] sm:$0xf]
      %v1005 = vld [vmem:[#allocation2 + $0xac] sm:$0xf]
      %v1006 = vld [vmem:[#allocation2 + $0xb0] sm:$0xf]
      %v1007 = vld [vmem:[#allocation2 + $0xb4] sm:$0xf]
      %v1008 = vld [vmem:[#allocation2 + $0xb8] sm:$0xf]
      %v1009 = vld [vmem:[#allocation2 + $0xbc] sm:$0xf]
      %v1010 = vld [vmem:[#allocation2 + $0xc0] sm:$0xf]
      %v1011 = vld [vmem:[#allocation2 + $0xc4] sm:$0xf]
      %v1012 = vld [vmem:[#allocation2 + $0xc8] sm:$0xf]
      %v1013 = vld [vmem:[#allocation2 + $0xcc] sm:$0xf]
      %v1014 = vld [vmem:[#allocation2 + $0xd0] sm:$0xf]
      %v1015 = vld [vmem:[#allocation2 + $0xd4] sm:$0xf]
      %v1016 = vld [vmem:[#allocation2 + $0xd8] sm:$0xf]
      %v1017 = vld [vmem:[#allocation2 + $0xdc] sm:$0xf]
      %v1018 = vld [vmem:[#allocation2 + $0xe0] sm:$0xf]
      %v1019 = vld [vmem:[#allocation2 + $0xe4] sm:$0xf]
      %v1020 = vld [vmem:[#allocation2 + $0xe8] sm:$0xf]
      %v1021 = vld [vmem:[#allocation2 + $0xec] sm:$0xf]
      %v1022 = vld [vmem:[#allocation2 + $0xf0] sm:$0xf]
      %v1023 = vld [vmem:[#allocation2 + $0xf4] sm:$0xf]
      %v1024 = vld [vmem:[#allocation2 + $0xf8] sm:$0xf]
      %v1025 = vld [vmem:[#allocation2 + $0xfc] sm:$0xf]
      %v1026 = vld [vmem:[%s294] sm:$0xf]
      %v1027 = vld [vmem:[%s294 + $0x4] sm:$0xf]
      %v1028 = vld [vmem:[%s294 + $0x8] sm:$0xf]
      %v1029 = vld [vmem:[%s294 + $0xc] sm:$0xf]
      %v1030 = vld [vmem:[%s294 + $0x10] sm:$0xf]
      %v1031 = vld [vmem:[%s294 + $0x14] sm:$0xf]
      %v1032 = vld [vmem:[%s294 + $0x18] sm:$0xf]
      %v1033 = vld [vmem:[%s294 + $0x1c] sm:$0xf]
      %v1034 = vld [vmem:[%s294 + $0x20] sm:$0xf]
      %v1035 = vld [vmem:[#allocation3] sm:$0x1]
      %v1037 = vlaneseq
      %v1038 = vshrl.u32 %v1037, 7
      %v1039 = vsub.s32 0, %v1038
      %v1040 = vrot.slane %v1035, %v1039
      %v1106 = vunpack.c.l.b16 %v962
      %v1107 = vunpack.c.l.b16 %v963
      %v1108 = vunpack.c.l.b16 %v964
      %v1109 = vunpack.c.l.b16 %v965
      %v1110 = vunpack.c.l.b16 %v966
      %v1111 = vunpack.c.l.b16 %v967
      %v1112 = vunpack.c.l.b16 %v968
      %v1113 = vunpack.c.l.b16 %v969
      %v1114 = vunpack.c.l.b16 %v970
      %v1115 = vunpack.c.l.b16 %v971
      %v1116 = vunpack.c.l.b16 %v972
      %v1117 = vunpack.c.l.b16 %v973
      %v1118 = vunpack.c.l.b16 %v974
      %v1119 = vunpack.c.l.b16 %v975
      %v1120 = vunpack.c.l.b16 %v976
      %v1121 = vunpack.c.l.b16 %v977
      %v1122 = vunpack.c.l.b16 %v978
      %v1123 = vunpack.c.l.b16 %v979
      %v1124 = vunpack.c.l.b16 %v980
      %v1125 = vunpack.c.l.b16 %v981
      %v1126 = vunpack.c.l.b16 %v982
      %v1127 = vunpack.c.l.b16 %v983
      %v1128 = vunpack.c.l.b16 %v984
      %v1129 = vunpack.c.l.b16 %v985
      %v1130 = vunpack.c.l.b16 %v986
      %v1131 = vunpack.c.l.b16 %v987
      %v1132 = vunpack.c.l.b16 %v988
      %v1133 = vunpack.c.l.b16 %v989
      %v1134 = vunpack.c.l.b16 %v990
      %v1135 = vunpack.c.l.b16 %v991
      %v1136 = vunpack.c.l.b16 %v992
      %v1137 = vunpack.c.l.b16 %v993
      %v1138 = vunpack.c.l.b16 %v994
      %v1139 = vunpack.c.l.b16 %v995
      %v1140 = vunpack.c.l.b16 %v996
      %v1141 = vunpack.c.l.b16 %v997
      %v1142 = vunpack.c.l.b16 %v998
      %v1143 = vunpack.c.l.b16 %v999
      %v1144 = vunpack.c.l.b16 %v1000
      %v1145 = vunpack.c.l.b16 %v1001
      %v1146 = vunpack.c.l.b16 %v1002
      %v1147 = vunpack.c.l.b16 %v1003
      %v1148 = vunpack.c.l.b16 %v1004
      %v1149 = vunpack.c.l.b16 %v1005
      %v1150 = vunpack.c.l.b16 %v1006
      %v1151 = vunpack.c.l.b16 %v1007
      %v1152 = vunpack.c.l.b16 %v1008
      %v1153 = vunpack.c.l.b16 %v1009
      %v1154 = vunpack.c.l.b16 %v1010
      %v1155 = vunpack.c.l.b16 %v1011
      %v1156 = vunpack.c.l.b16 %v1012
      %v1157 = vunpack.c.l.b16 %v1013
      %v1158 = vunpack.c.l.b16 %v1014
      %v1159 = vunpack.c.l.b16 %v1015
      %v1160 = vunpack.c.l.b16 %v1016
      %v1161 = vunpack.c.l.b16 %v1017
      %v1162 = vunpack.c.l.b16 %v1018
      %v1163 = vunpack.c.l.b16 %v1019
      %v1164 = vunpack.c.l.b16 %v1020
      %v1165 = vunpack.c.l.b16 %v1021
      %v1166 = vunpack.c.l.b16 %v1022
      %v1167 = vunpack.c.l.b16 %v1023
      %v1168 = vunpack.c.l.b16 %v1024
      %v1169 = vunpack.c.l.b16 %v1025
      %v1170 = vpack.c.b16 %v1107, %v1106
      %v1171 = vpack.c.b16 %v1109, %v1108
      %v1172 = vpack.c.b16 %v1111, %v1110
      %v1173 = vpack.c.b16 %v1113, %v1112
      %v1174 = vpack.c.b16 %v1115, %v1114
      %v1175 = vpack.c.b16 %v1117, %v1116
      %v1176 = vpack.c.b16 %v1119, %v1118
      %v1177 = vpack.c.b16 %v1121, %v1120
      %v1178 = vpack.c.b16 %v1123, %v1122
      %v1179 = vpack.c.b16 %v1125, %v1124
      %v1180 = vpack.c.b16 %v1127, %v1126
      %v1181 = vpack.c.b16 %v1129, %v1128
      %v1182 = vpack.c.b16 %v1131, %v1130
      %v1183 = vpack.c.b16 %v1133, %v1132
      %v1184 = vpack.c.b16 %v1135, %v1134
      %v1185 = vpack.c.b16 %v1137, %v1136
      %v1186 = vpack.c.b16 %v1139, %v1138
      %v1187 = vpack.c.b16 %v1141, %v1140
      %v1188 = vpack.c.b16 %v1143, %v1142
      %v1189 = vpack.c.b16 %v1145, %v1144
      %v1190 = vpack.c.b16 %v1147, %v1146
      %v1191 = vpack.c.b16 %v1149, %v1148
      %v1192 = vpack.c.b16 %v1151, %v1150
      %v1193 = vpack.c.b16 %v1153, %v1152
      %v1194 = vpack.c.b16 %v1155, %v1154
      %v1195 = vpack.c.b16 %v1157, %v1156
      %v1196 = vpack.c.b16 %v1159, %v1158
      %v1197 = vpack.c.b16 %v1161, %v1160
      %v1198 = vpack.c.b16 %v1163, %v1162
      %v1199 = vpack.c.b16 %v1165, %v1164
      %v1200 = vpack.c.b16 %v1167, %v1166
      %v1201 = vpack.c.b16 %v1169, %v1168
      %v1211 = vunpack.c.l.b16 %v1026
      %v1212 = vunpack.c.l.b16 %v1027
      %v1213 = vunpack.c.l.b16 %v1028
      %v1214 = vunpack.c.l.b16 %v1029
      %v1215 = vunpack.c.l.b16 %v1030
      %v1216 = vunpack.c.l.b16 %v1031
      %v1217 = vunpack.c.l.b16 %v1032
      %v1218 = vunpack.c.l.b16 %v1033
      %v1219 = vunpack.c.l.b16 %v1034
      %v1220 = vpack.c.b16 %v1212, %v1211
      %v1221 = vpack.c.b16 %v1214, %v1213
      %v1222 = vpack.c.b16 %v1216, %v1215
      %v1223 = vpack.c.b16 %v1218, %v1217
      %v1224 = vpack.c.b16 %v1219, %v1219
      %vm1229 = vcmask 588800
      %v1231 = vsel %vm1229, %v1170, 0
      %v1234 = vsel %vm1229, %v1171, 0
      %v1237 = vsel %vm1229, %v1172, 0
      %v1240 = vsel %vm1229, %v1173, 0
      %v1243 = vsel %vm1229, %v1174, 0
      %v1246 = vsel %vm1229, %v1175, 0
      %v1249 = vsel %vm1229, %v1176, 0
      %v1252 = vsel %vm1229, %v1177, 0
      %v1255 = vsel %vm1229, %v1178, 0
      %v1258 = vsel %vm1229, %v1179, 0
      %v1261 = vsel %vm1229, %v1180, 0
      %v1264 = vsel %vm1229, %v1181, 0
      %v1267 = vsel %vm1229, %v1182, 0
      %v1270 = vsel %vm1229, %v1183, 0
      %v1273 = vsel %vm1229, %v1184, 0
      %v1276 = vsel %vm1229, %v1185, 0
      %v1279 = vsel %vm1229, %v1186, 0
      %v1282 = vsel %vm1229, %v1187, 0
      %v1285 = vsel %vm1229, %v1188, 0
      %v1288 = vsel %vm1229, %v1189, 0
      %v1291 = vsel %vm1229, %v1190, 0
      %v1294 = vsel %vm1229, %v1191, 0
      %v1297 = vsel %vm1229, %v1192, 0
      %v1300 = vsel %vm1229, %v1193, 0
      %v1303 = vsel %vm1229, %v1194, 0
      %v1306 = vsel %vm1229, %v1195, 0
      %v1309 = vsel %vm1229, %v1196, 0
      %v1312 = vsel %vm1229, %v1197, 0
      %v1315 = vsel %vm1229, %v1198, 0
      %v1318 = vsel %vm1229, %v1199, 0
      %v1321 = vsel %vm1229, %v1200, 0
      %v1324 = vsel %vm1229, %v1201, 0
      %vm1326 = vcmask 1043456
      %v1328 = vsel %vm1326, %v1224, 0
      %1330 = vmatprep.subr.bf16.mxu0 0
      %1331 = vmatpush1.bf16.msra.mxu0 %v1220
      %1332 = vmatprep.subr.bf16.mxu0 0
      %1333 = vmatpush1.bf16.msra.mxu0 %v1221
      %1334 = vmatprep.subr.bf16.mxu0 0
      %1335 = vmatpush1.bf16.msra.mxu0 %v1222
      %1336 = vmatprep.subr.bf16.mxu0 0
      %1337 = vmatpush1.bf16.msra.mxu0 %v1223
      %1338 = vmatprep.subr.bf16.mxu0 0
      %1339 = vmatpush1.bf16.msra.mxu0 %v1328
      %1340 = vmatprep.subr.bf16.mxu0 0
      %1341 = vmatpush1.bf16.msra.mxu0 0
      %1342 = vmatprep.subr.bf16.mxu0 0
      %1343 = vmatpush1.bf16.msra.mxu0 0
      %1344 = vmatprep.subr.bf16.mxu0 0
      %1345 = vmatpush1.bf16.msra.mxu0 0
      %1346 = vmatprep.subr.bf16.mxu0 0
      %1347 = vmatpush1.bf16.msra.mxu0 0
      %1348 = vmatprep.subr.bf16.mxu0 0
      %1349 = vmatpush1.bf16.msra.mxu0 0
      %1350 = vmatprep.subr.bf16.mxu0 0
      %1351 = vmatpush1.bf16.msra.mxu0 0
      %1352 = vmatprep.subr.bf16.mxu0 0
      %1353 = vmatpush1.bf16.msra.mxu0 0
      %1354 = vmatprep.subr.bf16.mxu0 0
      %1355 = vmatpush1.bf16.msra.mxu0 0
      %1356 = vmatprep.subr.bf16.mxu0 0
      %1357 = vmatpush1.bf16.msra.mxu0 0
      %1358 = vmatprep.subr.bf16.mxu0 0
      %1359 = vmatpush1.bf16.msra.mxu0 0
      %1360 = vmatprep.subr.bf16.mxu0 0
      %1361 = vmatpush1.bf16.msra.mxu0 0
      %1362 = vmatprep.mubr.bf16.mxu0 0
      %1363 = vmatmul.mubr.bf16.gmra.mrb[0].mxu0 %v1231
      %v1364 = vpop.f32.mrb[0].mxu0
      %v1365 = vadd.f32 %v1040, %v1364
      %v1366 = vpop.f32.mrb[0].mxu0
      %v1367 = vpop.f32.mrb[0].mxu0
      %v1368 = vadd.f32 %v1040, %v1367
      %v1369 = vpop.f32.mrb[0].mxu0
      %1370 = vmatprep.mubr.bf16.mxu0 0
      %1371 = vmatmul.mubr.bf16.gmra.mrb[0].mxu0 %v1234
      %v1372 = vpop.f32.mrb[0].mxu0
      %v1373 = vadd.f32 %v1040, %v1372
      %v1374 = vpop.f32.mrb[0].mxu0
      %v1375 = vpop.f32.mrb[0].mxu0
      %v1376 = vadd.f32 %v1040, %v1375
      %v1377 = vpop.f32.mrb[0].mxu0
      %1378 = vmatprep.mubr.bf16.mxu0 0
      %1379 = vmatmul.mubr.bf16.gmra.mrb[0].mxu0 %v1237
      %v1380 = vpop.f32.mrb[0].mxu0
      %v1381 = vadd.f32 %v1040, %v1380
      %v1382 = vpop.f32.mrb[0].mxu0
      %v1383 = vpop.f32.mrb[0].mxu0
      %v1384 = vadd.f32 %v1040, %v1383
      %v1385 = vpop.f32.mrb[0].mxu0
      %1386 = vmatprep.mubr.bf16.mxu0 0
      %1387 = vmatmul.mubr.bf16.gmra.mrb[0].mxu0 %v1240
      %v1388 = vpop.f32.mrb[0].mxu0
      %v1389 = vadd.f32 %v1040, %v1388
      %v1390 = vpop.f32.mrb[0].mxu0
      %v1391 = vpop.f32.mrb[0].mxu0
      %v1392 = vadd.f32 %v1040, %v1391
      %v1393 = vpop.f32.mrb[0].mxu0
      %1394 = vmatprep.mubr.bf16.mxu0 0
      %1395 = vmatmul.mubr.bf16.gmra.mrb[0].mxu0 %v1243
      %v1396 = vpop.f32.mrb[0].mxu0
      %v1397 = vadd.f32 %v1040, %v1396
      %v1398 = vpop.f32.mrb[0].mxu0
      %v1399 = vpop.f32.mrb[0].mxu0
      %v1400 = vadd.f32 %v1040, %v1399
      %v1401 = vpop.f32.mrb[0].mxu0
      %1402 = vmatprep.mubr.bf16.mxu0 0
      %1403 = vmatmul.mubr.bf16.gmra.mrb[0].mxu0 %v1246
      %v1404 = vpop.f32.mrb[0].mxu0
      %v1405 = vadd.f32 %v1040, %v1404
      %v1406 = vpop.f32.mrb[0].mxu0
      %v1407 = vpop.f32.mrb[0].mxu0
      %v1408 = vadd.f32 %v1040, %v1407
      %v1409 = vpop.f32.mrb[0].mxu0
      %1410 = vmatprep.mubr.bf16.mxu0 0
      %1411 = vmatmul.mubr.bf16.gmra.mrb[0].mxu0 %v1249
      %v1412 = vpop.f32.mrb[0].mxu0
      %v1413 = vadd.f32 %v1040, %v1412
      %v1414 = vpop.f32.mrb[0].mxu0
      %v1415 = vpop.f32.mrb[0].mxu0
      %v1416 = vadd.f32 %v1040, %v1415
      %v1417 = vpop.f32.mrb[0].mxu0
      %1418 = vmatprep.mubr.bf16.mxu0 0
      %1419 = vmatmul.mubr.bf16.gmra.mrb[0].mxu0 %v1252
      %v1420 = vpop.f32.mrb[0].mxu0
      %v1421 = vadd.f32 %v1040, %v1420
      %v1422 = vpop.f32.mrb[0].mxu0
      %v1423 = vpop.f32.mrb[0].mxu0
      %v1424 = vadd.f32 %v1040, %v1423
      %v1425 = vpop.f32.mrb[0].mxu0
      %1426 = vmatprep.mubr.bf16.mxu0 0
      %1427 = vmatmul.mubr.bf16.gmra.mrb[0].mxu0 %v1255
      %v1428 = vpop.f32.mrb[0].mxu0
      %v1429 = vadd.f32 %v1040, %v1428
      %v1430 = vpop.f32.mrb[0].mxu0
      %v1431 = vpop.f32.mrb[0].mxu0
      %v1432 = vadd.f32 %v1040, %v1431
      %v1433 = vpop.f32.mrb[0].mxu0
      %1434 = vmatprep.mubr.bf16.mxu0 0
      %1435 = vmatmul.mubr.bf16.gmra.mrb[0].mxu0 %v1258
      %v1436 = vpop.f32.mrb[0].mxu0
      %v1437 = vadd.f32 %v1040, %v1436
      %v1438 = vpop.f32.mrb[0].mxu0
      %v1439 = vpop.f32.mrb[0].mxu0
      %v1440 = vadd.f32 %v1040, %v1439
      %v1441 = vpop.f32.mrb[0].mxu0
      %1442 = vmatprep.mubr.bf16.mxu0 0
      %1443 = vmatmul.mubr.bf16.gmra.mrb[0].mxu0 %v1261
      %v1444 = vpop.f32.mrb[0].mxu0
      %v1445 = vadd.f32 %v1040, %v1444
      %v1446 = vpop.f32.mrb[0].mxu0
      %v1447 = vpop.f32.mrb[0].mxu0
      %v1448 = vadd.f32 %v1040, %v1447
      %v1449 = vpop.f32.mrb[0].mxu0
      %1450 = vmatprep.mubr.bf16.mxu0 0
      %1451 = vmatmul.mubr.bf16.gmra.mrb[0].mxu0 %v1264
      %v1452 = vpop.f32.mrb[0].mxu0
      %v1453 = vadd.f32 %v1040, %v1452
      %v1454 = vpop.f32.mrb[0].mxu0
      %v1455 = vpop.f32.mrb[0].mxu0
      %v1456 = vadd.f32 %v1040, %v1455
      %v1457 = vpop.f32.mrb[0].mxu0
      %1458 = vmatprep.mubr.bf16.mxu0 0
      %1459 = vmatmul.mubr.bf16.gmra.mrb[0].mxu0 %v1267
      %v1460 = vpop.f32.mrb[0].mxu0
      %v1461 = vadd.f32 %v1040, %v1460
      %v1462 = vpop.f32.mrb[0].mxu0
      %v1463 = vpop.f32.mrb[0].mxu0
      %v1464 = vadd.f32 %v1040, %v1463
      %v1465 = vpop.f32.mrb[0].mxu0
      %1466 = vmatprep.mubr.bf16.mxu0 0
      %1467 = vmatmul.mubr.bf16.gmra.mrb[0].mxu0 %v1270
      %v1468 = vpop.f32.mrb[0].mxu0
      %v1469 = vadd.f32 %v1040, %v1468
      %v1470 = vpop.f32.mrb[0].mxu0
      %v1471 = vpop.f32.mrb[0].mxu0
      %v1472 = vadd.f32 %v1040, %v1471
      %v1473 = vpop.f32.mrb[0].mxu0
      %1474 = vmatprep.mubr.bf16.mxu0 0
      %1475 = vmatmul.mubr.bf16.gmra.mrb[0].mxu0 %v1273
      %v1476 = vpop.f32.mrb[0].mxu0
      %v1477 = vadd.f32 %v1040, %v1476
      %v1478 = vpop.f32.mrb[0].mxu0
      %v1479 = vpop.f32.mrb[0].mxu0
      %v1480 = vadd.f32 %v1040, %v1479
      %v1481 = vpop.f32.mrb[0].mxu0
      %1482 = vmatprep.mubr.bf16.mxu0 0
      %1483 = vmatmul.mubr.bf16.gmra.mrb[0].mxu0 %v1276
      %v1484 = vpop.f32.mrb[0].mxu0
      %v1485 = vadd.f32 %v1040, %v1484
      %v1486 = vpop.f32.mrb[0].mxu0
      %v1487 = vpop.f32.mrb[0].mxu0
      %v1488 = vadd.f32 %v1040, %v1487
      %v1489 = vpop.f32.mrb[0].mxu0
      %1490 = vmatprep.mubr.bf16.mxu0 0
      %1491 = vmatmul.mubr.bf16.gmra.mrb[0].mxu0 %v1279
      %v1492 = vpop.f32.mrb[0].mxu0
      %v1493 = vadd.f32 %v1040, %v1492
      %v1494 = vpop.f32.mrb[0].mxu0
      %v1495 = vpop.f32.mrb[0].mxu0
      %v1496 = vadd.f32 %v1040, %v1495
      %v1497 = vpop.f32.mrb[0].mxu0
      %1498 = vmatprep.mubr.bf16.mxu0 0
      %1499 = vmatmul.mubr.bf16.gmra.mrb[0].mxu0 %v1282
      %v1500 = vpop.f32.mrb[0].mxu0
      %v1501 = vadd.f32 %v1040, %v1500
      %v1502 = vpop.f32.mrb[0].mxu0
      %v1503 = vpop.f32.mrb[0].mxu0
      %v1504 = vadd.f32 %v1040, %v1503
      %v1505 = vpop.f32.mrb[0].mxu0
      %1506 = vmatprep.mubr.bf16.mxu0 0
      %1507 = vmatmul.mubr.bf16.gmra.mrb[0].mxu0 %v1285
      %v1508 = vpop.f32.mrb[0].mxu0
      %v1509 = vadd.f32 %v1040, %v1508
      %v1510 = vpop.f32.mrb[0].mxu0
      %v1511 = vpop.f32.mrb[0].mxu0
      %v1512 = vadd.f32 %v1040, %v1511
      %v1513 = vpop.f32.mrb[0].mxu0
      %1514 = vmatprep.mubr.bf16.mxu0 0
      %1515 = vmatmul.mubr.bf16.gmra.mrb[0].mxu0 %v1288
      %v1516 = vpop.f32.mrb[0].mxu0
      %v1517 = vadd.f32 %v1040, %v1516
      %v1518 = vpop.f32.mrb[0].mxu0
      %v1519 = vpop.f32.mrb[0].mxu0
      %v1520 = vadd.f32 %v1040, %v1519
      %v1521 = vpop.f32.mrb[0].mxu0
      %1522 = vmatprep.mubr.bf16.mxu0 0
      %1523 = vmatmul.mubr.bf16.gmra.mrb[0].mxu0 %v1291
      %v1524 = vpop.f32.mrb[0].mxu0
      %v1525 = vadd.f32 %v1040, %v1524
      %v1526 = vpop.f32.mrb[0].mxu0
      %v1527 = vpop.f32.mrb[0].mxu0
      %v1528 = vadd.f32 %v1040, %v1527
      %v1529 = vpop.f32.mrb[0].mxu0
      %1530 = vmatprep.mubr.bf16.mxu0 0
      %1531 = vmatmul.mubr.bf16.gmra.mrb[0].mxu0 %v1294
      %v1532 = vpop.f32.mrb[0].mxu0
      %v1533 = vadd.f32 %v1040, %v1532
      %v1534 = vpop.f32.mrb[0].mxu0
      %v1535 = vpop.f32.mrb[0].mxu0
      %v1536 = vadd.f32 %v1040, %v1535
      %v1537 = vpop.f32.mrb[0].mxu0
      %1538 = vmatprep.mubr.bf16.mxu0 0
      %1539 = vmatmul.mubr.bf16.gmra.mrb[0].mxu0 %v1297
      %v1540 = vpop.f32.mrb[0].mxu0
      %v1541 = vadd.f32 %v1040, %v1540
      %v1542 = vpop.f32.mrb[0].mxu0
      %v1543 = vpop.f32.mrb[0].mxu0
      %v1544 = vadd.f32 %v1040, %v1543
      %v1545 = vpop.f32.mrb[0].mxu0
      %1546 = vmatprep.mubr.bf16.mxu0 0
      %1547 = vmatmul.mubr.bf16.gmra.mrb[0].mxu0 %v1300
      %v1548 = vpop.f32.mrb[0].mxu0
      %v1549 = vadd.f32 %v1040, %v1548
      %v1550 = vpop.f32.mrb[0].mxu0
      %v1551 = vpop.f32.mrb[0].mxu0
      %v1552 = vadd.f32 %v1040, %v1551
      %v1553 = vpop.f32.mrb[0].mxu0
      %1554 = vmatprep.mubr.bf16.mxu0 0
      %1555 = vmatmul.mubr.bf16.gmra.mrb[0].mxu0 %v1303
      %v1556 = vpop.f32.mrb[0].mxu0
      %v1557 = vadd.f32 %v1040, %v1556
      %v1558 = vpop.f32.mrb[0].mxu0
      %v1559 = vpop.f32.mrb[0].mxu0
      %v1560 = vadd.f32 %v1040, %v1559
      %v1561 = vpop.f32.mrb[0].mxu0
      %1562 = vmatprep.mubr.bf16.mxu0 0
      %1563 = vmatmul.mubr.bf16.gmra.mrb[0].mxu0 %v1306
      %v1564 = vpop.f32.mrb[0].mxu0
      %v1565 = vadd.f32 %v1040, %v1564
      %v1566 = vpop.f32.mrb[0].mxu0
      %v1567 = vpop.f32.mrb[0].mxu0
      %v1568 = vadd.f32 %v1040, %v1567
      %v1569 = vpop.f32.mrb[0].mxu0
      %1570 = vmatprep.mubr.bf16.mxu0 0
      %1571 = vmatmul.mubr.bf16.gmra.mrb[0].mxu0 %v1309
      %v1572 = vpop.f32.mrb[0].mxu0
      %v1573 = vadd.f32 %v1040, %v1572
      %v1574 = vpop.f32.mrb[0].mxu0
      %v1575 = vpop.f32.mrb[0].mxu0
      %v1576 = vadd.f32 %v1040, %v1575
      %v1577 = vpop.f32.mrb[0].mxu0
      %1578 = vmatprep.mubr.bf16.mxu0 0
      %1579 = vmatmul.mubr.bf16.gmra.mrb[0].mxu0 %v1312
      %v1580 = vpop.f32.mrb[0].mxu0
      %v1581 = vadd.f32 %v1040, %v1580
      %v1582 = vpop.f32.mrb[0].mxu0
      %v1583 = vpop.f32.mrb[0].mxu0
      %v1584 = vadd.f32 %v1040, %v1583
      %v1585 = vpop.f32.mrb[0].mxu0
      %1586 = vmatprep.mubr.bf16.mxu0 0
      %1587 = vmatmul.mubr.bf16.gmra.mrb[0].mxu0 %v1315
      %v1588 = vpop.f32.mrb[0].mxu0
      %v1589 = vadd.f32 %v1040, %v1588
      %v1590 = vpop.f32.mrb[0].mxu0
      %v1591 = vpop.f32.mrb[0].mxu0
      %v1592 = vadd.f32 %v1040, %v1591
      %v1593 = vpop.f32.mrb[0].mxu0
      %1594 = vmatprep.mubr.bf16.mxu0 0
      %1595 = vmatmul.mubr.bf16.gmra.mrb[0].mxu0 %v1318
      %v1596 = vpop.f32.mrb[0].mxu0
      %v1597 = vadd.f32 %v1040, %v1596
      %v1598 = vpop.f32.mrb[0].mxu0
      %v1599 = vpop.f32.mrb[0].mxu0
      %v1600 = vadd.f32 %v1040, %v1599
      %v1601 = vpop.f32.mrb[0].mxu0
      %1602 = vmatprep.mubr.bf16.mxu0 0
      %1603 = vmatmul.mubr.bf16.gmra.mrb[0].mxu0 %v1321
      %v1604 = vpop.f32.mrb[0].mxu0
      %v1605 = vadd.f32 %v1040, %v1604
      %v1606 = vpop.f32.mrb[0].mxu0
      %v1607 = vpop.f32.mrb[0].mxu0
      %v1608 = vadd.f32 %v1040, %v1607
      %v1609 = vpop.f32.mrb[0].mxu0
      %1610 = vmatprep.mubr.bf16.mxu0 0
      %1611 = vmatmul.mubr.bf16.gmra.mrb[0].mxu0 %v1324
      %v1612 = vpop.f32.mrb[0].mxu0
      %v1613 = vadd.f32 %v1040, %v1612
      %v1614 = vpop.f32.mrb[0].mxu0
      %v1615 = vpop.f32.mrb[0].mxu0
      %v1616 = vadd.f32 %v1040, %v1615
      %v1617 = vpop.f32.mrb[0].mxu0
      %1618 = vdwg.mxu0
      %vm1619 = vcmp.ge.f32.partialorder %v1365, 0.0
      %vm1620 = vcmp.ge.f32.partialorder %v1368, 0.0
      %vm1621 = vcmp.ge.f32.partialorder %v1373, 0.0
      %vm1622 = vcmp.ge.f32.partialorder %v1376, 0.0
      %vm1623 = vcmp.ge.f32.partialorder %v1381, 0.0
      %vm1624 = vcmp.ge.f32.partialorder %v1384, 0.0
      %vm1625 = vcmp.ge.f32.partialorder %v1389, 0.0
      %vm1626 = vcmp.ge.f32.partialorder %v1392, 0.0
      %vm1627 = vcmp.ge.f32.partialorder %v1397, 0.0
      %vm1628 = vcmp.ge.f32.partialorder %v1400, 0.0
      %vm1629 = vcmp.ge.f32.partialorder %v1405, 0.0
      %vm1630 = vcmp.ge.f32.partialorder %v1408, 0.0
      %vm1631 = vcmp.ge.f32.partialorder %v1413, 0.0
      %vm1632 = vcmp.ge.f32.partialorder %v1416, 0.0
      %vm1633 = vcmp.ge.f32.partialorder %v1421, 0.0
      %vm1634 = vcmp.ge.f32.partialorder %v1424, 0.0
      %vm1635 = vcmp.ge.f32.partialorder %v1429, 0.0
      %vm1636 = vcmp.ge.f32.partialorder %v1432, 0.0
      %vm1637 = vcmp.ge.f32.partialorder %v1437, 0.0
      %vm1638 = vcmp.ge.f32.partialorder %v1440, 0.0
      %vm1639 = vcmp.ge.f32.partialorder %v1445, 0.0
      %vm1640 = vcmp.ge.f32.partialorder %v1448, 0.0
      %vm1641 = vcmp.ge.f32.partialorder %v1453, 0.0
      %vm1642 = vcmp.ge.f32.partialorder %v1456, 0.0
      %vm1643 = vcmp.ge.f32.partialorder %v1461, 0.0
      %vm1644 = vcmp.ge.f32.partialorder %v1464, 0.0
      %vm1645 = vcmp.ge.f32.partialorder %v1469, 0.0
      %vm1646 = vcmp.ge.f32.partialorder %v1472, 0.0
      %vm1647 = vcmp.ge.f32.partialorder %v1477, 0.0
      %vm1648 = vcmp.ge.f32.partialorder %v1480, 0.0
      %vm1649 = vcmp.ge.f32.partialorder %v1485, 0.0
      %vm1650 = vcmp.ge.f32.partialorder %v1488, 0.0
      %vm1651 = vcmp.ge.f32.partialorder %v1493, 0.0
      %vm1652 = vcmp.ge.f32.partialorder %v1496, 0.0
      %vm1653 = vcmp.ge.f32.partialorder %v1501, 0.0
      %vm1654 = vcmp.ge.f32.partialorder %v1504, 0.0
      %vm1655 = vcmp.ge.f32.partialorder %v1509, 0.0
      %vm1656 = vcmp.ge.f32.partialorder %v1512, 0.0
      %vm1657 = vcmp.ge.f32.partialorder %v1517, 0.0
      %vm1658 = vcmp.ge.f32.partialorder %v1520, 0.0
      %vm1659 = vcmp.ge.f32.partialorder %v1525, 0.0
      %vm1660 = vcmp.ge.f32.partialorder %v1528, 0.0
      %vm1661 = vcmp.ge.f32.partialorder %v1533, 0.0
      %vm1662 = vcmp.ge.f32.partialorder %v1536, 0.0
      %vm1663 = vcmp.ge.f32.partialorder %v1541, 0.0
      %vm1664 = vcmp.ge.f32.partialorder %v1544, 0.0
      %vm1665 = vcmp.ge.f32.partialorder %v1549, 0.0
      %vm1666 = vcmp.ge.f32.partialorder %v1552, 0.0
      %vm1667 = vcmp.ge.f32.partialorder %v1557, 0.0
      %vm1668 = vcmp.ge.f32.partialorder %v1560, 0.0
      %vm1669 = vcmp.ge.f32.partialorder %v1565, 0.0
      %vm1670 = vcmp.ge.f32.partialorder %v1568, 0.0
      %vm1671 = vcmp.ge.f32.partialorder %v1573, 0.0
      %vm1672 = vcmp.ge.f32.partialorder %v1576, 0.0
      %vm1673 = vcmp.ge.f32.partialorder %v1581, 0.0
      %vm1674 = vcmp.ge.f32.partialorder %v1584, 0.0
      %vm1675 = vcmp.ge.f32.partialorder %v1589, 0.0
      %vm1676 = vcmp.ge.f32.partialorder %v1592, 0.0
      %vm1677 = vcmp.ge.f32.partialorder %v1597, 0.0
      %vm1678 = vcmp.ge.f32.partialorder %v1600, 0.0
      %vm1679 = vcmp.ge.f32.partialorder %v1605, 0.0
      %vm1680 = vcmp.ge.f32.partialorder %v1608, 0.0
      %vm1681 = vcmp.ge.f32.partialorder %v1613, 0.0
      %vm1682 = vcmp.ge.f32.partialorder %v1616, 0.0
      %v1683 = vld [vmem:[#allocation4] sm:$0x1]
      %v1685 = vlaneseq
      %v1686 = vshrl.u32 %v1685, 7
      %v1687 = vsub.s32 0, %v1686
      %v1688 = vrot.slane %v1683, %v1687
      %v1690 = vmul.f32 %v1688, %v1365
      %v1691 = vmul.f32 %v1688, %v1368
      %v1692 = vmul.f32 %v1688, %v1373
      %v1693 = vmul.f32 %v1688, %v1376
      %v1694 = vmul.f32 %v1688, %v1381
      %v1695 = vmul.f32 %v1688, %v1384
      %v1696 = vmul.f32 %v1688, %v1389
      %v1697 = vmul.f32 %v1688, %v1392
      %v1698 = vmul.f32 %v1688, %v1397
      %v1699 = vmul.f32 %v1688, %v1400
      %v1700 = vmul.f32 %v1688, %v1405
      %v1701 = vmul.f32 %v1688, %v1408
      %v1702 = vmul.f32 %v1688, %v1413
      %v1703 = vmul.f32 %v1688, %v1416
      %v1704 = vmul.f32 %v1688, %v1421
      %v1705 = vmul.f32 %v1688, %v1424
      %v1706 = vmul.f32 %v1688, %v1429
      %v1707 = vmul.f32 %v1688, %v1432
      %v1708 = vmul.f32 %v1688, %v1437
      %v1709 = vmul.f32 %v1688, %v1440
      %v1710 = vmul.f32 %v1688, %v1445
      %v1711 = vmul.f32 %v1688, %v1448
      %v1712 = vmul.f32 %v1688, %v1453
      %v1713 = vmul.f32 %v1688, %v1456
      %v1714 = vmul.f32 %v1688, %v1461
      %v1715 = vmul.f32 %v1688, %v1464
      %v1716 = vmul.f32 %v1688, %v1469
      %v1717 = vmul.f32 %v1688, %v1472
      %v1718 = vmul.f32 %v1688, %v1477
      %v1719 = vmul.f32 %v1688, %v1480
      %v1720 = vmul.f32 %v1688, %v1485
      %v1721 = vmul.f32 %v1688, %v1488
      %v1722 = vmul.f32 %v1688, %v1493
      %v1723 = vmul.f32 %v1688, %v1496
      %v1724 = vmul.f32 %v1688, %v1501
      %v1725 = vmul.f32 %v1688, %v1504
      %v1726 = vmul.f32 %v1688, %v1509
      %v1727 = vmul.f32 %v1688, %v1512
      %v1728 = vmul.f32 %v1688, %v1517
      %v1729 = vmul.f32 %v1688, %v1520
      %v1730 = vmul.f32 %v1688, %v1525
      %v1731 = vmul.f32 %v1688, %v1528
      %v1732 = vmul.f32 %v1688, %v1533
      %v1733 = vmul.f32 %v1688, %v1536
      %v1734 = vmul.f32 %v1688, %v1541
      %v1735 = vmul.f32 %v1688, %v1544
      %v1736 = vmul.f32 %v1688, %v1549
      %v1737 = vmul.f32 %v1688, %v1552
      %v1738 = vmul.f32 %v1688, %v1557
      %v1739 = vmul.f32 %v1688, %v1560
      %v1740 = vmul.f32 %v1688, %v1565
      %v1741 = vmul.f32 %v1688, %v1568
      %v1742 = vmul.f32 %v1688, %v1573
      %v1743 = vmul.f32 %v1688, %v1576
      %v1744 = vmul.f32 %v1688, %v1581
      %v1745 = vmul.f32 %v1688, %v1584
      %v1746 = vmul.f32 %v1688, %v1589
      %v1747 = vmul.f32 %v1688, %v1592
      %v1748 = vmul.f32 %v1688, %v1597
      %v1749 = vmul.f32 %v1688, %v1600
      %v1750 = vmul.f32 %v1688, %v1605
      %v1751 = vmul.f32 %v1688, %v1608
      %v1752 = vmul.f32 %v1688, %v1613
      %v1753 = vmul.f32 %v1688, %v1616
      %v1754 = vsel %vm1619, %v1365, %v1690
      %v1755 = vsel %vm1620, %v1368, %v1691
      %v1756 = vsel %vm1621, %v1373, %v1692
      %v1757 = vsel %vm1622, %v1376, %v1693
      %v1758 = vsel %vm1623, %v1381, %v1694
      %v1759 = vsel %vm1624, %v1384, %v1695
      %v1760 = vsel %vm1625, %v1389, %v1696
      %v1761 = vsel %vm1626, %v1392, %v1697
      %v1762 = vsel %vm1627, %v1397, %v1698
      %v1763 = vsel %vm1628, %v1400, %v1699
      %v1764 = vsel %vm1629, %v1405, %v1700
      %v1765 = vsel %vm1630, %v1408, %v1701
      %v1766 = vsel %vm1631, %v1413, %v1702
      %v1767 = vsel %vm1632, %v1416, %v1703
      %v1768 = vsel %vm1633, %v1421, %v1704
      %v1769 = vsel %vm1634, %v1424, %v1705
      %v1770 = vsel %vm1635, %v1429, %v1706
      %v1771 = vsel %vm1636, %v1432, %v1707
      %v1772 = vsel %vm1637, %v1437, %v1708
      %v1773 = vsel %vm1638, %v1440, %v1709
      %v1774 = vsel %vm1639, %v1445, %v1710
      %v1775 = vsel %vm1640, %v1448, %v1711
      %v1776 = vsel %vm1641, %v1453, %v1712
      %v1777 = vsel %vm1642, %v1456, %v1713
      %v1778 = vsel %vm1643, %v1461, %v1714
      %v1779 = vsel %vm1644, %v1464, %v1715
      %v1780 = vsel %vm1645, %v1469, %v1716
      %v1781 = vsel %vm1646, %v1472, %v1717
      %v1782 = vsel %vm1647, %v1477, %v1718
      %v1783 = vsel %vm1648, %v1480, %v1719
      %v1784 = vsel %vm1649, %v1485, %v1720
      %v1785 = vsel %vm1650, %v1488, %v1721
      %v1786 = vsel %vm1651, %v1493, %v1722
      %v1787 = vsel %vm1652, %v1496, %v1723
      %v1788 = vsel %vm1653, %v1501, %v1724
      %v1789 = vsel %vm1654, %v1504, %v1725
      %v1790 = vsel %vm1655, %v1509, %v1726
      %v1791 = vsel %vm1656, %v1512, %v1727
      %v1792 = vsel %vm1657, %v1517, %v1728
      %v1793 = vsel %vm1658, %v1520, %v1729
      %v1794 = vsel %vm1659, %v1525, %v1730
      %v1795 = vsel %vm1660, %v1528, %v1731
      %v1796 = vsel %vm1661, %v1533, %v1732
      %v1797 = vsel %vm1662, %v1536, %v1733
      %v1798 = vsel %vm1663, %v1541, %v1734
      %v1799 = vsel %vm1664, %v1544, %v1735
      %v1800 = vsel %vm1665, %v1549, %v1736
      %v1801 = vsel %vm1666, %v1552, %v1737
      %v1802 = vsel %vm1667, %v1557, %v1738
      %v1803 = vsel %vm1668, %v1560, %v1739
      %v1804 = vsel %vm1669, %v1565, %v1740
      %v1805 = vsel %vm1670, %v1568, %v1741
      %v1806 = vsel %vm1671, %v1573, %v1742
      %v1807 = vsel %vm1672, %v1576, %v1743
      %v1808 = vsel %vm1673, %v1581, %v1744
      %v1809 = vsel %vm1674, %v1584, %v1745
      %v1810 = vsel %vm1675, %v1589, %v1746
      %v1811 = vsel %vm1676, %v1592, %v1747
      %v1812 = vsel %vm1677, %v1597, %v1748
      %v1813 = vsel %vm1678, %v1600, %v1749
      %v1814 = vsel %vm1679, %v1605, %v1750
      %v1815 = vsel %vm1680, %v1608, %v1751
      %v1816 = vsel %vm1681, %v1613, %v1752
      %v1817 = vsel %vm1682, %v1616, %v1753
      %v1818 = vld [vmem:[%s303] sm:$0xf]
      %v1819 = vld [vmem:[%s303 + $0x4] sm:$0xf]
      %v1820 = vld [vmem:[%s303 + $0x8] sm:$0xf]
      %v1821 = vld [vmem:[%s303 + $0xc] sm:$0xf]
      %v1822 = vld [vmem:[%s303 + $0x10] sm:$0xf]
      %v1823 = vld [vmem:[%s303 + $0x14] sm:$0xf]
      %v1824 = vld [vmem:[%s303 + $0x18] sm:$0xf]
      %v1825 = vld [vmem:[%s303 + $0x1c] sm:$0xf]
      %v1826 = vld [vmem:[%s303 + $0x20] sm:$0xf]
      %v1827 = vld [vmem:[%s303 + $0x24] sm:$0xf]
      %v1828 = vld [vmem:[%s303 + $0x28] sm:$0xf]
      %v1829 = vld [vmem:[%s303 + $0x2c] sm:$0xf]
      %v1830 = vld [vmem:[%s303 + $0x30] sm:$0xf]
      %v1831 = vld [vmem:[%s303 + $0x34] sm:$0xf]
      %v1832 = vld [vmem:[%s303 + $0x38] sm:$0xf]
      %v1833 = vld [vmem:[%s303 + $0x3c] sm:$0xf]
      %v1834 = vld [vmem:[%s303 + $0x40] sm:$0xf]
      %v1835 = vld [vmem:[%s303 + $0x44] sm:$0xf]
      %v1836 = vld [vmem:[%s303 + $0x48] sm:$0xf]
      %v1837 = vld [vmem:[%s303 + $0x4c] sm:$0xf]
      %v1838 = vld [vmem:[%s303 + $0x50] sm:$0xf]
      %v1839 = vld [vmem:[%s303 + $0x54] sm:$0xf]
      %v1840 = vld [vmem:[%s303 + $0x58] sm:$0xf]
      %v1841 = vld [vmem:[%s303 + $0x5c] sm:$0xf]
      %v1842 = vld [vmem:[%s303 + $0x60] sm:$0xf]
      %v1843 = vld [vmem:[%s303 + $0x64] sm:$0xf]
      %v1844 = vld [vmem:[%s303 + $0x68] sm:$0xf]
      %v1845 = vld [vmem:[%s303 + $0x6c] sm:$0xf]
      %v1846 = vld [vmem:[%s303 + $0x70] sm:$0xf]
      %v1847 = vld [vmem:[%s303 + $0x74] sm:$0xf]
      %v1848 = vld [vmem:[%s303 + $0x78] sm:$0xf]
      %v1849 = vld [vmem:[%s303 + $0x7c] sm:$0xf]
      %v1850 = vld [vmem:[%s303 + $0x80] sm:$0xf]
      %v1851 = vld [vmem:[%s303 + $0x84] sm:$0xf]
      %v1852 = vld [vmem:[%s303 + $0x88] sm:$0xf]
      %v1853 = vld [vmem:[%s303 + $0x8c] sm:$0xf]
      %v1854 = vld [vmem:[%s303 + $0x90] sm:$0xf]
      %v1855 = vld [vmem:[%s303 + $0x94] sm:$0xf]
      %v1856 = vld [vmem:[%s303 + $0x98] sm:$0xf]
      %v1857 = vld [vmem:[%s303 + $0x9c] sm:$0xf]
      %v1858 = vld [vmem:[%s303 + $0xa0] sm:$0xf]
      %v1859 = vld [vmem:[%s303 + $0xa4] sm:$0xf]
      %v1860 = vld [vmem:[%s303 + $0xa8] sm:$0xf]
      %v1861 = vld [vmem:[%s303 + $0xac] sm:$0xf]
      %v1862 = vld [vmem:[%s303 + $0xb0] sm:$0xf]
      %v1863 = vld [vmem:[%s303 + $0xb4] sm:$0xf]
      %v1864 = vld [vmem:[%s303 + $0xb8] sm:$0xf]
      %v1865 = vld [vmem:[%s303 + $0xbc] sm:$0xf]
      %v1866 = vld [vmem:[%s303 + $0xc0] sm:$0xf]
      %v1867 = vld [vmem:[%s303 + $0xc4] sm:$0xf]
      %v1868 = vld [vmem:[%s303 + $0xc8] sm:$0xf]
      %v1869 = vld [vmem:[%s303 + $0xcc] sm:$0xf]
      %v1870 = vld [vmem:[%s303 + $0xd0] sm:$0xf]
      %v1871 = vld [vmem:[%s303 + $0xd4] sm:$0xf]
      %v1872 = vld [vmem:[%s303 + $0xd8] sm:$0xf]
      %v1873 = vld [vmem:[%s303 + $0xdc] sm:$0xf]
      %v1874 = vld [vmem:[%s303 + $0xe0] sm:$0xf]
      %v1875 = vld [vmem:[%s303 + $0xe4] sm:$0xf]
      %v1876 = vld [vmem:[%s303 + $0xe8] sm:$0xf]
      %v1877 = vld [vmem:[%s303 + $0xec] sm:$0xf]
      %v1878 = vld [vmem:[%s303 + $0xf0] sm:$0xf]
      %v1879 = vld [vmem:[%s303 + $0xf4] sm:$0xf]
      %v1880 = vld [vmem:[%s303 + $0xf8] sm:$0xf]
      %v1881 = vld [vmem:[%s303 + $0xfc] sm:$0xf]
      %v1882 = vunpack.c.l.bf16 %v1818
      %v1883 = vunpack.c.l.bf16 %v1819
      %v1884 = vunpack.c.l.bf16 %v1820
      %v1885 = vunpack.c.l.bf16 %v1821
      %v1886 = vunpack.c.l.bf16 %v1822
      %v1887 = vunpack.c.l.bf16 %v1823
      %v1888 = vunpack.c.l.bf16 %v1824
      %v1889 = vunpack.c.l.bf16 %v1825
      %v1890 = vunpack.c.l.bf16 %v1826
      %v1891 = vunpack.c.l.bf16 %v1827
      %v1892 = vunpack.c.l.bf16 %v1828
      %v1893 = vunpack.c.l.bf16 %v1829
      %v1894 = vunpack.c.l.bf16 %v1830
      %v1895 = vunpack.c.l.bf16 %v1831
      %v1896 = vunpack.c.l.bf16 %v1832
      %v1897 = vunpack.c.l.bf16 %v1833
      %v1898 = vunpack.c.l.bf16 %v1834
      %v1899 = vunpack.c.l.bf16 %v1835
      %v1900 = vunpack.c.l.bf16 %v1836
      %v1901 = vunpack.c.l.bf16 %v1837
      %v1902 = vunpack.c.l.bf16 %v1838
      %v1903 = vunpack.c.l.bf16 %v1839
      %v1904 = vunpack.c.l.bf16 %v1840
      %v1905 = vunpack.c.l.bf16 %v1841
      %v1906 = vunpack.c.l.bf16 %v1842
      %v1907 = vunpack.c.l.bf16 %v1843
      %v1908 = vunpack.c.l.bf16 %v1844
      %v1909 = vunpack.c.l.bf16 %v1845
      %v1910 = vunpack.c.l.bf16 %v1846
      %v1911 = vunpack.c.l.bf16 %v1847
      %v1912 = vunpack.c.l.bf16 %v1848
      %v1913 = vunpack.c.l.bf16 %v1849
      %v1914 = vunpack.c.l.bf16 %v1850
      %v1915 = vunpack.c.l.bf16 %v1851
      %v1916 = vunpack.c.l.bf16 %v1852
      %v1917 = vunpack.c.l.bf16 %v1853
      %v1918 = vunpack.c.l.bf16 %v1854
      %v1919 = vunpack.c.l.bf16 %v1855
      %v1920 = vunpack.c.l.bf16 %v1856
      %v1921 = vunpack.c.l.bf16 %v1857
      %v1922 = vunpack.c.l.bf16 %v1858
      %v1923 = vunpack.c.l.bf16 %v1859
      %v1924 = vunpack.c.l.bf16 %v1860
      %v1925 = vunpack.c.l.bf16 %v1861
      %v1926 = vunpack.c.l.bf16 %v1862
      %v1927 = vunpack.c.l.bf16 %v1863
      %v1928 = vunpack.c.l.bf16 %v1864
      %v1929 = vunpack.c.l.bf16 %v1865
      %v1930 = vunpack.c.l.bf16 %v1866
      %v1931 = vunpack.c.l.bf16 %v1867
      %v1932 = vunpack.c.l.bf16 %v1868
      %v1933 = vunpack.c.l.bf16 %v1869
      %v1934 = vunpack.c.l.bf16 %v1870
      %v1935 = vunpack.c.l.bf16 %v1871
      %v1936 = vunpack.c.l.bf16 %v1872
      %v1937 = vunpack.c.l.bf16 %v1873
      %v1938 = vunpack.c.l.bf16 %v1874
      %v1939 = vunpack.c.l.bf16 %v1875
      %v1940 = vunpack.c.l.bf16 %v1876
      %v1941 = vunpack.c.l.bf16 %v1877
      %v1942 = vunpack.c.l.bf16 %v1878
      %v1943 = vunpack.c.l.bf16 %v1879
      %v1944 = vunpack.c.l.bf16 %v1880
      %v1945 = vunpack.c.l.bf16 %v1881
      %v1946 = vadd.f32 %v1754, %v1882
      %v1947 = vadd.f32 %v1755, %v1883
      %v1948 = vadd.f32 %v1756, %v1884
      %v1949 = vadd.f32 %v1757, %v1885
      %v1950 = vadd.f32 %v1758, %v1886
      %v1951 = vadd.f32 %v1759, %v1887
      %v1952 = vadd.f32 %v1760, %v1888
      %v1953 = vadd.f32 %v1761, %v1889
      %v1954 = vadd.f32 %v1762, %v1890
      %v1955 = vadd.f32 %v1763, %v1891
      %v1956 = vadd.f32 %v1764, %v1892
      %v1957 = vadd.f32 %v1765, %v1893
      %v1958 = vadd.f32 %v1766, %v1894
      %v1959 = vadd.f32 %v1767, %v1895
      %v1960 = vadd.f32 %v1768, %v1896
      %v1961 = vadd.f32 %v1769, %v1897
      %v1962 = vadd.f32 %v1770, %v1898
      %v1963 = vadd.f32 %v1771, %v1899
      %v1964 = vadd.f32 %v1772, %v1900
      %v1965 = vadd.f32 %v1773, %v1901
      %v1966 = vadd.f32 %v1774, %v1902
      %v1967 = vadd.f32 %v1775, %v1903
      %v1968 = vadd.f32 %v1776, %v1904
      %v1969 = vadd.f32 %v1777, %v1905
      %v1970 = vadd.f32 %v1778, %v1906
      %v1971 = vadd.f32 %v1779, %v1907
      %v1972 = vadd.f32 %v1780, %v1908
      %v1973 = vadd.f32 %v1781, %v1909
      %v1974 = vadd.f32 %v1782, %v1910
      %v1975 = vadd.f32 %v1783, %v1911
      %v1976 = vadd.f32 %v1784, %v1912
      %v1977 = vadd.f32 %v1785, %v1913
      %v1978 = vadd.f32 %v1786, %v1914
      %v1979 = vadd.f32 %v1787, %v1915
      %v1980 = vadd.f32 %v1788, %v1916
      %v1981 = vadd.f32 %v1789, %v1917
      %v1982 = vadd.f32 %v1790, %v1918
      %v1983 = vadd.f32 %v1791, %v1919
      %v1984 = vadd.f32 %v1792, %v1920
      %v1985 = vadd.f32 %v1793, %v1921
      %v1986 = vadd.f32 %v1794, %v1922
      %v1987 = vadd.f32 %v1795, %v1923
      %v1988 = vadd.f32 %v1796, %v1924
      %v1989 = vadd.f32 %v1797, %v1925
      %v1990 = vadd.f32 %v1798, %v1926
      %v1991 = vadd.f32 %v1799, %v1927
      %v1992 = vadd.f32 %v1800, %v1928
      %v1993 = vadd.f32 %v1801, %v1929
      %v1994 = vadd.f32 %v1802, %v1930
      %v1995 = vadd.f32 %v1803, %v1931
      %v1996 = vadd.f32 %v1804, %v1932
      %v1997 = vadd.f32 %v1805, %v1933
      %v1998 = vadd.f32 %v1806, %v1934
      %v1999 = vadd.f32 %v1807, %v1935
      %v2000 = vadd.f32 %v1808, %v1936
      %v2001 = vadd.f32 %v1809, %v1937
      %v2002 = vadd.f32 %v1810, %v1938
      %v2003 = vadd.f32 %v1811, %v1939
      %v2004 = vadd.f32 %v1812, %v1940
      %v2005 = vadd.f32 %v1813, %v1941
      %v2006 = vadd.f32 %v1814, %v1942
      %v2007 = vadd.f32 %v1815, %v1943
      %v2008 = vadd.f32 %v1816, %v1944
      %v2009 = vadd.f32 %v1817, %v1945
      %v2010 = vpack.c.bf16 %v1947, %v1946
      %v2011 = vpack.c.bf16 %v1949, %v1948
      %v2012 = vpack.c.bf16 %v1951, %v1950
      %v2013 = vpack.c.bf16 %v1953, %v1952
      %v2014 = vpack.c.bf16 %v1955, %v1954
      %v2015 = vpack.c.bf16 %v1957, %v1956
      %v2016 = vpack.c.bf16 %v1959, %v1958
      %v2017 = vpack.c.bf16 %v1961, %v1960
      %v2018 = vpack.c.bf16 %v1963, %v1962
      %v2019 = vpack.c.bf16 %v1965, %v1964
      %v2020 = vpack.c.bf16 %v1967, %v1966
      %v2021 = vpack.c.bf16 %v1969, %v1968
      %v2022 = vpack.c.bf16 %v1971, %v1970
      %v2023 = vpack.c.bf16 %v1973, %v1972
      %v2024 = vpack.c.bf16 %v1975, %v1974
      %v2025 = vpack.c.bf16 %v1977, %v1976
      %v2026 = vpack.c.bf16 %v1979, %v1978
      %v2027 = vpack.c.bf16 %v1981, %v1980
      %v2028 = vpack.c.bf16 %v1983, %v1982
      %v2029 = vpack.c.bf16 %v1985, %v1984
      %v2030 = vpack.c.bf16 %v1987, %v1986
      %v2031 = vpack.c.bf16 %v1989, %v1988
      %v2032 = vpack.c.bf16 %v1991, %v1990
      %v2033 = vpack.c.bf16 %v1993, %v1992
      %v2034 = vpack.c.bf16 %v1995, %v1994
      %v2035 = vpack.c.bf16 %v1997, %v1996
      %v2036 = vpack.c.bf16 %v1999, %v1998
      %v2037 = vpack.c.bf16 %v2001, %v2000
      %v2038 = vpack.c.bf16 %v2003, %v2002
      %v2039 = vpack.c.bf16 %v2005, %v2004
      %v2040 = vpack.c.bf16 %v2007, %v2006
      %v2041 = vpack.c.bf16 %v2009, %v2008
      %v2074 = vunpack.c.l.b16 %v2010
      %v2075 = vunpack.c.h.b16 %v2010
      %v2076 = vunpack.c.l.b16 %v2011
      %v2077 = vunpack.c.h.b16 %v2011
      %v2078 = vunpack.c.l.b16 %v2012
      %v2079 = vunpack.c.h.b16 %v2012
      %v2080 = vunpack.c.l.b16 %v2013
      %v2081 = vunpack.c.h.b16 %v2013
      %v2082 = vunpack.c.l.b16 %v2014
      %v2083 = vunpack.c.h.b16 %v2014
      %v2084 = vunpack.c.l.b16 %v2015
      %v2085 = vunpack.c.h.b16 %v2015
      %v2086 = vunpack.c.l.b16 %v2016
      %v2087 = vunpack.c.h.b16 %v2016
      %v2088 = vunpack.c.l.b16 %v2017
      %v2089 = vunpack.c.h.b16 %v2017
      %v2090 = vunpack.c.l.b16 %v2018
      %v2091 = vunpack.c.h.b16 %v2018
      %v2092 = vunpack.c.l.b16 %v2019
      %v2093 = vunpack.c.h.b16 %v2019
      %v2094 = vunpack.c.l.b16 %v2020
      %v2095 = vunpack.c.h.b16 %v2020
      %v2096 = vunpack.c.l.b16 %v2021
      %v2097 = vunpack.c.h.b16 %v2021
      %v2098 = vunpack.c.l.b16 %v2022
      %v2099 = vunpack.c.h.b16 %v2022
      %v2100 = vunpack.c.l.b16 %v2023
      %v2101 = vunpack.c.h.b16 %v2023
      %v2102 = vunpack.c.l.b16 %v2024
      %v2103 = vunpack.c.h.b16 %v2024
      %v2104 = vunpack.c.l.b16 %v2025
      %v2105 = vunpack.c.h.b16 %v2025
      %v2106 = vunpack.c.l.b16 %v2026
      %v2107 = vunpack.c.h.b16 %v2026
      %v2108 = vunpack.c.l.b16 %v2027
      %v2109 = vunpack.c.h.b16 %v2027
      %v2110 = vunpack.c.l.b16 %v2028
      %v2111 = vunpack.c.h.b16 %v2028
      %v2112 = vunpack.c.l.b16 %v2029
      %v2113 = vunpack.c.h.b16 %v2029
      %v2114 = vunpack.c.l.b16 %v2030
      %v2115 = vunpack.c.h.b16 %v2030
      %v2116 = vunpack.c.l.b16 %v2031
      %v2117 = vunpack.c.h.b16 %v2031
      %v2118 = vunpack.c.l.b16 %v2032
      %v2119 = vunpack.c.h.b16 %v2032
      %v2120 = vunpack.c.l.b16 %v2033
      %v2121 = vunpack.c.h.b16 %v2033
      %v2122 = vunpack.c.l.b16 %v2034
      %v2123 = vunpack.c.h.b16 %v2034
      %v2124 = vunpack.c.l.b16 %v2035
      %v2125 = vunpack.c.h.b16 %v2035
      %v2126 = vunpack.c.l.b16 %v2036
      %v2127 = vunpack.c.h.b16 %v2036
      %v2128 = vunpack.c.l.b16 %v2037
      %v2129 = vunpack.c.h.b16 %v2037
      %v2130 = vunpack.c.l.b16 %v2038
      %v2131 = vunpack.c.h.b16 %v2038
      %v2132 = vunpack.c.l.b16 %v2039
      %v2133 = vunpack.c.h.b16 %v2039
      %v2134 = vunpack.c.l.b16 %v2040
      %v2135 = vunpack.c.h.b16 %v2040
      %v2136 = vunpack.c.l.b16 %v2041
      %v2137 = vunpack.c.h.b16 %v2041
      %v2138 = vpack.c.b16 %v2074, %v2074
      %v2139 = vpack.c.b16 %v2075, %v2075
      %v2140 = vpack.c.b16 %v2076, %v2076
      %v2141 = vpack.c.b16 %v2077, %v2077
      %v2142 = vpack.c.b16 %v2078, %v2078
      %v2143 = vpack.c.b16 %v2079, %v2079
      %v2144 = vpack.c.b16 %v2080, %v2080
      %v2145 = vpack.c.b16 %v2081, %v2081
      %v2146 = vpack.c.b16 %v2082, %v2082
      %v2147 = vpack.c.b16 %v2083, %v2083
      %v2148 = vpack.c.b16 %v2084, %v2084
      %v2149 = vpack.c.b16 %v2085, %v2085
      %v2150 = vpack.c.b16 %v2086, %v2086
      %v2151 = vpack.c.b16 %v2087, %v2087
      %v2152 = vpack.c.b16 %v2088, %v2088
      %v2153 = vpack.c.b16 %v2089, %v2089
      %v2154 = vpack.c.b16 %v2090, %v2090
      %v2155 = vpack.c.b16 %v2091, %v2091
      %v2156 = vpack.c.b16 %v2092, %v2092
      %v2157 = vpack.c.b16 %v2093, %v2093
      %v2158 = vpack.c.b16 %v2094, %v2094
      %v2159 = vpack.c.b16 %v2095, %v2095
      %v2160 = vpack.c.b16 %v2096, %v2096
      %v2161 = vpack.c.b16 %v2097, %v2097
      %v2162 = vpack.c.b16 %v2098, %v2098
      %v2163 = vpack.c.b16 %v2099, %v2099
      %v2164 = vpack.c.b16 %v2100, %v2100
      %v2165 = vpack.c.b16 %v2101, %v2101
      %v2166 = vpack.c.b16 %v2102, %v2102
      %v2167 = vpack.c.b16 %v2103, %v2103
      %v2168 = vpack.c.b16 %v2104, %v2104
      %v2169 = vpack.c.b16 %v2105, %v2105
      %v2170 = vpack.c.b16 %v2106, %v2106
      %v2171 = vpack.c.b16 %v2107, %v2107
      %v2172 = vpack.c.b16 %v2108, %v2108
      %v2173 = vpack.c.b16 %v2109, %v2109
      %v2174 = vpack.c.b16 %v2110, %v2110
      %v2175 = vpack.c.b16 %v2111, %v2111
      %v2176 = vpack.c.b16 %v2112, %v2112
      %v2177 = vpack.c.b16 %v2113, %v2113
      %v2178 = vpack.c.b16 %v2114, %v2114
      %v2179 = vpack.c.b16 %v2115, %v2115
      %v2180 = vpack.c.b16 %v2116, %v2116
      %v2181 = vpack.c.b16 %v2117, %v2117
      %v2182 = vpack.c.b16 %v2118, %v2118
      %v2183 = vpack.c.b16 %v2119, %v2119
      %v2184 = vpack.c.b16 %v2120, %v2120
      %v2185 = vpack.c.b16 %v2121, %v2121
      %v2186 = vpack.c.b16 %v2122, %v2122
      %v2187 = vpack.c.b16 %v2123, %v2123
      %v2188 = vpack.c.b16 %v2124, %v2124
      %v2189 = vpack.c.b16 %v2125, %v2125
      %v2190 = vpack.c.b16 %v2126, %v2126
      %v2191 = vpack.c.b16 %v2127, %v2127
      %v2192 = vpack.c.b16 %v2128, %v2128
      %v2193 = vpack.c.b16 %v2129, %v2129
      %v2194 = vpack.c.b16 %v2130, %v2130
      %v2195 = vpack.c.b16 %v2131, %v2131
      %v2196 = vpack.c.b16 %v2132, %v2132
      %v2197 = vpack.c.b16 %v2133, %v2133
      %v2198 = vpack.c.b16 %v2134, %v2134
      %v2199 = vpack.c.b16 %v2135, %v2135
      %v2200 = vpack.c.b16 %v2136, %v2136
      %v2201 = vpack.c.b16 %v2137, %v2137
      %vm2266 = vcmask 60416
      %2267 = vst.msk [vmem:[%s313] sm:$0xf] %vm2266, %v2138
      %2268 = vst.msk [vmem:[%s313 + $0x4] sm:$0xf] %vm2266, %v2139
      %2269 = vst.msk [vmem:[%s313 + $0x8] sm:$0xf] %vm2266, %v2140
      %2270 = vst.msk [vmem:[%s313 + $0xc] sm:$0xf] %vm2266, %v2141
      %2271 = vst.msk [vmem:[%s313 + $0x10] sm:$0xf] %vm2266, %v2142
      %2272 = vst.msk [vmem:[%s313 + $0x14] sm:$0xf] %vm2266, %v2143
      %2273 = vst.msk [vmem:[%s313 + $0x18] sm:$0xf] %vm2266, %v2144
      %2274 = vst.msk [vmem:[%s313 + $0x1c] sm:$0xf] %vm2266, %v2145
      %2275 = vst.msk [vmem:[%s313 + $0x20] sm:$0xf] %vm2266, %v2146
      %2276 = vst.msk [vmem:[%s313 + $0x24] sm:$0xf] %vm2266, %v2147
      %2277 = vst.msk [vmem:[%s313 + $0x28] sm:$0xf] %vm2266, %v2148
      %2278 = vst.msk [vmem:[%s313 + $0x2c] sm:$0xf] %vm2266, %v2149
      %2279 = vst.msk [vmem:[%s313 + $0x30] sm:$0xf] %vm2266, %v2150
      %2280 = vst.msk [vmem:[%s313 + $0x34] sm:$0xf] %vm2266, %v2151
      %2281 = vst.msk [vmem:[%s313 + $0x38] sm:$0xf] %vm2266, %v2152
      %2282 = vst.msk [vmem:[%s313 + $0x3c] sm:$0xf] %vm2266, %v2153
      %2283 = vst.msk [vmem:[%s313 + $0x40] sm:$0xf] %vm2266, %v2154
      %2284 = vst.msk [vmem:[%s313 + $0x44] sm:$0xf] %vm2266, %v2155
      %2285 = vst.msk [vmem:[%s313 + $0x48] sm:$0xf] %vm2266, %v2156
      %2286 = vst.msk [vmem:[%s313 + $0x4c] sm:$0xf] %vm2266, %v2157
      %2287 = vst.msk [vmem:[%s313 + $0x50] sm:$0xf] %vm2266, %v2158
      %2288 = vst.msk [vmem:[%s313 + $0x54] sm:$0xf] %vm2266, %v2159
      %2289 = vst.msk [vmem:[%s313 + $0x58] sm:$0xf] %vm2266, %v2160
      %2290 = vst.msk [vmem:[%s313 + $0x5c] sm:$0xf] %vm2266, %v2161
      %2291 = vst.msk [vmem:[%s313 + $0x60] sm:$0xf] %vm2266, %v2162
      %2292 = vst.msk [vmem:[%s313 + $0x64] sm:$0xf] %vm2266, %v2163
      %2293 = vst.msk [vmem:[%s313 + $0x68] sm:$0xf] %vm2266, %v2164
      %2294 = vst.msk [vmem:[%s313 + $0x6c] sm:$0xf] %vm2266, %v2165
      %2295 = vst.msk [vmem:[%s313 + $0x70] sm:$0xf] %vm2266, %v2166
      %2296 = vst.msk [vmem:[%s313 + $0x74] sm:$0xf] %vm2266, %v2167
      %2297 = vst.msk [vmem:[%s313 + $0x78] sm:$0xf] %vm2266, %v2168
      %2298 = vst.msk [vmem:[%s313 + $0x7c] sm:$0xf] %vm2266, %v2169
      %2299 = vst.msk [vmem:[%s313 + $0x80] sm:$0xf] %vm2266, %v2170
      %2300 = vst.msk [vmem:[%s313 + $0x84] sm:$0xf] %vm2266, %v2171
      %2301 = vst.msk [vmem:[%s313 + $0x88] sm:$0xf] %vm2266, %v2172
      %2302 = vst.msk [vmem:[%s313 + $0x8c] sm:$0xf] %vm2266, %v2173
      %2303 = vst.msk [vmem:[%s313 + $0x90] sm:$0xf] %vm2266, %v2174
      %2304 = vst.msk [vmem:[%s313 + $0x94] sm:$0xf] %vm2266, %v2175
      %2305 = vst.msk [vmem:[%s313 + $0x98] sm:$0xf] %vm2266, %v2176
      %2306 = vst.msk [vmem:[%s313 + $0x9c] sm:$0xf] %vm2266, %v2177
      %2307 = vst.msk [vmem:[%s313 + $0xa0] sm:$0xf] %vm2266, %v2178
      %2308 = vst.msk [vmem:[%s313 + $0xa4] sm:$0xf] %vm2266, %v2179
      %2309 = vst.msk [vmem:[%s313 + $0xa8] sm:$0xf] %vm2266, %v2180
      %2310 = vst.msk [vmem:[%s313 + $0xac] sm:$0xf] %vm2266, %v2181
      %2311 = vst.msk [vmem:[%s313 + $0xb0] sm:$0xf] %vm2266, %v2182
      %2312 = vst.msk [vmem:[%s313 + $0xb4] sm:$0xf] %vm2266, %v2183
      %2313 = vst.msk [vmem:[%s313 + $0xb8] sm:$0xf] %vm2266, %v2184
      %2314 = vst.msk [vmem:[%s313 + $0xbc] sm:$0xf] %vm2266, %v2185
      %2315 = vst.msk [vmem:[%s313 + $0xc0] sm:$0xf] %vm2266, %v2186
      %2316 = vst.msk [vmem:[%s313 + $0xc4] sm:$0xf] %vm2266, %v2187
      %2317 = vst.msk [vmem:[%s313 + $0xc8] sm:$0xf] %vm2266, %v2188
      %2318 = vst.msk [vmem:[%s313 + $0xcc] sm:$0xf] %vm2266, %v2189
      %2319 = vst.msk [vmem:[%s313 + $0xd0] sm:$0xf] %vm2266, %v2190
      %2320 = vst.msk [vmem:[%s313 + $0xd4] sm:$0xf] %vm2266, %v2191
      %2321 = vst.msk [vmem:[%s313 + $0xd8] sm:$0xf] %vm2266, %v2192
      %2322 = vst.msk [vmem:[%s313 + $0xdc] sm:$0xf] %vm2266, %v2193
      %2323 = vst.msk [vmem:[%s313 + $0xe0] sm:$0xf] %vm2266, %v2194
      %2324 = vst.msk [vmem:[%s313 + $0xe4] sm:$0xf] %vm2266, %v2195
      %2325 = vst.msk [vmem:[%s313 + $0xe8] sm:$0xf] %vm2266, %v2196
      %2326 = vst.msk [vmem:[%s313 + $0xec] sm:$0xf] %vm2266, %v2197
      %2327 = vst.msk [vmem:[%s313 + $0xf0] sm:$0xf] %vm2266, %v2198
      %2328 = vst.msk [vmem:[%s313 + $0xf4] sm:$0xf] %vm2266, %v2199
      %2329 = vst.msk [vmem:[%s313 + $0xf8] sm:$0xf] %vm2266, %v2200
      %2330 = vst.msk [vmem:[%s313 + $0xfc] sm:$0xf] %vm2266, %v2201
      %s2331 = smul.u32 64, %s21
      %p2332 = scmp.lt.s32.totalorder %s20, 3
      %s2333 = scalar_select %p2332, %s20, 3
      %p2334 = scmp.lt.s32.totalorder %s2331, 63
      %s2335 = scalar_select %p2334, %s2331, 63
      %s2336 = smul.addr %s2333, 64
      %s2337 = sadd.s32 %s2335, %s2336
      %s2338 = smul.addr %s2337, 4
      %s2339 = scalar_lea.vmem %s5, %s2338
      // Predicated region
      $region41: #{dense_projection_forward.8} parent=39 // pred_check
        %p2340 = pneg %p174
      $region42: #{dense_projection_forward.8} parent=39 // pred_check_branch
        %2342 = sbr.rel (%p2340) target = $region44
      $region43: #{dense_projection_forward.8} parent=39 // pred_region
        %s2343 = smul.u32 64, %s21
      $region44: #{dense_projection_forward.8} parent=39 // pred_fallthru
        _
    $region40: #{dense_projection_forward.8} parent=5 // pred_fallthru
      _
    %p2344 = scmp.le.s32.totalorder 2, %s11
    // Predicated region
    $region45: #{dense_projection_forward.8} parent=5 // pred_check
      %p2345 = pneg %p2344
    $region46: #{dense_projection_forward.8} parent=5 // pred_check_branch
      %2347 = sbr.rel (%p2345) target = $region48
    $region47: #{dense_projection_forward.8} parent=5 // pred_region
      %s2348 = ssub.s32 %s11, 2
      // Predicated region
      $region49: #{dense_projection_forward.8} parent=47 // pred_check
        %p2349 = pneg %p180
      $region50: #{dense_projection_forward.8} parent=47 // pred_check_branch
        %2351 = sbr.rel (%p2349) target = $region52
      $region51: #{dense_projection_forward.8} parent=47 // pred_region
        %s2352 = smul.u32 64, %s23
        %p2353 = scmp.lt.s32.totalorder %s22, 3
        %s2354 = scalar_select %p2353, %s22, 3
        %p2355 = scmp.lt.s32.totalorder %s2352, 63
        %s2356 = scalar_select %p2355, %s2352, 63
        %s2357 = smul.addr %s2354, 64
        %s2358 = sadd.s32 %s2356, %s2357
        %s2359 = smul.addr %s2358, 4
        %s2360 = scalar_lea.vmem %s5, %s2359
      $region52: #{dense_projection_forward.8} parent=47 // pred_fallthru
        _
    $region48: #{dense_projection_forward.8} parent=5 // pred_fallthru
      _
  $region6: #{dense_projection_forward.8} parent=0 // loop_footer
    %s15 = sadd.s32 1, %s11
  $region7: #{dense_projection_forward.8} parent=0 // loop_footer_branch
    %10 = sbr.rel target = $region3
  $region8: #{dense_projection_forward.8} parent=0 // loop_exit
    _

// kernel: dense_projection_forward.11
$region0: #{dense_projection_forward.11}
  #allocation0 [shape = 'u32[]', space=smem, size = 0x4, offset = 0x4, fixed_abs, tag = 'smem constant byte address 0x4 - core index']
  #allocation1 [shape = 'u32[144,128]{1,0:T(1,128)}', space=vmem, size = 0x12000, scoped, tag = 'internal scratch']
  %s0 = inlined_call_operand.vmem [shape: bf16[1,512,288], index: 0, kind: input, shape index: {}]
  %s1 = inlined_call_operand.vmem [shape: bf16[1,288,8], index: 1, kind: input, shape index: {}]
  %s2 = inlined_call_operand.vmem [shape: bf16[1,512,8], index: 2, kind: input, shape index: {}]
  %s3 = inlined_call_operand.vmem [shape: f32[8], index: 3, kind: input, shape index: {}]
  %s4 = inlined_call_operand.vmem [shape: f32[8], index: 4, kind: input, shape index: {}]
  %s5 = inlined_call_operand.vmem [shape: bf16[1,512,8], index: 5, kind: output, shape index: {}]
  %s6 = sld [smem:[#allocation0]]
  $region30: #{dense_projection_forward.11} parent=0
    _
  %s8 = ssub.s32 1, %s6
  %s9 = scalar_select 0, %s8, %s6
  $region1: #{dense_projection_forward.11} parent=0
    #allocation2 [shape = 'u8[512]{0}', space=vmem, size = 0x400, dematerialized = true, scoped, tag = 'FusionAdapter Buffer %fusion.11 = f32[1,8]{1,0:T(1,128)} fusion(%param_4.15), kind=kLoop, calls=%fused_computation.103.clone, metadata={op_name="jit(dense_projection_forward)/reshape" stack_frame_id=53}']
    #allocation3 [shape = 'u8[512]{0}', space=vmem, size = 0x400, dematerialized = true, scoped, tag = 'FusionAdapter Buffer %fusion.10 = f32[1,8]{1,0:T(1,128)} fusion(%param_3.23), kind=kLoop, calls=%fused_computation.102.clone, metadata={op_name="jit(dense_projection_forward)/reshape" stack_frame_id=54}']
    // Predicated region
    $region2: #{dense_projection_forward.11} parent=1 // pred_check
      _
    $region3: #{dense_projection_forward.11} parent=1 // pred_check_branch
      %11 = sbr.rel (0) target = $region5
    $region4: #{dense_projection_forward.11} parent=1 // pred_region
      _
    $region5: #{dense_projection_forward.11} parent=1 // pred_fallthru
      _
    // Predicated region
    $region6: #{dense_projection_forward.11} parent=1 // pred_check
      _
    $region7: #{dense_projection_forward.11} parent=1 // pred_check_branch
      %13 = sbr.rel (0) target = $region9
    $region8: #{dense_projection_forward.11} parent=1 // pred_region
      _
    $region9: #{dense_projection_forward.11} parent=1 // pred_fallthru
      _
    // Predicated region
    $region10: #{dense_projection_forward.11} parent=1 // pred_check
      _
    $region11: #{dense_projection_forward.11} parent=1 // pred_check_branch
      %15 = sbr.rel (0) target = $region13
    $region12: #{dense_projection_forward.11} parent=1 // pred_region
      _
    $region13: #{dense_projection_forward.11} parent=1 // pred_fallthru
      _
    // Predicated region
    $region14: #{dense_projection_forward.11} parent=1 // pred_check
      _
    $region15: #{dense_projection_forward.11} parent=1 // pred_check_branch
      %17 = sbr.rel (0) target = $region17
    $region16: #{dense_projection_forward.11} parent=1 // pred_region
      _
    $region17: #{dense_projection_forward.11} parent=1 // pred_fallthru
      _
    // Predicated region
    $region18: #{dense_projection_forward.11} parent=1 // pred_check
      _
    $region19: #{dense_projection_forward.11} parent=1 // pred_check_branch
      %19 = sbr.rel (0) target = $region21
    $region20: #{dense_projection_forward.11} parent=1 // pred_region
      _
    $region21: #{dense_projection_forward.11} parent=1 // pred_fallthru
      _
    %v20 = vld [vmem:[%s4] sm:$0x1]
    %22 = vst [vmem:[#allocation2] sm:$0x1] %v20
    %v23 = vld [vmem:[%s3] sm:$0x1]
    %25 = vst [vmem:[#allocation3] sm:$0x1] %v23
    %v27 = vld [vmem:[%s0] sm:$0xff]
    %v28 = vld [vmem:[%s0 + $0x8] sm:$0xf]
    %v29 = vld [vmem:[%s0 + $0xc] sm:$0xff]
    %v30 = vld [vmem:[%s0 + $0x14] sm:$0xf]
    %v31 = vld [vmem:[%s0 + $0x18] sm:$0xff]
    %v32 = vld [vmem:[%s0 + $0x20] sm:$0xf]
    %v33 = vld [vmem:[%s0 + $0x24] sm:$0xff]
    %v34 = vld [vmem:[%s0 + $0x2c] sm:$0xf]
    %v35 = vld [vmem:[%s0 + $0x30] sm:$0xff]
    %v36 = vld [vmem:[%s0 + $0x38] sm:$0xf]
    %v37 = vld [vmem:[%s0 + $0x3c] sm:$0xff]
    %v38 = vld [vmem:[%s0 + $0x44] sm:$0xf]
    %v39 = vld [vmem:[%s0 + $0x48] sm:$0xff]
    %v40 = vld [vmem:[%s0 + $0x50] sm:$0xf]
    %v41 = vld [vmem:[%s0 + $0x54] sm:$0xff]
    %v42 = vld [vmem:[%s0 + $0x5c] sm:$0xf]
    %v43 = vld [vmem:[%s0 + $0x60] sm:$0xff]
    %v44 = vld [vmem:[%s0 + $0x68] sm:$0xf]
    %v45 = vld [vmem:[%s0 + $0x6c] sm:$0xff]
    %v46 = vld [vmem:[%s0 + $0x74] sm:$0xf]
    %v47 = vld [vmem:[%s0 + $0x78] sm:$0xff]
    %v48 = vld [vmem:[%s0 + $0x80] sm:$0xf]
    %v49 = vld [vmem:[%s0 + $0x84] sm:$0xff]
    %v50 = vld [vmem:[%s0 + $0x8c] sm:$0xf]
    %v51 = vld [vmem:[%s0 + $0x90] sm:$0xff]
    %v52 = vld [vmem:[%s0 + $0x98] sm:$0xf]
    %v53 = vld [vmem:[%s0 + $0x9c] sm:$0xff]
    %v54 = vld [vmem:[%s0 + $0xa4] sm:$0xf]
    %v55 = vld [vmem:[%s0 + $0xa8] sm:$0xff]
    %v56 = vld [vmem:[%s0 + $0xb0] sm:$0xf]
    %v57 = vld [vmem:[%s0 + $0xb4] sm:$0xff]
    %v58 = vld [vmem:[%s0 + $0xbc] sm:$0xf]
    %v59 = vld [vmem:[%s0 + $0xc0] sm:$0xff]
    %v60 = vld [vmem:[%s0 + $0xc8] sm:$0xf]
    %v61 = vld [vmem:[%s0 + $0xcc] sm:$0xff]
    %v62 = vld [vmem:[%s0 + $0xd4] sm:$0xf]
    %v63 = vld [vmem:[%s0 + $0xd8] sm:$0xff]
    %v64 = vld [vmem:[%s0 + $0xe0] sm:$0xf]
    %v65 = vld [vmem:[%s0 + $0xe4] sm:$0xff]
    %v66 = vld [vmem:[%s0 + $0xec] sm:$0xf]
    %v67 = vld [vmem:[%s0 + $0xf0] sm:$0xff]
    %v68 = vld [vmem:[%s0 + $0xf8] sm:$0xf]
    %v69 = vld [vmem:[%s0 + $0xfc] sm:$0xff]
    %v70 = vld [vmem:[%s0 + $0x104] sm:$0xf]
    %v71 = vld [vmem:[%s0 + $0x108] sm:$0xff]
    %v72 = vld [vmem:[%s0 + $0x110] sm:$0xf]
    %v73 = vld [vmem:[%s0 + $0x114] sm:$0xff]
    %v74 = vld [vmem:[%s0 + $0x11c] sm:$0xf]
    %v75 = vld [vmem:[%s0 + $0x120] sm:$0xff]
    %v76 = vld [vmem:[%s0 + $0x128] sm:$0xf]
    %v77 = vld [vmem:[%s0 + $0x12c] sm:$0xff]
    %v78 = vld [vmem:[%s0 + $0x134] sm:$0xf]
    %v79 = vld [vmem:[%s0 + $0x138] sm:$0xff]
    %v80 = vld [vmem:[%s0 + $0x140] sm:$0xf]
    %v81 = vld [vmem:[%s0 + $0x144] sm:$0xff]
    %v82 = vld [vmem:[%s0 + $0x14c] sm:$0xf]
    %v83 = vld [vmem:[%s0 + $0x150] sm:$0xff]
    %v84 = vld [vmem:[%s0 + $0x158] sm:$0xf]
    %v85 = vld [vmem:[%s0 + $0x15c] sm:$0xff]
    %v86 = vld [vmem:[%s0 + $0x164] sm:$0xf]
    %v87 = vld [vmem:[%s0 + $0x168] sm:$0xff]
    %v88 = vld [vmem:[%s0 + $0x170] sm:$0xf]
    %v89 = vld [vmem:[%s0 + $0x174] sm:$0xff]
    %v90 = vld [vmem:[%s0 + $0x17c] sm:$0xf]
    %v91 = vld [vmem:[%s0 + $0x180] sm:$0xff]
    %v92 = vld [vmem:[%s0 + $0x188] sm:$0xf]
    %v93 = vld [vmem:[%s0 + $0x18c] sm:$0xff]
    %v94 = vld [vmem:[%s0 + $0x194] sm:$0xf]
    %v95 = vld [vmem:[%s0 + $0x198] sm:$0xff]
    %v96 = vld [vmem:[%s0 + $0x1a0] sm:$0xf]
    %v97 = vld [vmem:[%s0 + $0x1a4] sm:$0xff]
    %v98 = vld [vmem:[%s0 + $0x1ac] sm:$0xf]
    %v99 = vld [vmem:[%s0 + $0x1b0] sm:$0xff]
    %v100 = vld [vmem:[%s0 + $0x1b8] sm:$0xf]
    %v101 = vld [vmem:[%s0 + $0x1bc] sm:$0xff]
    %v102 = vld [vmem:[%s0 + $0x1c4] sm:$0xf]
    %v103 = vld [vmem:[%s0 + $0x1c8] sm:$0xff]
    %v104 = vld [vmem:[%s0 + $0x1d0] sm:$0xf]
    %v105 = vld [vmem:[%s0 + $0x1d4] sm:$0xff]
    %v106 = vld [vmem:[%s0 + $0x1dc] sm:$0xf]
    %v107 = vld [vmem:[%s0 + $0x1e0] sm:$0xff]
    %v108 = vld [vmem:[%s0 + $0x1e8] sm:$0xf]
    %v109 = vld [vmem:[%s0 + $0x1ec] sm:$0xff]
    %v110 = vld [vmem:[%s0 + $0x1f4] sm:$0xf]
    %v111 = vld [vmem:[%s0 + $0x1f8] sm:$0xff]
    %v112 = vld [vmem:[%s0 + $0x200] sm:$0xf]
    %v113 = vld [vmem:[%s0 + $0x204] sm:$0xff]
    %v114 = vld [vmem:[%s0 + $0x20c] sm:$0xf]
    %v115 = vld [vmem:[%s0 + $0x210] sm:$0xff]
    %v116 = vld [vmem:[%s0 + $0x218] sm:$0xf]
    %v117 = vld [vmem:[%s0 + $0x21c] sm:$0xff]
    %v118 = vld [vmem:[%s0 + $0x224] sm:$0xf]
    %v119 = vld [vmem:[%s0 + $0x228] sm:$0xff]
    %v120 = vld [vmem:[%s0 + $0x230] sm:$0xf]
    %v121 = vld [vmem:[%s0 + $0x234] sm:$0xff]
    %v122 = vld [vmem:[%s0 + $0x23c] sm:$0xf]
    %v123 = vld [vmem:[%s0 + $0x240] sm:$0xff]
    %v124 = vld [vmem:[%s0 + $0x248] sm:$0xf]
    %v125 = vld [vmem:[%s0 + $0x24c] sm:$0xff]
    %v126 = vld [vmem:[%s0 + $0x254] sm:$0xf]
    %v127 = vld [vmem:[%s0 + $0x258] sm:$0xff]
    %v128 = vld [vmem:[%s0 + $0x260] sm:$0xf]
    %v129 = vld [vmem:[%s0 + $0x264] sm:$0xff]
    %v130 = vld [vmem:[%s0 + $0x26c] sm:$0xf]
    %v131 = vld [vmem:[%s0 + $0x270] sm:$0xff]
    %v132 = vld [vmem:[%s0 + $0x278] sm:$0xf]
    %v133 = vld [vmem:[%s0 + $0x27c] sm:$0xff]
    %v134 = vld [vmem:[%s0 + $0x284] sm:$0xf]
    %v135 = vld [vmem:[%s0 + $0x288] sm:$0xff]
    %v136 = vld [vmem:[%s0 + $0x290] sm:$0xf]
    %v137 = vld [vmem:[%s0 + $0x294] sm:$0xff]
    %v138 = vld [vmem:[%s0 + $0x29c] sm:$0xf]
    %v139 = vld [vmem:[%s0 + $0x2a0] sm:$0xff]
    %v140 = vld [vmem:[%s0 + $0x2a8] sm:$0xf]
    %v141 = vld [vmem:[%s0 + $0x2ac] sm:$0xff]
    %v142 = vld [vmem:[%s0 + $0x2b4] sm:$0xf]
    %v143 = vld [vmem:[%s0 + $0x2b8] sm:$0xff]
    %v144 = vld [vmem:[%s0 + $0x2c0] sm:$0xf]
    %v145 = vld [vmem:[%s0 + $0x2c4] sm:$0xff]
    %v146 = vld [vmem:[%s0 + $0x2cc] sm:$0xf]
    %v147 = vld [vmem:[%s0 + $0x2d0] sm:$0xff]
    %v148 = vld [vmem:[%s0 + $0x2d8] sm:$0xf]
    %v149 = vld [vmem:[%s0 + $0x2dc] sm:$0xff]
    %v150 = vld [vmem:[%s0 + $0x2e4] sm:$0xf]
    %v151 = vld [vmem:[%s0 + $0x2e8] sm:$0xff]
    %v152 = vld [vmem:[%s0 + $0x2f0] sm:$0xf]
    %v153 = vld [vmem:[%s0 + $0x2f4] sm:$0xff]
    %v154 = vld [vmem:[%s0 + $0x2fc] sm:$0xf]
    %v155 = vld [vmem:[%s1] sm:$0xf]
    %v156 = vld [vmem:[%s1 + $0x4] sm:$0xf]
    %v157 = vld [vmem:[%s1 + $0x8] sm:$0xf]
    %v158 = vld [vmem:[%s1 + $0xc] sm:$0xf]
    %v159 = vld [vmem:[%s1 + $0x10] sm:$0xf]
    %v160 = vld [vmem:[%s1 + $0x14] sm:$0xf]
    %v161 = vld [vmem:[%s1 + $0x18] sm:$0xf]
    %v162 = vld [vmem:[%s1 + $0x1c] sm:$0xf]
    %v163 = vld [vmem:[%s1 + $0x20] sm:$0xf]
    %v164 = vld [vmem:[%s1 + $0x24] sm:$0xf]
    %v165 = vld [vmem:[%s1 + $0x28] sm:$0xf]
    %v166 = vld [vmem:[%s1 + $0x2c] sm:$0xf]
    %v167 = vld [vmem:[%s1 + $0x30] sm:$0xf]
    %v168 = vld [vmem:[%s1 + $0x34] sm:$0xf]
    %v169 = vld [vmem:[%s1 + $0x38] sm:$0xf]
    %v170 = vld [vmem:[%s1 + $0x3c] sm:$0xf]
    %v171 = vld [vmem:[%s1 + $0x40] sm:$0xf]
    %v172 = vld [vmem:[%s1 + $0x44] sm:$0xf]
    %v173 = vld [vmem:[%s1 + $0x48] sm:$0xf]
    %v174 = vld [vmem:[%s1 + $0x4c] sm:$0xf]
    %v175 = vld [vmem:[%s1 + $0x50] sm:$0xf]
    %v176 = vld [vmem:[%s1 + $0x54] sm:$0xf]
    %v177 = vld [vmem:[%s1 + $0x58] sm:$0xf]
    %v178 = vld [vmem:[%s1 + $0x5c] sm:$0xf]
    %v179 = vld [vmem:[%s1 + $0x60] sm:$0xf]
    %v180 = vld [vmem:[%s1 + $0x64] sm:$0xf]
    %v181 = vld [vmem:[%s1 + $0x68] sm:$0xf]
    %v182 = vld [vmem:[%s1 + $0x6c] sm:$0xf]
    %v183 = vld [vmem:[%s1 + $0x70] sm:$0xf]
    %v184 = vld [vmem:[%s1 + $0x74] sm:$0xf]
    %v185 = vld [vmem:[%s1 + $0x78] sm:$0xf]
    %v186 = vld [vmem:[%s1 + $0x7c] sm:$0xf]
    %v187 = vld [vmem:[%s1 + $0x80] sm:$0xf]
    %v188 = vld [vmem:[%s1 + $0x84] sm:$0xf]
    %v189 = vld [vmem:[%s1 + $0x88] sm:$0xf]
    %v190 = vld [vmem:[%s1 + $0x8c] sm:$0xf]
    %v191 = vld [vmem:[#allocation2] sm:$0x1]
    %v193 = vlaneseq
    %v194 = vshrl.u32 %v193, 7
    %v195 = vsub.s32 0, %v194
    %v196 = vrot.slane %v191, %v195
    %v326 = vunpack.c.l.b16 %v27
    %v327 = vunpack.c.h.b16 %v27
    %v328 = vunpack.c.l.b16 %v28
    %v329 = vunpack.c.l.b16 %v29
    %v330 = vunpack.c.h.b16 %v29
    %v331 = vunpack.c.l.b16 %v30
    %v332 = vunpack.c.l.b16 %v31
    %v333 = vunpack.c.h.b16 %v31
    %v334 = vunpack.c.l.b16 %v32
    %v335 = vunpack.c.l.b16 %v33
    %v336 = vunpack.c.h.b16 %v33
    %v337 = vunpack.c.l.b16 %v34
    %v338 = vunpack.c.l.b16 %v35
    %v339 = vunpack.c.h.b16 %v35
    %v340 = vunpack.c.l.b16 %v36
    %v341 = vunpack.c.l.b16 %v37
    %v342 = vunpack.c.h.b16 %v37
    %v343 = vunpack.c.l.b16 %v38
    %v344 = vunpack.c.l.b16 %v39
    %v345 = vunpack.c.h.b16 %v39
    %v346 = vunpack.c.l.b16 %v40
    %v347 = vunpack.c.l.b16 %v41
    %v348 = vunpack.c.h.b16 %v41
    %v349 = vunpack.c.l.b16 %v42
    %v350 = vunpack.c.l.b16 %v43
    %v351 = vunpack.c.h.b16 %v43
    %v352 = vunpack.c.l.b16 %v44
    %v353 = vunpack.c.l.b16 %v45
    %v354 = vunpack.c.h.b16 %v45
    %v355 = vunpack.c.l.b16 %v46
    %v356 = vunpack.c.l.b16 %v47
    %v357 = vunpack.c.h.b16 %v47
    %v358 = vunpack.c.l.b16 %v48
    %v359 = vunpack.c.l.b16 %v49
    %v360 = vunpack.c.h.b16 %v49
    %v361 = vunpack.c.l.b16 %v50
    %v362 = vunpack.c.l.b16 %v51
    %v363 = vunpack.c.h.b16 %v51
    %v364 = vunpack.c.l.b16 %v52
    %v365 = vunpack.c.l.b16 %v53
    %v366 = vunpack.c.h.b16 %v53
    %v367 = vunpack.c.l.b16 %v54
    %v368 = vunpack.c.l.b16 %v55
    %v369 = vunpack.c.h.b16 %v55
    %v370 = vunpack.c.l.b16 %v56
    %v371 = vunpack.c.l.b16 %v57
    %v372 = vunpack.c.h.b16 %v57
    %v373 = vunpack.c.l.b16 %v58
    %v374 = vunpack.c.l.b16 %v59
    %v375 = vunpack.c.h.b16 %v59
    %v376 = vunpack.c.l.b16 %v60
    %v377 = vunpack.c.l.b16 %v61
    %v378 = vunpack.c.h.b16 %v61
    %v379 = vunpack.c.l.b16 %v62
    %v380 = vunpack.c.l.b16 %v63
    %v381 = vunpack.c.h.b16 %v63
    %v382 = vunpack.c.l.b16 %v64
    %v383 = vunpack.c.l.b16 %v65
    %v384 = vunpack.c.h.b16 %v65
    %v385 = vunpack.c.l.b16 %v66
    %v386 = vunpack.c.l.b16 %v67
    %v387 = vunpack.c.h.b16 %v67
    %v388 = vunpack.c.l.b16 %v68
    %v389 = vunpack.c.l.b16 %v69
    %v390 = vunpack.c.h.b16 %v69
    %v391 = vunpack.c.l.b16 %v70
    %v392 = vunpack.c.l.b16 %v71
    %v393 = vunpack.c.h.b16 %v71
    %v394 = vunpack.c.l.b16 %v72
    %v395 = vunpack.c.l.b16 %v73
    %v396 = vunpack.c.h.b16 %v73
    %v397 = vunpack.c.l.b16 %v74
    %v398 = vunpack.c.l.b16 %v75
    %v399 = vunpack.c.h.b16 %v75
    %v400 = vunpack.c.l.b16 %v76
    %v401 = vunpack.c.l.b16 %v77
    %v402 = vunpack.c.h.b16 %v77
    %v403 = vunpack.c.l.b16 %v78
    %v404 = vunpack.c.l.b16 %v79
    %v405 = vunpack.c.h.b16 %v79
    %v406 = vunpack.c.l.b16 %v80
    %v407 = vunpack.c.l.b16 %v81
    %v408 = vunpack.c.h.b16 %v81
    %v409 = vunpack.c.l.b16 %v82
    %v410 = vunpack.c.l.b16 %v83
    %v411 = vunpack.c.h.b16 %v83
    %v412 = vunpack.c.l.b16 %v84
    %v413 = vunpack.c.l.b16 %v85
    %v414 = vunpack.c.h.b16 %v85
    %v415 = vunpack.c.l.b16 %v86
    %v416 = vunpack.c.l.b16 %v87
    %v417 = vunpack.c.h.b16 %v87
    %v418 = vunpack.c.l.b16 %v88
    %v419 = vunpack.c.l.b16 %v89
    %v420 = vunpack.c.h.b16 %v89
    %v421 = vunpack.c.l.b16 %v90
    %v422 = vunpack.c.l.b16 %v91
    %v423 = vunpack.c.h.b16 %v91
    %v424 = vunpack.c.l.b16 %v92
    %v425 = vunpack.c.l.b16 %v93
    %v426 = vunpack.c.h.b16 %v93
    %v427 = vunpack.c.l.b16 %v94
    %v428 = vunpack.c.l.b16 %v95
    %v429 = vunpack.c.h.b16 %v95
    %v430 = vunpack.c.l.b16 %v96
    %v431 = vunpack.c.l.b16 %v97
    %v432 = vunpack.c.h.b16 %v97
    %v433 = vunpack.c.l.b16 %v98
    %v434 = vunpack.c.l.b16 %v99
    %v435 = vunpack.c.h.b16 %v99
    %v436 = vunpack.c.l.b16 %v100
    %v437 = vunpack.c.l.b16 %v101
    %v438 = vunpack.c.h.b16 %v101
    %v439 = vunpack.c.l.b16 %v102
    %v440 = vunpack.c.l.b16 %v103
    %v441 = vunpack.c.h.b16 %v103
    %v442 = vunpack.c.l.b16 %v104
    %v443 = vunpack.c.l.b16 %v105
    %v444 = vunpack.c.h.b16 %v105
    %v445 = vunpack.c.l.b16 %v106
    %v446 = vunpack.c.l.b16 %v107
    %v447 = vunpack.c.h.b16 %v107
    %v448 = vunpack.c.l.b16 %v108
    %v449 = vunpack.c.l.b16 %v109
    %v450 = vunpack.c.h.b16 %v109
    %v451 = vunpack.c.l.b16 %v110
    %v452 = vunpack.c.l.b16 %v111
    %v453 = vunpack.c.h.b16 %v111
    %v454 = vunpack.c.l.b16 %v112
    %v455 = vunpack.c.l.b16 %v113
    %v456 = vunpack.c.h.b16 %v113
    %v457 = vunpack.c.l.b16 %v114
    %v458 = vunpack.c.l.b16 %v115
    %v459 = vunpack.c.h.b16 %v115
    %v460 = vunpack.c.l.b16 %v116
    %v461 = vunpack.c.l.b16 %v117
    %v462 = vunpack.c.h.b16 %v117
    %v463 = vunpack.c.l.b16 %v118
    %v464 = vunpack.c.l.b16 %v119
    %v465 = vunpack.c.h.b16 %v119
    %v466 = vunpack.c.l.b16 %v120
    %v467 = vunpack.c.l.b16 %v121
    %v468 = vunpack.c.h.b16 %v121
    %v469 = vunpack.c.l.b16 %v122
    %v470 = vunpack.c.l.b16 %v123
    %v471 = vunpack.c.h.b16 %v123
    %v472 = vunpack.c.l.b16 %v124
    %v473 = vunpack.c.l.b16 %v125
    %v474 = vunpack.c.h.b16 %v125
    %v475 = vunpack.c.l.b16 %v126
    %v476 = vunpack.c.l.b16 %v127
    %v477 = vunpack.c.h.b16 %v127
    %v478 = vunpack.c.l.b16 %v128
    %v479 = vunpack.c.l.b16 %v129
    %v480 = vunpack.c.h.b16 %v129
    %v481 = vunpack.c.l.b16 %v130
    %v482 = vunpack.c.l.b16 %v131
    %v483 = vunpack.c.h.b16 %v131
    %v484 = vunpack.c.l.b16 %v132
    %v485 = vunpack.c.l.b16 %v133
    %v486 = vunpack.c.h.b16 %v133
    %v487 = vunpack.c.l.b16 %v134
    %v488 = vunpack.c.l.b16 %v135
    %v489 = vunpack.c.h.b16 %v135
    %v490 = vunpack.c.l.b16 %v136
    %v491 = vunpack.c.l.b16 %v137
    %v492 = vunpack.c.h.b16 %v137
    %v493 = vunpack.c.l.b16 %v138
    %v494 = vunpack.c.l.b16 %v139
    %v495 = vunpack.c.h.b16 %v139
    %v496 = vunpack.c.l.b16 %v140
    %v497 = vunpack.c.l.b16 %v141
    %v498 = vunpack.c.h.b16 %v141
    %v499 = vunpack.c.l.b16 %v142
    %v500 = vunpack.c.l.b16 %v143
    %v501 = vunpack.c.h.b16 %v143
    %v502 = vunpack.c.l.b16 %v144
    %v503 = vunpack.c.l.b16 %v145
    %v504 = vunpack.c.h.b16 %v145
    %v505 = vunpack.c.l.b16 %v146
    %v506 = vunpack.c.l.b16 %v147
    %v507 = vunpack.c.h.b16 %v147
    %v508 = vunpack.c.l.b16 %v148
    %v509 = vunpack.c.l.b16 %v149
    %v510 = vunpack.c.h.b16 %v149
    %v511 = vunpack.c.l.b16 %v150
    %v512 = vunpack.c.l.b16 %v151
    %v513 = vunpack.c.h.b16 %v151
    %v514 = vunpack.c.l.b16 %v152
    %v515 = vunpack.c.l.b16 %v153
    %v516 = vunpack.c.h.b16 %v153
    %v517 = vunpack.c.l.b16 %v154
    %v518 = vpack.c.b16 %v329, %v326
    %v519 = vpack.c.b16 %v330, %v327
    %v520 = vpack.c.b16 %v331, %v328
    %v521 = vpack.c.b16 %v335, %v332
    %v522 = vpack.c.b16 %v336, %v333
    %v523 = vpack.c.b16 %v337, %v334
    %v524 = vpack.c.b16 %v341, %v338
    %v525 = vpack.c.b16 %v342, %v339
    %v526 = vpack.c.b16 %v343, %v340
    %v527 = vpack.c.b16 %v347, %v344
    %v528 = vpack.c.b16 %v348, %v345
    %v529 = vpack.c.b16 %v349, %v346
    %v530 = vpack.c.b16 %v353, %v350
    %v531 = vpack.c.b16 %v354, %v351
    %v532 = vpack.c.b16 %v355, %v352
    %v533 = vpack.c.b16 %v359, %v356
    %v534 = vpack.c.b16 %v360, %v357
    %v535 = vpack.c.b16 %v361, %v358
    %v536 = vpack.c.b16 %v365, %v362
    %v537 = vpack.c.b16 %v366, %v363
    %v538 = vpack.c.b16 %v367, %v364
    %v539 = vpack.c.b16 %v371, %v368
    %v540 = vpack.c.b16 %v372, %v369
    %v541 = vpack.c.b16 %v373, %v370
    %v542 = vpack.c.b16 %v377, %v374
    %v543 = vpack.c.b16 %v378, %v375
    %v544 = vpack.c.b16 %v379, %v376
    %v545 = vpack.c.b16 %v383, %v380
    %v546 = vpack.c.b16 %v384, %v381
    %v547 = vpack.c.b16 %v385, %v382
    %v548 = vpack.c.b16 %v389, %v386
    %v549 = vpack.c.b16 %v390, %v387
    %v550 = vpack.c.b16 %v391, %v388
    %v551 = vpack.c.b16 %v395, %v392
    %v552 = vpack.c.b16 %v396, %v393
    %v553 = vpack.c.b16 %v397, %v394
    %v554 = vpack.c.b16 %v401, %v398
    %v555 = vpack.c.b16 %v402, %v399
    %v556 = vpack.c.b16 %v403, %v400
    %v557 = vpack.c.b16 %v407, %v404
    %v558 = vpack.c.b16 %v408, %v405
    %v559 = vpack.c.b16 %v409, %v406
    %v560 = vpack.c.b16 %v413, %v410
    %v561 = vpack.c.b16 %v414, %v411
    %v562 = vpack.c.b16 %v415, %v412
    %v563 = vpack.c.b16 %v419, %v416
    %v564 = vpack.c.b16 %v420, %v417
    %v565 = vpack.c.b16 %v421, %v418
    %v566 = vpack.c.b16 %v425, %v422
    %v567 = vpack.c.b16 %v426, %v423
    %v568 = vpack.c.b16 %v427, %v424
    %v569 = vpack.c.b16 %v431, %v428
    %v570 = vpack.c.b16 %v432, %v429
    %v571 = vpack.c.b16 %v433, %v430
    %v572 = vpack.c.b16 %v437, %v434
    %v573 = vpack.c.b16 %v438, %v435
    %v574 = vpack.c.b16 %v439, %v436
    %v575 = vpack.c.b16 %v443, %v440
    %v576 = vpack.c.b16 %v444, %v441
    %v577 = vpack.c.b16 %v445, %v442
    %v578 = vpack.c.b16 %v449, %v446
    %v579 = vpack.c.b16 %v450, %v447
    %v580 = vpack.c.b16 %v451, %v448
    %v581 = vpack.c.b16 %v455, %v452
    %v582 = vpack.c.b16 %v456, %v453
    %v583 = vpack.c.b16 %v457, %v454
    %v584 = vpack.c.b16 %v461, %v458
    %v585 = vpack.c.b16 %v462, %v459
    %v586 = vpack.c.b16 %v463, %v460
    %v587 = vpack.c.b16 %v467, %v464
    %v588 = vpack.c.b16 %v468, %v465
    %v589 = vpack.c.b16 %v469, %v466
    %v590 = vpack.c.b16 %v473, %v470
    %v591 = vpack.c.b16 %v474, %v471
    %v592 = vpack.c.b16 %v475, %v472
    %v593 = vpack.c.b16 %v479, %v476
    %v594 = vpack.c.b16 %v480, %v477
    %v595 = vpack.c.b16 %v481, %v478
    %v596 = vpack.c.b16 %v485, %v482
    %v597 = vpack.c.b16 %v486, %v483
    %v598 = vpack.c.b16 %v487, %v484
    %v599 = vpack.c.b16 %v491, %v488
    %v600 = vpack.c.b16 %v492, %v489
    %v601 = vpack.c.b16 %v493, %v490
    %v602 = vpack.c.b16 %v497, %v494
    %v603 = vpack.c.b16 %v498, %v495
    %v604 = vpack.c.b16 %v499, %v496
    %v605 = vpack.c.b16 %v503, %v500
    %v606 = vpack.c.b16 %v504, %v501
    %v607 = vpack.c.b16 %v505, %v502
    %v608 = vpack.c.b16 %v509, %v506
    %v609 = vpack.c.b16 %v510, %v507
    %v610 = vpack.c.b16 %v511, %v508
    %v611 = vpack.c.b16 %v515, %v512
    %v612 = vpack.c.b16 %v516, %v513
    %v613 = vpack.c.b16 %v517, %v514
    %v714 = vunpack.c.l.b16 %v155
    %v715 = vunpack.c.l.b16 %v156
    %v716 = vunpack.c.l.b16 %v157
    %v717 = vunpack.c.l.b16 %v158
    %v718 = vunpack.c.l.b16 %v159
    %v719 = vunpack.c.l.b16 %v160
    %v720 = vunpack.c.l.b16 %v161
    %v721 = vunpack.c.l.b16 %v162
    %v722 = vunpack.c.l.b16 %v163
    %v723 = vunpack.c.l.b16 %v164
    %v724 = vunpack.c.l.b16 %v165
    %v725 = vunpack.c.l.b16 %v166
    %v726 = vunpack.c.l.b16 %v167
    %v727 = vunpack.c.l.b16 %v168
    %v728 = vunpack.c.l.b16 %v169
    %v729 = vunpack.c.l.b16 %v170
    %v730 = vunpack.c.l.b16 %v171
    %v731 = vunpack.c.l.b16 %v172
    %v732 = vunpack.c.l.b16 %v173
    %v733 = vunpack.c.l.b16 %v174
    %v734 = vunpack.c.l.b16 %v175
    %v735 = vunpack.c.l.b16 %v176
    %v736 = vunpack.c.l.b16 %v177
    %v737 = vunpack.c.l.b16 %v178
    %v738 = vunpack.c.l.b16 %v179
    %v739 = vunpack.c.l.b16 %v180
    %v740 = vunpack.c.l.b16 %v181
    %v741 = vunpack.c.l.b16 %v182
    %v742 = vunpack.c.l.b16 %v183
    %v743 = vunpack.c.l.b16 %v184
    %v744 = vunpack.c.l.b16 %v185
    %v745 = vunpack.c.l.b16 %v186
    %v746 = vunpack.c.l.b16 %v187
    %v747 = vunpack.c.l.b16 %v188
    %v748 = vunpack.c.l.b16 %v189
    %v749 = vunpack.c.l.b16 %v190
    %v750 = vpack.c.b16 %v715, %v714
    %v751 = vpack.c.b16 %v717, %v716
    %v752 = vpack.c.b16 %v719, %v718
    %v753 = vpack.c.b16 %v721, %v720
    %v754 = vpack.c.b16 %v723, %v722
    %v755 = vpack.c.b16 %v725, %v724
    %v756 = vpack.c.b16 %v727, %v726
    %v757 = vpack.c.b16 %v729, %v728
    %v758 = vpack.c.b16 %v731, %v730
    %v759 = vpack.c.b16 %v733, %v732
    %v760 = vpack.c.b16 %v735, %v734
    %v761 = vpack.c.b16 %v737, %v736
    %v762 = vpack.c.b16 %v739, %v738
    %v763 = vpack.c.b16 %v741, %v740
    %v764 = vpack.c.b16 %v743, %v742
    %v765 = vpack.c.b16 %v745, %v744
    %v766 = vpack.c.b16 %v747, %v746
    %v767 = vpack.c.b16 %v749, %v748
    %vm786 = vcmask 261120
    %v788 = vsel %vm786, %v520, 0
    %v791 = vsel %vm786, %v523, 0
    %v794 = vsel %vm786, %v526, 0
    %v797 = vsel %vm786, %v529, 0
    %v800 = vsel %vm786, %v532, 0
    %v803 = vsel %vm786, %v535, 0
    %v806 = vsel %vm786, %v538, 0
    %v809 = vsel %vm786, %v541, 0
    %v812 = vsel %vm786, %v544, 0
    %v815 = vsel %vm786, %v547, 0
    %v818 = vsel %vm786, %v550, 0
    %v821 = vsel %vm786, %v553, 0
    %v824 = vsel %vm786, %v556, 0
    %v827 = vsel %vm786, %v559, 0
    %v830 = vsel %vm786, %v562, 0
    %v833 = vsel %vm786, %v565, 0
    %v836 = vsel %vm786, %v568, 0
    %v839 = vsel %vm786, %v571, 0
    %v842 = vsel %vm786, %v574, 0
    %v845 = vsel %vm786, %v577, 0
    %v848 = vsel %vm786, %v580, 0
    %v851 = vsel %vm786, %v583, 0
    %v854 = vsel %vm786, %v586, 0
    %v857 = vsel %vm786, %v589, 0
    %v860 = vsel %vm786, %v592, 0
    %v863 = vsel %vm786, %v595, 0
    %v866 = vsel %vm786, %v598, 0
    %v869 = vsel %vm786, %v601, 0
    %v872 = vsel %vm786, %v604, 0
    %v875 = vsel %vm786, %v607, 0
    %v878 = vsel %vm786, %v610, 0
    %v881 = vsel %vm786, %v613, 0
    %883 = vmatprep.subr.bf16.mxu0 0
    %884 = vmatpush1.bf16.msra.mxu0 %v750
    %885 = vmatprep.subr.bf16.mxu0 0
    %886 = vmatpush1.bf16.msra.mxu0 %v751
    %887 = vmatprep.subr.bf16.mxu0 0
    %888 = vmatpush1.bf16.msra.mxu0 %v752
    %889 = vmatprep.subr.bf16.mxu0 0
    %890 = vmatpush1.bf16.msra.mxu0 %v753
    %891 = vmatprep.subr.bf16.mxu0 0
    %892 = vmatpush1.bf16.msra.mxu0 %v754
    %893 = vmatprep.subr.bf16.mxu0 0
    %894 = vmatpush1.bf16.msra.mxu0 %v755
    %895 = vmatprep.subr.bf16.mxu0 0
    %896 = vmatpush1.bf16.msra.mxu0 %v756
    %897 = vmatprep.subr.bf16.mxu0 0
    %898 = vmatpush1.bf16.msra.mxu0 %v757
    %899 = vmatprep.subr.bf16.mxu0 0
    %900 = vmatpush1.bf16.msra.mxu0 %v758
    %901 = vmatprep.subr.bf16.mxu0 0
    %902 = vmatpush1.bf16.msra.mxu0 %v759
    %903 = vmatprep.subr.bf16.mxu0 0
    %904 = vmatpush1.bf16.msra.mxu0 %v760
    %905 = vmatprep.subr.bf16.mxu0 0
    %906 = vmatpush1.bf16.msra.mxu0 %v761
    %907 = vmatprep.subr.bf16.mxu0 0
    %908 = vmatpush1.bf16.msra.mxu0 %v762
    %909 = vmatprep.subr.bf16.mxu0 0
    %910 = vmatpush1.bf16.msra.mxu0 %v763
    %911 = vmatprep.subr.bf16.mxu0 0
    %912 = vmatpush1.bf16.msra.mxu0 %v764
    %913 = vmatprep.subr.bf16.mxu0 0
    %914 = vmatpush1.bf16.msra.mxu0 %v765
    %915 = vmatprep.mubr.bf16.mxu0 %v519
    %916 = vmatmul.mubr.bf16.gmra.mrb[0].mxu0 %v518
    %v917 = vpop.f32.mrb[0].mxu0
    %v918 = vadd.f32 %v196, %v917
    %v919 = vpop.f32.mrb[0].mxu0
    %v920 = vpop.f32.mrb[0].mxu0
    %v921 = vadd.f32 %v196, %v920
    %v922 = vpop.f32.mrb[0].mxu0
    %923 = vmatprep.mubr.bf16.mxu0 %v522
    %924 = vmatmul.mubr.bf16.gmra.mrb[0].mxu0 %v521
    %v925 = vpop.f32.mrb[0].mxu0
    %v926 = vadd.f32 %v196, %v925
    %v927 = vpop.f32.mrb[0].mxu0
    %v928 = vpop.f32.mrb[0].mxu0
    %v929 = vadd.f32 %v196, %v928
    %v930 = vpop.f32.mrb[0].mxu0
    %931 = vmatprep.mubr.bf16.mxu0 %v525
    %932 = vmatmul.mubr.bf16.gmra.mrb[0].mxu0 %v524
    %v933 = vpop.f32.mrb[0].mxu0
    %v934 = vadd.f32 %v196, %v933
    %v935 = vpop.f32.mrb[0].mxu0
    %v936 = vpop.f32.mrb[0].mxu0
    %v937 = vadd.f32 %v196, %v936
    %v938 = vpop.f32.mrb[0].mxu0
    %939 = vmatprep.mubr.bf16.mxu0 %v528
    %940 = vmatmul.mubr.bf16.gmra.mrb[0].mxu0 %v527
    %v941 = vpop.f32.mrb[0].mxu0
    %v942 = vadd.f32 %v196, %v941
    %v943 = vpop.f32.mrb[0].mxu0
    %v944 = vpop.f32.mrb[0].mxu0
    %v945 = vadd.f32 %v196, %v944
    %v946 = vpop.f32.mrb[0].mxu0
    %947 = vmatprep.mubr.bf16.mxu0 %v531
    %948 = vmatmul.mubr.bf16.gmra.mrb[0].mxu0 %v530
    %v949 = vpop.f32.mrb[0].mxu0
    %v950 = vadd.f32 %v196, %v949
    %v951 = vpop.f32.mrb[0].mxu0
    %v952 = vpop.f32.mrb[0].mxu0
    %v953 = vadd.f32 %v196, %v952
    %v954 = vpop.f32.mrb[0].mxu0
    %955 = vmatprep.mubr.bf16.mxu0 %v534
    %956 = vmatmul.mubr.bf16.gmra.mrb[0].mxu0 %v533
    %v957 = vpop.f32.mrb[0].mxu0
    %v958 = vadd.f32 %v196, %v957
    %v959 = vpop.f32.mrb[0].mxu0
    %v960 = vpop.f32.mrb[0].mxu0
    %v961 = vadd.f32 %v196, %v960
    %v962 = vpop.f32.mrb[0].mxu0
    %963 = vmatprep.mubr.bf16.mxu0 %v537
    %964 = vmatmul.mubr.bf16.gmra.mrb[0].mxu0 %v536
    %v965 = vpop.f32.mrb[0].mxu0
    %v966 = vadd.f32 %v196, %v965
    %v967 = vpop.f32.mrb[0].mxu0
    %v968 = vpop.f32.mrb[0].mxu0
    %v969 = vadd.f32 %v196, %v968
    %v970 = vpop.f32.mrb[0].mxu0
    %971 = vmatprep.mubr.bf16.mxu0 %v540
    %972 = vmatmul.mubr.bf16.gmra.mrb[0].mxu0 %v539
    %v973 = vpop.f32.mrb[0].mxu0
    %v974 = vadd.f32 %v196, %v973
    %v975 = vpop.f32.mrb[0].mxu0
    %v976 = vpop.f32.mrb[0].mxu0
    %v977 = vadd.f32 %v196, %v976
    %v978 = vpop.f32.mrb[0].mxu0
    %979 = vmatprep.mubr.bf16.mxu0 %v543
    %980 = vmatmul.mubr.bf16.gmra.mrb[0].mxu0 %v542
    %v981 = vpop.f32.mrb[0].mxu0
    %v982 = vadd.f32 %v196, %v981
    %v983 = vpop.f32.mrb[0].mxu0
    %v984 = vpop.f32.mrb[0].mxu0
    %v985 = vadd.f32 %v196, %v984
    %v986 = vpop.f32.mrb[0].mxu0
    %987 = vmatprep.mubr.bf16.mxu0 %v546
    %988 = vmatmul.mubr.bf16.gmra.mrb[0].mxu0 %v545
    %v989 = vpop.f32.mrb[0].mxu0
    %v990 = vadd.f32 %v196, %v989
    %v991 = vpop.f32.mrb[0].mxu0
    %v992 = vpop.f32.mrb[0].mxu0
    %v993 = vadd.f32 %v196, %v992
    %v994 = vpop.f32.mrb[0].mxu0
    %995 = vmatprep.mubr.bf16.mxu0 %v549
    %996 = vmatmul.mubr.bf16.gmra.mrb[0].mxu0 %v548
    %v997 = vpop.f32.mrb[0].mxu0
    %v998 = vadd.f32 %v196, %v997
    %v999 = vpop.f32.mrb[0].mxu0
    %v1000 = vpop.f32.mrb[0].mxu0
    %v1001 = vadd.f32 %v196, %v1000
    %v1002 = vpop.f32.mrb[0].mxu0
    %1003 = vmatprep.mubr.bf16.mxu0 %v552
    %1004 = vmatmul.mubr.bf16.gmra.mrb[0].mxu0 %v551
    %v1005 = vpop.f32.mrb[0].mxu0
    %v1006 = vadd.f32 %v196, %v1005
    %v1007 = vpop.f32.mrb[0].mxu0
    %v1008 = vpop.f32.mrb[0].mxu0
    %v1009 = vadd.f32 %v196, %v1008
    %v1010 = vpop.f32.mrb[0].mxu0
    %1011 = vmatprep.mubr.bf16.mxu0 %v555
    %1012 = vmatmul.mubr.bf16.gmra.mrb[0].mxu0 %v554
    %v1013 = vpop.f32.mrb[0].mxu0
    %v1014 = vadd.f32 %v196, %v1013
    %v1015 = vpop.f32.mrb[0].mxu0
    %v1016 = vpop.f32.mrb[0].mxu0
    %v1017 = vadd.f32 %v196, %v1016
    %v1018 = vpop.f32.mrb[0].mxu0
    %1019 = vmatprep.mubr.bf16.mxu0 %v558
    %1020 = vmatmul.mubr.bf16.gmra.mrb[0].mxu0 %v557
    %v1021 = vpop.f32.mrb[0].mxu0
    %v1022 = vadd.f32 %v196, %v1021
    %v1023 = vpop.f32.mrb[0].mxu0
    %v1024 = vpop.f32.mrb[0].mxu0
    %v1025 = vadd.f32 %v196, %v1024
    %v1026 = vpop.f32.mrb[0].mxu0
    %1027 = vmatprep.mubr.bf16.mxu0 %v561
    %1028 = vmatmul.mubr.bf16.gmra.mrb[0].mxu0 %v560
    %v1029 = vpop.f32.mrb[0].mxu0
    %v1030 = vadd.f32 %v196, %v1029
    %v1031 = vpop.f32.mrb[0].mxu0
    %v1032 = vpop.f32.mrb[0].mxu0
    %v1033 = vadd.f32 %v196, %v1032
    %v1034 = vpop.f32.mrb[0].mxu0
    %1035 = vmatprep.mubr.bf16.mxu0 %v564
    %1036 = vmatmul.mubr.bf16.gmra.mrb[0].mxu0 %v563
    %v1037 = vpop.f32.mrb[0].mxu0
    %v1038 = vadd.f32 %v196, %v1037
    %v1039 = vpop.f32.mrb[0].mxu0
    %v1040 = vpop.f32.mrb[0].mxu0
    %v1041 = vadd.f32 %v196, %v1040
    %v1042 = vpop.f32.mrb[0].mxu0
    %1043 = vmatprep.mubr.bf16.mxu0 %v567
    %1044 = vmatmul.mubr.bf16.gmra.mrb[0].mxu0 %v566
    %v1045 = vpop.f32.mrb[0].mxu0
    %v1046 = vadd.f32 %v196, %v1045
    %v1047 = vpop.f32.mrb[0].mxu0
    %v1048 = vpop.f32.mrb[0].mxu0
    %v1049 = vadd.f32 %v196, %v1048
    %v1050 = vpop.f32.mrb[0].mxu0
    %1051 = vmatprep.mubr.bf16.mxu0 %v570
    %1052 = vmatmul.mubr.bf16.gmra.mrb[0].mxu0 %v569
    %v1053 = vpop.f32.mrb[0].mxu0
    %v1054 = vadd.f32 %v196, %v1053
    %v1055 = vpop.f32.mrb[0].mxu0
    %v1056 = vpop.f32.mrb[0].mxu0
    %v1057 = vadd.f32 %v196, %v1056
    %v1058 = vpop.f32.mrb[0].mxu0
    %1059 = vmatprep.mubr.bf16.mxu0 %v573
    %1060 = vmatmul.mubr.bf16.gmra.mrb[0].mxu0 %v572
    %v1061 = vpop.f32.mrb[0].mxu0
    %v1062 = vadd.f32 %v196, %v1061
    %v1063 = vpop.f32.mrb[0].mxu0
    %v1064 = vpop.f32.mrb[0].mxu0
    %v1065 = vadd.f32 %v196, %v1064
    %v1066 = vpop.f32.mrb[0].mxu0
    %1067 = vmatprep.mubr.bf16.mxu0 %v576
    %1068 = vmatmul.mubr.bf16.gmra.mrb[0].mxu0 %v575
    %v1069 = vpop.f32.mrb[0].mxu0
    %v1070 = vadd.f32 %v196, %v1069
    %v1071 = vpop.f32.mrb[0].mxu0
    %v1072 = vpop.f32.mrb[0].mxu0
    %v1073 = vadd.f32 %v196, %v1072
    %v1074 = vpop.f32.mrb[0].mxu0
    %1075 = vmatprep.mubr.bf16.mxu0 %v579
    %1076 = vmatmul.mubr.bf16.gmra.mrb[0].mxu0 %v578
    %v1077 = vpop.f32.mrb[0].mxu0
    %v1078 = vadd.f32 %v196, %v1077
    %v1079 = vpop.f32.mrb[0].mxu0
    %v1080 = vpop.f32.mrb[0].mxu0
    %v1081 = vadd.f32 %v196, %v1080
    %v1082 = vpop.f32.mrb[0].mxu0
    %1083 = vmatprep.mubr.bf16.mxu0 %v582
    %1084 = vmatmul.mubr.bf16.gmra.mrb[0].mxu0 %v581
    %v1085 = vpop.f32.mrb[0].mxu0
    %v1086 = vadd.f32 %v196, %v1085
    %v1087 = vpop.f32.mrb[0].mxu0
    %v1088 = vpop.f32.mrb[0].mxu0
    %v1089 = vadd.f32 %v196, %v1088
    %v1090 = vpop.f32.mrb[0].mxu0
    %1091 = vmatprep.mubr.bf16.mxu0 %v585
    %1092 = vmatmul.mubr.bf16.gmra.mrb[0].mxu0 %v584
    %v1093 = vpop.f32.mrb[0].mxu0
    %v1094 = vadd.f32 %v196, %v1093
    %v1095 = vpop.f32.mrb[0].mxu0
    %v1096 = vpop.f32.mrb[0].mxu0
    %v1097 = vadd.f32 %v196, %v1096
    %v1098 = vpop.f32.mrb[0].mxu0
    %1099 = vmatprep.mubr.bf16.mxu0 %v588
    %1100 = vmatmul.mubr.bf16.gmra.mrb[0].mxu0 %v587
    %v1101 = vpop.f32.mrb[0].mxu0
    %v1102 = vadd.f32 %v196, %v1101
    %v1103 = vpop.f32.mrb[0].mxu0
    %v1104 = vpop.f32.mrb[0].mxu0
    %v1105 = vadd.f32 %v196, %v1104
    %v1106 = vpop.f32.mrb[0].mxu0
    %1107 = vmatprep.mubr.bf16.mxu0 %v591
    %1108 = vmatmul.mubr.bf16.gmra.mrb[0].mxu0 %v590
    %v1109 = vpop.f32.mrb[0].mxu0
    %v1110 = vadd.f32 %v196, %v1109
    %v1111 = vpop.f32.mrb[0].mxu0
    %v1112 = vpop.f32.mrb[0].mxu0
    %v1113 = vadd.f32 %v196, %v1112
    %v1114 = vpop.f32.mrb[0].mxu0
    %1115 = vmatprep.mubr.bf16.mxu0 %v594
    %1116 = vmatmul.mubr.bf16.gmra.mrb[0].mxu0 %v593
    %v1117 = vpop.f32.mrb[0].mxu0
    %v1118 = vadd.f32 %v196, %v1117
    %v1119 = vpop.f32.mrb[0].mxu0
    %v1120 = vpop.f32.mrb[0].mxu0
    %v1121 = vadd.f32 %v196, %v1120
    %v1122 = vpop.f32.mrb[0].mxu0
    %1123 = vmatprep.mubr.bf16.mxu0 %v597
    %1124 = vmatmul.mubr.bf16.gmra.mrb[0].mxu0 %v596
    %v1125 = vpop.f32.mrb[0].mxu0
    %v1126 = vadd.f32 %v196, %v1125
    %v1127 = vpop.f32.mrb[0].mxu0
    %v1128 = vpop.f32.mrb[0].mxu0
    %v1129 = vadd.f32 %v196, %v1128
    %v1130 = vpop.f32.mrb[0].mxu0
    %1131 = vmatprep.mubr.bf16.mxu0 %v600
    %1132 = vmatmul.mubr.bf16.gmra.mrb[0].mxu0 %v599
    %v1133 = vpop.f32.mrb[0].mxu0
    %v1134 = vadd.f32 %v196, %v1133
    %v1135 = vpop.f32.mrb[0].mxu0
    %v1136 = vpop.f32.mrb[0].mxu0
    %v1137 = vadd.f32 %v196, %v1136
    %v1138 = vpop.f32.mrb[0].mxu0
    %1139 = vmatprep.mubr.bf16.mxu0 %v603
    %1140 = vmatmul.mubr.bf16.gmra.mrb[0].mxu0 %v602
    %v1141 = vpop.f32.mrb[0].mxu0
    %v1142 = vadd.f32 %v196, %v1141
    %v1143 = vpop.f32.mrb[0].mxu0
    %v1144 = vpop.f32.mrb[0].mxu0
    %v1145 = vadd.f32 %v196, %v1144
    %v1146 = vpop.f32.mrb[0].mxu0
    %1147 = vmatprep.mubr.bf16.mxu0 %v606
    %1148 = vmatmul.mubr.bf16.gmra.mrb[0].mxu0 %v605
    %v1149 = vpop.f32.mrb[0].mxu0
    %v1150 = vadd.f32 %v196, %v1149
    %v1151 = vpop.f32.mrb[0].mxu0
    %v1152 = vpop.f32.mrb[0].mxu0
    %v1153 = vadd.f32 %v196, %v1152
    %v1154 = vpop.f32.mrb[0].mxu0
    %1155 = vmatprep.mubr.bf16.mxu0 %v609
    %1156 = vmatmul.mubr.bf16.gmra.mrb[0].mxu0 %v608
    %v1157 = vpop.f32.mrb[0].mxu0
    %v1158 = vadd.f32 %v196, %v1157
    %v1159 = vpop.f32.mrb[0].mxu0
    %v1160 = vpop.f32.mrb[0].mxu0
    %v1161 = vadd.f32 %v196, %v1160
    %v1162 = vpop.f32.mrb[0].mxu0
    %1163 = vmatprep.mubr.bf16.mxu0 %v612
    %1164 = vmatmul.mubr.bf16.gmra.mrb[0].mxu0 %v611
    %v1165 = vpop.f32.mrb[0].mxu0
    %v1166 = vadd.f32 %v196, %v1165
    %v1167 = vpop.f32.mrb[0].mxu0
    %v1168 = vpop.f32.mrb[0].mxu0
    %v1169 = vadd.f32 %v196, %v1168
    %v1170 = vpop.f32.mrb[0].mxu0
    %1171 = vdwg.mxu0
    %1172 = vmatprep.subr.bf16.mxu0 0
    %1173 = vmatpush1.bf16.msra.mxu0 %v766
    %1174 = vmatprep.subr.bf16.mxu0 0
    %1175 = vmatpush1.bf16.msra.mxu0 %v767
    %1176 = vmatprep.subr.bf16.mxu0 0
    %1177 = vmatpush1.bf16.msra.mxu0 0
    %1178 = vmatprep.subr.bf16.mxu0 0
    %1179 = vmatpush1.bf16.msra.mxu0 0
    %1180 = vmatprep.subr.bf16.mxu0 0
    %1181 = vmatpush1.bf16.msra.mxu0 0
    %1182 = vmatprep.subr.bf16.mxu0 0
    %1183 = vmatpush1.bf16.msra.mxu0 0
    %1184 = vmatprep.subr.bf16.mxu0 0
    %1185 = vmatpush1.bf16.msra.mxu0 0
    %1186 = vmatprep.subr.bf16.mxu0 0
    %1187 = vmatpush1.bf16.msra.mxu0 0
    %1188 = vmatprep.subr.bf16.mxu0 0
    %1189 = vmatpush1.bf16.msra.mxu0 0
    %1190 = vmatprep.subr.bf16.mxu0 0
    %1191 = vmatpush1.bf16.msra.mxu0 0
    %1192 = vmatprep.subr.bf16.mxu0 0
    %1193 = vmatpush1.bf16.msra.mxu0 0
    %1194 = vmatprep.subr.bf16.mxu0 0
    %1195 = vmatpush1.bf16.msra.mxu0 0
    %1196 = vmatprep.subr.bf16.mxu0 0
    %1197 = vmatpush1.bf16.msra.mxu0 0
    %1198 = vmatprep.subr.bf16.mxu0 0
    %1199 = vmatpush1.bf16.msra.mxu0 0
    %1200 = vmatprep.subr.bf16.mxu0 0
    %1201 = vmatpush1.bf16.msra.mxu0 0
    %1202 = vmatprep.subr.bf16.mxu0 0
    %1203 = vmatpush1.bf16.msra.mxu0 0
    %1204 = vmatprep.mubr.bf16.mxu0 0
    %1205 = vmatmul.mubr.bf16.gmra.mrb[0].mxu0 %v788
    %v1206 = vpop.f32.mrb[0].mxu0
    %v1207 = vadd.f32 %v918, %v1206
    %v1208 = vpop.f32.mrb[0].mxu0
    %v1209 = vpop.f32.mrb[0].mxu0
    %v1210 = vadd.f32 %v921, %v1209
    %v1211 = vpop.f32.mrb[0].mxu0
    %1212 = vmatprep.mubr.bf16.mxu0 0
    %1213 = vmatmul.mubr.bf16.gmra.mrb[0].mxu0 %v791
    %v1214 = vpop.f32.mrb[0].mxu0
    %v1215 = vadd.f32 %v926, %v1214
    %v1216 = vpop.f32.mrb[0].mxu0
    %v1217 = vpop.f32.mrb[0].mxu0
    %v1218 = vadd.f32 %v929, %v1217
    %v1219 = vpop.f32.mrb[0].mxu0
    %1220 = vmatprep.mubr.bf16.mxu0 0
    %1221 = vmatmul.mubr.bf16.gmra.mrb[0].mxu0 %v794
    %v1222 = vpop.f32.mrb[0].mxu0
    %v1223 = vadd.f32 %v934, %v1222
    %v1224 = vpop.f32.mrb[0].mxu0
    %v1225 = vpop.f32.mrb[0].mxu0
    %v1226 = vadd.f32 %v937, %v1225
    %v1227 = vpop.f32.mrb[0].mxu0
    %1228 = vmatprep.mubr.bf16.mxu0 0
    %1229 = vmatmul.mubr.bf16.gmra.mrb[0].mxu0 %v797
    %v1230 = vpop.f32.mrb[0].mxu0
    %v1231 = vadd.f32 %v942, %v1230
    %v1232 = vpop.f32.mrb[0].mxu0
    %v1233 = vpop.f32.mrb[0].mxu0
    %v1234 = vadd.f32 %v945, %v1233
    %v1235 = vpop.f32.mrb[0].mxu0
    %1236 = vmatprep.mubr.bf16.mxu0 0
    %1237 = vmatmul.mubr.bf16.gmra.mrb[0].mxu0 %v800
    %v1238 = vpop.f32.mrb[0].mxu0
    %v1239 = vadd.f32 %v950, %v1238
    %v1240 = vpop.f32.mrb[0].mxu0
    %v1241 = vpop.f32.mrb[0].mxu0
    %v1242 = vadd.f32 %v953, %v1241
    %v1243 = vpop.f32.mrb[0].mxu0
    %1244 = vmatprep.mubr.bf16.mxu0 0
    %1245 = vmatmul.mubr.bf16.gmra.mrb[0].mxu0 %v803
    %v1246 = vpop.f32.mrb[0].mxu0
    %v1247 = vadd.f32 %v958, %v1246
    %v1248 = vpop.f32.mrb[0].mxu0
    %v1249 = vpop.f32.mrb[0].mxu0
    %v1250 = vadd.f32 %v961, %v1249
    %v1251 = vpop.f32.mrb[0].mxu0
    %1252 = vmatprep.mubr.bf16.mxu0 0
    %1253 = vmatmul.mubr.bf16.gmra.mrb[0].mxu0 %v806
    %v1254 = vpop.f32.mrb[0].mxu0
    %v1255 = vadd.f32 %v966, %v1254
    %v1256 = vpop.f32.mrb[0].mxu0
    %v1257 = vpop.f32.mrb[0].mxu0
    %v1258 = vadd.f32 %v969, %v1257
    %v1259 = vpop.f32.mrb[0].mxu0
    %1260 = vmatprep.mubr.bf16.mxu0 0
    %1261 = vmatmul.mubr.bf16.gmra.mrb[0].mxu0 %v809
    %v1262 = vpop.f32.mrb[0].mxu0
    %v1263 = vadd.f32 %v974, %v1262
    %v1264 = vpop.f32.mrb[0].mxu0
    %v1265 = vpop.f32.mrb[0].mxu0
    %v1266 = vadd.f32 %v977, %v1265
    %v1267 = vpop.f32.mrb[0].mxu0
    %1268 = vmatprep.mubr.bf16.mxu0 0
    %1269 = vmatmul.mubr.bf16.gmra.mrb[0].mxu0 %v812
    %v1270 = vpop.f32.mrb[0].mxu0
    %v1271 = vadd.f32 %v982, %v1270
    %v1272 = vpop.f32.mrb[0].mxu0
    %v1273 = vpop.f32.mrb[0].mxu0
    %v1274 = vadd.f32 %v985, %v1273
    %v1275 = vpop.f32.mrb[0].mxu0
    %1276 = vmatprep.mubr.bf16.mxu0 0
    %1277 = vmatmul.mubr.bf16.gmra.mrb[0].mxu0 %v815
    %v1278 = vpop.f32.mrb[0].mxu0
    %v1279 = vadd.f32 %v990, %v1278
    %v1280 = vpop.f32.mrb[0].mxu0
    %v1281 = vpop.f32.mrb[0].mxu0
    %v1282 = vadd.f32 %v993, %v1281
    %v1283 = vpop.f32.mrb[0].mxu0
    %1284 = vmatprep.mubr.bf16.mxu0 0
    %1285 = vmatmul.mubr.bf16.gmra.mrb[0].mxu0 %v818
    %v1286 = vpop.f32.mrb[0].mxu0
    %v1287 = vadd.f32 %v998, %v1286
    %v1288 = vpop.f32.mrb[0].mxu0
    %v1289 = vpop.f32.mrb[0].mxu0
    %v1290 = vadd.f32 %v1001, %v1289
    %v1291 = vpop.f32.mrb[0].mxu0
    %1292 = vmatprep.mubr.bf16.mxu0 0
    %1293 = vmatmul.mubr.bf16.gmra.mrb[0].mxu0 %v821
    %v1294 = vpop.f32.mrb[0].mxu0
    %v1295 = vadd.f32 %v1006, %v1294
    %v1296 = vpop.f32.mrb[0].mxu0
    %v1297 = vpop.f32.mrb[0].mxu0
    %v1298 = vadd.f32 %v1009, %v1297
    %v1299 = vpop.f32.mrb[0].mxu0
    %1300 = vmatprep.mubr.bf16.mxu0 0
    %1301 = vmatmul.mubr.bf16.gmra.mrb[0].mxu0 %v824
    %v1302 = vpop.f32.mrb[0].mxu0
    %v1303 = vadd.f32 %v1014, %v1302
    %v1304 = vpop.f32.mrb[0].mxu0
    %v1305 = vpop.f32.mrb[0].mxu0
    %v1306 = vadd.f32 %v1017, %v1305
    %v1307 = vpop.f32.mrb[0].mxu0
    %1308 = vmatprep.mubr.bf16.mxu0 0
    %1309 = vmatmul.mubr.bf16.gmra.mrb[0].mxu0 %v827
    %v1310 = vpop.f32.mrb[0].mxu0
    %v1311 = vadd.f32 %v1022, %v1310
    %v1312 = vpop.f32.mrb[0].mxu0
    %v1313 = vpop.f32.mrb[0].mxu0
    %v1314 = vadd.f32 %v1025, %v1313
    %v1315 = vpop.f32.mrb[0].mxu0
    %1316 = vmatprep.mubr.bf16.mxu0 0
    %1317 = vmatmul.mubr.bf16.gmra.mrb[0].mxu0 %v830
    %v1318 = vpop.f32.mrb[0].mxu0
    %v1319 = vadd.f32 %v1030, %v1318
    %v1320 = vpop.f32.mrb[0].mxu0
    %v1321 = vpop.f32.mrb[0].mxu0
    %v1322 = vadd.f32 %v1033, %v1321
    %v1323 = vpop.f32.mrb[0].mxu0
    %1324 = vmatprep.mubr.bf16.mxu0 0
    %1325 = vmatmul.mubr.bf16.gmra.mrb[0].mxu0 %v833
    %v1326 = vpop.f32.mrb[0].mxu0
    %v1327 = vadd.f32 %v1038, %v1326
    %v1328 = vpop.f32.mrb[0].mxu0
    %v1329 = vpop.f32.mrb[0].mxu0
    %v1330 = vadd.f32 %v1041, %v1329
    %v1331 = vpop.f32.mrb[0].mxu0
    %1332 = vmatprep.mubr.bf16.mxu0 0
    %1333 = vmatmul.mubr.bf16.gmra.mrb[0].mxu0 %v836
    %v1334 = vpop.f32.mrb[0].mxu0
    %v1335 = vadd.f32 %v1046, %v1334
    %v1336 = vpop.f32.mrb[0].mxu0
    %v1337 = vpop.f32.mrb[0].mxu0
    %v1338 = vadd.f32 %v1049, %v1337
    %v1339 = vpop.f32.mrb[0].mxu0
    %1340 = vmatprep.mubr.bf16.mxu0 0
    %1341 = vmatmul.mubr.bf16.gmra.mrb[0].mxu0 %v839
    %v1342 = vpop.f32.mrb[0].mxu0
    %v1343 = vadd.f32 %v1054, %v1342
    %v1344 = vpop.f32.mrb[0].mxu0
    %v1345 = vpop.f32.mrb[0].mxu0
    %v1346 = vadd.f32 %v1057, %v1345
    %v1347 = vpop.f32.mrb[0].mxu0
    %1348 = vmatprep.mubr.bf16.mxu0 0
    %1349 = vmatmul.mubr.bf16.gmra.mrb[0].mxu0 %v842
    %v1350 = vpop.f32.mrb[0].mxu0
    %v1351 = vadd.f32 %v1062, %v1350
    %v1352 = vpop.f32.mrb[0].mxu0
    %v1353 = vpop.f32.mrb[0].mxu0
    %v1354 = vadd.f32 %v1065, %v1353
    %v1355 = vpop.f32.mrb[0].mxu0
    %1356 = vmatprep.mubr.bf16.mxu0 0
    %1357 = vmatmul.mubr.bf16.gmra.mrb[0].mxu0 %v845
    %v1358 = vpop.f32.mrb[0].mxu0
    %v1359 = vadd.f32 %v1070, %v1358
    %v1360 = vpop.f32.mrb[0].mxu0
    %v1361 = vpop.f32.mrb[0].mxu0
    %v1362 = vadd.f32 %v1073, %v1361
    %v1363 = vpop.f32.mrb[0].mxu0
    %1364 = vmatprep.mubr.bf16.mxu0 0
    %1365 = vmatmul.mubr.bf16.gmra.mrb[0].mxu0 %v848
    %v1366 = vpop.f32.mrb[0].mxu0
    %v1367 = vadd.f32 %v1078, %v1366
    %v1368 = vpop.f32.mrb[0].mxu0
    %v1369 = vpop.f32.mrb[0].mxu0
    %v1370 = vadd.f32 %v1081, %v1369
    %v1371 = vpop.f32.mrb[0].mxu0
    %1372 = vmatprep.mubr.bf16.mxu0 0
    %1373 = vmatmul.mubr.bf16.gmra.mrb[0].mxu0 %v851
    %v1374 = vpop.f32.mrb[0].mxu0
    %v1375 = vadd.f32 %v1086, %v1374
    %v1376 = vpop.f32.mrb[0].mxu0
    %v1377 = vpop.f32.mrb[0].mxu0
    %v1378 = vadd.f32 %v1089, %v1377
    %v1379 = vpop.f32.mrb[0].mxu0
    %1380 = vmatprep.mubr.bf16.mxu0 0
    %1381 = vmatmul.mubr.bf16.gmra.mrb[0].mxu0 %v854
    %v1382 = vpop.f32.mrb[0].mxu0
    %v1383 = vadd.f32 %v1094, %v1382
    %v1384 = vpop.f32.mrb[0].mxu0
    %v1385 = vpop.f32.mrb[0].mxu0
    %v1386 = vadd.f32 %v1097, %v1385
    %v1387 = vpop.f32.mrb[0].mxu0
    %1388 = vmatprep.mubr.bf16.mxu0 0
    %1389 = vmatmul.mubr.bf16.gmra.mrb[0].mxu0 %v857
    %v1390 = vpop.f32.mrb[0].mxu0
    %v1391 = vadd.f32 %v1102, %v1390
    %v1392 = vpop.f32.mrb[0].mxu0
    %v1393 = vpop.f32.mrb[0].mxu0
    %v1394 = vadd.f32 %v1105, %v1393
    %v1395 = vpop.f32.mrb[0].mxu0
    %1396 = vmatprep.mubr.bf16.mxu0 0
    %1397 = vmatmul.mubr.bf16.gmra.mrb[0].mxu0 %v860
    %v1398 = vpop.f32.mrb[0].mxu0
    %v1399 = vadd.f32 %v1110, %v1398
    %v1400 = vpop.f32.mrb[0].mxu0
    %v1401 = vpop.f32.mrb[0].mxu0
    %v1402 = vadd.f32 %v1113, %v1401
    %v1403 = vpop.f32.mrb[0].mxu0
    %1404 = vmatprep.mubr.bf16.mxu0 0
    %1405 = vmatmul.mubr.bf16.gmra.mrb[0].mxu0 %v863
    %v1406 = vpop.f32.mrb[0].mxu0
    %v1407 = vadd.f32 %v1118, %v1406
    %v1408 = vpop.f32.mrb[0].mxu0
    %v1409 = vpop.f32.mrb[0].mxu0
    %v1410 = vadd.f32 %v1121, %v1409
    %v1411 = vpop.f32.mrb[0].mxu0
    %1412 = vmatprep.mubr.bf16.mxu0 0
    %1413 = vmatmul.mubr.bf16.gmra.mrb[0].mxu0 %v866
    %v1414 = vpop.f32.mrb[0].mxu0
    %v1415 = vadd.f32 %v1126, %v1414
    %v1416 = vpop.f32.mrb[0].mxu0
    %v1417 = vpop.f32.mrb[0].mxu0
    %v1418 = vadd.f32 %v1129, %v1417
    %v1419 = vpop.f32.mrb[0].mxu0
    %1420 = vmatprep.mubr.bf16.mxu0 0
    %1421 = vmatmul.mubr.bf16.gmra.mrb[0].mxu0 %v869
    %v1422 = vpop.f32.mrb[0].mxu0
    %v1423 = vadd.f32 %v1134, %v1422
    %v1424 = vpop.f32.mrb[0].mxu0
    %v1425 = vpop.f32.mrb[0].mxu0
    %v1426 = vadd.f32 %v1137, %v1425
    %v1427 = vpop.f32.mrb[0].mxu0
    %1428 = vmatprep.mubr.bf16.mxu0 0
    %1429 = vmatmul.mubr.bf16.gmra.mrb[0].mxu0 %v872
    %v1430 = vpop.f32.mrb[0].mxu0
    %v1431 = vadd.f32 %v1142, %v1430
    %v1432 = vpop.f32.mrb[0].mxu0
    %v1433 = vpop.f32.mrb[0].mxu0
    %v1434 = vadd.f32 %v1145, %v1433
    %v1435 = vpop.f32.mrb[0].mxu0
    %1436 = vmatprep.mubr.bf16.mxu0 0
    %1437 = vmatmul.mubr.bf16.gmra.mrb[0].mxu0 %v875
    %v1438 = vpop.f32.mrb[0].mxu0
    %v1439 = vadd.f32 %v1150, %v1438
    %v1440 = vpop.f32.mrb[0].mxu0
    %v1441 = vpop.f32.mrb[0].mxu0
    %v1442 = vadd.f32 %v1153, %v1441
    %v1443 = vpop.f32.mrb[0].mxu0
    %1444 = vmatprep.mubr.bf16.mxu0 0
    %1445 = vmatmul.mubr.bf16.gmra.mrb[0].mxu0 %v878
    %v1446 = vpop.f32.mrb[0].mxu0
    %v1447 = vadd.f32 %v1158, %v1446
    %v1448 = vpop.f32.mrb[0].mxu0
    %v1449 = vpop.f32.mrb[0].mxu0
    %v1450 = vadd.f32 %v1161, %v1449
    %v1451 = vpop.f32.mrb[0].mxu0
    %1452 = vmatprep.mubr.bf16.mxu0 0
    %1453 = vmatmul.mubr.bf16.gmra.mrb[0].mxu0 %v881
    %v1454 = vpop.f32.mrb[0].mxu0
    %v1455 = vadd.f32 %v1166, %v1454
    %v1456 = vpop.f32.mrb[0].mxu0
    %v1457 = vpop.f32.mrb[0].mxu0
    %v1458 = vadd.f32 %v1169, %v1457
    %v1459 = vpop.f32.mrb[0].mxu0
    %1460 = vdwg.mxu0
    %vm1461 = vcmp.ge.f32.partialorder %v1207, 0.0
    %vm1462 = vcmp.ge.f32.partialorder %v1210, 0.0
    %vm1463 = vcmp.ge.f32.partialorder %v1215, 0.0
    %vm1464 = vcmp.ge.f32.partialorder %v1218, 0.0
    %vm1465 = vcmp.ge.f32.partialorder %v1223, 0.0
    %vm1466 = vcmp.ge.f32.partialorder %v1226, 0.0
    %vm1467 = vcmp.ge.f32.partialorder %v1231, 0.0
    %vm1468 = vcmp.ge.f32.partialorder %v1234, 0.0
    %vm1469 = vcmp.ge.f32.partialorder %v1239, 0.0
    %vm1470 = vcmp.ge.f32.partialorder %v1242, 0.0
    %vm1471 = vcmp.ge.f32.partialorder %v1247, 0.0
    %vm1472 = vcmp.ge.f32.partialorder %v1250, 0.0
    %vm1473 = vcmp.ge.f32.partialorder %v1255, 0.0
    %vm1474 = vcmp.ge.f32.partialorder %v1258, 0.0
    %vm1475 = vcmp.ge.f32.partialorder %v1263, 0.0
    %vm1476 = vcmp.ge.f32.partialorder %v1266, 0.0
    %vm1477 = vcmp.ge.f32.partialorder %v1271, 0.0
    %vm1478 = vcmp.ge.f32.partialorder %v1274, 0.0
    %vm1479 = vcmp.ge.f32.partialorder %v1279, 0.0
    %vm1480 = vcmp.ge.f32.partialorder %v1282, 0.0
    %vm1481 = vcmp.ge.f32.partialorder %v1287, 0.0
    %vm1482 = vcmp.ge.f32.partialorder %v1290, 0.0
    %vm1483 = vcmp.ge.f32.partialorder %v1295, 0.0
    %vm1484 = vcmp.ge.f32.partialorder %v1298, 0.0
    %vm1485 = vcmp.ge.f32.partialorder %v1303, 0.0
    %vm1486 = vcmp.ge.f32.partialorder %v1306, 0.0
    %vm1487 = vcmp.ge.f32.partialorder %v1311, 0.0
    %vm1488 = vcmp.ge.f32.partialorder %v1314, 0.0
    %vm1489 = vcmp.ge.f32.partialorder %v1319, 0.0
    %vm1490 = vcmp.ge.f32.partialorder %v1322, 0.0
    %vm1491 = vcmp.ge.f32.partialorder %v1327, 0.0
    %vm1492 = vcmp.ge.f32.partialorder %v1330, 0.0
    %vm1493 = vcmp.ge.f32.partialorder %v1335, 0.0
    %vm1494 = vcmp.ge.f32.partialorder %v1338, 0.0
    %vm1495 = vcmp.ge.f32.partialorder %v1343, 0.0
    %vm1496 = vcmp.ge.f32.partialorder %v1346, 0.0
    %vm1497 = vcmp.ge.f32.partialorder %v1351, 0.0
    %vm1498 = vcmp.ge.f32.partialorder %v1354, 0.0
    %vm1499 = vcmp.ge.f32.partialorder %v1359, 0.0
    %vm1500 = vcmp.ge.f32.partialorder %v1362, 0.0
    %vm1501 = vcmp.ge.f32.partialorder %v1367, 0.0
    %vm1502 = vcmp.ge.f32.partialorder %v1370, 0.0
    %vm1503 = vcmp.ge.f32.partialorder %v1375, 0.0
    %vm1504 = vcmp.ge.f32.partialorder %v1378, 0.0
    %vm1505 = vcmp.ge.f32.partialorder %v1383, 0.0
    %vm1506 = vcmp.ge.f32.partialorder %v1386, 0.0
    %vm1507 = vcmp.ge.f32.partialorder %v1391, 0.0
    %vm1508 = vcmp.ge.f32.partialorder %v1394, 0.0
    %vm1509 = vcmp.ge.f32.partialorder %v1399, 0.0
    %vm1510 = vcmp.ge.f32.partialorder %v1402, 0.0
    %vm1511 = vcmp.ge.f32.partialorder %v1407, 0.0
    %vm1512 = vcmp.ge.f32.partialorder %v1410, 0.0
    %vm1513 = vcmp.ge.f32.partialorder %v1415, 0.0
    %vm1514 = vcmp.ge.f32.partialorder %v1418, 0.0
    %vm1515 = vcmp.ge.f32.partialorder %v1423, 0.0
    %vm1516 = vcmp.ge.f32.partialorder %v1426, 0.0
    %vm1517 = vcmp.ge.f32.partialorder %v1431, 0.0
    %vm1518 = vcmp.ge.f32.partialorder %v1434, 0.0
    %vm1519 = vcmp.ge.f32.partialorder %v1439, 0.0
    %vm1520 = vcmp.ge.f32.partialorder %v1442, 0.0
    %vm1521 = vcmp.ge.f32.partialorder %v1447, 0.0
    %vm1522 = vcmp.ge.f32.partialorder %v1450, 0.0
    %vm1523 = vcmp.ge.f32.partialorder %v1455, 0.0
    %vm1524 = vcmp.ge.f32.partialorder %v1458, 0.0
    %v1525 = vld [vmem:[#allocation3] sm:$0x1]
    %v1527 = vlaneseq
    %v1528 = vshrl.u32 %v1527, 7
    %v1529 = vsub.s32 0, %v1528
    %v1530 = vrot.slane %v1525, %v1529
    %v1532 = vmul.f32 %v1530, %v1207
    %v1533 = vmul.f32 %v1530, %v1210
    %v1534 = vmul.f32 %v1530, %v1215
    %v1535 = vmul.f32 %v1530, %v1218
    %v1536 = vmul.f32 %v1530, %v1223
    %v1537 = vmul.f32 %v1530, %v1226
    %v1538 = vmul.f32 %v1530, %v1231
    %v1539 = vmul.f32 %v1530, %v1234
    %v1540 = vmul.f32 %v1530, %v1239
    %v1541 = vmul.f32 %v1530, %v1242
    %v1542 = vmul.f32 %v1530, %v1247
    %v1543 = vmul.f32 %v1530, %v1250
    %v1544 = vmul.f32 %v1530, %v1255
    %v1545 = vmul.f32 %v1530, %v1258
    %v1546 = vmul.f32 %v1530, %v1263
    %v1547 = vmul.f32 %v1530, %v1266
    %v1548 = vmul.f32 %v1530, %v1271
    %v1549 = vmul.f32 %v1530, %v1274
    %v1550 = vmul.f32 %v1530, %v1279
    %v1551 = vmul.f32 %v1530, %v1282
    %v1552 = vmul.f32 %v1530, %v1287
    %v1553 = vmul.f32 %v1530, %v1290
    %v1554 = vmul.f32 %v1530, %v1295
    %v1555 = vmul.f32 %v1530, %v1298
    %v1556 = vmul.f32 %v1530, %v1303
    %v1557 = vmul.f32 %v1530, %v1306
    %v1558 = vmul.f32 %v1530, %v1311
    %v1559 = vmul.f32 %v1530, %v1314
    %v1560 = vmul.f32 %v1530, %v1319
    %v1561 = vmul.f32 %v1530, %v1322
    %v1562 = vmul.f32 %v1530, %v1327
    %v1563 = vmul.f32 %v1530, %v1330
    %v1564 = vmul.f32 %v1530, %v1335
    %v1565 = vmul.f32 %v1530, %v1338
    %v1566 = vmul.f32 %v1530, %v1343
    %v1567 = vmul.f32 %v1530, %v1346
    %v1568 = vmul.f32 %v1530, %v1351
    %v1569 = vmul.f32 %v1530, %v1354
    %v1570 = vmul.f32 %v1530, %v1359
    %v1571 = vmul.f32 %v1530, %v1362
    %v1572 = vmul.f32 %v1530, %v1367
    %v1573 = vmul.f32 %v1530, %v1370
    %v1574 = vmul.f32 %v1530, %v1375
    %v1575 = vmul.f32 %v1530, %v1378
    %v1576 = vmul.f32 %v1530, %v1383
    %v1577 = vmul.f32 %v1530, %v1386
    %v1578 = vmul.f32 %v1530, %v1391
    %v1579 = vmul.f32 %v1530, %v1394
    %v1580 = vmul.f32 %v1530, %v1399
    %v1581 = vmul.f32 %v1530, %v1402
    %v1582 = vmul.f32 %v1530, %v1407
    %v1583 = vmul.f32 %v1530, %v1410
    %v1584 = vmul.f32 %v1530, %v1415
    %v1585 = vmul.f32 %v1530, %v1418
    %v1586 = vmul.f32 %v1530, %v1423
    %v1587 = vmul.f32 %v1530, %v1426
    %v1588 = vmul.f32 %v1530, %v1431
    %v1589 = vmul.f32 %v1530, %v1434
    %v1590 = vmul.f32 %v1530, %v1439
    %v1591 = vmul.f32 %v1530, %v1442
    %v1592 = vmul.f32 %v1530, %v1447
    %v1593 = vmul.f32 %v1530, %v1450
    %v1594 = vmul.f32 %v1530, %v1455
    %v1595 = vmul.f32 %v1530, %v1458
    %v1596 = vsel %vm1461, %v1207, %v1532
    %v1597 = vsel %vm1462, %v1210, %v1533
    %v1598 = vsel %vm1463, %v1215, %v1534
    %v1599 = vsel %vm1464, %v1218, %v1535
    %v1600 = vsel %vm1465, %v1223, %v1536
    %v1601 = vsel %vm1466, %v1226, %v1537
    %v1602 = vsel %vm1467, %v1231, %v1538
    %v1603 = vsel %vm1468, %v1234, %v1539
    %v1604 = vsel %vm1469, %v1239, %v1540
    %v1605 = vsel %vm1470, %v1242, %v1541
    %v1606 = vsel %vm1471, %v1247, %v1542
    %v1607 = vsel %vm1472, %v1250, %v1543
    %v1608 = vsel %vm1473, %v1255, %v1544
    %v1609 = vsel %vm1474, %v1258, %v1545
    %v1610 = vsel %vm1475, %v1263, %v1546
    %v1611 = vsel %vm1476, %v1266, %v1547
    %v1612 = vsel %vm1477, %v1271, %v1548
    %v1613 = vsel %vm1478, %v1274, %v1549
    %v1614 = vsel %vm1479, %v1279, %v1550
    %v1615 = vsel %vm1480, %v1282, %v1551
    %v1616 = vsel %vm1481, %v1287, %v1552
    %v1617 = vsel %vm1482, %v1290, %v1553
    %v1618 = vsel %vm1483, %v1295, %v1554
    %v1619 = vsel %vm1484, %v1298, %v1555
    %v1620 = vsel %vm1485, %v1303, %v1556
    %v1621 = vsel %vm1486, %v1306, %v1557
    %v1622 = vsel %vm1487, %v1311, %v1558
    %v1623 = vsel %vm1488, %v1314, %v1559
    %v1624 = vsel %vm1489, %v1319, %v1560
    %v1625 = vsel %vm1490, %v1322, %v1561
    %v1626 = vsel %vm1491, %v1327, %v1562
    %v1627 = vsel %vm1492, %v1330, %v1563
    %v1628 = vsel %vm1493, %v1335, %v1564
    %v1629 = vsel %vm1494, %v1338, %v1565
    %v1630 = vsel %vm1495, %v1343, %v1566
    %v1631 = vsel %vm1496, %v1346, %v1567
    %v1632 = vsel %vm1497, %v1351, %v1568
    %v1633 = vsel %vm1498, %v1354, %v1569
    %v1634 = vsel %vm1499, %v1359, %v1570
    %v1635 = vsel %vm1500, %v1362, %v1571
    %v1636 = vsel %vm1501, %v1367, %v1572
    %v1637 = vsel %vm1502, %v1370, %v1573
    %v1638 = vsel %vm1503, %v1375, %v1574
    %v1639 = vsel %vm1504, %v1378, %v1575
    %v1640 = vsel %vm1505, %v1383, %v1576
    %v1641 = vsel %vm1506, %v1386, %v1577
    %v1642 = vsel %vm1507, %v1391, %v1578
    %v1643 = vsel %vm1508, %v1394, %v1579
    %v1644 = vsel %vm1509, %v1399, %v1580
    %v1645 = vsel %vm1510, %v1402, %v1581
    %v1646 = vsel %vm1511, %v1407, %v1582
    %v1647 = vsel %vm1512, %v1410, %v1583
    %v1648 = vsel %vm1513, %v1415, %v1584
    %v1649 = vsel %vm1514, %v1418, %v1585
    %v1650 = vsel %vm1515, %v1423, %v1586
    %v1651 = vsel %vm1516, %v1426, %v1587
    %v1652 = vsel %vm1517, %v1431, %v1588
    %v1653 = vsel %vm1518, %v1434, %v1589
    %v1654 = vsel %vm1519, %v1439, %v1590
    %v1655 = vsel %vm1520, %v1442, %v1591
    %v1656 = vsel %vm1521, %v1447, %v1592
    %v1657 = vsel %vm1522, %v1450, %v1593
    %v1658 = vsel %vm1523, %v1455, %v1594
    %v1659 = vsel %vm1524, %v1458, %v1595
    %v1660 = vld [vmem:[%s2] sm:$0xf]
    %v1661 = vld [vmem:[%s2 + $0x4] sm:$0xf]
    %v1662 = vld [vmem:[%s2 + $0x8] sm:$0xf]
    %v1663 = vld [vmem:[%s2 + $0xc] sm:$0xf]
    %v1664 = vld [vmem:[%s2 + $0x10] sm:$0xf]
    %v1665 = vld [vmem:[%s2 + $0x14] sm:$0xf]
    %v1666 = vld [vmem:[%s2 + $0x18] sm:$0xf]
    %v1667 = vld [vmem:[%s2 + $0x1c] sm:$0xf]
    %v1668 = vld [vmem:[%s2 + $0x20] sm:$0xf]
    %v1669 = vld [vmem:[%s2 + $0x24] sm:$0xf]
    %v1670 = vld [vmem:[%s2 + $0x28] sm:$0xf]
    %v1671 = vld [vmem:[%s2 + $0x2c] sm:$0xf]
    %v1672 = vld [vmem:[%s2 + $0x30] sm:$0xf]
    %v1673 = vld [vmem:[%s2 + $0x34] sm:$0xf]
    %v1674 = vld [vmem:[%s2 + $0x38] sm:$0xf]
    %v1675 = vld [vmem:[%s2 + $0x3c] sm:$0xf]
    %v1676 = vld [vmem:[%s2 + $0x40] sm:$0xf]
    %v1677 = vld [vmem:[%s2 + $0x44] sm:$0xf]
    %v1678 = vld [vmem:[%s2 + $0x48] sm:$0xf]
    %v1679 = vld [vmem:[%s2 + $0x4c] sm:$0xf]
    %v1680 = vld [vmem:[%s2 + $0x50] sm:$0xf]
    %v1681 = vld [vmem:[%s2 + $0x54] sm:$0xf]
    %v1682 = vld [vmem:[%s2 + $0x58] sm:$0xf]
    %v1683 = vld [vmem:[%s2 + $0x5c] sm:$0xf]
    %v1684 = vld [vmem:[%s2 + $0x60] sm:$0xf]
    %v1685 = vld [vmem:[%s2 + $0x64] sm:$0xf]
    %v1686 = vld [vmem:[%s2 + $0x68] sm:$0xf]
    %v1687 = vld [vmem:[%s2 + $0x6c] sm:$0xf]
    %v1688 = vld [vmem:[%s2 + $0x70] sm:$0xf]
    %v1689 = vld [vmem:[%s2 + $0x74] sm:$0xf]
    %v1690 = vld [vmem:[%s2 + $0x78] sm:$0xf]
    %v1691 = vld [vmem:[%s2 + $0x7c] sm:$0xf]
    %v1692 = vld [vmem:[%s2 + $0x80] sm:$0xf]
    %v1693 = vld [vmem:[%s2 + $0x84] sm:$0xf]
    %v1694 = vld [vmem:[%s2 + $0x88] sm:$0xf]
    %v1695 = vld [vmem:[%s2 + $0x8c] sm:$0xf]
    %v1696 = vld [vmem:[%s2 + $0x90] sm:$0xf]
    %v1697 = vld [vmem:[%s2 + $0x94] sm:$0xf]
    %v1698 = vld [vmem:[%s2 + $0x98] sm:$0xf]
    %v1699 = vld [vmem:[%s2 + $0x9c] sm:$0xf]
    %v1700 = vld [vmem:[%s2 + $0xa0] sm:$0xf]
    %v1701 = vld [vmem:[%s2 + $0xa4] sm:$0xf]
    %v1702 = vld [vmem:[%s2 + $0xa8] sm:$0xf]
    %v1703 = vld [vmem:[%s2 + $0xac] sm:$0xf]
    %v1704 = vld [vmem:[%s2 + $0xb0] sm:$0xf]
    %v1705 = vld [vmem:[%s2 + $0xb4] sm:$0xf]
    %v1706 = vld [vmem:[%s2 + $0xb8] sm:$0xf]
    %v1707 = vld [vmem:[%s2 + $0xbc] sm:$0xf]
    %v1708 = vld [vmem:[%s2 + $0xc0] sm:$0xf]
    %v1709 = vld [vmem:[%s2 + $0xc4] sm:$0xf]
    %v1710 = vld [vmem:[%s2 + $0xc8] sm:$0xf]
    %v1711 = vld [vmem:[%s2 + $0xcc] sm:$0xf]
    %v1712 = vld [vmem:[%s2 + $0xd0] sm:$0xf]
    %v1713 = vld [vmem:[%s2 + $0xd4] sm:$0xf]
    %v1714 = vld [vmem:[%s2 + $0xd8] sm:$0xf]
    %v1715 = vld [vmem:[%s2 + $0xdc] sm:$0xf]
    %v1716 = vld [vmem:[%s2 + $0xe0] sm:$0xf]
    %v1717 = vld [vmem:[%s2 + $0xe4] sm:$0xf]
    %v1718 = vld [vmem:[%s2 + $0xe8] sm:$0xf]
    %v1719 = vld [vmem:[%s2 + $0xec] sm:$0xf]
    %v1720 = vld [vmem:[%s2 + $0xf0] sm:$0xf]
    %v1721 = vld [vmem:[%s2 + $0xf4] sm:$0xf]
    %v1722 = vld [vmem:[%s2 + $0xf8] sm:$0xf]
    %v1723 = vld [vmem:[%s2 + $0xfc] sm:$0xf]
    %v1724 = vunpack.c.l.bf16 %v1660
    %v1725 = vunpack.c.l.bf16 %v1661
    %v1726 = vunpack.c.l.bf16 %v1662
    %v1727 = vunpack.c.l.bf16 %v1663
    %v1728 = vunpack.c.l.bf16 %v1664
    %v1729 = vunpack.c.l.bf16 %v1665
    %v1730 = vunpack.c.l.bf16 %v1666
    %v1731 = vunpack.c.l.bf16 %v1667
    %v1732 = vunpack.c.l.bf16 %v1668
    %v1733 = vunpack.c.l.bf16 %v1669
    %v1734 = vunpack.c.l.bf16 %v1670
    %v1735 = vunpack.c.l.bf16 %v1671
    %v1736 = vunpack.c.l.bf16 %v1672
    %v1737 = vunpack.c.l.bf16 %v1673
    %v1738 = vunpack.c.l.bf16 %v1674
    %v1739 = vunpack.c.l.bf16 %v1675
    %v1740 = vunpack.c.l.bf16 %v1676
    %v1741 = vunpack.c.l.bf16 %v1677
    %v1742 = vunpack.c.l.bf16 %v1678
    %v1743 = vunpack.c.l.bf16 %v1679
    %v1744 = vunpack.c.l.bf16 %v1680
    %v1745 = vunpack.c.l.bf16 %v1681
    %v1746 = vunpack.c.l.bf16 %v1682
    %v1747 = vunpack.c.l.bf16 %v1683
    %v1748 = vunpack.c.l.bf16 %v1684
    %v1749 = vunpack.c.l.bf16 %v1685
    %v1750 = vunpack.c.l.bf16 %v1686
    %v1751 = vunpack.c.l.bf16 %v1687
    %v1752 = vunpack.c.l.bf16 %v1688
    %v1753 = vunpack.c.l.bf16 %v1689
    %v1754 = vunpack.c.l.bf16 %v1690
    %v1755 = vunpack.c.l.bf16 %v1691
    %v1756 = vunpack.c.l.bf16 %v1692
    %v1757 = vunpack.c.l.bf16 %v1693
    %v1758 = vunpack.c.l.bf16 %v1694
    %v1759 = vunpack.c.l.bf16 %v1695
    %v1760 = vunpack.c.l.bf16 %v1696
    %v1761 = vunpack.c.l.bf16 %v1697
    %v1762 = vunpack.c.l.bf16 %v1698
    %v1763 = vunpack.c.l.bf16 %v1699
    %v1764 = vunpack.c.l.bf16 %v1700
    %v1765 = vunpack.c.l.bf16 %v1701
    %v1766 = vunpack.c.l.bf16 %v1702
    %v1767 = vunpack.c.l.bf16 %v1703
    %v1768 = vunpack.c.l.bf16 %v1704
    %v1769 = vunpack.c.l.bf16 %v1705
    %v1770 = vunpack.c.l.bf16 %v1706
    %v1771 = vunpack.c.l.bf16 %v1707
    %v1772 = vunpack.c.l.bf16 %v1708
    %v1773 = vunpack.c.l.bf16 %v1709
    %v1774 = vunpack.c.l.bf16 %v1710
    %v1775 = vunpack.c.l.bf16 %v1711
    %v1776 = vunpack.c.l.bf16 %v1712
    %v1777 = vunpack.c.l.bf16 %v1713
    %v1778 = vunpack.c.l.bf16 %v1714
    %v1779 = vunpack.c.l.bf16 %v1715
    %v1780 = vunpack.c.l.bf16 %v1716
    %v1781 = vunpack.c.l.bf16 %v1717
    %v1782 = vunpack.c.l.bf16 %v1718
    %v1783 = vunpack.c.l.bf16 %v1719
    %v1784 = vunpack.c.l.bf16 %v1720
    %v1785 = vunpack.c.l.bf16 %v1721
    %v1786 = vunpack.c.l.bf16 %v1722
    %v1787 = vunpack.c.l.bf16 %v1723
    %v1788 = vsub.f32 %v1596, %v1724
    %v1789 = vsub.f32 %v1597, %v1725
    %v1790 = vsub.f32 %v1598, %v1726
    %v1791 = vsub.f32 %v1599, %v1727
    %v1792 = vsub.f32 %v1600, %v1728
    %v1793 = vsub.f32 %v1601, %v1729
    %v1794 = vsub.f32 %v1602, %v1730
    %v1795 = vsub.f32 %v1603, %v1731
    %v1796 = vsub.f32 %v1604, %v1732
    %v1797 = vsub.f32 %v1605, %v1733
    %v1798 = vsub.f32 %v1606, %v1734
    %v1799 = vsub.f32 %v1607, %v1735
    %v1800 = vsub.f32 %v1608, %v1736
    %v1801 = vsub.f32 %v1609, %v1737
    %v1802 = vsub.f32 %v1610, %v1738
    %v1803 = vsub.f32 %v1611, %v1739
    %v1804 = vsub.f32 %v1612, %v1740
    %v1805 = vsub.f32 %v1613, %v1741
    %v1806 = vsub.f32 %v1614, %v1742
    %v1807 = vsub.f32 %v1615, %v1743
    %v1808 = vsub.f32 %v1616, %v1744
    %v1809 = vsub.f32 %v1617, %v1745
    %v1810 = vsub.f32 %v1618, %v1746
    %v1811 = vsub.f32 %v1619, %v1747
    %v1812 = vsub.f32 %v1620, %v1748
    %v1813 = vsub.f32 %v1621, %v1749
    %v1814 = vsub.f32 %v1622, %v1750
    %v1815 = vsub.f32 %v1623, %v1751
    %v1816 = vsub.f32 %v1624, %v1752
    %v1817 = vsub.f32 %v1625, %v1753
    %v1818 = vsub.f32 %v1626, %v1754
    %v1819 = vsub.f32 %v1627, %v1755
    %v1820 = vsub.f32 %v1628, %v1756
    %v1821 = vsub.f32 %v1629, %v1757
    %v1822 = vsub.f32 %v1630, %v1758
    %v1823 = vsub.f32 %v1631, %v1759
    %v1824 = vsub.f32 %v1632, %v1760
    %v1825 = vsub.f32 %v1633, %v1761
    %v1826 = vsub.f32 %v1634, %v1762
    %v1827 = vsub.f32 %v1635, %v1763
    %v1828 = vsub.f32 %v1636, %v1764
    %v1829 = vsub.f32 %v1637, %v1765
    %v1830 = vsub.f32 %v1638, %v1766
    %v1831 = vsub.f32 %v1639, %v1767
    %v1832 = vsub.f32 %v1640, %v1768
    %v1833 = vsub.f32 %v1641, %v1769
    %v1834 = vsub.f32 %v1642, %v1770
    %v1835 = vsub.f32 %v1643, %v1771
    %v1836 = vsub.f32 %v1644, %v1772
    %v1837 = vsub.f32 %v1645, %v1773
    %v1838 = vsub.f32 %v1646, %v1774
    %v1839 = vsub.f32 %v1647, %v1775
    %v1840 = vsub.f32 %v1648, %v1776
    %v1841 = vsub.f32 %v1649, %v1777
    %v1842 = vsub.f32 %v1650, %v1778
    %v1843 = vsub.f32 %v1651, %v1779
    %v1844 = vsub.f32 %v1652, %v1780
    %v1845 = vsub.f32 %v1653, %v1781
    %v1846 = vsub.f32 %v1654, %v1782
    %v1847 = vsub.f32 %v1655, %v1783
    %v1848 = vsub.f32 %v1656, %v1784
    %v1849 = vsub.f32 %v1657, %v1785
    %v1850 = vsub.f32 %v1658, %v1786
    %v1851 = vsub.f32 %v1659, %v1787
    %v1852 = vpack.c.bf16 %v1789, %v1788
    %v1853 = vpack.c.bf16 %v1791, %v1790
    %v1854 = vpack.c.bf16 %v1793, %v1792
    %v1855 = vpack.c.bf16 %v1795, %v1794
    %v1856 = vpack.c.bf16 %v1797, %v1796
    %v1857 = vpack.c.bf16 %v1799, %v1798
    %v1858 = vpack.c.bf16 %v1801, %v1800
    %v1859 = vpack.c.bf16 %v1803, %v1802
    %v1860 = vpack.c.bf16 %v1805, %v1804
    %v1861 = vpack.c.bf16 %v1807, %v1806
    %v1862 = vpack.c.bf16 %v1809, %v1808
    %v1863 = vpack.c.bf16 %v1811, %v1810
    %v1864 = vpack.c.bf16 %v1813, %v1812
    %v1865 = vpack.c.bf16 %v1815, %v1814
    %v1866 = vpack.c.bf16 %v1817, %v1816
    %v1867 = vpack.c.bf16 %v1819, %v1818
    %v1868 = vpack.c.bf16 %v1821, %v1820
    %v1869 = vpack.c.bf16 %v1823, %v1822
    %v1870 = vpack.c.bf16 %v1825, %v1824
    %v1871 = vpack.c.bf16 %v1827, %v1826
    %v1872 = vpack.c.bf16 %v1829, %v1828
    %v1873 = vpack.c.bf16 %v1831, %v1830
    %v1874 = vpack.c.bf16 %v1833, %v1832
    %v1875 = vpack.c.bf16 %v1835, %v1834
    %v1876 = vpack.c.bf16 %v1837, %v1836
    %v1877 = vpack.c.bf16 %v1839, %v1838
    %v1878 = vpack.c.bf16 %v1841, %v1840
    %v1879 = vpack.c.bf16 %v1843, %v1842
    %v1880 = vpack.c.bf16 %v1845, %v1844
    %v1881 = vpack.c.bf16 %v1847, %v1846
    %v1882 = vpack.c.bf16 %v1849, %v1848
    %v1883 = vpack.c.bf16 %v1851, %v1850
    %v1916 = vunpack.c.l.b16 %v1852
    %v1917 = vunpack.c.h.b16 %v1852
    %v1918 = vunpack.c.l.b16 %v1853
    %v1919 = vunpack.c.h.b16 %v1853
    %v1920 = vunpack.c.l.b16 %v1854
    %v1921 = vunpack.c.h.b16 %v1854
    %v1922 = vunpack.c.l.b16 %v1855
    %v1923 = vunpack.c.h.b16 %v1855
    %v1924 = vunpack.c.l.b16 %v1856
    %v1925 = vunpack.c.h.b16 %v1856
    %v1926 = vunpack.c.l.b16 %v1857
    %v1927 = vunpack.c.h.b16 %v1857
    %v1928 = vunpack.c.l.b16 %v1858
    %v1929 = vunpack.c.h.b16 %v1858
    %v1930 = vunpack.c.l.b16 %v1859
    %v1931 = vunpack.c.h.b16 %v1859
    %v1932 = vunpack.c.l.b16 %v1860
    %v1933 = vunpack.c.h.b16 %v1860
    %v1934 = vunpack.c.l.b16 %v1861
    %v1935 = vunpack.c.h.b16 %v1861
    %v1936 = vunpack.c.l.b16 %v1862
    %v1937 = vunpack.c.h.b16 %v1862
    %v1938 = vunpack.c.l.b16 %v1863
    %v1939 = vunpack.c.h.b16 %v1863
    %v1940 = vunpack.c.l.b16 %v1864
    %v1941 = vunpack.c.h.b16 %v1864
    %v1942 = vunpack.c.l.b16 %v1865
    %v1943 = vunpack.c.h.b16 %v1865
    %v1944 = vunpack.c.l.b16 %v1866
    %v1945 = vunpack.c.h.b16 %v1866
    %v1946 = vunpack.c.l.b16 %v1867
    %v1947 = vunpack.c.h.b16 %v1867
    %v1948 = vunpack.c.l.b16 %v1868
    %v1949 = vunpack.c.h.b16 %v1868
    %v1950 = vunpack.c.l.b16 %v1869
    %v1951 = vunpack.c.h.b16 %v1869
    %v1952 = vunpack.c.l.b16 %v1870
    %v1953 = vunpack.c.h.b16 %v1870
    %v1954 = vunpack.c.l.b16 %v1871
    %v1955 = vunpack.c.h.b16 %v1871
    %v1956 = vunpack.c.l.b16 %v1872
    %v1957 = vunpack.c.h.b16 %v1872
    %v1958 = vunpack.c.l.b16 %v1873
    %v1959 = vunpack.c.h.b16 %v1873
    %v1960 = vunpack.c.l.b16 %v1874
    %v1961 = vunpack.c.h.b16 %v1874
    %v1962 = vunpack.c.l.b16 %v1875
    %v1963 = vunpack.c.h.b16 %v1875
    %v1964 = vunpack.c.l.b16 %v1876
    %v1965 = vunpack.c.h.b16 %v1876
    %v1966 = vunpack.c.l.b16 %v1877
    %v1967 = vunpack.c.h.b16 %v1877
    %v1968 = vunpack.c.l.b16 %v1878
    %v1969 = vunpack.c.h.b16 %v1878
    %v1970 = vunpack.c.l.b16 %v1879
    %v1971 = vunpack.c.h.b16 %v1879
    %v1972 = vunpack.c.l.b16 %v1880
    %v1973 = vunpack.c.h.b16 %v1880
    %v1974 = vunpack.c.l.b16 %v1881
    %v1975 = vunpack.c.h.b16 %v1881
    %v1976 = vunpack.c.l.b16 %v1882
    %v1977 = vunpack.c.h.b16 %v1882
    %v1978 = vunpack.c.l.b16 %v1883
    %v1979 = vunpack.c.h.b16 %v1883
    %v1980 = vpack.c.b16 %v1916, %v1916
    %v1981 = vpack.c.b16 %v1917, %v1917
    %v1982 = vpack.c.b16 %v1918, %v1918
    %v1983 = vpack.c.b16 %v1919, %v1919
    %v1984 = vpack.c.b16 %v1920, %v1920
    %v1985 = vpack.c.b16 %v1921, %v1921
    %v1986 = vpack.c.b16 %v1922, %v1922
    %v1987 = vpack.c.b16 %v1923, %v1923
    %v1988 = vpack.c.b16 %v1924, %v1924
    %v1989 = vpack.c.b16 %v1925, %v1925
    %v1990 = vpack.c.b16 %v1926, %v1926
    %v1991 = vpack.c.b16 %v1927, %v1927
    %v1992 = vpack.c.b16 %v1928, %v1928
    %v1993 = vpack.c.b16 %v1929, %v1929
    %v1994 = vpack.c.b16 %v1930, %v1930
    %v1995 = vpack.c.b16 %v1931, %v1931
    %v1996 = vpack.c.b16 %v1932, %v1932
    %v1997 = vpack.c.b16 %v1933, %v1933
    %v1998 = vpack.c.b16 %v1934, %v1934
    %v1999 = vpack.c.b16 %v1935, %v1935
    %v2000 = vpack.c.b16 %v1936, %v1936
    %v2001 = vpack.c.b16 %v1937, %v1937
    %v2002 = vpack.c.b16 %v1938, %v1938
    %v2003 = vpack.c.b16 %v1939, %v1939
    %v2004 = vpack.c.b16 %v1940, %v1940
    %v2005 = vpack.c.b16 %v1941, %v1941
    %v2006 = vpack.c.b16 %v1942, %v1942
    %v2007 = vpack.c.b16 %v1943, %v1943
    %v2008 = vpack.c.b16 %v1944, %v1944
    %v2009 = vpack.c.b16 %v1945, %v1945
    %v2010 = vpack.c.b16 %v1946, %v1946
    %v2011 = vpack.c.b16 %v1947, %v1947
    %v2012 = vpack.c.b16 %v1948, %v1948
    %v2013 = vpack.c.b16 %v1949, %v1949
    %v2014 = vpack.c.b16 %v1950, %v1950
    %v2015 = vpack.c.b16 %v1951, %v1951
    %v2016 = vpack.c.b16 %v1952, %v1952
    %v2017 = vpack.c.b16 %v1953, %v1953
    %v2018 = vpack.c.b16 %v1954, %v1954
    %v2019 = vpack.c.b16 %v1955, %v1955
    %v2020 = vpack.c.b16 %v1956, %v1956
    %v2021 = vpack.c.b16 %v1957, %v1957
    %v2022 = vpack.c.b16 %v1958, %v1958
    %v2023 = vpack.c.b16 %v1959, %v1959
    %v2024 = vpack.c.b16 %v1960, %v1960
    %v2025 = vpack.c.b16 %v1961, %v1961
    %v2026 = vpack.c.b16 %v1962, %v1962
    %v2027 = vpack.c.b16 %v1963, %v1963
    %v2028 = vpack.c.b16 %v1964, %v1964
    %v2029 = vpack.c.b16 %v1965, %v1965
    %v2030 = vpack.c.b16 %v1966, %v1966
    %v2031 = vpack.c.b16 %v1967, %v1967
    %v2032 = vpack.c.b16 %v1968, %v1968
    %v2033 = vpack.c.b16 %v1969, %v1969
    %v2034 = vpack.c.b16 %v1970, %v1970
    %v2035 = vpack.c.b16 %v1971, %v1971
    %v2036 = vpack.c.b16 %v1972, %v1972
    %v2037 = vpack.c.b16 %v1973, %v1973
    %v2038 = vpack.c.b16 %v1974, %v1974
    %v2039 = vpack.c.b16 %v1975, %v1975
    %v2040 = vpack.c.b16 %v1976, %v1976
    %v2041 = vpack.c.b16 %v1977, %v1977
    %v2042 = vpack.c.b16 %v1978, %v1978
    %v2043 = vpack.c.b16 %v1979, %v1979
    %vm2108 = vcmask 60416
    %2109 = vst.msk [vmem:[%s5] sm:$0xf] %vm2108, %v1980
    %2110 = vst.msk [vmem:[%s5 + $0x4] sm:$0xf] %vm2108, %v1981
    %2111 = vst.msk [vmem:[%s5 + $0x8] sm:$0xf] %vm2108, %v1982
    %2112 = vst.msk [vmem:[%s5 + $0xc] sm:$0xf] %vm2108, %v1983
    %2113 = vst.msk [vmem:[%s5 + $0x10] sm:$0xf] %vm2108, %v1984
    %2114 = vst.msk [vmem:[%s5 + $0x14] sm:$0xf] %vm2108, %v1985
    %2115 = vst.msk [vmem:[%s5 + $0x18] sm:$0xf] %vm2108, %v1986
    %2116 = vst.msk [vmem:[%s5 + $0x1c] sm:$0xf] %vm2108, %v1987
    %2117 = vst.msk [vmem:[%s5 + $0x20] sm:$0xf] %vm2108, %v1988
    %2118 = vst.msk [vmem:[%s5 + $0x24] sm:$0xf] %vm2108, %v1989
    %2119 = vst.msk [vmem:[%s5 + $0x28] sm:$0xf] %vm2108, %v1990
    %2120 = vst.msk [vmem:[%s5 + $0x2c] sm:$0xf] %vm2108, %v1991
    %2121 = vst.msk [vmem:[%s5 + $0x30] sm:$0xf] %vm2108, %v1992
    %2122 = vst.msk [vmem:[%s5 + $0x34] sm:$0xf] %vm2108, %v1993
    %2123 = vst.msk [vmem:[%s5 + $0x38] sm:$0xf] %vm2108, %v1994
    %2124 = vst.msk [vmem:[%s5 + $0x3c] sm:$0xf] %vm2108, %v1995
    %2125 = vst.msk [vmem:[%s5 + $0x40] sm:$0xf] %vm2108, %v1996
    %2126 = vst.msk [vmem:[%s5 + $0x44] sm:$0xf] %vm2108, %v1997
    %2127 = vst.msk [vmem:[%s5 + $0x48] sm:$0xf] %vm2108, %v1998
    %2128 = vst.msk [vmem:[%s5 + $0x4c] sm:$0xf] %vm2108, %v1999
    %2129 = vst.msk [vmem:[%s5 + $0x50] sm:$0xf] %vm2108, %v2000
    %2130 = vst.msk [vmem:[%s5 + $0x54] sm:$0xf] %vm2108, %v2001
    %2131 = vst.msk [vmem:[%s5 + $0x58] sm:$0xf] %vm2108, %v2002
    %2132 = vst.msk [vmem:[%s5 + $0x5c] sm:$0xf] %vm2108, %v2003
    %2133 = vst.msk [vmem:[%s5 + $0x60] sm:$0xf] %vm2108, %v2004
    %2134 = vst.msk [vmem:[%s5 + $0x64] sm:$0xf] %vm2108, %v2005
    %2135 = vst.msk [vmem:[%s5 + $0x68] sm:$0xf] %vm2108, %v2006
    %2136 = vst.msk [vmem:[%s5 + $0x6c] sm:$0xf] %vm2108, %v2007
    %2137 = vst.msk [vmem:[%s5 + $0x70] sm:$0xf] %vm2108, %v2008
    %2138 = vst.msk [vmem:[%s5 + $0x74] sm:$0xf] %vm2108, %v2009
    %2139 = vst.msk [vmem:[%s5 + $0x78] sm:$0xf] %vm2108, %v2010
    %2140 = vst.msk [vmem:[%s5 + $0x7c] sm:$0xf] %vm2108, %v2011
    %2141 = vst.msk [vmem:[%s5 + $0x80] sm:$0xf] %vm2108, %v2012
    %2142 = vst.msk [vmem:[%s5 + $0x84] sm:$0xf] %vm2108, %v2013
    %2143 = vst.msk [vmem:[%s5 + $0x88] sm:$0xf] %vm2108, %v2014
    %2144 = vst.msk [vmem:[%s5 + $0x8c] sm:$0xf] %vm2108, %v2015
    %2145 = vst.msk [vmem:[%s5 + $0x90] sm:$0xf] %vm2108, %v2016
    %2146 = vst.msk [vmem:[%s5 + $0x94] sm:$0xf] %vm2108, %v2017
    %2147 = vst.msk [vmem:[%s5 + $0x98] sm:$0xf] %vm2108, %v2018
    %2148 = vst.msk [vmem:[%s5 + $0x9c] sm:$0xf] %vm2108, %v2019
    %2149 = vst.msk [vmem:[%s5 + $0xa0] sm:$0xf] %vm2108, %v2020
    %2150 = vst.msk [vmem:[%s5 + $0xa4] sm:$0xf] %vm2108, %v2021
    %2151 = vst.msk [vmem:[%s5 + $0xa8] sm:$0xf] %vm2108, %v2022
    %2152 = vst.msk [vmem:[%s5 + $0xac] sm:$0xf] %vm2108, %v2023
    %2153 = vst.msk [vmem:[%s5 + $0xb0] sm:$0xf] %vm2108, %v2024
    %2154 = vst.msk [vmem:[%s5 + $0xb4] sm:$0xf] %vm2108, %v2025
    %2155 = vst.msk [vmem:[%s5 + $0xb8] sm:$0xf] %vm2108, %v2026
    %2156 = vst.msk [vmem:[%s5 + $0xbc] sm:$0xf] %vm2108, %v2027
    %2157 = vst.msk [vmem:[%s5 + $0xc0] sm:$0xf] %vm2108, %v2028
    %2158 = vst.msk [vmem:[%s5 + $0xc4] sm:$0xf] %vm2108, %v2029
    %2159 = vst.msk [vmem:[%s5 + $0xc8] sm:$0xf] %vm2108, %v2030
    %2160 = vst.msk [vmem:[%s5 + $0xcc] sm:$0xf] %vm2108, %v2031
    %2161 = vst.msk [vmem:[%s5 + $0xd0] sm:$0xf] %vm2108, %v2032
    %2162 = vst.msk [vmem:[%s5 + $0xd4] sm:$0xf] %vm2108, %v2033
    %2163 = vst.msk [vmem:[%s5 + $0xd8] sm:$0xf] %vm2108, %v2034
    %2164 = vst.msk [vmem:[%s5 + $0xdc] sm:$0xf] %vm2108, %v2035
    %2165 = vst.msk [vmem:[%s5 + $0xe0] sm:$0xf] %vm2108, %v2036
    %2166 = vst.msk [vmem:[%s5 + $0xe4] sm:$0xf] %vm2108, %v2037
    %2167 = vst.msk [vmem:[%s5 + $0xe8] sm:$0xf] %vm2108, %v2038
    %2168 = vst.msk [vmem:[%s5 + $0xec] sm:$0xf] %vm2108, %v2039
    %2169 = vst.msk [vmem:[%s5 + $0xf0] sm:$0xf] %vm2108, %v2040
    %2170 = vst.msk [vmem:[%s5 + $0xf4] sm:$0xf] %vm2108, %v2041
    %2171 = vst.msk [vmem:[%s5 + $0xf8] sm:$0xf] %vm2108, %v2042
    %2172 = vst.msk [vmem:[%s5 + $0xfc] sm:$0xf] %vm2108, %v2043
    // Predicated region
    $region22: #{dense_projection_forward.11} parent=1 // pred_check
      _
    $region23: #{dense_projection_forward.11} parent=1 // pred_check_branch
      %2174 = sbr.rel (0) target = $region25
    $region24: #{dense_projection_forward.11} parent=1 // pred_region
      _
    $region25: #{dense_projection_forward.11} parent=1 // pred_fallthru
      _
    // Predicated region
    $region26: #{dense_projection_forward.11} parent=1 // pred_check
      _
    $region27: #{dense_projection_forward.11} parent=1 // pred_check_branch
      %2176 = sbr.rel (0) target = $region29
    $region28: #{dense_projection_forward.11} parent=1 // pred_region
      _
    $region29: #{dense_projection_forward.11} parent=1 // pred_fallthru
      _

</llo_original>
